<compile_context>
chip_gen: v7x
topology: tpu7x:2x2x1
jax: 0.10.0
libtpu: 0.0.40
codegen_flags: <defaults>
</compile_context>

<pallas_src>
import numpy as np
import jax
import jax.numpy as jnp
from jax.experimental import pallas as pl
from jax.experimental.pallas import tpu as pltpu

N_NEURONS = 32          # params.n_neurons ; x is square [n_neurons, n_neurons]
N_NODES = N_NEURONS
N_EDGES = 64


# ---------------------------------------------------------------------------
# Fused kernel: 4 propagates (gather -> message MLP -> scatter-add -> mlp2)
#               + mlp_3s head, all in VMEM, single dispatch.
# ---------------------------------------------------------------------------
def _relu(v):
    return jnp.maximum(v, 0.0)


def _lin(h, w, b):
    return jnp.dot(h, w, preferred_element_type=jnp.float32) + b


def _msg_mlp(h, p):     # Linear R Linear R Linear R Linear  (8 refs: w,b x4)
    h = _relu(_lin(h, p[0], p[1]))
    h = _relu(_lin(h, p[2], p[3]))
    h = _relu(_lin(h, p[4], p[5]))
    return _lin(h, p[6], p[7])


def _mlp3(h, p):        # Linear R Linear R Linear           (6 refs: w,b x3)
    h = _relu(_lin(h, p[0], p[1]))
    h = _relu(_lin(h, p[2], p[3]))
    return _lin(h, p[4], p[5])


def _fused_kernel(*refs):
    # ref layout: x, xt, g_src, g_dst, s_src, s_dst, <50 weight/bias refs>, out
    out_ref = refs[-1]
    x, xt, g_src, g_dst, s_src, s_dst = (r[...] for r in refs[:6])
    p = [r[...] for r in refs[6:-1]]

    fwd_tgt, fwd_src, fwd_upd = p[0:8],  p[8:16],  p[16:22]
    bwd_tgt, bwd_src, bwd_upd = p[22:30], p[30:38], p[38:44]
    head = p[44:50]

    def propagate(feat, g_i, g_j, s_agg, msg_p, upd_p):
        # gather x_i, x_j per edge as one-hot matmuls (MXU, not XLU gather)
        xi = jnp.dot(g_i, feat, preferred_element_type=jnp.float32)   # [E, N]
        xj = jnp.dot(g_j, feat, preferred_element_type=jnp.float32)   # [E, N]
        m = _msg_mlp(xi * xj, msg_p)                                  # [E, N]
        agg = jnp.dot(s_agg, m, preferred_element_type=jnp.float32)   # [Nn, N] scatter-add
        return _mlp3(agg, upd_p)                                      # [Nn, N]

    # forward flow (source_to_target): x_i = x[dst], x_j = x[src], aggregate at dst
    o1 = propagate(x,  g_dst, g_src, s_dst, fwd_tgt, fwd_upd)
    o2 = propagate(xt, g_dst, g_src, s_dst, fwd_src, fwd_upd)
    # backward flow (target_to_source): x_i = x[src], x_j = x[dst], aggregate at src
    o3 = propagate(x,  g_src, g_dst, s_src, bwd_tgt, bwd_upd)
    o4 = propagate(xt, g_src, g_dst, s_src, bwd_src, bwd_upd)

    # head: single K = 4*N matmul on the in-kernel concat
    c = jnp.concatenate([o1, o2, o3, o4], axis=1)                     # [Nn, 4N]
    out_ref[...] = _mlp3(c, head)                                     # [Nn, 1]


# ---------------------------------------------------------------------------
# Wrapper: build the two (S, G) one-hot pairs once, flatten weights, one call.
# ---------------------------------------------------------------------------
def outer_simplicial_forward(edge_index, x, params):
    # x.T path reuses node indices on the transposed matrix; only valid when
    # n_nodes == n_neurons (square x), exactly as in the PyTorch module.
    assert x.shape[0] == x.shape[1], "Outer_Simplicial requires square x"
    n_nodes, n = x.shape
    src, dst = edge_index[0], edge_index[1]

    # Two distinct scatter matrices (dst-agg for forward flow, src-agg for
    # backward flow); gather matrices are just their transposes.
    iota = jnp.arange(n_nodes, dtype=src.dtype)[:, None]
    s_src = (iota == src[None, :]).astype(jnp.float32)     # [Nn, E]
    s_dst = (iota == dst[None, :]).astype(jnp.float32)     # [Nn, E]
    g_src = s_src.T                                        # [E, Nn]
    g_dst = s_dst.T                                        # [E, Nn]
    xt = x.T

    flat = []
    for group in ("fwd3s", "bwd3s"):
        for mlp in ("mlp_targets", "mlp_sources", "mlp2"):
            for w, b in params[group][mlp]:
                flat += [w, b]
    for w, b in params["mlp_3s"]:
        flat += [w, b]

    ins = (x, xt, g_src, g_dst, s_src, s_dst, *flat)

    # Cost estimate (matmul flops only; relus are negligible).
    e = int(g_src.shape[0])
    mm = lambda m_, k_, n_: 2 * m_ * k_ * n_
    prop_flops = (2 * mm(e, n_nodes, n)
                  + mm(e, n, n) + mm(e, n, 10 * n) + mm(e, 10 * n, n) + mm(e, n, n)
                  + mm(n_nodes, e, n)
                  + mm(n_nodes, n, 10 * n) + mm(n_nodes, 10 * n, n) + mm(n_nodes, n, n))
    head_flops = mm(n_nodes, 4 * n, 10 * n) + mm(n_nodes, 10 * n, n) + mm(n_nodes, n, 1)
    flops = 4 * prop_flops + head_flops
    bytes_accessed = sum(int(np.prod(a.shape)) * 4 for a in ins) + n_nodes * 4

    return pl.pallas_call(
        _fused_kernel,
        out_shape=jax.ShapeDtypeStruct((n_nodes, 1), jnp.float32),
        in_specs=[pl.BlockSpec(memory_space=pltpu.MemorySpace.VMEM)] * len(ins),
        out_specs=pl.BlockSpec(memory_space=pltpu.MemorySpace.VMEM),
        cost_estimate=pl.CostEstimate(flops=flops, transcendentals=0,
                                      bytes_accessed=bytes_accessed),
    )(*ins)


# ---------------------------------------------------------------------------
# Parameter init (deterministic, kaiming-normal weights like the PyTorch module)
# ---------------------------------------------------------------------------
def init_linear(key, fan_in, fan_out):
    kw, kb = jax.random.split(key)
    w = jax.random.normal(kw, (fan_in, fan_out), jnp.float32) * np.sqrt(2.0 / fan_in)
    bound = 1.0 / np.sqrt(fan_in)
    b = jax.random.uniform(kb, (1, fan_out), jnp.float32, -bound, bound)
    return w, b


def init_msg_mlp(key, n):            # Linear(n,n) R Linear(n,10n) R Linear(10n,n) R Linear(n,n)
    ks = jax.random.split(key, 4)
    return [init_linear(ks[0], n, n), init_linear(ks[1], n, 10 * n),
            init_linear(ks[2], 10 * n, n), init_linear(ks[3], n, n)]


def init_upd_mlp(key, n):            # Linear(n,10n) R Linear(10n,n) R Linear(n,n)
    ks = jax.random.split(key, 3)
    return [init_linear(ks[0], n, 10 * n), init_linear(ks[1], 10 * n, n),
            init_linear(ks[2], n, n)]


def init_head_mlp(key, n):           # Linear(4n,10n) R Linear(10n,n) R Linear(n,1)
    ks = jax.random.split(key, 3)
    return [init_linear(ks[0], 4 * n, 10 * n), init_linear(ks[1], 10 * n, n),
            init_linear(ks[2], n, 1)]


def init_mpn_params(key, n):
    k1, k2, k3 = jax.random.split(key, 3)
    return {"mlp_sources": init_msg_mlp(k1, n),
            "mlp_targets": init_msg_mlp(k2, n),
            "mlp2": init_upd_mlp(k3, n)}


def init_params(key, n):
    k1, k2, k3 = jax.random.split(key, 3)
    return {"fwd3s": init_mpn_params(k1, n),
            "bwd3s": init_mpn_params(k2, n),
            "mlp_3s": init_head_mlp(k3, n)}


# ---------------------------------------------------------------------------
# Pure-JAX reference (for a correctness cross-check)
# ---------------------------------------------------------------------------
def _ref_propagate(x_i, x_j, agg_idx, n_nodes, msg_p, upd_p):
    (w1, b1), (w2, b2), (w3, b3), (w4, b4) = msg_p
    h = x_i * x_j
    h = jax.nn.relu(h @ w1 + b1)
    h = jax.nn.relu(h @ w2 + b2)
    h = jax.nn.relu(h @ w3 + b3)
    m = h @ w4 + b4
    agg = jax.ops.segment_sum(m, agg_idx, num_segments=n_nodes)
    (w5, b5), (w6, b6), (w7, b7) = upd_p
    g = jax.nn.relu(agg @ w5 + b5)
    g = jax.nn.relu(g @ w6 + b6)
    return g @ w7 + b7


def _ref_mpn(edge_index, x, params, flow):
    src, dst = edge_index[0], edge_index[1]
    if flow == "source_to_target":
        idx_j, idx_i, agg = src, dst, dst
    else:
        idx_j, idx_i, agg = dst, src, src
    o1 = _ref_propagate(x[idx_i], x[idx_j], agg, x.shape[0],
                        params["mlp_targets"], params["mlp2"])
    xt = x.T
    o2 = _ref_propagate(xt[idx_i], xt[idx_j], agg, xt.shape[0],
                        params["mlp_sources"], params["mlp2"])
    return o1, o2


def _ref_forward(edge_index, x, params):
    o1, o2 = _ref_mpn(edge_index, x, params["fwd3s"], "source_to_target")
    o3, o4 = _ref_mpn(edge_index, x, params["bwd3s"], "target_to_source")
    c = jnp.concatenate([o1, o2, o3, o4], axis=1)
    (wa, ba), (wb, bb), (wc, bc) = params["mlp_3s"]
    h = jax.nn.relu(c @ wa + ba)
    h = jax.nn.relu(h @ wb + bb)
    return h @ wc + bc


# ---------------------------------------------------------------------------
if __name__ == "__main__":
    key = jax.random.PRNGKey(0)
    k_edge_s, k_edge_d, k_x, k_par = jax.random.split(key, 4)

    src = jax.random.randint(k_edge_s, (N_EDGES,), 0, N_NODES, dtype=jnp.int32)
    dst = jax.random.randint(k_edge_d, (N_EDGES,), 0, N_NODES, dtype=jnp.int32)
    edge_index = jnp.stack([src, dst])                        # [2, E]
    x = jax.random.normal(k_x, (N_NODES, N_NEURONS), jnp.float32) * 0.5

    params = init_params(k_par, N_NEURONS)

    fwd = jax.jit(outer_simplicial_forward)
    dim3 = jax.block_until_ready(fwd(edge_index, x, params))
    assert dim3.shape == (N_NODES, 1)

    ref = jax.block_until_ready(_ref_forward(edge_index, x, params))
    np.testing.assert_allclose(np.asarray(dim3), np.asarray(ref), rtol=1e-2, atol=1e-2)

    print("KERNEL_OK")
</pallas_src>

<mosaic_0001>
module attributes {stable_mosaic.version = 11 : i64} {
  func.func @_fused_kernel(%arg0: memref<32x32xf32, #tpu.memory_space<vmem>>, %arg1: memref<32x32xf32, #tpu.memory_space<vmem>>, %arg2: memref<64x32xf32, #tpu.memory_space<vmem>>, %arg3: memref<64x32xf32, #tpu.memory_space<vmem>>, %arg4: memref<32x64xf32, #tpu.memory_space<vmem>>, %arg5: memref<32x64xf32, #tpu.memory_space<vmem>>, %arg6: memref<32x32xf32, #tpu.memory_space<vmem>>, %arg7: memref<1x32xf32, #tpu.memory_space<vmem>>, %arg8: memref<32x320xf32, #tpu.memory_space<vmem>>, %arg9: memref<1x320xf32, #tpu.memory_space<vmem>>, %arg10: memref<320x32xf32, #tpu.memory_space<vmem>>, %arg11: memref<1x32xf32, #tpu.memory_space<vmem>>, %arg12: memref<32x32xf32, #tpu.memory_space<vmem>>, %arg13: memref<1x32xf32, #tpu.memory_space<vmem>>, %arg14: memref<32x32xf32, #tpu.memory_space<vmem>>, %arg15: memref<1x32xf32, #tpu.memory_space<vmem>>, %arg16: memref<32x320xf32, #tpu.memory_space<vmem>>, %arg17: memref<1x320xf32, #tpu.memory_space<vmem>>, %arg18: memref<320x32xf32, #tpu.memory_space<vmem>>, %arg19: memref<1x32xf32, #tpu.memory_space<vmem>>, %arg20: memref<32x32xf32, #tpu.memory_space<vmem>>, %arg21: memref<1x32xf32, #tpu.memory_space<vmem>>, %arg22: memref<32x320xf32, #tpu.memory_space<vmem>>, %arg23: memref<1x320xf32, #tpu.memory_space<vmem>>, %arg24: memref<320x32xf32, #tpu.memory_space<vmem>>, %arg25: memref<1x32xf32, #tpu.memory_space<vmem>>, %arg26: memref<32x32xf32, #tpu.memory_space<vmem>>, %arg27: memref<1x32xf32, #tpu.memory_space<vmem>>, %arg28: memref<32x32xf32, #tpu.memory_space<vmem>>, %arg29: memref<1x32xf32, #tpu.memory_space<vmem>>, %arg30: memref<32x320xf32, #tpu.memory_space<vmem>>, %arg31: memref<1x320xf32, #tpu.memory_space<vmem>>, %arg32: memref<320x32xf32, #tpu.memory_space<vmem>>, %arg33: memref<1x32xf32, #tpu.memory_space<vmem>>, %arg34: memref<32x32xf32, #tpu.memory_space<vmem>>, %arg35: memref<1x32xf32, #tpu.memory_space<vmem>>, %arg36: memref<32x32xf32, #tpu.memory_space<vmem>>, %arg37: memref<1x32xf32, #tpu.memory_space<vmem>>, %arg38: memref<32x320xf32, #tpu.memory_space<vmem>>, %arg39: memref<1x320xf32, #tpu.memory_space<vmem>>, %arg40: memref<320x32xf32, #tpu.memory_space<vmem>>, %arg41: memref<1x32xf32, #tpu.memory_space<vmem>>, %arg42: memref<32x32xf32, #tpu.memory_space<vmem>>, %arg43: memref<1x32xf32, #tpu.memory_space<vmem>>, %arg44: memref<32x320xf32, #tpu.memory_space<vmem>>, %arg45: memref<1x320xf32, #tpu.memory_space<vmem>>, %arg46: memref<320x32xf32, #tpu.memory_space<vmem>>, %arg47: memref<1x32xf32, #tpu.memory_space<vmem>>, %arg48: memref<32x32xf32, #tpu.memory_space<vmem>>, %arg49: memref<1x32xf32, #tpu.memory_space<vmem>>, %arg50: memref<128x320xf32, #tpu.memory_space<vmem>>, %arg51: memref<1x320xf32, #tpu.memory_space<vmem>>, %arg52: memref<320x32xf32, #tpu.memory_space<vmem>>, %arg53: memref<1x32xf32, #tpu.memory_space<vmem>>, %arg54: memref<32x1xf32, #tpu.memory_space<vmem>>, %arg55: memref<1x1xf32, #tpu.memory_space<vmem>>, %arg56: memref<32x1xf32, #tpu.memory_space<vmem>>) attributes {dimension_semantics = [], scalar_prefetch = 0 : i64, scratch_operands = 0 : i64, tpu.core_type = #tpu.core_type<tc>} {
    %c0 = arith.constant 0 : index
    %c0_0 = arith.constant 0 : index
    %0 = vector.load %arg0[%c0, %c0_0] : memref<32x32xf32, #tpu.memory_space<vmem>>, vector<32x32xf32>
    %c0_1 = arith.constant 0 : index
    %c0_2 = arith.constant 0 : index
    %1 = vector.load %arg1[%c0_1, %c0_2] : memref<32x32xf32, #tpu.memory_space<vmem>>, vector<32x32xf32>
    %c0_3 = arith.constant 0 : index
    %c0_4 = arith.constant 0 : index
    %2 = vector.load %arg2[%c0_3, %c0_4] : memref<64x32xf32, #tpu.memory_space<vmem>>, vector<64x32xf32>
    %c0_5 = arith.constant 0 : index
    %c0_6 = arith.constant 0 : index
    %3 = vector.load %arg3[%c0_5, %c0_6] : memref<64x32xf32, #tpu.memory_space<vmem>>, vector<64x32xf32>
    %c0_7 = arith.constant 0 : index
    %c0_8 = arith.constant 0 : index
    %4 = vector.load %arg4[%c0_7, %c0_8] : memref<32x64xf32, #tpu.memory_space<vmem>>, vector<32x64xf32>
    %c0_9 = arith.constant 0 : index
    %c0_10 = arith.constant 0 : index
    %5 = vector.load %arg5[%c0_9, %c0_10] : memref<32x64xf32, #tpu.memory_space<vmem>>, vector<32x64xf32>
    %c0_11 = arith.constant 0 : index
    %c0_12 = arith.constant 0 : index
    %6 = vector.load %arg6[%c0_11, %c0_12] : memref<32x32xf32, #tpu.memory_space<vmem>>, vector<32x32xf32>
    %c0_13 = arith.constant 0 : index
    %c0_14 = arith.constant 0 : index
    %7 = vector.load %arg7[%c0_13, %c0_14] : memref<1x32xf32, #tpu.memory_space<vmem>>, vector<1x32xf32>
    %c0_15 = arith.constant 0 : index
    %c0_16 = arith.constant 0 : index
    %8 = vector.load %arg8[%c0_15, %c0_16] : memref<32x320xf32, #tpu.memory_space<vmem>>, vector<32x320xf32>
    %c0_17 = arith.constant 0 : index
    %c0_18 = arith.constant 0 : index
    %9 = vector.load %arg9[%c0_17, %c0_18] : memref<1x320xf32, #tpu.memory_space<vmem>>, vector<1x320xf32>
    %c0_19 = arith.constant 0 : index
    %c0_20 = arith.constant 0 : index
    %10 = vector.load %arg10[%c0_19, %c0_20] : memref<320x32xf32, #tpu.memory_space<vmem>>, vector<320x32xf32>
    %c0_21 = arith.constant 0 : index
    %c0_22 = arith.constant 0 : index
    %11 = vector.load %arg11[%c0_21, %c0_22] : memref<1x32xf32, #tpu.memory_space<vmem>>, vector<1x32xf32>
    %c0_23 = arith.constant 0 : index
    %c0_24 = arith.constant 0 : index
    %12 = vector.load %arg12[%c0_23, %c0_24] : memref<32x32xf32, #tpu.memory_space<vmem>>, vector<32x32xf32>
    %c0_25 = arith.constant 0 : index
    %c0_26 = arith.constant 0 : index
    %13 = vector.load %arg13[%c0_25, %c0_26] : memref<1x32xf32, #tpu.memory_space<vmem>>, vector<1x32xf32>
    %c0_27 = arith.constant 0 : index
    %c0_28 = arith.constant 0 : index
    %14 = vector.load %arg14[%c0_27, %c0_28] : memref<32x32xf32, #tpu.memory_space<vmem>>, vector<32x32xf32>
    %c0_29 = arith.constant 0 : index
    %c0_30 = arith.constant 0 : index
    %15 = vector.load %arg15[%c0_29, %c0_30] : memref<1x32xf32, #tpu.memory_space<vmem>>, vector<1x32xf32>
    %c0_31 = arith.constant 0 : index
    %c0_32 = arith.constant 0 : index
    %16 = vector.load %arg16[%c0_31, %c0_32] : memref<32x320xf32, #tpu.memory_space<vmem>>, vector<32x320xf32>
    %c0_33 = arith.constant 0 : index
    %c0_34 = arith.constant 0 : index
    %17 = vector.load %arg17[%c0_33, %c0_34] : memref<1x320xf32, #tpu.memory_space<vmem>>, vector<1x320xf32>
    %c0_35 = arith.constant 0 : index
    %c0_36 = arith.constant 0 : index
    %18 = vector.load %arg18[%c0_35, %c0_36] : memref<320x32xf32, #tpu.memory_space<vmem>>, vector<320x32xf32>
    %c0_37 = arith.constant 0 : index
    %c0_38 = arith.constant 0 : index
    %19 = vector.load %arg19[%c0_37, %c0_38] : memref<1x32xf32, #tpu.memory_space<vmem>>, vector<1x32xf32>
    %c0_39 = arith.constant 0 : index
    %c0_40 = arith.constant 0 : index
    %20 = vector.load %arg20[%c0_39, %c0_40] : memref<32x32xf32, #tpu.memory_space<vmem>>, vector<32x32xf32>
    %c0_41 = arith.constant 0 : index
    %c0_42 = arith.constant 0 : index
    %21 = vector.load %arg21[%c0_41, %c0_42] : memref<1x32xf32, #tpu.memory_space<vmem>>, vector<1x32xf32>
    %c0_43 = arith.constant 0 : index
    %c0_44 = arith.constant 0 : index
    %22 = vector.load %arg22[%c0_43, %c0_44] : memref<32x320xf32, #tpu.memory_space<vmem>>, vector<32x320xf32>
    %c0_45 = arith.constant 0 : index
    %c0_46 = arith.constant 0 : index
    %23 = vector.load %arg23[%c0_45, %c0_46] : memref<1x320xf32, #tpu.memory_space<vmem>>, vector<1x320xf32>
    %c0_47 = arith.constant 0 : index
    %c0_48 = arith.constant 0 : index
    %24 = vector.load %arg24[%c0_47, %c0_48] : memref<320x32xf32, #tpu.memory_space<vmem>>, vector<320x32xf32>
    %c0_49 = arith.constant 0 : index
    %c0_50 = arith.constant 0 : index
    %25 = vector.load %arg25[%c0_49, %c0_50] : memref<1x32xf32, #tpu.memory_space<vmem>>, vector<1x32xf32>
    %c0_51 = arith.constant 0 : index
    %c0_52 = arith.constant 0 : index
    %26 = vector.load %arg26[%c0_51, %c0_52] : memref<32x32xf32, #tpu.memory_space<vmem>>, vector<32x32xf32>
    %c0_53 = arith.constant 0 : index
    %c0_54 = arith.constant 0 : index
    %27 = vector.load %arg27[%c0_53, %c0_54] : memref<1x32xf32, #tpu.memory_space<vmem>>, vector<1x32xf32>
    %c0_55 = arith.constant 0 : index
    %c0_56 = arith.constant 0 : index
    %28 = vector.load %arg28[%c0_55, %c0_56] : memref<32x32xf32, #tpu.memory_space<vmem>>, vector<32x32xf32>
    %c0_57 = arith.constant 0 : index
    %c0_58 = arith.constant 0 : index
    %29 = vector.load %arg29[%c0_57, %c0_58] : memref<1x32xf32, #tpu.memory_space<vmem>>, vector<1x32xf32>
    %c0_59 = arith.constant 0 : index
    %c0_60 = arith.constant 0 : index
    %30 = vector.load %arg30[%c0_59, %c0_60] : memref<32x320xf32, #tpu.memory_space<vmem>>, vector<32x320xf32>
    %c0_61 = arith.constant 0 : index
    %c0_62 = arith.constant 0 : index
    %31 = vector.load %arg31[%c0_61, %c0_62] : memref<1x320xf32, #tpu.memory_space<vmem>>, vector<1x320xf32>
    %c0_63 = arith.constant 0 : index
    %c0_64 = arith.constant 0 : index
    %32 = vector.load %arg32[%c0_63, %c0_64] : memref<320x32xf32, #tpu.memory_space<vmem>>, vector<320x32xf32>
    %c0_65 = arith.constant 0 : index
    %c0_66 = arith.constant 0 : index
    %33 = vector.load %arg33[%c0_65, %c0_66] : memref<1x32xf32, #tpu.memory_space<vmem>>, vector<1x32xf32>
    %c0_67 = arith.constant 0 : index
    %c0_68 = arith.constant 0 : index
    %34 = vector.load %arg34[%c0_67, %c0_68] : memref<32x32xf32, #tpu.memory_space<vmem>>, vector<32x32xf32>
    %c0_69 = arith.constant 0 : index
    %c0_70 = arith.constant 0 : index
    %35 = vector.load %arg35[%c0_69, %c0_70] : memref<1x32xf32, #tpu.memory_space<vmem>>, vector<1x32xf32>
    %c0_71 = arith.constant 0 : index
    %c0_72 = arith.constant 0 : index
    %36 = vector.load %arg36[%c0_71, %c0_72] : memref<32x32xf32, #tpu.memory_space<vmem>>, vector<32x32xf32>
    %c0_73 = arith.constant 0 : index
    %c0_74 = arith.constant 0 : index
    %37 = vector.load %arg37[%c0_73, %c0_74] : memref<1x32xf32, #tpu.memory_space<vmem>>, vector<1x32xf32>
    %c0_75 = arith.constant 0 : index
    %c0_76 = arith.constant 0 : index
    %38 = vector.load %arg38[%c0_75, %c0_76] : memref<32x320xf32, #tpu.memory_space<vmem>>, vector<32x320xf32>
    %c0_77 = arith.constant 0 : index
    %c0_78 = arith.constant 0 : index
    %39 = vector.load %arg39[%c0_77, %c0_78] : memref<1x320xf32, #tpu.memory_space<vmem>>, vector<1x320xf32>
    %c0_79 = arith.constant 0 : index
    %c0_80 = arith.constant 0 : index
    %40 = vector.load %arg40[%c0_79, %c0_80] : memref<320x32xf32, #tpu.memory_space<vmem>>, vector<320x32xf32>
    %c0_81 = arith.constant 0 : index
    %c0_82 = arith.constant 0 : index
    %41 = vector.load %arg41[%c0_81, %c0_82] : memref<1x32xf32, #tpu.memory_space<vmem>>, vector<1x32xf32>
    %c0_83 = arith.constant 0 : index
    %c0_84 = arith.constant 0 : index
    %42 = vector.load %arg42[%c0_83, %c0_84] : memref<32x32xf32, #tpu.memory_space<vmem>>, vector<32x32xf32>
    %c0_85 = arith.constant 0 : index
    %c0_86 = arith.constant 0 : index
    %43 = vector.load %arg43[%c0_85, %c0_86] : memref<1x32xf32, #tpu.memory_space<vmem>>, vector<1x32xf32>
    %c0_87 = arith.constant 0 : index
    %c0_88 = arith.constant 0 : index
    %44 = vector.load %arg44[%c0_87, %c0_88] : memref<32x320xf32, #tpu.memory_space<vmem>>, vector<32x320xf32>
    %c0_89 = arith.constant 0 : index
    %c0_90 = arith.constant 0 : index
    %45 = vector.load %arg45[%c0_89, %c0_90] : memref<1x320xf32, #tpu.memory_space<vmem>>, vector<1x320xf32>
    %c0_91 = arith.constant 0 : index
    %c0_92 = arith.constant 0 : index
    %46 = vector.load %arg46[%c0_91, %c0_92] : memref<320x32xf32, #tpu.memory_space<vmem>>, vector<320x32xf32>
    %c0_93 = arith.constant 0 : index
    %c0_94 = arith.constant 0 : index
    %47 = vector.load %arg47[%c0_93, %c0_94] : memref<1x32xf32, #tpu.memory_space<vmem>>, vector<1x32xf32>
    %c0_95 = arith.constant 0 : index
    %c0_96 = arith.constant 0 : index
    %48 = vector.load %arg48[%c0_95, %c0_96] : memref<32x32xf32, #tpu.memory_space<vmem>>, vector<32x32xf32>
    %c0_97 = arith.constant 0 : index
    %c0_98 = arith.constant 0 : index
    %49 = vector.load %arg49[%c0_97, %c0_98] : memref<1x32xf32, #tpu.memory_space<vmem>>, vector<1x32xf32>
    %c0_99 = arith.constant 0 : index
    %c0_100 = arith.constant 0 : index
    %50 = vector.load %arg50[%c0_99, %c0_100] : memref<128x320xf32, #tpu.memory_space<vmem>>, vector<128x320xf32>
    %c0_101 = arith.constant 0 : index
    %c0_102 = arith.constant 0 : index
    %51 = vector.load %arg51[%c0_101, %c0_102] : memref<1x320xf32, #tpu.memory_space<vmem>>, vector<1x320xf32>
    %c0_103 = arith.constant 0 : index
    %c0_104 = arith.constant 0 : index
    %52 = vector.load %arg52[%c0_103, %c0_104] : memref<320x32xf32, #tpu.memory_space<vmem>>, vector<320x32xf32>
    %c0_105 = arith.constant 0 : index
    %c0_106 = arith.constant 0 : index
    %53 = vector.load %arg53[%c0_105, %c0_106] : memref<1x32xf32, #tpu.memory_space<vmem>>, vector<1x32xf32>
    %c0_107 = arith.constant 0 : index
    %c0_108 = arith.constant 0 : index
    %54 = vector.load %arg54[%c0_107, %c0_108] : memref<32x1xf32, #tpu.memory_space<vmem>>, vector<32x1xf32>
    %c0_109 = arith.constant 0 : index
    %c0_110 = arith.constant 0 : index
    %55 = vector.load %arg55[%c0_109, %c0_110] : memref<1x1xf32, #tpu.memory_space<vmem>>, vector<1x1xf32>
    %cst = arith.constant dense<0.000000e+00> : vector<64x32xf32>
    %56 = tpu.matmul %3, %0, %cst {dimension_numbers = #tpu.dot_dimension_numbers<[1], [0], [0], [1], [0, 0, 1, 1], [], []>} : vector<64x32xf32>, vector<32x32xf32>, vector<64x32xf32> -> vector<64x32xf32>
    %cst_111 = arith.constant dense<0.000000e+00> : vector<64x32xf32>
    %57 = tpu.matmul %2, %0, %cst_111 {dimension_numbers = #tpu.dot_dimension_numbers<[1], [0], [0], [1], [0, 0, 1, 1], [], []>} : vector<64x32xf32>, vector<32x32xf32>, vector<64x32xf32> -> vector<64x32xf32>
    %58 = arith.mulf %56, %57 : vector<64x32xf32>
    %cst_112 = arith.constant dense<0.000000e+00> : vector<64x32xf32>
    %59 = tpu.matmul %58, %6, %cst_112 {dimension_numbers = #tpu.dot_dimension_numbers<[1], [0], [0], [1], [0, 0, 1, 1], [], []>} : vector<64x32xf32>, vector<32x32xf32>, vector<64x32xf32> -> vector<64x32xf32>
    %60 = vector.broadcast %7 : vector<1x32xf32> to vector<64x32xf32>
    %61 = arith.addf %59, %60 : vector<64x32xf32>
    %cst_113 = arith.constant 0.000000e+00 : f32
    %62 = vector.broadcast %cst_113 : f32 to vector<64x32xf32>
    %63 = arith.maximumf %61, %62 : vector<64x32xf32>
    %cst_114 = arith.constant dense<0.000000e+00> : vector<64x320xf32>
    %64 = tpu.matmul %63, %8, %cst_114 {dimension_numbers = #tpu.dot_dimension_numbers<[1], [0], [0], [1], [0, 0, 1, 1], [], []>} : vector<64x32xf32>, vector<32x320xf32>, vector<64x320xf32> -> vector<64x320xf32>
    %65 = vector.broadcast %9 : vector<1x320xf32> to vector<64x320xf32>
    %66 = arith.addf %64, %65 : vector<64x320xf32>
    %cst_115 = arith.constant 0.000000e+00 : f32
    %67 = vector.broadcast %cst_115 : f32 to vector<64x320xf32>
    %68 = arith.maximumf %66, %67 : vector<64x320xf32>
    %cst_116 = arith.constant dense<0.000000e+00> : vector<64x32xf32>
    %69 = tpu.matmul %68, %10, %cst_116 {dimension_numbers = #tpu.dot_dimension_numbers<[1], [0], [0], [1], [0, 0, 1, 1], [], []>} : vector<64x320xf32>, vector<320x32xf32>, vector<64x32xf32> -> vector<64x32xf32>
    %70 = vector.broadcast %11 : vector<1x32xf32> to vector<64x32xf32>
    %71 = arith.addf %69, %70 : vector<64x32xf32>
    %cst_117 = arith.constant 0.000000e+00 : f32
    %72 = vector.broadcast %cst_117 : f32 to vector<64x32xf32>
    %73 = arith.maximumf %71, %72 : vector<64x32xf32>
    %cst_118 = arith.constant dense<0.000000e+00> : vector<64x32xf32>
    %74 = tpu.matmul %73, %12, %cst_118 {dimension_numbers = #tpu.dot_dimension_numbers<[1], [0], [0], [1], [0, 0, 1, 1], [], []>} : vector<64x32xf32>, vector<32x32xf32>, vector<64x32xf32> -> vector<64x32xf32>
    %75 = vector.broadcast %13 : vector<1x32xf32> to vector<64x32xf32>
    %76 = arith.addf %74, %75 : vector<64x32xf32>
    %cst_119 = arith.constant dense<0.000000e+00> : vector<32x32xf32>
    %77 = tpu.matmul %5, %76, %cst_119 {dimension_numbers = #tpu.dot_dimension_numbers<[1], [0], [0], [1], [0, 0, 1, 1], [], []>} : vector<32x64xf32>, vector<64x32xf32>, vector<32x32xf32> -> vector<32x32xf32>
    %cst_120 = arith.constant dense<0.000000e+00> : vector<32x320xf32>
    %78 = tpu.matmul %77, %22, %cst_120 {dimension_numbers = #tpu.dot_dimension_numbers<[1], [0], [0], [1], [0, 0, 1, 1], [], []>} : vector<32x32xf32>, vector<32x320xf32>, vector<32x320xf32> -> vector<32x320xf32>
    %79 = vector.broadcast %23 : vector<1x320xf32> to vector<32x320xf32>
    %80 = arith.addf %78, %79 : vector<32x320xf32>
    %cst_121 = arith.constant 0.000000e+00 : f32
    %81 = vector.broadcast %cst_121 : f32 to vector<32x320xf32>
    %82 = arith.maximumf %80, %81 : vector<32x320xf32>
    %cst_122 = arith.constant dense<0.000000e+00> : vector<32x32xf32>
    %83 = tpu.matmul %82, %24, %cst_122 {dimension_numbers = #tpu.dot_dimension_numbers<[1], [0], [0], [1], [0, 0, 1, 1], [], []>} : vector<32x320xf32>, vector<320x32xf32>, vector<32x32xf32> -> vector<32x32xf32>
    %84 = vector.broadcast %25 : vector<1x32xf32> to vector<32x32xf32>
    %85 = arith.addf %83, %84 : vector<32x32xf32>
    %cst_123 = arith.constant 0.000000e+00 : f32
    %86 = vector.broadcast %cst_123 : f32 to vector<32x32xf32>
    %87 = arith.maximumf %85, %86 : vector<32x32xf32>
    %cst_124 = arith.constant dense<0.000000e+00> : vector<32x32xf32>
    %88 = tpu.matmul %87, %26, %cst_124 {dimension_numbers = #tpu.dot_dimension_numbers<[1], [0], [0], [1], [0, 0, 1, 1], [], []>} : vector<32x32xf32>, vector<32x32xf32>, vector<32x32xf32> -> vector<32x32xf32>
    %89 = vector.broadcast %27 : vector<1x32xf32> to vector<32x32xf32>
    %90 = arith.addf %88, %89 : vector<32x32xf32>
    %cst_125 = arith.constant dense<0.000000e+00> : vector<64x32xf32>
    %91 = tpu.matmul %3, %1, %cst_125 {dimension_numbers = #tpu.dot_dimension_numbers<[1], [0], [0], [1], [0, 0, 1, 1], [], []>} : vector<64x32xf32>, vector<32x32xf32>, vector<64x32xf32> -> vector<64x32xf32>
    %cst_126 = arith.constant dense<0.000000e+00> : vector<64x32xf32>
    %92 = tpu.matmul %2, %1, %cst_126 {dimension_numbers = #tpu.dot_dimension_numbers<[1], [0], [0], [1], [0, 0, 1, 1], [], []>} : vector<64x32xf32>, vector<32x32xf32>, vector<64x32xf32> -> vector<64x32xf32>
    %93 = arith.mulf %91, %92 : vector<64x32xf32>
    %cst_127 = arith.constant dense<0.000000e+00> : vector<64x32xf32>
    %94 = tpu.matmul %93, %14, %cst_127 {dimension_numbers = #tpu.dot_dimension_numbers<[1], [0], [0], [1], [0, 0, 1, 1], [], []>} : vector<64x32xf32>, vector<32x32xf32>, vector<64x32xf32> -> vector<64x32xf32>
    %95 = vector.broadcast %15 : vector<1x32xf32> to vector<64x32xf32>
    %96 = arith.addf %94, %95 : vector<64x32xf32>
    %cst_128 = arith.constant 0.000000e+00 : f32
    %97 = vector.broadcast %cst_128 : f32 to vector<64x32xf32>
    %98 = arith.maximumf %96, %97 : vector<64x32xf32>
    %cst_129 = arith.constant dense<0.000000e+00> : vector<64x320xf32>
    %99 = tpu.matmul %98, %16, %cst_129 {dimension_numbers = #tpu.dot_dimension_numbers<[1], [0], [0], [1], [0, 0, 1, 1], [], []>} : vector<64x32xf32>, vector<32x320xf32>, vector<64x320xf32> -> vector<64x320xf32>
    %100 = vector.broadcast %17 : vector<1x320xf32> to vector<64x320xf32>
    %101 = arith.addf %99, %100 : vector<64x320xf32>
    %cst_130 = arith.constant 0.000000e+00 : f32
    %102 = vector.broadcast %cst_130 : f32 to vector<64x320xf32>
    %103 = arith.maximumf %101, %102 : vector<64x320xf32>
    %cst_131 = arith.constant dense<0.000000e+00> : vector<64x32xf32>
    %104 = tpu.matmul %103, %18, %cst_131 {dimension_numbers = #tpu.dot_dimension_numbers<[1], [0], [0], [1], [0, 0, 1, 1], [], []>} : vector<64x320xf32>, vector<320x32xf32>, vector<64x32xf32> -> vector<64x32xf32>
    %105 = vector.broadcast %19 : vector<1x32xf32> to vector<64x32xf32>
    %106 = arith.addf %104, %105 : vector<64x32xf32>
    %cst_132 = arith.constant 0.000000e+00 : f32
    %107 = vector.broadcast %cst_132 : f32 to vector<64x32xf32>
    %108 = arith.maximumf %106, %107 : vector<64x32xf32>
    %cst_133 = arith.constant dense<0.000000e+00> : vector<64x32xf32>
    %109 = tpu.matmul %108, %20, %cst_133 {dimension_numbers = #tpu.dot_dimension_numbers<[1], [0], [0], [1], [0, 0, 1, 1], [], []>} : vector<64x32xf32>, vector<32x32xf32>, vector<64x32xf32> -> vector<64x32xf32>
    %110 = vector.broadcast %21 : vector<1x32xf32> to vector<64x32xf32>
    %111 = arith.addf %109, %110 : vector<64x32xf32>
    %cst_134 = arith.constant dense<0.000000e+00> : vector<32x32xf32>
    %112 = tpu.matmul %5, %111, %cst_134 {dimension_numbers = #tpu.dot_dimension_numbers<[1], [0], [0], [1], [0, 0, 1, 1], [], []>} : vector<32x64xf32>, vector<64x32xf32>, vector<32x32xf32> -> vector<32x32xf32>
    %cst_135 = arith.constant dense<0.000000e+00> : vector<32x320xf32>
    %113 = tpu.matmul %112, %22, %cst_135 {dimension_numbers = #tpu.dot_dimension_numbers<[1], [0], [0], [1], [0, 0, 1, 1], [], []>} : vector<32x32xf32>, vector<32x320xf32>, vector<32x320xf32> -> vector<32x320xf32>
    %114 = vector.broadcast %23 : vector<1x320xf32> to vector<32x320xf32>
    %115 = arith.addf %113, %114 : vector<32x320xf32>
    %cst_136 = arith.constant 0.000000e+00 : f32
    %116 = vector.broadcast %cst_136 : f32 to vector<32x320xf32>
    %117 = arith.maximumf %115, %116 : vector<32x320xf32>
    %cst_137 = arith.constant dense<0.000000e+00> : vector<32x32xf32>
    %118 = tpu.matmul %117, %24, %cst_137 {dimension_numbers = #tpu.dot_dimension_numbers<[1], [0], [0], [1], [0, 0, 1, 1], [], []>} : vector<32x320xf32>, vector<320x32xf32>, vector<32x32xf32> -> vector<32x32xf32>
    %119 = vector.broadcast %25 : vector<1x32xf32> to vector<32x32xf32>
    %120 = arith.addf %118, %119 : vector<32x32xf32>
    %cst_138 = arith.constant 0.000000e+00 : f32
    %121 = vector.broadcast %cst_138 : f32 to vector<32x32xf32>
    %122 = arith.maximumf %120, %121 : vector<32x32xf32>
    %cst_139 = arith.constant dense<0.000000e+00> : vector<32x32xf32>
    %123 = tpu.matmul %122, %26, %cst_139 {dimension_numbers = #tpu.dot_dimension_numbers<[1], [0], [0], [1], [0, 0, 1, 1], [], []>} : vector<32x32xf32>, vector<32x32xf32>, vector<32x32xf32> -> vector<32x32xf32>
    %124 = vector.broadcast %27 : vector<1x32xf32> to vector<32x32xf32>
    %125 = arith.addf %123, %124 : vector<32x32xf32>
    %cst_140 = arith.constant dense<0.000000e+00> : vector<64x32xf32>
    %126 = tpu.matmul %2, %0, %cst_140 {dimension_numbers = #tpu.dot_dimension_numbers<[1], [0], [0], [1], [0, 0, 1, 1], [], []>} : vector<64x32xf32>, vector<32x32xf32>, vector<64x32xf32> -> vector<64x32xf32>
    %cst_141 = arith.constant dense<0.000000e+00> : vector<64x32xf32>
    %127 = tpu.matmul %3, %0, %cst_141 {dimension_numbers = #tpu.dot_dimension_numbers<[1], [0], [0], [1], [0, 0, 1, 1], [], []>} : vector<64x32xf32>, vector<32x32xf32>, vector<64x32xf32> -> vector<64x32xf32>
    %128 = arith.mulf %126, %127 : vector<64x32xf32>
    %cst_142 = arith.constant dense<0.000000e+00> : vector<64x32xf32>
    %129 = tpu.matmul %128, %28, %cst_142 {dimension_numbers = #tpu.dot_dimension_numbers<[1], [0], [0], [1], [0, 0, 1, 1], [], []>} : vector<64x32xf32>, vector<32x32xf32>, vector<64x32xf32> -> vector<64x32xf32>
    %130 = vector.broadcast %29 : vector<1x32xf32> to vector<64x32xf32>
    %131 = arith.addf %129, %130 : vector<64x32xf32>
    %cst_143 = arith.constant 0.000000e+00 : f32
    %132 = vector.broadcast %cst_143 : f32 to vector<64x32xf32>
    %133 = arith.maximumf %131, %132 : vector<64x32xf32>
    %cst_144 = arith.constant dense<0.000000e+00> : vector<64x320xf32>
    %134 = tpu.matmul %133, %30, %cst_144 {dimension_numbers = #tpu.dot_dimension_numbers<[1], [0], [0], [1], [0, 0, 1, 1], [], []>} : vector<64x32xf32>, vector<32x320xf32>, vector<64x320xf32> -> vector<64x320xf32>
    %135 = vector.broadcast %31 : vector<1x320xf32> to vector<64x320xf32>
    %136 = arith.addf %134, %135 : vector<64x320xf32>
    %cst_145 = arith.constant 0.000000e+00 : f32
    %137 = vector.broadcast %cst_145 : f32 to vector<64x320xf32>
    %138 = arith.maximumf %136, %137 : vector<64x320xf32>
    %cst_146 = arith.constant dense<0.000000e+00> : vector<64x32xf32>
    %139 = tpu.matmul %138, %32, %cst_146 {dimension_numbers = #tpu.dot_dimension_numbers<[1], [0], [0], [1], [0, 0, 1, 1], [], []>} : vector<64x320xf32>, vector<320x32xf32>, vector<64x32xf32> -> vector<64x32xf32>
    %140 = vector.broadcast %33 : vector<1x32xf32> to vector<64x32xf32>
    %141 = arith.addf %139, %140 : vector<64x32xf32>
    %cst_147 = arith.constant 0.000000e+00 : f32
    %142 = vector.broadcast %cst_147 : f32 to vector<64x32xf32>
    %143 = arith.maximumf %141, %142 : vector<64x32xf32>
    %cst_148 = arith.constant dense<0.000000e+00> : vector<64x32xf32>
    %144 = tpu.matmul %143, %34, %cst_148 {dimension_numbers = #tpu.dot_dimension_numbers<[1], [0], [0], [1], [0, 0, 1, 1], [], []>} : vector<64x32xf32>, vector<32x32xf32>, vector<64x32xf32> -> vector<64x32xf32>
    %145 = vector.broadcast %35 : vector<1x32xf32> to vector<64x32xf32>
    %146 = arith.addf %144, %145 : vector<64x32xf32>
    %cst_149 = arith.constant dense<0.000000e+00> : vector<32x32xf32>
    %147 = tpu.matmul %4, %146, %cst_149 {dimension_numbers = #tpu.dot_dimension_numbers<[1], [0], [0], [1], [0, 0, 1, 1], [], []>} : vector<32x64xf32>, vector<64x32xf32>, vector<32x32xf32> -> vector<32x32xf32>
    %cst_150 = arith.constant dense<0.000000e+00> : vector<32x320xf32>
    %148 = tpu.matmul %147, %44, %cst_150 {dimension_numbers = #tpu.dot_dimension_numbers<[1], [0], [0], [1], [0, 0, 1, 1], [], []>} : vector<32x32xf32>, vector<32x320xf32>, vector<32x320xf32> -> vector<32x320xf32>
    %149 = vector.broadcast %45 : vector<1x320xf32> to vector<32x320xf32>
    %150 = arith.addf %148, %149 : vector<32x320xf32>
    %cst_151 = arith.constant 0.000000e+00 : f32
    %151 = vector.broadcast %cst_151 : f32 to vector<32x320xf32>
    %152 = arith.maximumf %150, %151 : vector<32x320xf32>
    %cst_152 = arith.constant dense<0.000000e+00> : vector<32x32xf32>
    %153 = tpu.matmul %152, %46, %cst_152 {dimension_numbers = #tpu.dot_dimension_numbers<[1], [0], [0], [1], [0, 0, 1, 1], [], []>} : vector<32x320xf32>, vector<320x32xf32>, vector<32x32xf32> -> vector<32x32xf32>
    %154 = vector.broadcast %47 : vector<1x32xf32> to vector<32x32xf32>
    %155 = arith.addf %153, %154 : vector<32x32xf32>
    %cst_153 = arith.constant 0.000000e+00 : f32
    %156 = vector.broadcast %cst_153 : f32 to vector<32x32xf32>
    %157 = arith.maximumf %155, %156 : vector<32x32xf32>
    %cst_154 = arith.constant dense<0.000000e+00> : vector<32x32xf32>
    %158 = tpu.matmul %157, %48, %cst_154 {dimension_numbers = #tpu.dot_dimension_numbers<[1], [0], [0], [1], [0, 0, 1, 1], [], []>} : vector<32x32xf32>, vector<32x32xf32>, vector<32x32xf32> -> vector<32x32xf32>
    %159 = vector.broadcast %49 : vector<1x32xf32> to vector<32x32xf32>
    %160 = arith.addf %158, %159 : vector<32x32xf32>
    %cst_155 = arith.constant dense<0.000000e+00> : vector<64x32xf32>
    %161 = tpu.matmul %2, %1, %cst_155 {dimension_numbers = #tpu.dot_dimension_numbers<[1], [0], [0], [1], [0, 0, 1, 1], [], []>} : vector<64x32xf32>, vector<32x32xf32>, vector<64x32xf32> -> vector<64x32xf32>
    %cst_156 = arith.constant dense<0.000000e+00> : vector<64x32xf32>
    %162 = tpu.matmul %3, %1, %cst_156 {dimension_numbers = #tpu.dot_dimension_numbers<[1], [0], [0], [1], [0, 0, 1, 1], [], []>} : vector<64x32xf32>, vector<32x32xf32>, vector<64x32xf32> -> vector<64x32xf32>
    %163 = arith.mulf %161, %162 : vector<64x32xf32>
    %cst_157 = arith.constant dense<0.000000e+00> : vector<64x32xf32>
    %164 = tpu.matmul %163, %36, %cst_157 {dimension_numbers = #tpu.dot_dimension_numbers<[1], [0], [0], [1], [0, 0, 1, 1], [], []>} : vector<64x32xf32>, vector<32x32xf32>, vector<64x32xf32> -> vector<64x32xf32>
    %165 = vector.broadcast %37 : vector<1x32xf32> to vector<64x32xf32>
    %166 = arith.addf %164, %165 : vector<64x32xf32>
    %cst_158 = arith.constant 0.000000e+00 : f32
    %167 = vector.broadcast %cst_158 : f32 to vector<64x32xf32>
    %168 = arith.maximumf %166, %167 : vector<64x32xf32>
    %cst_159 = arith.constant dense<0.000000e+00> : vector<64x320xf32>
    %169 = tpu.matmul %168, %38, %cst_159 {dimension_numbers = #tpu.dot_dimension_numbers<[1], [0], [0], [1], [0, 0, 1, 1], [], []>} : vector<64x32xf32>, vector<32x320xf32>, vector<64x320xf32> -> vector<64x320xf32>
    %170 = vector.broadcast %39 : vector<1x320xf32> to vector<64x320xf32>
    %171 = arith.addf %169, %170 : vector<64x320xf32>
    %cst_160 = arith.constant 0.000000e+00 : f32
    %172 = vector.broadcast %cst_160 : f32 to vector<64x320xf32>
    %173 = arith.maximumf %171, %172 : vector<64x320xf32>
    %cst_161 = arith.constant dense<0.000000e+00> : vector<64x32xf32>
    %174 = tpu.matmul %173, %40, %cst_161 {dimension_numbers = #tpu.dot_dimension_numbers<[1], [0], [0], [1], [0, 0, 1, 1], [], []>} : vector<64x320xf32>, vector<320x32xf32>, vector<64x32xf32> -> vector<64x32xf32>
    %175 = vector.broadcast %41 : vector<1x32xf32> to vector<64x32xf32>
    %176 = arith.addf %174, %175 : vector<64x32xf32>
    %cst_162 = arith.constant 0.000000e+00 : f32
    %177 = vector.broadcast %cst_162 : f32 to vector<64x32xf32>
    %178 = arith.maximumf %176, %177 : vector<64x32xf32>
    %cst_163 = arith.constant dense<0.000000e+00> : vector<64x32xf32>
    %179 = tpu.matmul %178, %42, %cst_163 {dimension_numbers = #tpu.dot_dimension_numbers<[1], [0], [0], [1], [0, 0, 1, 1], [], []>} : vector<64x32xf32>, vector<32x32xf32>, vector<64x32xf32> -> vector<64x32xf32>
    %180 = vector.broadcast %43 : vector<1x32xf32> to vector<64x32xf32>
    %181 = arith.addf %179, %180 : vector<64x32xf32>
    %cst_164 = arith.constant dense<0.000000e+00> : vector<32x32xf32>
    %182 = tpu.matmul %4, %181, %cst_164 {dimension_numbers = #tpu.dot_dimension_numbers<[1], [0], [0], [1], [0, 0, 1, 1], [], []>} : vector<32x64xf32>, vector<64x32xf32>, vector<32x32xf32> -> vector<32x32xf32>
    %cst_165 = arith.constant dense<0.000000e+00> : vector<32x320xf32>
    %183 = tpu.matmul %182, %44, %cst_165 {dimension_numbers = #tpu.dot_dimension_numbers<[1], [0], [0], [1], [0, 0, 1, 1], [], []>} : vector<32x32xf32>, vector<32x320xf32>, vector<32x320xf32> -> vector<32x320xf32>
    %184 = vector.broadcast %45 : vector<1x320xf32> to vector<32x320xf32>
    %185 = arith.addf %183, %184 : vector<32x320xf32>
    %cst_166 = arith.constant 0.000000e+00 : f32
    %186 = vector.broadcast %cst_166 : f32 to vector<32x320xf32>
    %187 = arith.maximumf %185, %186 : vector<32x320xf32>
    %cst_167 = arith.constant dense<0.000000e+00> : vector<32x32xf32>
    %188 = tpu.matmul %187, %46, %cst_167 {dimension_numbers = #tpu.dot_dimension_numbers<[1], [0], [0], [1], [0, 0, 1, 1], [], []>} : vector<32x320xf32>, vector<320x32xf32>, vector<32x32xf32> -> vector<32x32xf32>
    %189 = vector.broadcast %47 : vector<1x32xf32> to vector<32x32xf32>
    %190 = arith.addf %188, %189 : vector<32x32xf32>
    %cst_168 = arith.constant 0.000000e+00 : f32
    %191 = vector.broadcast %cst_168 : f32 to vector<32x32xf32>
    %192 = arith.maximumf %190, %191 : vector<32x32xf32>
    %cst_169 = arith.constant dense<0.000000e+00> : vector<32x32xf32>
    %193 = tpu.matmul %192, %48, %cst_169 {dimension_numbers = #tpu.dot_dimension_numbers<[1], [0], [0], [1], [0, 0, 1, 1], [], []>} : vector<32x32xf32>, vector<32x32xf32>, vector<32x32xf32> -> vector<32x32xf32>
    %194 = vector.broadcast %49 : vector<1x32xf32> to vector<32x32xf32>
    %195 = arith.addf %193, %194 : vector<32x32xf32>
    %196 = tpu.concatenate %90, %125, %160, %195 in 1 : vector<32x32xf32>, vector<32x32xf32>, vector<32x32xf32>, vector<32x32xf32> -> vector<32x128xf32>
    %cst_170 = arith.constant dense<0.000000e+00> : vector<32x320xf32>
    %197 = tpu.matmul %196, %50, %cst_170 {dimension_numbers = #tpu.dot_dimension_numbers<[1], [0], [0], [1], [0, 0, 1, 1], [], []>} : vector<32x128xf32>, vector<128x320xf32>, vector<32x320xf32> -> vector<32x320xf32>
    %198 = vector.broadcast %51 : vector<1x320xf32> to vector<32x320xf32>
    %199 = arith.addf %197, %198 : vector<32x320xf32>
    %cst_171 = arith.constant 0.000000e+00 : f32
    %200 = vector.broadcast %cst_171 : f32 to vector<32x320xf32>
    %201 = arith.maximumf %199, %200 : vector<32x320xf32>
    %cst_172 = arith.constant dense<0.000000e+00> : vector<32x32xf32>
    %202 = tpu.matmul %201, %52, %cst_172 {dimension_numbers = #tpu.dot_dimension_numbers<[1], [0], [0], [1], [0, 0, 1, 1], [], []>} : vector<32x320xf32>, vector<320x32xf32>, vector<32x32xf32> -> vector<32x32xf32>
    %203 = vector.broadcast %53 : vector<1x32xf32> to vector<32x32xf32>
    %204 = arith.addf %202, %203 : vector<32x32xf32>
    %cst_173 = arith.constant 0.000000e+00 : f32
    %205 = vector.broadcast %cst_173 : f32 to vector<32x32xf32>
    %206 = arith.maximumf %204, %205 : vector<32x32xf32>
    %cst_174 = arith.constant dense<0.000000e+00> : vector<32x1xf32>
    %207 = tpu.matmul %206, %54, %cst_174 {dimension_numbers = #tpu.dot_dimension_numbers<[1], [0], [0], [1], [0, 0, 1, 1], [], []>} : vector<32x32xf32>, vector<32x1xf32>, vector<32x1xf32> -> vector<32x1xf32>
    %208 = vector.broadcast %55 : vector<1x1xf32> to vector<32x1xf32>
    %209 = arith.addf %207, %208 : vector<32x1xf32>
    %c0_175 = arith.constant 0 : index
    %c0_176 = arith.constant 0 : index
    %210 = vector.load %arg56[%c0_175, %c0_176] : memref<32x1xf32, #tpu.memory_space<vmem>>, vector<32x1xf32>
    tpu.vector_store %arg56[%c0_175, %c0_176], %209 {strides = array<i32>} : memref<32x1xf32, #tpu.memory_space<vmem>>, vector<32x1xf32>,
    return
  }
}

</mosaic_0001>

<llo_original>
// kernel: outer_simplicial_forward.1
$region0: #{outer_simplicial_forward.1}
  #allocation0 [shape = 'u32[]', space=smem, size = 0x4, offset = 0x4, fixed_abs, tag = 'smem constant byte address 0x4 - core index']
  #allocation1 [shape = 'u32[144,128]{1,0:T(1,128)}', space=vmem, size = 0x12000, scoped, tag = 'internal scratch']
  #allocation2 [shape = 'f32[1,1]{1,0:T(1,128)S(1)}', space=vmem, size = 0x200, scoped, tag = 'scoped memory for outer_simplicial_forward.1']
  %s0 = inlined_call_operand.smem [shape: u32[57], index: -1, kind: input, shape index: {}]
  %s1 = sld [smem:[%s0]]
  %s2 = scalar_lea.smem %s0, 1
  %s3 = sld [smem:[%s2]]
  %s4 = scalar_lea.smem %s0, 2
  %s5 = sld [smem:[%s4]]
  %s6 = scalar_lea.smem %s0, 3
  %s7 = sld [smem:[%s6]]
  %s8 = scalar_lea.smem %s0, 4
  %s9 = sld [smem:[%s8]]
  %s10 = scalar_lea.smem %s0, 5
  %s11 = sld [smem:[%s10]]
  %s12 = scalar_lea.smem %s0, 6
  %s13 = sld [smem:[%s12]]
  %s14 = scalar_lea.smem %s0, 7
  %s15 = sld [smem:[%s14]]
  %s16 = scalar_lea.smem %s0, 8
  %s17 = sld [smem:[%s16]]
  %s18 = scalar_lea.smem %s0, 9
  %s19 = sld [smem:[%s18]]
  %s20 = scalar_lea.smem %s0, 10
  %s21 = sld [smem:[%s20]]
  %s22 = scalar_lea.smem %s0, 11
  %s23 = sld [smem:[%s22]]
  %s24 = scalar_lea.smem %s0, 12
  %s25 = sld [smem:[%s24]]
  %s26 = scalar_lea.smem %s0, 13
  %s27 = sld [smem:[%s26]]
  %s28 = scalar_lea.smem %s0, 14
  %s29 = sld [smem:[%s28]]
  %s30 = scalar_lea.smem %s0, 15
  %s31 = sld [smem:[%s30]]
  %s32 = scalar_lea.smem %s0, 16
  %s33 = sld [smem:[%s32]]
  %s34 = scalar_lea.smem %s0, 17
  %s35 = sld [smem:[%s34]]
  %s36 = scalar_lea.smem %s0, 18
  %s37 = sld [smem:[%s36]]
  %s38 = scalar_lea.smem %s0, 19
  %s39 = sld [smem:[%s38]]
  %s40 = scalar_lea.smem %s0, 20
  %s41 = sld [smem:[%s40]]
  %s42 = scalar_lea.smem %s0, 21
  %s43 = sld [smem:[%s42]]
  %s44 = scalar_lea.smem %s0, 22
  %s45 = sld [smem:[%s44]]
  %s46 = scalar_lea.smem %s0, 23
  %s47 = sld [smem:[%s46]]
  %s48 = scalar_lea.smem %s0, 24
  %s49 = sld [smem:[%s48]]
  %s50 = scalar_lea.smem %s0, 25
  %s51 = sld [smem:[%s50]]
  %s52 = scalar_lea.smem %s0, 26
  %s53 = sld [smem:[%s52]]
  %s54 = scalar_lea.smem %s0, 27
  %s55 = sld [smem:[%s54]]
  %s56 = scalar_lea.smem %s0, 28
  %s57 = sld [smem:[%s56]]
  %s58 = scalar_lea.smem %s0, 29
  %s59 = sld [smem:[%s58]]
  %s60 = scalar_lea.smem %s0, 30
  %s61 = sld [smem:[%s60]]
  %s62 = scalar_lea.smem %s0, 31
  %s63 = sld [smem:[%s62]]
  %s64 = scalar_lea.smem %s0, 32
  %s65 = sld [smem:[%s64]]
  %s66 = scalar_lea.smem %s0, 33
  %s67 = sld [smem:[%s66]]
  %s68 = scalar_lea.smem %s0, 34
  %s69 = sld [smem:[%s68]]
  %s70 = scalar_lea.smem %s0, 35
  %s71 = sld [smem:[%s70]]
  %s72 = scalar_lea.smem %s0, 36
  %s73 = sld [smem:[%s72]]
  %s74 = scalar_lea.smem %s0, 37
  %s75 = sld [smem:[%s74]]
  %s76 = scalar_lea.smem %s0, 38
  %s77 = sld [smem:[%s76]]
  %s78 = scalar_lea.smem %s0, 39
  %s79 = sld [smem:[%s78]]
  %s80 = scalar_lea.smem %s0, 40
  %s81 = sld [smem:[%s80]]
  %s82 = scalar_lea.smem %s0, 41
  %s83 = sld [smem:[%s82]]
  %s84 = scalar_lea.smem %s0, 42
  %s85 = sld [smem:[%s84]]
  %s86 = scalar_lea.smem %s0, 43
  %s87 = sld [smem:[%s86]]
  %s88 = scalar_lea.smem %s0, 44
  %s89 = sld [smem:[%s88]]
  %s90 = scalar_lea.smem %s0, 45
  %s91 = sld [smem:[%s90]]
  %s92 = scalar_lea.smem %s0, 46
  %s93 = sld [smem:[%s92]]
  %s94 = scalar_lea.smem %s0, 47
  %s95 = sld [smem:[%s94]]
  %s96 = scalar_lea.smem %s0, 48
  %s97 = sld [smem:[%s96]]
  %s98 = scalar_lea.smem %s0, 49
  %s99 = sld [smem:[%s98]]
  %s100 = scalar_lea.smem %s0, 50
  %s101 = sld [smem:[%s100]]
  %s102 = scalar_lea.smem %s0, 51
  %s103 = sld [smem:[%s102]]
  %s104 = scalar_lea.smem %s0, 52
  %s105 = sld [smem:[%s104]]
  %s106 = scalar_lea.smem %s0, 53
  %s107 = sld [smem:[%s106]]
  %s108 = scalar_lea.smem %s0, 54
  %s109 = sld [smem:[%s108]]
  %s110 = scalar_lea.smem %s0, 55
  %s111 = sld [smem:[%s110]]
  %s112 = scalar_lea.smem %s0, 56
  %s113 = sld [smem:[%s112]]
  %s114 = sld [smem:[#allocation0]]
  $region246: #{outer_simplicial_forward.1} parent=0
    _
  %s116 = ssub.s32 1, %s114
  %s117 = scalar_select 0, %s116, %s114
  %v118 = vstv %s111
  %119 = vst [vmem:[#allocation2] sm:$0x1] %v118
  $region1: #{outer_simplicial_forward.1} parent=0
    #allocation3 [shape = 'u8[512]{0}', space=vmem, size = 0x400, scoped, tag = 'input window, operand 47, single buffered']
    #allocation4 [shape = 's32[1]{0}', space=sflag, size = 0x4, scoped, tag = 'scoped memory for outer_simplicial_forward.1']
    #allocation5 [shape = 'u8[512]{0}', space=vmem, size = 0x400, scoped, tag = 'input window, operand 49, single buffered']
    #allocation6 [shape = 's32[1]{0}', space=sflag, size = 0x4, scoped, tag = 'scoped memory for outer_simplicial_forward.1']
    #allocation7 [shape = 'u8[512]{0}', space=vmem, size = 0x400, scoped, tag = 'input window, operand 53, single buffered']
    %120 = vsyncpa [#allocation4], 0
    %121 = vsyncpa [#allocation6], 0
    // Predicated region
    $region2: #{outer_simplicial_forward.1} parent=1 // pred_check
      _
    $region3: #{outer_simplicial_forward.1} parent=1 // pred_check_branch
      %123 = sbr.rel (0) target = $region5
    $region4: #{outer_simplicial_forward.1} parent=1 // pred_region
      _
    $region5: #{outer_simplicial_forward.1} parent=1 // pred_fallthru
      _
    // Predicated region
    $region6: #{outer_simplicial_forward.1} parent=1 // pred_check
      _
    $region7: #{outer_simplicial_forward.1} parent=1 // pred_check_branch
      %125 = sbr.rel (0) target = $region9
    $region8: #{outer_simplicial_forward.1} parent=1 // pred_region
      _
    $region9: #{outer_simplicial_forward.1} parent=1 // pred_fallthru
      _
    // Predicated region
    $region10: #{outer_simplicial_forward.1} parent=1 // pred_check
      _
    $region11: #{outer_simplicial_forward.1} parent=1 // pred_check_branch
      %127 = sbr.rel (0) target = $region13
    $region12: #{outer_simplicial_forward.1} parent=1 // pred_region
      _
    $region13: #{outer_simplicial_forward.1} parent=1 // pred_fallthru
      _
    // Predicated region
    $region14: #{outer_simplicial_forward.1} parent=1 // pred_check
      _
    $region15: #{outer_simplicial_forward.1} parent=1 // pred_check_branch
      %129 = sbr.rel (0) target = $region17
    $region16: #{outer_simplicial_forward.1} parent=1 // pred_region
      _
    $region17: #{outer_simplicial_forward.1} parent=1 // pred_fallthru
      _
    // Predicated region
    $region18: #{outer_simplicial_forward.1} parent=1 // pred_check
      _
    $region19: #{outer_simplicial_forward.1} parent=1 // pred_check_branch
      %131 = sbr.rel (0) target = $region21
    $region20: #{outer_simplicial_forward.1} parent=1 // pred_region
      _
    $region21: #{outer_simplicial_forward.1} parent=1 // pred_fallthru
      _
    // Predicated region
    $region22: #{outer_simplicial_forward.1} parent=1 // pred_check
      _
    $region23: #{outer_simplicial_forward.1} parent=1 // pred_check_branch
      %133 = sbr.rel (0) target = $region25
    $region24: #{outer_simplicial_forward.1} parent=1 // pred_region
      _
    $region25: #{outer_simplicial_forward.1} parent=1 // pred_fallthru
      _
    // Predicated region
    $region26: #{outer_simplicial_forward.1} parent=1 // pred_check
      _
    $region27: #{outer_simplicial_forward.1} parent=1 // pred_check_branch
      %135 = sbr.rel (0) target = $region29
    $region28: #{outer_simplicial_forward.1} parent=1 // pred_region
      _
    $region29: #{outer_simplicial_forward.1} parent=1 // pred_fallthru
      _
    // Predicated region
    $region30: #{outer_simplicial_forward.1} parent=1 // pred_check
      _
    $region31: #{outer_simplicial_forward.1} parent=1 // pred_check_branch
      %137 = sbr.rel (0) target = $region33
    $region32: #{outer_simplicial_forward.1} parent=1 // pred_region
      _
    $region33: #{outer_simplicial_forward.1} parent=1 // pred_fallthru
      _
    // Predicated region
    $region34: #{outer_simplicial_forward.1} parent=1 // pred_check
      _
    $region35: #{outer_simplicial_forward.1} parent=1 // pred_check_branch
      %139 = sbr.rel (0) target = $region37
    $region36: #{outer_simplicial_forward.1} parent=1 // pred_region
      _
    $region37: #{outer_simplicial_forward.1} parent=1 // pred_fallthru
      _
    // Predicated region
    $region38: #{outer_simplicial_forward.1} parent=1 // pred_check
      _
    $region39: #{outer_simplicial_forward.1} parent=1 // pred_check_branch
      %141 = sbr.rel (0) target = $region41
    $region40: #{outer_simplicial_forward.1} parent=1 // pred_region
      _
    $region41: #{outer_simplicial_forward.1} parent=1 // pred_fallthru
      _
    // Predicated region
    $region42: #{outer_simplicial_forward.1} parent=1 // pred_check
      _
    $region43: #{outer_simplicial_forward.1} parent=1 // pred_check_branch
      %143 = sbr.rel (0) target = $region45
    $region44: #{outer_simplicial_forward.1} parent=1 // pred_region
      _
    $region45: #{outer_simplicial_forward.1} parent=1 // pred_fallthru
      _
    // Predicated region
    $region46: #{outer_simplicial_forward.1} parent=1 // pred_check
      _
    $region47: #{outer_simplicial_forward.1} parent=1 // pred_check_branch
      %145 = sbr.rel (0) target = $region49
    $region48: #{outer_simplicial_forward.1} parent=1 // pred_region
      _
    $region49: #{outer_simplicial_forward.1} parent=1 // pred_fallthru
      _
    // Predicated region
    $region50: #{outer_simplicial_forward.1} parent=1 // pred_check
      _
    $region51: #{outer_simplicial_forward.1} parent=1 // pred_check_branch
      %147 = sbr.rel (0) target = $region53
    $region52: #{outer_simplicial_forward.1} parent=1 // pred_region
      _
    $region53: #{outer_simplicial_forward.1} parent=1 // pred_fallthru
      _
    // Predicated region
    $region54: #{outer_simplicial_forward.1} parent=1 // pred_check
      _
    $region55: #{outer_simplicial_forward.1} parent=1 // pred_check_branch
      %149 = sbr.rel (0) target = $region57
    $region56: #{outer_simplicial_forward.1} parent=1 // pred_region
      _
    $region57: #{outer_simplicial_forward.1} parent=1 // pred_fallthru
      _
    // Predicated region
    $region58: #{outer_simplicial_forward.1} parent=1 // pred_check
      _
    $region59: #{outer_simplicial_forward.1} parent=1 // pred_check_branch
      %151 = sbr.rel (0) target = $region61
    $region60: #{outer_simplicial_forward.1} parent=1 // pred_region
      _
    $region61: #{outer_simplicial_forward.1} parent=1 // pred_fallthru
      _
    // Predicated region
    $region62: #{outer_simplicial_forward.1} parent=1 // pred_check
      _
    $region63: #{outer_simplicial_forward.1} parent=1 // pred_check_branch
      %153 = sbr.rel (0) target = $region65
    $region64: #{outer_simplicial_forward.1} parent=1 // pred_region
      _
    $region65: #{outer_simplicial_forward.1} parent=1 // pred_fallthru
      _
    // Predicated region
    $region66: #{outer_simplicial_forward.1} parent=1 // pred_check
      _
    $region67: #{outer_simplicial_forward.1} parent=1 // pred_check_branch
      %155 = sbr.rel (0) target = $region69
    $region68: #{outer_simplicial_forward.1} parent=1 // pred_region
      _
    $region69: #{outer_simplicial_forward.1} parent=1 // pred_fallthru
      _
    // Predicated region
    $region70: #{outer_simplicial_forward.1} parent=1 // pred_check
      _
    $region71: #{outer_simplicial_forward.1} parent=1 // pred_check_branch
      %157 = sbr.rel (0) target = $region73
    $region72: #{outer_simplicial_forward.1} parent=1 // pred_region
      _
    $region73: #{outer_simplicial_forward.1} parent=1 // pred_fallthru
      _
    // Predicated region
    $region74: #{outer_simplicial_forward.1} parent=1 // pred_check
      _
    $region75: #{outer_simplicial_forward.1} parent=1 // pred_check_branch
      %159 = sbr.rel (0) target = $region77
    $region76: #{outer_simplicial_forward.1} parent=1 // pred_region
      _
    $region77: #{outer_simplicial_forward.1} parent=1 // pred_fallthru
      _
    // Predicated region
    $region78: #{outer_simplicial_forward.1} parent=1 // pred_check
      _
    $region79: #{outer_simplicial_forward.1} parent=1 // pred_check_branch
      %161 = sbr.rel (0) target = $region81
    $region80: #{outer_simplicial_forward.1} parent=1 // pred_region
      _
    $region81: #{outer_simplicial_forward.1} parent=1 // pred_fallthru
      _
    // Predicated region
    $region82: #{outer_simplicial_forward.1} parent=1 // pred_check
      _
    $region83: #{outer_simplicial_forward.1} parent=1 // pred_check_branch
      %163 = sbr.rel (0) target = $region85
    $region84: #{outer_simplicial_forward.1} parent=1 // pred_region
      _
    $region85: #{outer_simplicial_forward.1} parent=1 // pred_fallthru
      _
    // Predicated region
    $region86: #{outer_simplicial_forward.1} parent=1 // pred_check
      _
    $region87: #{outer_simplicial_forward.1} parent=1 // pred_check_branch
      %165 = sbr.rel (0) target = $region89
    $region88: #{outer_simplicial_forward.1} parent=1 // pred_region
      _
    $region89: #{outer_simplicial_forward.1} parent=1 // pred_fallthru
      _
    // Predicated region
    $region90: #{outer_simplicial_forward.1} parent=1 // pred_check
      _
    $region91: #{outer_simplicial_forward.1} parent=1 // pred_check_branch
      %167 = sbr.rel (0) target = $region93
    $region92: #{outer_simplicial_forward.1} parent=1 // pred_region
      _
    $region93: #{outer_simplicial_forward.1} parent=1 // pred_fallthru
      _
    // Predicated region
    $region94: #{outer_simplicial_forward.1} parent=1 // pred_check
      _
    $region95: #{outer_simplicial_forward.1} parent=1 // pred_check_branch
      %169 = sbr.rel (0) target = $region97
    $region96: #{outer_simplicial_forward.1} parent=1 // pred_region
      _
    $region97: #{outer_simplicial_forward.1} parent=1 // pred_fallthru
      _
    // Predicated region
    $region98: #{outer_simplicial_forward.1} parent=1 // pred_check
      _
    $region99: #{outer_simplicial_forward.1} parent=1 // pred_check_branch
      %171 = sbr.rel (0) target = $region101
    $region100: #{outer_simplicial_forward.1} parent=1 // pred_region
      _
    $region101: #{outer_simplicial_forward.1} parent=1 // pred_fallthru
      _
    // Predicated region
    $region102: #{outer_simplicial_forward.1} parent=1 // pred_check
      _
    $region103: #{outer_simplicial_forward.1} parent=1 // pred_check_branch
      %173 = sbr.rel (0) target = $region105
    $region104: #{outer_simplicial_forward.1} parent=1 // pred_region
      _
    $region105: #{outer_simplicial_forward.1} parent=1 // pred_fallthru
      _
    // Predicated region
    $region106: #{outer_simplicial_forward.1} parent=1 // pred_check
      _
    $region107: #{outer_simplicial_forward.1} parent=1 // pred_check_branch
      %175 = sbr.rel (0) target = $region109
    $region108: #{outer_simplicial_forward.1} parent=1 // pred_region
      _
    $region109: #{outer_simplicial_forward.1} parent=1 // pred_fallthru
      _
    // Predicated region
    $region110: #{outer_simplicial_forward.1} parent=1 // pred_check
      _
    $region111: #{outer_simplicial_forward.1} parent=1 // pred_check_branch
      %177 = sbr.rel (0) target = $region113
    $region112: #{outer_simplicial_forward.1} parent=1 // pred_region
      _
    $region113: #{outer_simplicial_forward.1} parent=1 // pred_fallthru
      _
    // Predicated region
    $region114: #{outer_simplicial_forward.1} parent=1 // pred_check
      _
    $region115: #{outer_simplicial_forward.1} parent=1 // pred_check_branch
      %179 = sbr.rel (0) target = $region117
    $region116: #{outer_simplicial_forward.1} parent=1 // pred_region
      _
    $region117: #{outer_simplicial_forward.1} parent=1 // pred_fallthru
      _
    // Predicated region
    $region118: #{outer_simplicial_forward.1} parent=1 // pred_check
      _
    $region119: #{outer_simplicial_forward.1} parent=1 // pred_check_branch
      %181 = sbr.rel (0) target = $region121
    $region120: #{outer_simplicial_forward.1} parent=1 // pred_region
      _
    $region121: #{outer_simplicial_forward.1} parent=1 // pred_fallthru
      _
    // Predicated region
    $region122: #{outer_simplicial_forward.1} parent=1 // pred_check
      _
    $region123: #{outer_simplicial_forward.1} parent=1 // pred_check_branch
      %183 = sbr.rel (0) target = $region125
    $region124: #{outer_simplicial_forward.1} parent=1 // pred_region
      _
    $region125: #{outer_simplicial_forward.1} parent=1 // pred_fallthru
      _
    // Predicated region
    $region126: #{outer_simplicial_forward.1} parent=1 // pred_check
      _
    $region127: #{outer_simplicial_forward.1} parent=1 // pred_check_branch
      %185 = sbr.rel (0) target = $region129
    $region128: #{outer_simplicial_forward.1} parent=1 // pred_region
      _
    $region129: #{outer_simplicial_forward.1} parent=1 // pred_fallthru
      _
    // Predicated region
    $region130: #{outer_simplicial_forward.1} parent=1 // pred_check
      _
    $region131: #{outer_simplicial_forward.1} parent=1 // pred_check_branch
      %187 = sbr.rel (0) target = $region133
    $region132: #{outer_simplicial_forward.1} parent=1 // pred_region
      _
    $region133: #{outer_simplicial_forward.1} parent=1 // pred_fallthru
      _
    // Predicated region
    $region134: #{outer_simplicial_forward.1} parent=1 // pred_check
      _
    $region135: #{outer_simplicial_forward.1} parent=1 // pred_check_branch
      %189 = sbr.rel (0) target = $region137
    $region136: #{outer_simplicial_forward.1} parent=1 // pred_region
      _
    $region137: #{outer_simplicial_forward.1} parent=1 // pred_fallthru
      _
    // Predicated region
    $region138: #{outer_simplicial_forward.1} parent=1 // pred_check
      _
    $region139: #{outer_simplicial_forward.1} parent=1 // pred_check_branch
      %191 = sbr.rel (0) target = $region141
    $region140: #{outer_simplicial_forward.1} parent=1 // pred_region
      _
    $region141: #{outer_simplicial_forward.1} parent=1 // pred_fallthru
      _
    // Predicated region
    $region142: #{outer_simplicial_forward.1} parent=1 // pred_check
      _
    $region143: #{outer_simplicial_forward.1} parent=1 // pred_check_branch
      %193 = sbr.rel (0) target = $region145
    $region144: #{outer_simplicial_forward.1} parent=1 // pred_region
      _
    $region145: #{outer_simplicial_forward.1} parent=1 // pred_fallthru
      _
    // Predicated region
    $region146: #{outer_simplicial_forward.1} parent=1 // pred_check
      _
    $region147: #{outer_simplicial_forward.1} parent=1 // pred_check_branch
      %195 = sbr.rel (0) target = $region149
    $region148: #{outer_simplicial_forward.1} parent=1 // pred_region
      _
    $region149: #{outer_simplicial_forward.1} parent=1 // pred_fallthru
      _
    // Predicated region
    $region150: #{outer_simplicial_forward.1} parent=1 // pred_check
      _
    $region151: #{outer_simplicial_forward.1} parent=1 // pred_check_branch
      %197 = sbr.rel (0) target = $region153
    $region152: #{outer_simplicial_forward.1} parent=1 // pred_region
      _
    $region153: #{outer_simplicial_forward.1} parent=1 // pred_fallthru
      _
    // Predicated region
    $region154: #{outer_simplicial_forward.1} parent=1 // pred_check
      _
    $region155: #{outer_simplicial_forward.1} parent=1 // pred_check_branch
      %199 = sbr.rel (0) target = $region157
    $region156: #{outer_simplicial_forward.1} parent=1 // pred_region
      _
    $region157: #{outer_simplicial_forward.1} parent=1 // pred_fallthru
      _
    // Predicated region
    $region158: #{outer_simplicial_forward.1} parent=1 // pred_check
      _
    $region159: #{outer_simplicial_forward.1} parent=1 // pred_check_branch
      %201 = sbr.rel (0) target = $region161
    $region160: #{outer_simplicial_forward.1} parent=1 // pred_region
      _
    $region161: #{outer_simplicial_forward.1} parent=1 // pred_fallthru
      _
    // Predicated region
    $region162: #{outer_simplicial_forward.1} parent=1 // pred_check
      _
    $region163: #{outer_simplicial_forward.1} parent=1 // pred_check_branch
      %203 = sbr.rel (0) target = $region165
    $region164: #{outer_simplicial_forward.1} parent=1 // pred_region
      _
    $region165: #{outer_simplicial_forward.1} parent=1 // pred_fallthru
      _
    // Predicated region
    $region166: #{outer_simplicial_forward.1} parent=1 // pred_check
      _
    $region167: #{outer_simplicial_forward.1} parent=1 // pred_check_branch
      %205 = sbr.rel (0) target = $region169
    $region168: #{outer_simplicial_forward.1} parent=1 // pred_region
      _
    $region169: #{outer_simplicial_forward.1} parent=1 // pred_fallthru
      _
    // Predicated region
    $region170: #{outer_simplicial_forward.1} parent=1 // pred_check
      _
    $region171: #{outer_simplicial_forward.1} parent=1 // pred_check_branch
      %207 = sbr.rel (0) target = $region173
    $region172: #{outer_simplicial_forward.1} parent=1 // pred_region
      _
    $region173: #{outer_simplicial_forward.1} parent=1 // pred_fallthru
      _
    // Predicated region
    $region174: #{outer_simplicial_forward.1} parent=1 // pred_check
      _
    $region175: #{outer_simplicial_forward.1} parent=1 // pred_check_branch
      %209 = sbr.rel (0) target = $region177
    $region176: #{outer_simplicial_forward.1} parent=1 // pred_region
      _
    $region177: #{outer_simplicial_forward.1} parent=1 // pred_fallthru
      _
    // Predicated region
    $region178: #{outer_simplicial_forward.1} parent=1 // pred_check
      _
    $region179: #{outer_simplicial_forward.1} parent=1 // pred_check_branch
      %211 = sbr.rel (0) target = $region181
    $region180: #{outer_simplicial_forward.1} parent=1 // pred_region
      _
    $region181: #{outer_simplicial_forward.1} parent=1 // pred_fallthru
      _
    // Predicated region
    $region182: #{outer_simplicial_forward.1} parent=1 // pred_check
      _
    $region183: #{outer_simplicial_forward.1} parent=1 // pred_check_branch
      %213 = sbr.rel (0) target = $region185
    $region184: #{outer_simplicial_forward.1} parent=1 // pred_region
      _
    $region185: #{outer_simplicial_forward.1} parent=1 // pred_fallthru
      _
    // Predicated region
    $region186: #{outer_simplicial_forward.1} parent=1 // pred_check
      _
    $region187: #{outer_simplicial_forward.1} parent=1 // pred_check_branch
      %215 = sbr.rel (0) target = $region189
    $region188: #{outer_simplicial_forward.1} parent=1 // pred_region
      _
    $region189: #{outer_simplicial_forward.1} parent=1 // pred_fallthru
      _
    // Predicated region
    $region190: #{outer_simplicial_forward.1} parent=1 // pred_check
      _
    $region191: #{outer_simplicial_forward.1} parent=1 // pred_check_branch
      %217 = sbr.rel (0) target = $region193
    $region192: #{outer_simplicial_forward.1} parent=1 // pred_region
      %s219 = ssub.s32 16, 16
      %220 = vsyncadd [#allocation4], %s219
      %s222 = sshll.u32 [#allocation3], 4
      %s223 = int_to_ptr.vmem [resolvable:$true] %s222
      %225 = dma.hbm_to_vmem [thread:$0]  %s95, 16, %s223, [#allocation4]
    $region193: #{outer_simplicial_forward.1} parent=1 // pred_fallthru
      _
    // Predicated region
    $region194: #{outer_simplicial_forward.1} parent=1 // pred_check
      _
    $region195: #{outer_simplicial_forward.1} parent=1 // pred_check_branch
      %227 = sbr.rel (0) target = $region197
    $region196: #{outer_simplicial_forward.1} parent=1 // pred_region
      _
    $region197: #{outer_simplicial_forward.1} parent=1 // pred_fallthru
      _
    // Predicated region
    $region198: #{outer_simplicial_forward.1} parent=1 // pred_check
      _
    $region199: #{outer_simplicial_forward.1} parent=1 // pred_check_branch
      %229 = sbr.rel (0) target = $region201
    $region200: #{outer_simplicial_forward.1} parent=1 // pred_region
      %s231 = ssub.s32 16, 16
      %232 = vsyncadd [#allocation6], %s231
      %s234 = sshll.u32 [#allocation5], 4
      %s235 = int_to_ptr.vmem [resolvable:$true] %s234
      %237 = dma.hbm_to_vmem [thread:$0]  %s99, 16, %s235, [#allocation6]
    $region201: #{outer_simplicial_forward.1} parent=1 // pred_fallthru
      _
    // Predicated region
    $region202: #{outer_simplicial_forward.1} parent=1 // pred_check
      _
    $region203: #{outer_simplicial_forward.1} parent=1 // pred_check_branch
      %239 = sbr.rel (0) target = $region205
    $region204: #{outer_simplicial_forward.1} parent=1 // pred_region
      _
    $region205: #{outer_simplicial_forward.1} parent=1 // pred_fallthru
      _
    // Predicated region
    $region206: #{outer_simplicial_forward.1} parent=1 // pred_check
      _
    $region207: #{outer_simplicial_forward.1} parent=1 // pred_check_branch
      %241 = sbr.rel (0) target = $region209
    $region208: #{outer_simplicial_forward.1} parent=1 // pred_region
      _
    $region209: #{outer_simplicial_forward.1} parent=1 // pred_fallthru
      _
    // Predicated region
    $region210: #{outer_simplicial_forward.1} parent=1 // pred_check
      _
    $region211: #{outer_simplicial_forward.1} parent=1 // pred_check_branch
      %243 = sbr.rel (0) target = $region213
    $region212: #{outer_simplicial_forward.1} parent=1 // pred_region
      _
    $region213: #{outer_simplicial_forward.1} parent=1 // pred_fallthru
      _
    // Predicated region
    $region214: #{outer_simplicial_forward.1} parent=1 // pred_check
      _
    $region215: #{outer_simplicial_forward.1} parent=1 // pred_check_branch
      %245 = sbr.rel (0) target = $region217
    $region216: #{outer_simplicial_forward.1} parent=1 // pred_region
      %s247 = ssub.s32 16, 16
      %248 = vsyncadd [#allocation6], %s247
      %s250 = sshll.u32 [#allocation7], 4
      %s251 = int_to_ptr.vmem [resolvable:$true] %s250
      %253 = dma.hbm_to_vmem [thread:$0]  %s107, 16, %s251, [#allocation6]
    $region217: #{outer_simplicial_forward.1} parent=1 // pred_fallthru
      _
    // Predicated region
    $region218: #{outer_simplicial_forward.1} parent=1 // pred_check
      _
    $region219: #{outer_simplicial_forward.1} parent=1 // pred_check_branch
      %255 = sbr.rel (0) target = $region221
    $region220: #{outer_simplicial_forward.1} parent=1 // pred_region
      _
    $region221: #{outer_simplicial_forward.1} parent=1 // pred_fallthru
      _
    // Predicated region
    $region222: #{outer_simplicial_forward.1} parent=1 // pred_check
      _
    $region223: #{outer_simplicial_forward.1} parent=1 // pred_check_branch
      %257 = sbr.rel (0) target = $region225
    $region224: #{outer_simplicial_forward.1} parent=1 // pred_region
      _
    $region225: #{outer_simplicial_forward.1} parent=1 // pred_fallthru
      _
    // Predicated region
    $region226: #{outer_simplicial_forward.1} parent=1 // pred_check
      _
    $region227: #{outer_simplicial_forward.1} parent=1 // pred_check_branch
      %259 = sbr.rel (0) target = $region229
    $region228: #{outer_simplicial_forward.1} parent=1 // pred_region
      %260 = dma.done [#allocation4], 16
    $region229: #{outer_simplicial_forward.1} parent=1 // pred_fallthru
      _
    // Predicated region
    $region230: #{outer_simplicial_forward.1} parent=1 // pred_check
      _
    $region231: #{outer_simplicial_forward.1} parent=1 // pred_check_branch
      %262 = sbr.rel (0) target = $region233
    $region232: #{outer_simplicial_forward.1} parent=1 // pred_region
      %263 = dma.done [#allocation6], 16
    $region233: #{outer_simplicial_forward.1} parent=1 // pred_fallthru
      _
    // Predicated region
    $region234: #{outer_simplicial_forward.1} parent=1 // pred_check
      _
    $region235: #{outer_simplicial_forward.1} parent=1 // pred_check_branch
      %265 = sbr.rel (0) target = $region237
    $region236: #{outer_simplicial_forward.1} parent=1 // pred_region
      %266 = dma.done [#allocation6], 16
    $region237: #{outer_simplicial_forward.1} parent=1 // pred_fallthru
      _
    %v267 = vld [vmem:[%s1] sm:$0xff]
    %v268 = vld [vmem:[%s1 + $0x8] sm:$0xff]
    %v269 = vld [vmem:[%s1 + $0x10] sm:$0xff]
    %v270 = vld [vmem:[%s1 + $0x18] sm:$0xff]
    %v271 = vld [vmem:[%s3] sm:$0xff]
    %v272 = vld [vmem:[%s3 + $0x8] sm:$0xff]
    %v273 = vld [vmem:[%s3 + $0x10] sm:$0xff]
    %v274 = vld [vmem:[%s3 + $0x18] sm:$0xff]
    %v275 = vld [vmem:[%s5] sm:$0xff]
    %v276 = vld [vmem:[%s5 + $0x8] sm:$0xff]
    %v277 = vld [vmem:[%s5 + $0x10] sm:$0xff]
    %v278 = vld [vmem:[%s5 + $0x18] sm:$0xff]
    %v279 = vld [vmem:[%s5 + $0x20] sm:$0xff]
    %v280 = vld [vmem:[%s5 + $0x28] sm:$0xff]
    %v281 = vld [vmem:[%s5 + $0x30] sm:$0xff]
    %v282 = vld [vmem:[%s5 + $0x38] sm:$0xff]
    %v283 = vld [vmem:[%s7] sm:$0xff]
    %v284 = vld [vmem:[%s7 + $0x8] sm:$0xff]
    %v285 = vld [vmem:[%s7 + $0x10] sm:$0xff]
    %v286 = vld [vmem:[%s7 + $0x18] sm:$0xff]
    %v287 = vld [vmem:[%s7 + $0x20] sm:$0xff]
    %v288 = vld [vmem:[%s7 + $0x28] sm:$0xff]
    %v289 = vld [vmem:[%s7 + $0x30] sm:$0xff]
    %v290 = vld [vmem:[%s7 + $0x38] sm:$0xff]
    %v291 = vld [vmem:[%s9] sm:$0xff]
    %v292 = vld [vmem:[%s9 + $0x8] sm:$0xff]
    %v293 = vld [vmem:[%s9 + $0x10] sm:$0xff]
    %v294 = vld [vmem:[%s9 + $0x18] sm:$0xff]
    %v295 = vld [vmem:[%s11] sm:$0xff]
    %v296 = vld [vmem:[%s11 + $0x8] sm:$0xff]
    %v297 = vld [vmem:[%s11 + $0x10] sm:$0xff]
    %v298 = vld [vmem:[%s11 + $0x18] sm:$0xff]
    %v299 = vld [vmem:[%s13] sm:$0xff]
    %v300 = vld [vmem:[%s13 + $0x8] sm:$0xff]
    %v301 = vld [vmem:[%s13 + $0x10] sm:$0xff]
    %v302 = vld [vmem:[%s13 + $0x18] sm:$0xff]
    %v303 = vld [vmem:[%s15] sm:$0x1]
    %v304 = vld [vmem:[%s17] sm:$0xff]
    %v305 = vld [vmem:[%s17 + $0x8] sm:$0xff]
    %v306 = vld [vmem:[%s17 + $0x10] sm:$0xff]
    %v307 = vld [vmem:[%s17 + $0x18] sm:$0xff]
    %v308 = vld [vmem:[%s17 + $0x20] sm:$0xff]
    %v309 = vld [vmem:[%s17 + $0x28] sm:$0xff]
    %v310 = vld [vmem:[%s17 + $0x30] sm:$0xff]
    %v311 = vld [vmem:[%s17 + $0x38] sm:$0xff]
    %v312 = vld [vmem:[%s17 + $0x40] sm:$0xff]
    %v313 = vld [vmem:[%s17 + $0x48] sm:$0xff]
    %v314 = vld [vmem:[%s17 + $0x50] sm:$0xff]
    %v315 = vld [vmem:[%s17 + $0x58] sm:$0xff]
    %v316 = vld [vmem:[%s19] sm:$0x7]
    %v317 = vld [vmem:[%s21] sm:$0xff]
    %v318 = vld [vmem:[%s21 + $0x8] sm:$0xff]
    %v319 = vld [vmem:[%s21 + $0x10] sm:$0xff]
    %v320 = vld [vmem:[%s21 + $0x18] sm:$0xff]
    %v321 = vld [vmem:[%s21 + $0x20] sm:$0xff]
    %v322 = vld [vmem:[%s21 + $0x28] sm:$0xff]
    %v323 = vld [vmem:[%s21 + $0x30] sm:$0xff]
    %v324 = vld [vmem:[%s21 + $0x38] sm:$0xff]
    %v325 = vld [vmem:[%s21 + $0x40] sm:$0xff]
    %v326 = vld [vmem:[%s21 + $0x48] sm:$0xff]
    %v327 = vld [vmem:[%s21 + $0x50] sm:$0xff]
    %v328 = vld [vmem:[%s21 + $0x58] sm:$0xff]
    %v329 = vld [vmem:[%s21 + $0x60] sm:$0xff]
    %v330 = vld [vmem:[%s21 + $0x68] sm:$0xff]
    %v331 = vld [vmem:[%s21 + $0x70] sm:$0xff]
    %v332 = vld [vmem:[%s21 + $0x78] sm:$0xff]
    %v333 = vld [vmem:[%s21 + $0x80] sm:$0xff]
    %v334 = vld [vmem:[%s21 + $0x88] sm:$0xff]
    %v335 = vld [vmem:[%s21 + $0x90] sm:$0xff]
    %v336 = vld [vmem:[%s21 + $0x98] sm:$0xff]
    %v337 = vld [vmem:[%s21 + $0xa0] sm:$0xff]
    %v338 = vld [vmem:[%s21 + $0xa8] sm:$0xff]
    %v339 = vld [vmem:[%s21 + $0xb0] sm:$0xff]
    %v340 = vld [vmem:[%s21 + $0xb8] sm:$0xff]
    %v341 = vld [vmem:[%s21 + $0xc0] sm:$0xff]
    %v342 = vld [vmem:[%s21 + $0xc8] sm:$0xff]
    %v343 = vld [vmem:[%s21 + $0xd0] sm:$0xff]
    %v344 = vld [vmem:[%s21 + $0xd8] sm:$0xff]
    %v345 = vld [vmem:[%s21 + $0xe0] sm:$0xff]
    %v346 = vld [vmem:[%s21 + $0xe8] sm:$0xff]
    %v347 = vld [vmem:[%s21 + $0xf0] sm:$0xff]
    %v348 = vld [vmem:[%s21 + $0xf8] sm:$0xff]
    %v349 = vld [vmem:[%s21 + $0x100] sm:$0xff]
    %v350 = vld [vmem:[%s21 + $0x108] sm:$0xff]
    %v351 = vld [vmem:[%s21 + $0x110] sm:$0xff]
    %v352 = vld [vmem:[%s21 + $0x118] sm:$0xff]
    %v353 = vld [vmem:[%s21 + $0x120] sm:$0xff]
    %v354 = vld [vmem:[%s21 + $0x128] sm:$0xff]
    %v355 = vld [vmem:[%s21 + $0x130] sm:$0xff]
    %v356 = vld [vmem:[%s21 + $0x138] sm:$0xff]
    %v357 = vld [vmem:[%s23] sm:$0x1]
    %v358 = vld [vmem:[%s25] sm:$0xff]
    %v359 = vld [vmem:[%s25 + $0x8] sm:$0xff]
    %v360 = vld [vmem:[%s25 + $0x10] sm:$0xff]
    %v361 = vld [vmem:[%s25 + $0x18] sm:$0xff]
    %v362 = vld [vmem:[%s27] sm:$0x1]
    %v363 = vld [vmem:[%s29] sm:$0xff]
    %v364 = vld [vmem:[%s29 + $0x8] sm:$0xff]
    %v365 = vld [vmem:[%s29 + $0x10] sm:$0xff]
    %v366 = vld [vmem:[%s29 + $0x18] sm:$0xff]
    %v367 = vld [vmem:[%s31] sm:$0x1]
    %v368 = vld [vmem:[%s33] sm:$0xff]
    %v369 = vld [vmem:[%s33 + $0x8] sm:$0xff]
    %v370 = vld [vmem:[%s33 + $0x10] sm:$0xff]
    %v371 = vld [vmem:[%s33 + $0x18] sm:$0xff]
    %v372 = vld [vmem:[%s33 + $0x20] sm:$0xff]
    %v373 = vld [vmem:[%s33 + $0x28] sm:$0xff]
    %v374 = vld [vmem:[%s33 + $0x30] sm:$0xff]
    %v375 = vld [vmem:[%s33 + $0x38] sm:$0xff]
    %v376 = vld [vmem:[%s33 + $0x40] sm:$0xff]
    %v377 = vld [vmem:[%s33 + $0x48] sm:$0xff]
    %v378 = vld [vmem:[%s33 + $0x50] sm:$0xff]
    %v379 = vld [vmem:[%s33 + $0x58] sm:$0xff]
    %v380 = vld [vmem:[%s35] sm:$0x7]
    %v381 = vld [vmem:[%s37] sm:$0xff]
    %v382 = vld [vmem:[%s37 + $0x8] sm:$0xff]
    %v383 = vld [vmem:[%s37 + $0x10] sm:$0xff]
    %v384 = vld [vmem:[%s37 + $0x18] sm:$0xff]
    %v385 = vld [vmem:[%s37 + $0x20] sm:$0xff]
    %v386 = vld [vmem:[%s37 + $0x28] sm:$0xff]
    %v387 = vld [vmem:[%s37 + $0x30] sm:$0xff]
    %v388 = vld [vmem:[%s37 + $0x38] sm:$0xff]
    %v389 = vld [vmem:[%s37 + $0x40] sm:$0xff]
    %v390 = vld [vmem:[%s37 + $0x48] sm:$0xff]
    %v391 = vld [vmem:[%s37 + $0x50] sm:$0xff]
    %v392 = vld [vmem:[%s37 + $0x58] sm:$0xff]
    %v393 = vld [vmem:[%s37 + $0x60] sm:$0xff]
    %v394 = vld [vmem:[%s37 + $0x68] sm:$0xff]
    %v395 = vld [vmem:[%s37 + $0x70] sm:$0xff]
    %v396 = vld [vmem:[%s37 + $0x78] sm:$0xff]
    %v397 = vld [vmem:[%s37 + $0x80] sm:$0xff]
    %v398 = vld [vmem:[%s37 + $0x88] sm:$0xff]
    %v399 = vld [vmem:[%s37 + $0x90] sm:$0xff]
    %v400 = vld [vmem:[%s37 + $0x98] sm:$0xff]
    %v401 = vld [vmem:[%s37 + $0xa0] sm:$0xff]
    %v402 = vld [vmem:[%s37 + $0xa8] sm:$0xff]
    %v403 = vld [vmem:[%s37 + $0xb0] sm:$0xff]
    %v404 = vld [vmem:[%s37 + $0xb8] sm:$0xff]
    %v405 = vld [vmem:[%s37 + $0xc0] sm:$0xff]
    %v406 = vld [vmem:[%s37 + $0xc8] sm:$0xff]
    %v407 = vld [vmem:[%s37 + $0xd0] sm:$0xff]
    %v408 = vld [vmem:[%s37 + $0xd8] sm:$0xff]
    %v409 = vld [vmem:[%s37 + $0xe0] sm:$0xff]
    %v410 = vld [vmem:[%s37 + $0xe8] sm:$0xff]
    %v411 = vld [vmem:[%s37 + $0xf0] sm:$0xff]
    %v412 = vld [vmem:[%s37 + $0xf8] sm:$0xff]
    %v413 = vld [vmem:[%s37 + $0x100] sm:$0xff]
    %v414 = vld [vmem:[%s37 + $0x108] sm:$0xff]
    %v415 = vld [vmem:[%s37 + $0x110] sm:$0xff]
    %v416 = vld [vmem:[%s37 + $0x118] sm:$0xff]
    %v417 = vld [vmem:[%s37 + $0x120] sm:$0xff]
    %v418 = vld [vmem:[%s37 + $0x128] sm:$0xff]
    %v419 = vld [vmem:[%s37 + $0x130] sm:$0xff]
    %v420 = vld [vmem:[%s37 + $0x138] sm:$0xff]
    %v421 = vld [vmem:[%s39] sm:$0x1]
    %v422 = vld [vmem:[%s41] sm:$0xff]
    %v423 = vld [vmem:[%s41 + $0x8] sm:$0xff]
    %v424 = vld [vmem:[%s41 + $0x10] sm:$0xff]
    %v425 = vld [vmem:[%s41 + $0x18] sm:$0xff]
    %v426 = vld [vmem:[%s43] sm:$0x1]
    %v427 = vld [vmem:[%s45] sm:$0xff]
    %v428 = vld [vmem:[%s45 + $0x8] sm:$0xff]
    %v429 = vld [vmem:[%s45 + $0x10] sm:$0xff]
    %v430 = vld [vmem:[%s45 + $0x18] sm:$0xff]
    %v431 = vld [vmem:[%s45 + $0x20] sm:$0xff]
    %v432 = vld [vmem:[%s45 + $0x28] sm:$0xff]
    %v433 = vld [vmem:[%s45 + $0x30] sm:$0xff]
    %v434 = vld [vmem:[%s45 + $0x38] sm:$0xff]
    %v435 = vld [vmem:[%s45 + $0x40] sm:$0xff]
    %v436 = vld [vmem:[%s45 + $0x48] sm:$0xff]
    %v437 = vld [vmem:[%s45 + $0x50] sm:$0xff]
    %v438 = vld [vmem:[%s45 + $0x58] sm:$0xff]
    %v439 = vld [vmem:[%s47] sm:$0x7]
    %v440 = vld [vmem:[%s49] sm:$0xff]
    %v441 = vld [vmem:[%s49 + $0x8] sm:$0xff]
    %v442 = vld [vmem:[%s49 + $0x10] sm:$0xff]
    %v443 = vld [vmem:[%s49 + $0x18] sm:$0xff]
    %v444 = vld [vmem:[%s49 + $0x20] sm:$0xff]
    %v445 = vld [vmem:[%s49 + $0x28] sm:$0xff]
    %v446 = vld [vmem:[%s49 + $0x30] sm:$0xff]
    %v447 = vld [vmem:[%s49 + $0x38] sm:$0xff]
    %v448 = vld [vmem:[%s49 + $0x40] sm:$0xff]
    %v449 = vld [vmem:[%s49 + $0x48] sm:$0xff]
    %v450 = vld [vmem:[%s49 + $0x50] sm:$0xff]
    %v451 = vld [vmem:[%s49 + $0x58] sm:$0xff]
    %v452 = vld [vmem:[%s49 + $0x60] sm:$0xff]
    %v453 = vld [vmem:[%s49 + $0x68] sm:$0xff]
    %v454 = vld [vmem:[%s49 + $0x70] sm:$0xff]
    %v455 = vld [vmem:[%s49 + $0x78] sm:$0xff]
    %v456 = vld [vmem:[%s49 + $0x80] sm:$0xff]
    %v457 = vld [vmem:[%s49 + $0x88] sm:$0xff]
    %v458 = vld [vmem:[%s49 + $0x90] sm:$0xff]
    %v459 = vld [vmem:[%s49 + $0x98] sm:$0xff]
    %v460 = vld [vmem:[%s49 + $0xa0] sm:$0xff]
    %v461 = vld [vmem:[%s49 + $0xa8] sm:$0xff]
    %v462 = vld [vmem:[%s49 + $0xb0] sm:$0xff]
    %v463 = vld [vmem:[%s49 + $0xb8] sm:$0xff]
    %v464 = vld [vmem:[%s49 + $0xc0] sm:$0xff]
    %v465 = vld [vmem:[%s49 + $0xc8] sm:$0xff]
    %v466 = vld [vmem:[%s49 + $0xd0] sm:$0xff]
    %v467 = vld [vmem:[%s49 + $0xd8] sm:$0xff]
    %v468 = vld [vmem:[%s49 + $0xe0] sm:$0xff]
    %v469 = vld [vmem:[%s49 + $0xe8] sm:$0xff]
    %v470 = vld [vmem:[%s49 + $0xf0] sm:$0xff]
    %v471 = vld [vmem:[%s49 + $0xf8] sm:$0xff]
    %v472 = vld [vmem:[%s49 + $0x100] sm:$0xff]
    %v473 = vld [vmem:[%s49 + $0x108] sm:$0xff]
    %v474 = vld [vmem:[%s49 + $0x110] sm:$0xff]
    %v475 = vld [vmem:[%s49 + $0x118] sm:$0xff]
    %v476 = vld [vmem:[%s49 + $0x120] sm:$0xff]
    %v477 = vld [vmem:[%s49 + $0x128] sm:$0xff]
    %v478 = vld [vmem:[%s49 + $0x130] sm:$0xff]
    %v479 = vld [vmem:[%s49 + $0x138] sm:$0xff]
    %v480 = vld [vmem:[%s51] sm:$0x1]
    %v481 = vld [vmem:[%s53] sm:$0xff]
    %v482 = vld [vmem:[%s53 + $0x8] sm:$0xff]
    %v483 = vld [vmem:[%s53 + $0x10] sm:$0xff]
    %v484 = vld [vmem:[%s53 + $0x18] sm:$0xff]
    %v485 = vld [vmem:[%s55] sm:$0x1]
    %v486 = vld [vmem:[%s57] sm:$0xff]
    %v487 = vld [vmem:[%s57 + $0x8] sm:$0xff]
    %v488 = vld [vmem:[%s57 + $0x10] sm:$0xff]
    %v489 = vld [vmem:[%s57 + $0x18] sm:$0xff]
    %v490 = vld [vmem:[%s59] sm:$0x1]
    %v491 = vld [vmem:[%s61] sm:$0xff]
    %v492 = vld [vmem:[%s61 + $0x8] sm:$0xff]
    %v493 = vld [vmem:[%s61 + $0x10] sm:$0xff]
    %v494 = vld [vmem:[%s61 + $0x18] sm:$0xff]
    %v495 = vld [vmem:[%s61 + $0x20] sm:$0xff]
    %v496 = vld [vmem:[%s61 + $0x28] sm:$0xff]
    %v497 = vld [vmem:[%s61 + $0x30] sm:$0xff]
    %v498 = vld [vmem:[%s61 + $0x38] sm:$0xff]
    %v499 = vld [vmem:[%s61 + $0x40] sm:$0xff]
    %v500 = vld [vmem:[%s61 + $0x48] sm:$0xff]
    %v501 = vld [vmem:[%s61 + $0x50] sm:$0xff]
    %v502 = vld [vmem:[%s61 + $0x58] sm:$0xff]
    %v503 = vld [vmem:[%s63] sm:$0x7]
    %v504 = vld [vmem:[%s65] sm:$0xff]
    %v505 = vld [vmem:[%s65 + $0x8] sm:$0xff]
    %v506 = vld [vmem:[%s65 + $0x10] sm:$0xff]
    %v507 = vld [vmem:[%s65 + $0x18] sm:$0xff]
    %v508 = vld [vmem:[%s65 + $0x20] sm:$0xff]
    %v509 = vld [vmem:[%s65 + $0x28] sm:$0xff]
    %v510 = vld [vmem:[%s65 + $0x30] sm:$0xff]
    %v511 = vld [vmem:[%s65 + $0x38] sm:$0xff]
    %v512 = vld [vmem:[%s65 + $0x40] sm:$0xff]
    %v513 = vld [vmem:[%s65 + $0x48] sm:$0xff]
    %v514 = vld [vmem:[%s65 + $0x50] sm:$0xff]
    %v515 = vld [vmem:[%s65 + $0x58] sm:$0xff]
    %v516 = vld [vmem:[%s65 + $0x60] sm:$0xff]
    %v517 = vld [vmem:[%s65 + $0x68] sm:$0xff]
    %v518 = vld [vmem:[%s65 + $0x70] sm:$0xff]
    %v519 = vld [vmem:[%s65 + $0x78] sm:$0xff]
    %v520 = vld [vmem:[%s65 + $0x80] sm:$0xff]
    %v521 = vld [vmem:[%s65 + $0x88] sm:$0xff]
    %v522 = vld [vmem:[%s65 + $0x90] sm:$0xff]
    %v523 = vld [vmem:[%s65 + $0x98] sm:$0xff]
    %v524 = vld [vmem:[%s65 + $0xa0] sm:$0xff]
    %v525 = vld [vmem:[%s65 + $0xa8] sm:$0xff]
    %v526 = vld [vmem:[%s65 + $0xb0] sm:$0xff]
    %v527 = vld [vmem:[%s65 + $0xb8] sm:$0xff]
    %v528 = vld [vmem:[%s65 + $0xc0] sm:$0xff]
    %v529 = vld [vmem:[%s65 + $0xc8] sm:$0xff]
    %v530 = vld [vmem:[%s65 + $0xd0] sm:$0xff]
    %v531 = vld [vmem:[%s65 + $0xd8] sm:$0xff]
    %v532 = vld [vmem:[%s65 + $0xe0] sm:$0xff]
    %v533 = vld [vmem:[%s65 + $0xe8] sm:$0xff]
    %v534 = vld [vmem:[%s65 + $0xf0] sm:$0xff]
    %v535 = vld [vmem:[%s65 + $0xf8] sm:$0xff]
    %v536 = vld [vmem:[%s65 + $0x100] sm:$0xff]
    %v537 = vld [vmem:[%s65 + $0x108] sm:$0xff]
    %v538 = vld [vmem:[%s65 + $0x110] sm:$0xff]
    %v539 = vld [vmem:[%s65 + $0x118] sm:$0xff]
    %v540 = vld [vmem:[%s65 + $0x120] sm:$0xff]
    %v541 = vld [vmem:[%s65 + $0x128] sm:$0xff]
    %v542 = vld [vmem:[%s65 + $0x130] sm:$0xff]
    %v543 = vld [vmem:[%s65 + $0x138] sm:$0xff]
    %v544 = vld [vmem:[%s67] sm:$0x1]
    %v545 = vld [vmem:[%s69] sm:$0xff]
    %v546 = vld [vmem:[%s69 + $0x8] sm:$0xff]
    %v547 = vld [vmem:[%s69 + $0x10] sm:$0xff]
    %v548 = vld [vmem:[%s69 + $0x18] sm:$0xff]
    %v549 = vld [vmem:[%s71] sm:$0x1]
    %v550 = vld [vmem:[%s73] sm:$0xff]
    %v551 = vld [vmem:[%s73 + $0x8] sm:$0xff]
    %v552 = vld [vmem:[%s73 + $0x10] sm:$0xff]
    %v553 = vld [vmem:[%s73 + $0x18] sm:$0xff]
    %v554 = vld [vmem:[%s75] sm:$0x1]
    %v555 = vld [vmem:[%s77] sm:$0xff]
    %v556 = vld [vmem:[%s77 + $0x8] sm:$0xff]
    %v557 = vld [vmem:[%s77 + $0x10] sm:$0xff]
    %v558 = vld [vmem:[%s77 + $0x18] sm:$0xff]
    %v559 = vld [vmem:[%s77 + $0x20] sm:$0xff]
    %v560 = vld [vmem:[%s77 + $0x28] sm:$0xff]
    %v561 = vld [vmem:[%s77 + $0x30] sm:$0xff]
    %v562 = vld [vmem:[%s77 + $0x38] sm:$0xff]
    %v563 = vld [vmem:[%s77 + $0x40] sm:$0xff]
    %v564 = vld [vmem:[%s77 + $0x48] sm:$0xff]
    %v565 = vld [vmem:[%s77 + $0x50] sm:$0xff]
    %v566 = vld [vmem:[%s77 + $0x58] sm:$0xff]
    %v567 = vld [vmem:[%s79] sm:$0x7]
    %v568 = vld [vmem:[%s81] sm:$0xff]
    %v569 = vld [vmem:[%s81 + $0x8] sm:$0xff]
    %v570 = vld [vmem:[%s81 + $0x10] sm:$0xff]
    %v571 = vld [vmem:[%s81 + $0x18] sm:$0xff]
    %v572 = vld [vmem:[%s81 + $0x20] sm:$0xff]
    %v573 = vld [vmem:[%s81 + $0x28] sm:$0xff]
    %v574 = vld [vmem:[%s81 + $0x30] sm:$0xff]
    %v575 = vld [vmem:[%s81 + $0x38] sm:$0xff]
    %v576 = vld [vmem:[%s81 + $0x40] sm:$0xff]
    %v577 = vld [vmem:[%s81 + $0x48] sm:$0xff]
    %v578 = vld [vmem:[%s81 + $0x50] sm:$0xff]
    %v579 = vld [vmem:[%s81 + $0x58] sm:$0xff]
    %v580 = vld [vmem:[%s81 + $0x60] sm:$0xff]
    %v581 = vld [vmem:[%s81 + $0x68] sm:$0xff]
    %v582 = vld [vmem:[%s81 + $0x70] sm:$0xff]
    %v583 = vld [vmem:[%s81 + $0x78] sm:$0xff]
    %v584 = vld [vmem:[%s81 + $0x80] sm:$0xff]
    %v585 = vld [vmem:[%s81 + $0x88] sm:$0xff]
    %v586 = vld [vmem:[%s81 + $0x90] sm:$0xff]
    %v587 = vld [vmem:[%s81 + $0x98] sm:$0xff]
    %v588 = vld [vmem:[%s81 + $0xa0] sm:$0xff]
    %v589 = vld [vmem:[%s81 + $0xa8] sm:$0xff]
    %v590 = vld [vmem:[%s81 + $0xb0] sm:$0xff]
    %v591 = vld [vmem:[%s81 + $0xb8] sm:$0xff]
    %v592 = vld [vmem:[%s81 + $0xc0] sm:$0xff]
    %v593 = vld [vmem:[%s81 + $0xc8] sm:$0xff]
    %v594 = vld [vmem:[%s81 + $0xd0] sm:$0xff]
    %v595 = vld [vmem:[%s81 + $0xd8] sm:$0xff]
    %v596 = vld [vmem:[%s81 + $0xe0] sm:$0xff]
    %v597 = vld [vmem:[%s81 + $0xe8] sm:$0xff]
    %v598 = vld [vmem:[%s81 + $0xf0] sm:$0xff]
    %v599 = vld [vmem:[%s81 + $0xf8] sm:$0xff]
    %v600 = vld [vmem:[%s81 + $0x100] sm:$0xff]
    %v601 = vld [vmem:[%s81 + $0x108] sm:$0xff]
    %v602 = vld [vmem:[%s81 + $0x110] sm:$0xff]
    %v603 = vld [vmem:[%s81 + $0x118] sm:$0xff]
    %v604 = vld [vmem:[%s81 + $0x120] sm:$0xff]
    %v605 = vld [vmem:[%s81 + $0x128] sm:$0xff]
    %v606 = vld [vmem:[%s81 + $0x130] sm:$0xff]
    %v607 = vld [vmem:[%s81 + $0x138] sm:$0xff]
    %v608 = vld [vmem:[%s83] sm:$0x1]
    %v609 = vld [vmem:[%s85] sm:$0xff]
    %v610 = vld [vmem:[%s85 + $0x8] sm:$0xff]
    %v611 = vld [vmem:[%s85 + $0x10] sm:$0xff]
    %v612 = vld [vmem:[%s85 + $0x18] sm:$0xff]
    %v613 = vld [vmem:[%s87] sm:$0x1]
    %v614 = vld [vmem:[%s89] sm:$0xff]
    %v615 = vld [vmem:[%s89 + $0x8] sm:$0xff]
    %v616 = vld [vmem:[%s89 + $0x10] sm:$0xff]
    %v617 = vld [vmem:[%s89 + $0x18] sm:$0xff]
    %v618 = vld [vmem:[%s89 + $0x20] sm:$0xff]
    %v619 = vld [vmem:[%s89 + $0x28] sm:$0xff]
    %v620 = vld [vmem:[%s89 + $0x30] sm:$0xff]
    %v621 = vld [vmem:[%s89 + $0x38] sm:$0xff]
    %v622 = vld [vmem:[%s89 + $0x40] sm:$0xff]
    %v623 = vld [vmem:[%s89 + $0x48] sm:$0xff]
    %v624 = vld [vmem:[%s89 + $0x50] sm:$0xff]
    %v625 = vld [vmem:[%s89 + $0x58] sm:$0xff]
    %v626 = vld [vmem:[%s91] sm:$0x7]
    %v627 = vld [vmem:[%s93] sm:$0xff]
    %v628 = vld [vmem:[%s93 + $0x8] sm:$0xff]
    %v629 = vld [vmem:[%s93 + $0x10] sm:$0xff]
    %v630 = vld [vmem:[%s93 + $0x18] sm:$0xff]
    %v631 = vld [vmem:[%s93 + $0x20] sm:$0xff]
    %v632 = vld [vmem:[%s93 + $0x28] sm:$0xff]
    %v633 = vld [vmem:[%s93 + $0x30] sm:$0xff]
    %v634 = vld [vmem:[%s93 + $0x38] sm:$0xff]
    %v635 = vld [vmem:[%s93 + $0x40] sm:$0xff]
    %v636 = vld [vmem:[%s93 + $0x48] sm:$0xff]
    %v637 = vld [vmem:[%s93 + $0x50] sm:$0xff]
    %v638 = vld [vmem:[%s93 + $0x58] sm:$0xff]
    %v639 = vld [vmem:[%s93 + $0x60] sm:$0xff]
    %v640 = vld [vmem:[%s93 + $0x68] sm:$0xff]
    %v641 = vld [vmem:[%s93 + $0x70] sm:$0xff]
    %v642 = vld [vmem:[%s93 + $0x78] sm:$0xff]
    %v643 = vld [vmem:[%s93 + $0x80] sm:$0xff]
    %v644 = vld [vmem:[%s93 + $0x88] sm:$0xff]
    %v645 = vld [vmem:[%s93 + $0x90] sm:$0xff]
    %v646 = vld [vmem:[%s93 + $0x98] sm:$0xff]
    %v647 = vld [vmem:[%s93 + $0xa0] sm:$0xff]
    %v648 = vld [vmem:[%s93 + $0xa8] sm:$0xff]
    %v649 = vld [vmem:[%s93 + $0xb0] sm:$0xff]
    %v650 = vld [vmem:[%s93 + $0xb8] sm:$0xff]
    %v651 = vld [vmem:[%s93 + $0xc0] sm:$0xff]
    %v652 = vld [vmem:[%s93 + $0xc8] sm:$0xff]
    %v653 = vld [vmem:[%s93 + $0xd0] sm:$0xff]
    %v654 = vld [vmem:[%s93 + $0xd8] sm:$0xff]
    %v655 = vld [vmem:[%s93 + $0xe0] sm:$0xff]
    %v656 = vld [vmem:[%s93 + $0xe8] sm:$0xff]
    %v657 = vld [vmem:[%s93 + $0xf0] sm:$0xff]
    %v658 = vld [vmem:[%s93 + $0xf8] sm:$0xff]
    %v659 = vld [vmem:[%s93 + $0x100] sm:$0xff]
    %v660 = vld [vmem:[%s93 + $0x108] sm:$0xff]
    %v661 = vld [vmem:[%s93 + $0x110] sm:$0xff]
    %v662 = vld [vmem:[%s93 + $0x118] sm:$0xff]
    %v663 = vld [vmem:[%s93 + $0x120] sm:$0xff]
    %v664 = vld [vmem:[%s93 + $0x128] sm:$0xff]
    %v665 = vld [vmem:[%s93 + $0x130] sm:$0xff]
    %v666 = vld [vmem:[%s93 + $0x138] sm:$0xff]
    %v667 = vld [vmem:[#allocation3] sm:$0x1]
    %v668 = vld [vmem:[%s97] sm:$0xff]
    %v669 = vld [vmem:[%s97 + $0x8] sm:$0xff]
    %v670 = vld [vmem:[%s97 + $0x10] sm:$0xff]
    %v671 = vld [vmem:[%s97 + $0x18] sm:$0xff]
    %v672 = vld [vmem:[#allocation5] sm:$0x1]
    %v673 = vld [vmem:[%s101] sm:$0xff]
    %v674 = vld [vmem:[%s101 + $0x8] sm:$0xff]
    %v675 = vld [vmem:[%s101 + $0x10] sm:$0xff]
    %v676 = vld [vmem:[%s101 + $0x18] sm:$0xff]
    %v677 = vld [vmem:[%s101 + $0x20] sm:$0xff]
    %v678 = vld [vmem:[%s101 + $0x28] sm:$0xff]
    %v679 = vld [vmem:[%s101 + $0x30] sm:$0xff]
    %v680 = vld [vmem:[%s101 + $0x38] sm:$0xff]
    %v681 = vld [vmem:[%s101 + $0x40] sm:$0xff]
    %v682 = vld [vmem:[%s101 + $0x48] sm:$0xff]
    %v683 = vld [vmem:[%s101 + $0x50] sm:$0xff]
    %v684 = vld [vmem:[%s101 + $0x58] sm:$0xff]
    %v685 = vld [vmem:[%s101 + $0x60] sm:$0xff]
    %v686 = vld [vmem:[%s101 + $0x68] sm:$0xff]
    %v687 = vld [vmem:[%s101 + $0x70] sm:$0xff]
    %v688 = vld [vmem:[%s101 + $0x78] sm:$0xff]
    %v689 = vld [vmem:[%s101 + $0x80] sm:$0xff]
    %v690 = vld [vmem:[%s101 + $0x88] sm:$0xff]
    %v691 = vld [vmem:[%s101 + $0x90] sm:$0xff]
    %v692 = vld [vmem:[%s101 + $0x98] sm:$0xff]
    %v693 = vld [vmem:[%s101 + $0xa0] sm:$0xff]
    %v694 = vld [vmem:[%s101 + $0xa8] sm:$0xff]
    %v695 = vld [vmem:[%s101 + $0xb0] sm:$0xff]
    %v696 = vld [vmem:[%s101 + $0xb8] sm:$0xff]
    %v697 = vld [vmem:[%s101 + $0xc0] sm:$0xff]
    %v698 = vld [vmem:[%s101 + $0xc8] sm:$0xff]
    %v699 = vld [vmem:[%s101 + $0xd0] sm:$0xff]
    %v700 = vld [vmem:[%s101 + $0xd8] sm:$0xff]
    %v701 = vld [vmem:[%s101 + $0xe0] sm:$0xff]
    %v702 = vld [vmem:[%s101 + $0xe8] sm:$0xff]
    %v703 = vld [vmem:[%s101 + $0xf0] sm:$0xff]
    %v704 = vld [vmem:[%s101 + $0xf8] sm:$0xff]
    %v705 = vld [vmem:[%s101 + $0x100] sm:$0xff]
    %v706 = vld [vmem:[%s101 + $0x108] sm:$0xff]
    %v707 = vld [vmem:[%s101 + $0x110] sm:$0xff]
    %v708 = vld [vmem:[%s101 + $0x118] sm:$0xff]
    %v709 = vld [vmem:[%s101 + $0x120] sm:$0xff]
    %v710 = vld [vmem:[%s101 + $0x128] sm:$0xff]
    %v711 = vld [vmem:[%s101 + $0x130] sm:$0xff]
    %v712 = vld [vmem:[%s101 + $0x138] sm:$0xff]
    %v713 = vld [vmem:[%s101 + $0x140] sm:$0xff]
    %v714 = vld [vmem:[%s101 + $0x148] sm:$0xff]
    %v715 = vld [vmem:[%s101 + $0x150] sm:$0xff]
    %v716 = vld [vmem:[%s101 + $0x158] sm:$0xff]
    %v717 = vld [vmem:[%s101 + $0x160] sm:$0xff]
    %v718 = vld [vmem:[%s101 + $0x168] sm:$0xff]
    %v719 = vld [vmem:[%s101 + $0x170] sm:$0xff]
    %v720 = vld [vmem:[%s101 + $0x178] sm:$0xff]
    %v721 = vld [vmem:[%s103] sm:$0x7]
    %v722 = vld [vmem:[%s105] sm:$0xff]
    %v723 = vld [vmem:[%s105 + $0x8] sm:$0xff]
    %v724 = vld [vmem:[%s105 + $0x10] sm:$0xff]
    %v725 = vld [vmem:[%s105 + $0x18] sm:$0xff]
    %v726 = vld [vmem:[%s105 + $0x20] sm:$0xff]
    %v727 = vld [vmem:[%s105 + $0x28] sm:$0xff]
    %v728 = vld [vmem:[%s105 + $0x30] sm:$0xff]
    %v729 = vld [vmem:[%s105 + $0x38] sm:$0xff]
    %v730 = vld [vmem:[%s105 + $0x40] sm:$0xff]
    %v731 = vld [vmem:[%s105 + $0x48] sm:$0xff]
    %v732 = vld [vmem:[%s105 + $0x50] sm:$0xff]
    %v733 = vld [vmem:[%s105 + $0x58] sm:$0xff]
    %v734 = vld [vmem:[%s105 + $0x60] sm:$0xff]
    %v735 = vld [vmem:[%s105 + $0x68] sm:$0xff]
    %v736 = vld [vmem:[%s105 + $0x70] sm:$0xff]
    %v737 = vld [vmem:[%s105 + $0x78] sm:$0xff]
    %v738 = vld [vmem:[%s105 + $0x80] sm:$0xff]
    %v739 = vld [vmem:[%s105 + $0x88] sm:$0xff]
    %v740 = vld [vmem:[%s105 + $0x90] sm:$0xff]
    %v741 = vld [vmem:[%s105 + $0x98] sm:$0xff]
    %v742 = vld [vmem:[%s105 + $0xa0] sm:$0xff]
    %v743 = vld [vmem:[%s105 + $0xa8] sm:$0xff]
    %v744 = vld [vmem:[%s105 + $0xb0] sm:$0xff]
    %v745 = vld [vmem:[%s105 + $0xb8] sm:$0xff]
    %v746 = vld [vmem:[%s105 + $0xc0] sm:$0xff]
    %v747 = vld [vmem:[%s105 + $0xc8] sm:$0xff]
    %v748 = vld [vmem:[%s105 + $0xd0] sm:$0xff]
    %v749 = vld [vmem:[%s105 + $0xd8] sm:$0xff]
    %v750 = vld [vmem:[%s105 + $0xe0] sm:$0xff]
    %v751 = vld [vmem:[%s105 + $0xe8] sm:$0xff]
    %v752 = vld [vmem:[%s105 + $0xf0] sm:$0xff]
    %v753 = vld [vmem:[%s105 + $0xf8] sm:$0xff]
    %v754 = vld [vmem:[%s105 + $0x100] sm:$0xff]
    %v755 = vld [vmem:[%s105 + $0x108] sm:$0xff]
    %v756 = vld [vmem:[%s105 + $0x110] sm:$0xff]
    %v757 = vld [vmem:[%s105 + $0x118] sm:$0xff]
    %v758 = vld [vmem:[%s105 + $0x120] sm:$0xff]
    %v759 = vld [vmem:[%s105 + $0x128] sm:$0xff]
    %v760 = vld [vmem:[%s105 + $0x130] sm:$0xff]
    %v761 = vld [vmem:[%s105 + $0x138] sm:$0xff]
    %v762 = vld [vmem:[#allocation7] sm:$0x1]
    %v763 = vld [vmem:[%s109] sm:$0xff]
    %v764 = vld [vmem:[%s109 + $0x8] sm:$0xff]
    %v765 = vld [vmem:[%s109 + $0x10] sm:$0xff]
    %v766 = vld [vmem:[%s109 + $0x18] sm:$0xff]
    %v767 = vld [vmem:[#allocation2] sm:$0x1]
    %vm768 = vcmask 261120
    %v770 = vsel %vm768, %v283, 0
    %v773 = vsel %vm768, %v284, 0
    %v776 = vsel %vm768, %v285, 0
    %v779 = vsel %vm768, %v286, 0
    %v782 = vsel %vm768, %v287, 0
    %v785 = vsel %vm768, %v288, 0
    %v788 = vsel %vm768, %v289, 0
    %v791 = vsel %vm768, %v290, 0
    %793 = vmatprep.subr.mxu0 0.0
    %794 = vmatpush1.msra.mxu0 %v267
    %795 = vmatprep.subr.mxu0 0.0
    %796 = vmatpush1.msra.mxu0 %v268
    %797 = vmatprep.subr.mxu0 0.0
    %798 = vmatpush1.msra.mxu0 %v269
    %799 = vmatprep.subr.mxu0 0.0
    %800 = vmatpush1.msra.mxu0 %v270
    %801 = vmatprep.subr.mxu0 0.0
    %802 = vmatpush1.msra.mxu0 0.0
    %803 = vmatprep.subr.mxu0 0.0
    %804 = vmatpush1.msra.mxu0 0.0
    %805 = vmatprep.subr.mxu0 0.0
    %806 = vmatpush1.msra.mxu0 0.0
    %807 = vmatprep.subr.mxu0 0.0
    %808 = vmatpush1.msra.mxu0 0.0
    %809 = vmatprep.subr.mxu0 0.0
    %810 = vmatpush1.msra.mxu0 0.0
    %811 = vmatprep.subr.mxu0 0.0
    %812 = vmatpush1.msra.mxu0 0.0
    %813 = vmatprep.subr.mxu0 0.0
    %814 = vmatpush1.msra.mxu0 0.0
    %815 = vmatprep.subr.mxu0 0.0
    %816 = vmatpush1.msra.mxu0 0.0
    %817 = vmatprep.subr.mxu0 0.0
    %818 = vmatpush1.msra.mxu0 0.0
    %819 = vmatprep.subr.mxu0 0.0
    %820 = vmatpush1.msra.mxu0 0.0
    %821 = vmatprep.subr.mxu0 0.0
    %822 = vmatpush1.msra.mxu0 0.0
    %823 = vmatprep.subr.mxu0 0.0
    %824 = vmatpush1.msra.mxu0 0.0
    %825 = vmatprep.subr.mxu0 0.0
    %826 = vmatpush1.msra.mxu0 0.0
    %827 = vmatprep.subr.mxu0 0.0
    %828 = vmatpush1.msra.mxu0 0.0
    %829 = vmatprep.subr.mxu0 0.0
    %830 = vmatpush1.msra.mxu0 0.0
    %831 = vmatprep.subr.mxu0 0.0
    %832 = vmatpush1.msra.mxu0 0.0
    %833 = vmatprep.subr.mxu0 0.0
    %834 = vmatpush1.msra.mxu0 0.0
    %835 = vmatprep.subr.mxu0 0.0
    %836 = vmatpush1.msra.mxu0 0.0
    %837 = vmatprep.subr.mxu0 0.0
    %838 = vmatpush1.msra.mxu0 0.0
    %839 = vmatprep.subr.mxu0 0.0
    %840 = vmatpush1.msra.mxu0 0.0
    %841 = vmatprep.subr.mxu0 0.0
    %842 = vmatpush1.msra.mxu0 0.0
    %843 = vmatprep.subr.mxu0 0.0
    %844 = vmatpush1.msra.mxu0 0.0
    %845 = vmatprep.subr.mxu0 0.0
    %846 = vmatpush1.msra.mxu0 0.0
    %847 = vmatprep.subr.mxu0 0.0
    %848 = vmatpush1.msra.mxu0 0.0
    %849 = vmatprep.subr.mxu0 0.0
    %850 = vmatpush1.msra.mxu0 0.0
    %851 = vmatprep.subr.mxu0 0.0
    %852 = vmatpush1.msra.mxu0 0.0
    %853 = vmatprep.subr.mxu0 0.0
    %854 = vmatpush1.msra.mxu0 0.0
    %855 = vmatprep.subr.mxu0 0.0
    %856 = vmatpush1.msra.mxu0 0.0
    %857 = vmatprep.mubr.f32.mxu0 0.0
    %858 = vmatmul.mubr.f32.gmra.mrb[0].mxu0 %v770
    %v859 = vpop.f32.mrb[0].mxu0
    %v860 = vadd.f32 0.0, %v859
    %v861 = vpop.f32.mrb[0].mxu0
    %862 = vmatprep.mubr.f32.mxu0 0.0
    %863 = vmatmul.mubr.f32.gmra.mrb[0].mxu0 %v773
    %v864 = vpop.f32.mrb[0].mxu0
    %v865 = vadd.f32 0.0, %v864
    %v866 = vpop.f32.mrb[0].mxu0
    %867 = vmatprep.mubr.f32.mxu0 0.0
    %868 = vmatmul.mubr.f32.gmra.mrb[0].mxu0 %v776
    %v869 = vpop.f32.mrb[0].mxu0
    %v870 = vadd.f32 0.0, %v869
    %v871 = vpop.f32.mrb[0].mxu0
    %872 = vmatprep.mubr.f32.mxu0 0.0
    %873 = vmatmul.mubr.f32.gmra.mrb[0].mxu0 %v779
    %v874 = vpop.f32.mrb[0].mxu0
    %v875 = vadd.f32 0.0, %v874
    %v876 = vpop.f32.mrb[0].mxu0
    %877 = vmatprep.mubr.f32.mxu0 0.0
    %878 = vmatmul.mubr.f32.gmra.mrb[0].mxu0 %v782
    %v879 = vpop.f32.mrb[0].mxu0
    %v880 = vadd.f32 0.0, %v879
    %v881 = vpop.f32.mrb[0].mxu0
    %882 = vmatprep.mubr.f32.mxu0 0.0
    %883 = vmatmul.mubr.f32.gmra.mrb[0].mxu0 %v785
    %v884 = vpop.f32.mrb[0].mxu0
    %v885 = vadd.f32 0.0, %v884
    %v886 = vpop.f32.mrb[0].mxu0
    %887 = vmatprep.mubr.f32.mxu0 0.0
    %888 = vmatmul.mubr.f32.gmra.mrb[0].mxu0 %v788
    %v889 = vpop.f32.mrb[0].mxu0
    %v890 = vadd.f32 0.0, %v889
    %v891 = vpop.f32.mrb[0].mxu0
    %892 = vmatprep.mubr.f32.mxu0 0.0
    %893 = vmatmul.mubr.f32.gmra.mrb[0].mxu0 %v791
    %v894 = vpop.f32.mrb[0].mxu0
    %v895 = vadd.f32 0.0, %v894
    %v896 = vpop.f32.mrb[0].mxu0
    %897 = vdwg.mxu0
    %v899 = vsel %vm768, %v275, 0
    %v902 = vsel %vm768, %v276, 0
    %v905 = vsel %vm768, %v277, 0
    %v908 = vsel %vm768, %v278, 0
    %v911 = vsel %vm768, %v279, 0
    %v914 = vsel %vm768, %v280, 0
    %v917 = vsel %vm768, %v281, 0
    %v920 = vsel %vm768, %v282, 0
    %922 = vmatprep.subr.mxu0 0.0
    %923 = vmatpush1.msra.mxu0 %v267
    %924 = vmatprep.subr.mxu0 0.0
    %925 = vmatpush1.msra.mxu0 %v268
    %926 = vmatprep.subr.mxu0 0.0
    %927 = vmatpush1.msra.mxu0 %v269
    %928 = vmatprep.subr.mxu0 0.0
    %929 = vmatpush1.msra.mxu0 %v270
    %930 = vmatprep.subr.mxu0 0.0
    %931 = vmatpush1.msra.mxu0 0.0
    %932 = vmatprep.subr.mxu0 0.0
    %933 = vmatpush1.msra.mxu0 0.0
    %934 = vmatprep.subr.mxu0 0.0
    %935 = vmatpush1.msra.mxu0 0.0
    %936 = vmatprep.subr.mxu0 0.0
    %937 = vmatpush1.msra.mxu0 0.0
    %938 = vmatprep.subr.mxu0 0.0
    %939 = vmatpush1.msra.mxu0 0.0
    %940 = vmatprep.subr.mxu0 0.0
    %941 = vmatpush1.msra.mxu0 0.0
    %942 = vmatprep.subr.mxu0 0.0
    %943 = vmatpush1.msra.mxu0 0.0
    %944 = vmatprep.subr.mxu0 0.0
    %945 = vmatpush1.msra.mxu0 0.0
    %946 = vmatprep.subr.mxu0 0.0
    %947 = vmatpush1.msra.mxu0 0.0
    %948 = vmatprep.subr.mxu0 0.0
    %949 = vmatpush1.msra.mxu0 0.0
    %950 = vmatprep.subr.mxu0 0.0
    %951 = vmatpush1.msra.mxu0 0.0
    %952 = vmatprep.subr.mxu0 0.0
    %953 = vmatpush1.msra.mxu0 0.0
    %954 = vmatprep.subr.mxu0 0.0
    %955 = vmatpush1.msra.mxu0 0.0
    %956 = vmatprep.subr.mxu0 0.0
    %957 = vmatpush1.msra.mxu0 0.0
    %958 = vmatprep.subr.mxu0 0.0
    %959 = vmatpush1.msra.mxu0 0.0
    %960 = vmatprep.subr.mxu0 0.0
    %961 = vmatpush1.msra.mxu0 0.0
    %962 = vmatprep.subr.mxu0 0.0
    %963 = vmatpush1.msra.mxu0 0.0
    %964 = vmatprep.subr.mxu0 0.0
    %965 = vmatpush1.msra.mxu0 0.0
    %966 = vmatprep.subr.mxu0 0.0
    %967 = vmatpush1.msra.mxu0 0.0
    %968 = vmatprep.subr.mxu0 0.0
    %969 = vmatpush1.msra.mxu0 0.0
    %970 = vmatprep.subr.mxu0 0.0
    %971 = vmatpush1.msra.mxu0 0.0
    %972 = vmatprep.subr.mxu0 0.0
    %973 = vmatpush1.msra.mxu0 0.0
    %974 = vmatprep.subr.mxu0 0.0
    %975 = vmatpush1.msra.mxu0 0.0
    %976 = vmatprep.subr.mxu0 0.0
    %977 = vmatpush1.msra.mxu0 0.0
    %978 = vmatprep.subr.mxu0 0.0
    %979 = vmatpush1.msra.mxu0 0.0
    %980 = vmatprep.subr.mxu0 0.0
    %981 = vmatpush1.msra.mxu0 0.0
    %982 = vmatprep.subr.mxu0 0.0
    %983 = vmatpush1.msra.mxu0 0.0
    %984 = vmatprep.subr.mxu0 0.0
    %985 = vmatpush1.msra.mxu0 0.0
    %986 = vmatprep.mubr.f32.mxu0 0.0
    %987 = vmatmul.mubr.f32.gmra.mrb[0].mxu0 %v899
    %v988 = vpop.f32.mrb[0].mxu0
    %v989 = vadd.f32 0.0, %v988
    %v990 = vpop.f32.mrb[0].mxu0
    %991 = vmatprep.mubr.f32.mxu0 0.0
    %992 = vmatmul.mubr.f32.gmra.mrb[0].mxu0 %v902
    %v993 = vpop.f32.mrb[0].mxu0
    %v994 = vadd.f32 0.0, %v993
    %v995 = vpop.f32.mrb[0].mxu0
    %996 = vmatprep.mubr.f32.mxu0 0.0
    %997 = vmatmul.mubr.f32.gmra.mrb[0].mxu0 %v905
    %v998 = vpop.f32.mrb[0].mxu0
    %v999 = vadd.f32 0.0, %v998
    %v1000 = vpop.f32.mrb[0].mxu0
    %1001 = vmatprep.mubr.f32.mxu0 0.0
    %1002 = vmatmul.mubr.f32.gmra.mrb[0].mxu0 %v908
    %v1003 = vpop.f32.mrb[0].mxu0
    %v1004 = vadd.f32 0.0, %v1003
    %v1005 = vpop.f32.mrb[0].mxu0
    %1006 = vmatprep.mubr.f32.mxu0 0.0
    %1007 = vmatmul.mubr.f32.gmra.mrb[0].mxu0 %v911
    %v1008 = vpop.f32.mrb[0].mxu0
    %v1009 = vadd.f32 0.0, %v1008
    %v1010 = vpop.f32.mrb[0].mxu0
    %1011 = vmatprep.mubr.f32.mxu0 0.0
    %1012 = vmatmul.mubr.f32.gmra.mrb[0].mxu0 %v914
    %v1013 = vpop.f32.mrb[0].mxu0
    %v1014 = vadd.f32 0.0, %v1013
    %v1015 = vpop.f32.mrb[0].mxu0
    %1016 = vmatprep.mubr.f32.mxu0 0.0
    %1017 = vmatmul.mubr.f32.gmra.mrb[0].mxu0 %v917
    %v1018 = vpop.f32.mrb[0].mxu0
    %v1019 = vadd.f32 0.0, %v1018
    %v1020 = vpop.f32.mrb[0].mxu0
    %1021 = vmatprep.mubr.f32.mxu0 0.0
    %1022 = vmatmul.mubr.f32.gmra.mrb[0].mxu0 %v920
    %v1023 = vpop.f32.mrb[0].mxu0
    %v1024 = vadd.f32 0.0, %v1023
    %v1025 = vpop.f32.mrb[0].mxu0
    %1026 = vdwg.mxu0
    %v1027 = vmul.f32 %v860, %v989
    %v1028 = vmul.f32 %v865, %v994
    %v1029 = vmul.f32 %v870, %v999
    %v1030 = vmul.f32 %v875, %v1004
    %v1031 = vmul.f32 %v880, %v1009
    %v1032 = vmul.f32 %v885, %v1014
    %v1033 = vmul.f32 %v890, %v1019
    %v1034 = vmul.f32 %v895, %v1024
    %v1036 = vlaneseq
    %v1037 = vshrl.u32 %v1036, 7
    %v1038 = vsub.s32 0, %v1037
    %v1039 = vrot.slane %v303, %v1038
    %v1042 = vsel %vm768, %v1027, 0
    %v1045 = vsel %vm768, %v1028, 0
    %v1048 = vsel %vm768, %v1029, 0
    %v1051 = vsel %vm768, %v1030, 0
    %v1054 = vsel %vm768, %v1031, 0
    %v1057 = vsel %vm768, %v1032, 0
    %v1060 = vsel %vm768, %v1033, 0
    %v1063 = vsel %vm768, %v1034, 0
    %1065 = vmatprep.subr.mxu0 0.0
    %1066 = vmatpush1.msra.mxu0 %v299
    %1067 = vmatprep.subr.mxu0 0.0
    %1068 = vmatpush1.msra.mxu0 %v300
    %1069 = vmatprep.subr.mxu0 0.0
    %1070 = vmatpush1.msra.mxu0 %v301
    %1071 = vmatprep.subr.mxu0 0.0
    %1072 = vmatpush1.msra.mxu0 %v302
    %1073 = vmatprep.subr.mxu0 0.0
    %1074 = vmatpush1.msra.mxu0 0.0
    %1075 = vmatprep.subr.mxu0 0.0
    %1076 = vmatpush1.msra.mxu0 0.0
    %1077 = vmatprep.subr.mxu0 0.0
    %1078 = vmatpush1.msra.mxu0 0.0
    %1079 = vmatprep.subr.mxu0 0.0
    %1080 = vmatpush1.msra.mxu0 0.0
    %1081 = vmatprep.subr.mxu0 0.0
    %1082 = vmatpush1.msra.mxu0 0.0
    %1083 = vmatprep.subr.mxu0 0.0
    %1084 = vmatpush1.msra.mxu0 0.0
    %1085 = vmatprep.subr.mxu0 0.0
    %1086 = vmatpush1.msra.mxu0 0.0
    %1087 = vmatprep.subr.mxu0 0.0
    %1088 = vmatpush1.msra.mxu0 0.0
    %1089 = vmatprep.subr.mxu0 0.0
    %1090 = vmatpush1.msra.mxu0 0.0
    %1091 = vmatprep.subr.mxu0 0.0
    %1092 = vmatpush1.msra.mxu0 0.0
    %1093 = vmatprep.subr.mxu0 0.0
    %1094 = vmatpush1.msra.mxu0 0.0
    %1095 = vmatprep.subr.mxu0 0.0
    %1096 = vmatpush1.msra.mxu0 0.0
    %1097 = vmatprep.subr.mxu0 0.0
    %1098 = vmatpush1.msra.mxu0 0.0
    %1099 = vmatprep.subr.mxu0 0.0
    %1100 = vmatpush1.msra.mxu0 0.0
    %1101 = vmatprep.subr.mxu0 0.0
    %1102 = vmatpush1.msra.mxu0 0.0
    %1103 = vmatprep.subr.mxu0 0.0
    %1104 = vmatpush1.msra.mxu0 0.0
    %1105 = vmatprep.subr.mxu0 0.0
    %1106 = vmatpush1.msra.mxu0 0.0
    %1107 = vmatprep.subr.mxu0 0.0
    %1108 = vmatpush1.msra.mxu0 0.0
    %1109 = vmatprep.subr.mxu0 0.0
    %1110 = vmatpush1.msra.mxu0 0.0
    %1111 = vmatprep.subr.mxu0 0.0
    %1112 = vmatpush1.msra.mxu0 0.0
    %1113 = vmatprep.subr.mxu0 0.0
    %1114 = vmatpush1.msra.mxu0 0.0
    %1115 = vmatprep.subr.mxu0 0.0
    %1116 = vmatpush1.msra.mxu0 0.0
    %1117 = vmatprep.subr.mxu0 0.0
    %1118 = vmatpush1.msra.mxu0 0.0
    %1119 = vmatprep.subr.mxu0 0.0
    %1120 = vmatpush1.msra.mxu0 0.0
    %1121 = vmatprep.subr.mxu0 0.0
    %1122 = vmatpush1.msra.mxu0 0.0
    %1123 = vmatprep.subr.mxu0 0.0
    %1124 = vmatpush1.msra.mxu0 0.0
    %1125 = vmatprep.subr.mxu0 0.0
    %1126 = vmatpush1.msra.mxu0 0.0
    %1127 = vmatprep.subr.mxu0 0.0
    %1128 = vmatpush1.msra.mxu0 0.0
    %1129 = vmatprep.mubr.f32.mxu0 0.0
    %1130 = vmatmul.mubr.f32.gmra.mrb[0].mxu0 %v1042
    %v1131 = vpop.f32.mrb[0].mxu0
    %v1132 = vadd.f32 %v1039, %v1131
    %v1133 = vpop.f32.mrb[0].mxu0
    %1134 = vmatprep.mubr.f32.mxu0 0.0
    %1135 = vmatmul.mubr.f32.gmra.mrb[0].mxu0 %v1045
    %v1136 = vpop.f32.mrb[0].mxu0
    %v1137 = vadd.f32 %v1039, %v1136
    %v1138 = vpop.f32.mrb[0].mxu0
    %1139 = vmatprep.mubr.f32.mxu0 0.0
    %1140 = vmatmul.mubr.f32.gmra.mrb[0].mxu0 %v1048
    %v1141 = vpop.f32.mrb[0].mxu0
    %v1142 = vadd.f32 %v1039, %v1141
    %v1143 = vpop.f32.mrb[0].mxu0
    %1144 = vmatprep.mubr.f32.mxu0 0.0
    %1145 = vmatmul.mubr.f32.gmra.mrb[0].mxu0 %v1051
    %v1146 = vpop.f32.mrb[0].mxu0
    %v1147 = vadd.f32 %v1039, %v1146
    %v1148 = vpop.f32.mrb[0].mxu0
    %1149 = vmatprep.mubr.f32.mxu0 0.0
    %1150 = vmatmul.mubr.f32.gmra.mrb[0].mxu0 %v1054
    %v1151 = vpop.f32.mrb[0].mxu0
    %v1152 = vadd.f32 %v1039, %v1151
    %v1153 = vpop.f32.mrb[0].mxu0
    %1154 = vmatprep.mubr.f32.mxu0 0.0
    %1155 = vmatmul.mubr.f32.gmra.mrb[0].mxu0 %v1057
    %v1156 = vpop.f32.mrb[0].mxu0
    %v1157 = vadd.f32 %v1039, %v1156
    %v1158 = vpop.f32.mrb[0].mxu0
    %1159 = vmatprep.mubr.f32.mxu0 0.0
    %1160 = vmatmul.mubr.f32.gmra.mrb[0].mxu0 %v1060
    %v1161 = vpop.f32.mrb[0].mxu0
    %v1162 = vadd.f32 %v1039, %v1161
    %v1163 = vpop.f32.mrb[0].mxu0
    %1164 = vmatprep.mubr.f32.mxu0 0.0
    %1165 = vmatmul.mubr.f32.gmra.mrb[0].mxu0 %v1063
    %v1166 = vpop.f32.mrb[0].mxu0
    %v1167 = vadd.f32 %v1039, %v1166
    %v1168 = vpop.f32.mrb[0].mxu0
    %1169 = vdwg.mxu0
    %v1170 = vmax.f32 %v1132, 0.0
    %v1171 = vmax.f32 %v1137, 0.0
    %v1172 = vmax.f32 %v1142, 0.0
    %v1173 = vmax.f32 %v1147, 0.0
    %v1174 = vmax.f32 %v1152, 0.0
    %v1175 = vmax.f32 %v1157, 0.0
    %v1176 = vmax.f32 %v1162, 0.0
    %v1177 = vmax.f32 %v1167, 0.0
    %v1179 = vlaneseq
    %v1180 = vshrl.u32 %v1179, 7
    %v1181 = vsub.s32 0, %v1180
    %v1182 = vrot.slane %v316, %v1181
    %v1183 = vlaneseq
    %v1184 = vshrl.u32 %v1183, 7
    %v1185 = vsub.s32 1, %v1184
    %v1186 = vrot.slane %v316, %v1185
    %v1187 = vlaneseq
    %v1188 = vshrl.u32 %v1187, 7
    %v1189 = vsub.s32 2, %v1188
    %v1190 = vrot.slane %v316, %v1189
    %v1195 = vsel %vm768, %v1170, 0
    %v1198 = vsel %vm768, %v1171, 0
    %v1201 = vsel %vm768, %v1172, 0
    %v1204 = vsel %vm768, %v1173, 0
    %v1207 = vsel %vm768, %v1174, 0
    %v1210 = vsel %vm768, %v1175, 0
    %v1213 = vsel %vm768, %v1176, 0
    %v1216 = vsel %vm768, %v1177, 0
    %1218 = vmatprep.subr.mxu0 %v305
    %1219 = vmatpush1.msra.mxu0 %v304
    %1220 = vmatprep.subr.mxu0 %v308
    %1221 = vmatpush1.msra.mxu0 %v307
    %1222 = vmatprep.subr.mxu0 %v311
    %1223 = vmatpush1.msra.mxu0 %v310
    %1224 = vmatprep.subr.mxu0 %v314
    %1225 = vmatpush1.msra.mxu0 %v313
    %1226 = vmatprep.subr.mxu0 0.0
    %1227 = vmatpush1.msra.mxu0 0.0
    %1228 = vmatprep.subr.mxu0 0.0
    %1229 = vmatpush1.msra.mxu0 0.0
    %1230 = vmatprep.subr.mxu0 0.0
    %1231 = vmatpush1.msra.mxu0 0.0
    %1232 = vmatprep.subr.mxu0 0.0
    %1233 = vmatpush1.msra.mxu0 0.0
    %1234 = vmatprep.subr.mxu0 0.0
    %1235 = vmatpush1.msra.mxu0 0.0
    %1236 = vmatprep.subr.mxu0 0.0
    %1237 = vmatpush1.msra.mxu0 0.0
    %1238 = vmatprep.subr.mxu0 0.0
    %1239 = vmatpush1.msra.mxu0 0.0
    %1240 = vmatprep.subr.mxu0 0.0
    %1241 = vmatpush1.msra.mxu0 0.0
    %1242 = vmatprep.subr.mxu0 0.0
    %1243 = vmatpush1.msra.mxu0 0.0
    %1244 = vmatprep.subr.mxu0 0.0
    %1245 = vmatpush1.msra.mxu0 0.0
    %1246 = vmatprep.subr.mxu0 0.0
    %1247 = vmatpush1.msra.mxu0 0.0
    %1248 = vmatprep.subr.mxu0 0.0
    %1249 = vmatpush1.msra.mxu0 0.0
    %1250 = vmatprep.subr.mxu0 0.0
    %1251 = vmatpush1.msra.mxu0 0.0
    %1252 = vmatprep.subr.mxu0 0.0
    %1253 = vmatpush1.msra.mxu0 0.0
    %1254 = vmatprep.subr.mxu0 0.0
    %1255 = vmatpush1.msra.mxu0 0.0
    %1256 = vmatprep.subr.mxu0 0.0
    %1257 = vmatpush1.msra.mxu0 0.0
    %1258 = vmatprep.subr.mxu0 0.0
    %1259 = vmatpush1.msra.mxu0 0.0
    %1260 = vmatprep.subr.mxu0 0.0
    %1261 = vmatpush1.msra.mxu0 0.0
    %1262 = vmatprep.subr.mxu0 0.0
    %1263 = vmatpush1.msra.mxu0 0.0
    %1264 = vmatprep.subr.mxu0 0.0
    %1265 = vmatpush1.msra.mxu0 0.0
    %1266 = vmatprep.subr.mxu0 0.0
    %1267 = vmatpush1.msra.mxu0 0.0
    %1268 = vmatprep.subr.mxu0 0.0
    %1269 = vmatpush1.msra.mxu0 0.0
    %1270 = vmatprep.subr.mxu0 0.0
    %1271 = vmatpush1.msra.mxu0 0.0
    %1272 = vmatprep.subr.mxu0 0.0
    %1273 = vmatpush1.msra.mxu0 0.0
    %1274 = vmatprep.subr.mxu0 0.0
    %1275 = vmatpush1.msra.mxu0 0.0
    %1276 = vmatprep.subr.mxu0 0.0
    %1277 = vmatpush1.msra.mxu0 0.0
    %1278 = vmatprep.subr.mxu0 0.0
    %1279 = vmatpush1.msra.mxu0 0.0
    %1280 = vmatprep.subr.mxu0 0.0
    %1281 = vmatpush1.msra.mxu0 0.0
    %1282 = vmatprep.mubr.f32.mxu0 0.0
    %1283 = vmatmul.mubr.f32.gmra.mrb[0].mxu0 %v1195
    %v1284 = vpop.f32.mrb[0].mxu0
    %v1285 = vadd.f32 %v1182, %v1284
    %v1286 = vpop.f32.mrb[0].mxu0
    %v1287 = vadd.f32 %v1186, %v1286
    %1288 = vmatprep.mubr.f32.mxu0 0.0
    %1289 = vmatmul.mubr.f32.gmra.mrb[0].mxu0 %v1198
    %v1290 = vpop.f32.mrb[0].mxu0
    %v1291 = vadd.f32 %v1182, %v1290
    %v1292 = vpop.f32.mrb[0].mxu0
    %v1293 = vadd.f32 %v1186, %v1292
    %1294 = vmatprep.mubr.f32.mxu0 0.0
    %1295 = vmatmul.mubr.f32.gmra.mrb[0].mxu0 %v1201
    %v1296 = vpop.f32.mrb[0].mxu0
    %v1297 = vadd.f32 %v1182, %v1296
    %v1298 = vpop.f32.mrb[0].mxu0
    %v1299 = vadd.f32 %v1186, %v1298
    %1300 = vmatprep.mubr.f32.mxu0 0.0
    %1301 = vmatmul.mubr.f32.gmra.mrb[0].mxu0 %v1204
    %v1302 = vpop.f32.mrb[0].mxu0
    %v1303 = vadd.f32 %v1182, %v1302
    %v1304 = vpop.f32.mrb[0].mxu0
    %v1305 = vadd.f32 %v1186, %v1304
    %1306 = vmatprep.mubr.f32.mxu0 0.0
    %1307 = vmatmul.mubr.f32.gmra.mrb[0].mxu0 %v1207
    %v1308 = vpop.f32.mrb[0].mxu0
    %v1309 = vadd.f32 %v1182, %v1308
    %v1310 = vpop.f32.mrb[0].mxu0
    %v1311 = vadd.f32 %v1186, %v1310
    %1312 = vmatprep.mubr.f32.mxu0 0.0
    %1313 = vmatmul.mubr.f32.gmra.mrb[0].mxu0 %v1210
    %v1314 = vpop.f32.mrb[0].mxu0
    %v1315 = vadd.f32 %v1182, %v1314
    %v1316 = vpop.f32.mrb[0].mxu0
    %v1317 = vadd.f32 %v1186, %v1316
    %1318 = vmatprep.mubr.f32.mxu0 0.0
    %1319 = vmatmul.mubr.f32.gmra.mrb[0].mxu0 %v1213
    %v1320 = vpop.f32.mrb[0].mxu0
    %v1321 = vadd.f32 %v1182, %v1320
    %v1322 = vpop.f32.mrb[0].mxu0
    %v1323 = vadd.f32 %v1186, %v1322
    %1324 = vmatprep.mubr.f32.mxu0 0.0
    %1325 = vmatmul.mubr.f32.gmra.mrb[0].mxu0 %v1216
    %v1326 = vpop.f32.mrb[0].mxu0
    %v1327 = vadd.f32 %v1182, %v1326
    %v1328 = vpop.f32.mrb[0].mxu0
    %v1329 = vadd.f32 %v1186, %v1328
    %1330 = vdwg.mxu0
    %1331 = vmatprep.subr.mxu0 0.0
    %1332 = vmatpush1.msra.mxu0 %v306
    %1333 = vmatprep.subr.mxu0 0.0
    %1334 = vmatpush1.msra.mxu0 %v309
    %1335 = vmatprep.subr.mxu0 0.0
    %1336 = vmatpush1.msra.mxu0 %v312
    %1337 = vmatprep.subr.mxu0 0.0
    %1338 = vmatpush1.msra.mxu0 %v315
    %1339 = vmatprep.subr.mxu0 0.0
    %1340 = vmatpush1.msra.mxu0 0.0
    %1341 = vmatprep.subr.mxu0 0.0
    %1342 = vmatpush1.msra.mxu0 0.0
    %1343 = vmatprep.subr.mxu0 0.0
    %1344 = vmatpush1.msra.mxu0 0.0
    %1345 = vmatprep.subr.mxu0 0.0
    %1346 = vmatpush1.msra.mxu0 0.0
    %1347 = vmatprep.subr.mxu0 0.0
    %1348 = vmatpush1.msra.mxu0 0.0
    %1349 = vmatprep.subr.mxu0 0.0
    %1350 = vmatpush1.msra.mxu0 0.0
    %1351 = vmatprep.subr.mxu0 0.0
    %1352 = vmatpush1.msra.mxu0 0.0
    %1353 = vmatprep.subr.mxu0 0.0
    %1354 = vmatpush1.msra.mxu0 0.0
    %1355 = vmatprep.subr.mxu0 0.0
    %1356 = vmatpush1.msra.mxu0 0.0
    %1357 = vmatprep.subr.mxu0 0.0
    %1358 = vmatpush1.msra.mxu0 0.0
    %1359 = vmatprep.subr.mxu0 0.0
    %1360 = vmatpush1.msra.mxu0 0.0
    %1361 = vmatprep.subr.mxu0 0.0
    %1362 = vmatpush1.msra.mxu0 0.0
    %1363 = vmatprep.subr.mxu0 0.0
    %1364 = vmatpush1.msra.mxu0 0.0
    %1365 = vmatprep.subr.mxu0 0.0
    %1366 = vmatpush1.msra.mxu0 0.0
    %1367 = vmatprep.subr.mxu0 0.0
    %1368 = vmatpush1.msra.mxu0 0.0
    %1369 = vmatprep.subr.mxu0 0.0
    %1370 = vmatpush1.msra.mxu0 0.0
    %1371 = vmatprep.subr.mxu0 0.0
    %1372 = vmatpush1.msra.mxu0 0.0
    %1373 = vmatprep.subr.mxu0 0.0
    %1374 = vmatpush1.msra.mxu0 0.0
    %1375 = vmatprep.subr.mxu0 0.0
    %1376 = vmatpush1.msra.mxu0 0.0
    %1377 = vmatprep.subr.mxu0 0.0
    %1378 = vmatpush1.msra.mxu0 0.0
    %1379 = vmatprep.subr.mxu0 0.0
    %1380 = vmatpush1.msra.mxu0 0.0
    %1381 = vmatprep.subr.mxu0 0.0
    %1382 = vmatpush1.msra.mxu0 0.0
    %1383 = vmatprep.subr.mxu0 0.0
    %1384 = vmatpush1.msra.mxu0 0.0
    %1385 = vmatprep.subr.mxu0 0.0
    %1386 = vmatpush1.msra.mxu0 0.0
    %1387 = vmatprep.subr.mxu0 0.0
    %1388 = vmatpush1.msra.mxu0 0.0
    %1389 = vmatprep.subr.mxu0 0.0
    %1390 = vmatpush1.msra.mxu0 0.0
    %1391 = vmatprep.subr.mxu0 0.0
    %1392 = vmatpush1.msra.mxu0 0.0
    %1393 = vmatprep.subr.mxu0 0.0
    %1394 = vmatpush1.msra.mxu0 0.0
    %1395 = vmatprep.mubr.f32.mxu0 0.0
    %1396 = vmatmul.mubr.f32.gmra.mrb[0].mxu0 %v1195
    %v1397 = vpop.f32.mrb[0].mxu0
    %v1398 = vadd.f32 %v1190, %v1397
    %v1399 = vpop.f32.mrb[0].mxu0
    %1400 = vmatprep.mubr.f32.mxu0 0.0
    %1401 = vmatmul.mubr.f32.gmra.mrb[0].mxu0 %v1198
    %v1402 = vpop.f32.mrb[0].mxu0
    %v1403 = vadd.f32 %v1190, %v1402
    %v1404 = vpop.f32.mrb[0].mxu0
    %1405 = vmatprep.mubr.f32.mxu0 0.0
    %1406 = vmatmul.mubr.f32.gmra.mrb[0].mxu0 %v1201
    %v1407 = vpop.f32.mrb[0].mxu0
    %v1408 = vadd.f32 %v1190, %v1407
    %v1409 = vpop.f32.mrb[0].mxu0
    %1410 = vmatprep.mubr.f32.mxu0 0.0
    %1411 = vmatmul.mubr.f32.gmra.mrb[0].mxu0 %v1204
    %v1412 = vpop.f32.mrb[0].mxu0
    %v1413 = vadd.f32 %v1190, %v1412
    %v1414 = vpop.f32.mrb[0].mxu0
    %1415 = vmatprep.mubr.f32.mxu0 0.0
    %1416 = vmatmul.mubr.f32.gmra.mrb[0].mxu0 %v1207
    %v1417 = vpop.f32.mrb[0].mxu0
    %v1418 = vadd.f32 %v1190, %v1417
    %v1419 = vpop.f32.mrb[0].mxu0
    %1420 = vmatprep.mubr.f32.mxu0 0.0
    %1421 = vmatmul.mubr.f32.gmra.mrb[0].mxu0 %v1210
    %v1422 = vpop.f32.mrb[0].mxu0
    %v1423 = vadd.f32 %v1190, %v1422
    %v1424 = vpop.f32.mrb[0].mxu0
    %1425 = vmatprep.mubr.f32.mxu0 0.0
    %1426 = vmatmul.mubr.f32.gmra.mrb[0].mxu0 %v1213
    %v1427 = vpop.f32.mrb[0].mxu0
    %v1428 = vadd.f32 %v1190, %v1427
    %v1429 = vpop.f32.mrb[0].mxu0
    %1430 = vmatprep.mubr.f32.mxu0 0.0
    %1431 = vmatmul.mubr.f32.gmra.mrb[0].mxu0 %v1216
    %v1432 = vpop.f32.mrb[0].mxu0
    %v1433 = vadd.f32 %v1190, %v1432
    %v1434 = vpop.f32.mrb[0].mxu0
    %1435 = vdwg.mxu0
    %v1436 = vmax.f32 %v1285, 0.0
    %v1437 = vmax.f32 %v1287, 0.0
    %v1438 = vmax.f32 %v1398, 0.0
    %v1439 = vmax.f32 %v1291, 0.0
    %v1440 = vmax.f32 %v1293, 0.0
    %v1441 = vmax.f32 %v1403, 0.0
    %v1442 = vmax.f32 %v1297, 0.0
    %v1443 = vmax.f32 %v1299, 0.0
    %v1444 = vmax.f32 %v1408, 0.0
    %v1445 = vmax.f32 %v1303, 0.0
    %v1446 = vmax.f32 %v1305, 0.0
    %v1447 = vmax.f32 %v1413, 0.0
    %v1448 = vmax.f32 %v1309, 0.0
    %v1449 = vmax.f32 %v1311, 0.0
    %v1450 = vmax.f32 %v1418, 0.0
    %v1451 = vmax.f32 %v1315, 0.0
    %v1452 = vmax.f32 %v1317, 0.0
    %v1453 = vmax.f32 %v1423, 0.0
    %v1454 = vmax.f32 %v1321, 0.0
    %v1455 = vmax.f32 %v1323, 0.0
    %v1456 = vmax.f32 %v1428, 0.0
    %v1457 = vmax.f32 %v1327, 0.0
    %v1458 = vmax.f32 %v1329, 0.0
    %v1459 = vmax.f32 %v1433, 0.0
    %v1461 = vlaneseq
    %v1462 = vshrl.u32 %v1461, 7
    %v1463 = vsub.s32 0, %v1462
    %v1464 = vrot.slane %v357, %v1463
    %vm1466 = vcmask 523264
    %v1468 = vsel %vm1466, %v1438, 0
    %v1471 = vsel %vm1466, %v1441, 0
    %v1474 = vsel %vm1466, %v1444, 0
    %v1477 = vsel %vm1466, %v1447, 0
    %v1480 = vsel %vm1466, %v1450, 0
    %v1483 = vsel %vm1466, %v1453, 0
    %v1486 = vsel %vm1466, %v1456, 0
    %v1489 = vsel %vm1466, %v1459, 0
    %1491 = vmatprep.subr.mxu0 0.0
    %1492 = vmatpush1.msra.mxu0 %v317
    %1493 = vmatprep.subr.mxu0 0.0
    %1494 = vmatpush1.msra.mxu0 %v318
    %1495 = vmatprep.subr.mxu0 0.0
    %1496 = vmatpush1.msra.mxu0 %v319
    %1497 = vmatprep.subr.mxu0 0.0
    %1498 = vmatpush1.msra.mxu0 %v320
    %1499 = vmatprep.subr.mxu0 0.0
    %1500 = vmatpush1.msra.mxu0 %v321
    %1501 = vmatprep.subr.mxu0 0.0
    %1502 = vmatpush1.msra.mxu0 %v322
    %1503 = vmatprep.subr.mxu0 0.0
    %1504 = vmatpush1.msra.mxu0 %v323
    %1505 = vmatprep.subr.mxu0 0.0
    %1506 = vmatpush1.msra.mxu0 %v324
    %1507 = vmatprep.subr.mxu0 0.0
    %1508 = vmatpush1.msra.mxu0 %v325
    %1509 = vmatprep.subr.mxu0 0.0
    %1510 = vmatpush1.msra.mxu0 %v326
    %1511 = vmatprep.subr.mxu0 0.0
    %1512 = vmatpush1.msra.mxu0 %v327
    %1513 = vmatprep.subr.mxu0 0.0
    %1514 = vmatpush1.msra.mxu0 %v328
    %1515 = vmatprep.subr.mxu0 0.0
    %1516 = vmatpush1.msra.mxu0 %v329
    %1517 = vmatprep.subr.mxu0 0.0
    %1518 = vmatpush1.msra.mxu0 %v330
    %1519 = vmatprep.subr.mxu0 0.0
    %1520 = vmatpush1.msra.mxu0 %v331
    %1521 = vmatprep.subr.mxu0 0.0
    %1522 = vmatpush1.msra.mxu0 %v332
    %1523 = vmatprep.subr.mxu0 0.0
    %1524 = vmatpush1.msra.mxu0 %v333
    %1525 = vmatprep.subr.mxu0 0.0
    %1526 = vmatpush1.msra.mxu0 %v334
    %1527 = vmatprep.subr.mxu0 0.0
    %1528 = vmatpush1.msra.mxu0 %v335
    %1529 = vmatprep.subr.mxu0 0.0
    %1530 = vmatpush1.msra.mxu0 %v336
    %1531 = vmatprep.subr.mxu0 0.0
    %1532 = vmatpush1.msra.mxu0 %v337
    %1533 = vmatprep.subr.mxu0 0.0
    %1534 = vmatpush1.msra.mxu0 %v338
    %1535 = vmatprep.subr.mxu0 0.0
    %1536 = vmatpush1.msra.mxu0 %v339
    %1537 = vmatprep.subr.mxu0 0.0
    %1538 = vmatpush1.msra.mxu0 %v340
    %1539 = vmatprep.subr.mxu0 0.0
    %1540 = vmatpush1.msra.mxu0 %v341
    %1541 = vmatprep.subr.mxu0 0.0
    %1542 = vmatpush1.msra.mxu0 %v342
    %1543 = vmatprep.subr.mxu0 0.0
    %1544 = vmatpush1.msra.mxu0 %v343
    %1545 = vmatprep.subr.mxu0 0.0
    %1546 = vmatpush1.msra.mxu0 %v344
    %1547 = vmatprep.subr.mxu0 0.0
    %1548 = vmatpush1.msra.mxu0 %v345
    %1549 = vmatprep.subr.mxu0 0.0
    %1550 = vmatpush1.msra.mxu0 %v346
    %1551 = vmatprep.subr.mxu0 0.0
    %1552 = vmatpush1.msra.mxu0 %v347
    %1553 = vmatprep.subr.mxu0 0.0
    %1554 = vmatpush1.msra.mxu0 %v348
    %1555 = vmatprep.mubr.f32.mxu0 %v1437
    %1556 = vmatmul.mubr.f32.gmra.mrb[0].mxu0 %v1436
    %v1557 = vpop.f32.mrb[0].mxu0
    %v1558 = vadd.f32 %v1464, %v1557
    %v1559 = vpop.f32.mrb[0].mxu0
    %1560 = vmatprep.mubr.f32.mxu0 %v1440
    %1561 = vmatmul.mubr.f32.gmra.mrb[0].mxu0 %v1439
    %v1562 = vpop.f32.mrb[0].mxu0
    %v1563 = vadd.f32 %v1464, %v1562
    %v1564 = vpop.f32.mrb[0].mxu0
    %1565 = vmatprep.mubr.f32.mxu0 %v1443
    %1566 = vmatmul.mubr.f32.gmra.mrb[0].mxu0 %v1442
    %v1567 = vpop.f32.mrb[0].mxu0
    %v1568 = vadd.f32 %v1464, %v1567
    %v1569 = vpop.f32.mrb[0].mxu0
    %1570 = vmatprep.mubr.f32.mxu0 %v1446
    %1571 = vmatmul.mubr.f32.gmra.mrb[0].mxu0 %v1445
    %v1572 = vpop.f32.mrb[0].mxu0
    %v1573 = vadd.f32 %v1464, %v1572
    %v1574 = vpop.f32.mrb[0].mxu0
    %1575 = vmatprep.mubr.f32.mxu0 %v1449
    %1576 = vmatmul.mubr.f32.gmra.mrb[0].mxu0 %v1448
    %v1577 = vpop.f32.mrb[0].mxu0
    %v1578 = vadd.f32 %v1464, %v1577
    %v1579 = vpop.f32.mrb[0].mxu0
    %1580 = vmatprep.mubr.f32.mxu0 %v1452
    %1581 = vmatmul.mubr.f32.gmra.mrb[0].mxu0 %v1451
    %v1582 = vpop.f32.mrb[0].mxu0
    %v1583 = vadd.f32 %v1464, %v1582
    %v1584 = vpop.f32.mrb[0].mxu0
    %1585 = vmatprep.mubr.f32.mxu0 %v1455
    %1586 = vmatmul.mubr.f32.gmra.mrb[0].mxu0 %v1454
    %v1587 = vpop.f32.mrb[0].mxu0
    %v1588 = vadd.f32 %v1464, %v1587
    %v1589 = vpop.f32.mrb[0].mxu0
    %1590 = vmatprep.mubr.f32.mxu0 %v1458
    %1591 = vmatmul.mubr.f32.gmra.mrb[0].mxu0 %v1457
    %v1592 = vpop.f32.mrb[0].mxu0
    %v1593 = vadd.f32 %v1464, %v1592
    %v1594 = vpop.f32.mrb[0].mxu0
    %1595 = vdwg.mxu0
    %1596 = vmatprep.subr.mxu0 0.0
    %1597 = vmatpush1.msra.mxu0 %v349
    %1598 = vmatprep.subr.mxu0 0.0
    %1599 = vmatpush1.msra.mxu0 %v350
    %1600 = vmatprep.subr.mxu0 0.0
    %1601 = vmatpush1.msra.mxu0 %v351
    %1602 = vmatprep.subr.mxu0 0.0
    %1603 = vmatpush1.msra.mxu0 %v352
    %1604 = vmatprep.subr.mxu0 0.0
    %1605 = vmatpush1.msra.mxu0 %v353
    %1606 = vmatprep.subr.mxu0 0.0
    %1607 = vmatpush1.msra.mxu0 %v354
    %1608 = vmatprep.subr.mxu0 0.0
    %1609 = vmatpush1.msra.mxu0 %v355
    %1610 = vmatprep.subr.mxu0 0.0
    %1611 = vmatpush1.msra.mxu0 %v356
    %1612 = vmatprep.subr.mxu0 0.0
    %1613 = vmatpush1.msra.mxu0 0.0
    %1614 = vmatprep.subr.mxu0 0.0
    %1615 = vmatpush1.msra.mxu0 0.0
    %1616 = vmatprep.subr.mxu0 0.0
    %1617 = vmatpush1.msra.mxu0 0.0
    %1618 = vmatprep.subr.mxu0 0.0
    %1619 = vmatpush1.msra.mxu0 0.0
    %1620 = vmatprep.subr.mxu0 0.0
    %1621 = vmatpush1.msra.mxu0 0.0
    %1622 = vmatprep.subr.mxu0 0.0
    %1623 = vmatpush1.msra.mxu0 0.0
    %1624 = vmatprep.subr.mxu0 0.0
    %1625 = vmatpush1.msra.mxu0 0.0
    %1626 = vmatprep.subr.mxu0 0.0
    %1627 = vmatpush1.msra.mxu0 0.0
    %1628 = vmatprep.subr.mxu0 0.0
    %1629 = vmatpush1.msra.mxu0 0.0
    %1630 = vmatprep.subr.mxu0 0.0
    %1631 = vmatpush1.msra.mxu0 0.0
    %1632 = vmatprep.subr.mxu0 0.0
    %1633 = vmatpush1.msra.mxu0 0.0
    %1634 = vmatprep.subr.mxu0 0.0
    %1635 = vmatpush1.msra.mxu0 0.0
    %1636 = vmatprep.subr.mxu0 0.0
    %1637 = vmatpush1.msra.mxu0 0.0
    %1638 = vmatprep.subr.mxu0 0.0
    %1639 = vmatpush1.msra.mxu0 0.0
    %1640 = vmatprep.subr.mxu0 0.0
    %1641 = vmatpush1.msra.mxu0 0.0
    %1642 = vmatprep.subr.mxu0 0.0
    %1643 = vmatpush1.msra.mxu0 0.0
    %1644 = vmatprep.subr.mxu0 0.0
    %1645 = vmatpush1.msra.mxu0 0.0
    %1646 = vmatprep.subr.mxu0 0.0
    %1647 = vmatpush1.msra.mxu0 0.0
    %1648 = vmatprep.subr.mxu0 0.0
    %1649 = vmatpush1.msra.mxu0 0.0
    %1650 = vmatprep.subr.mxu0 0.0
    %1651 = vmatpush1.msra.mxu0 0.0
    %1652 = vmatprep.subr.mxu0 0.0
    %1653 = vmatpush1.msra.mxu0 0.0
    %1654 = vmatprep.subr.mxu0 0.0
    %1655 = vmatpush1.msra.mxu0 0.0
    %1656 = vmatprep.subr.mxu0 0.0
    %1657 = vmatpush1.msra.mxu0 0.0
    %1658 = vmatprep.subr.mxu0 0.0
    %1659 = vmatpush1.msra.mxu0 0.0
    %1660 = vmatprep.mubr.f32.mxu0 0.0
    %1661 = vmatmul.mubr.f32.gmra.mrb[0].mxu0 %v1468
    %v1662 = vpop.f32.mrb[0].mxu0
    %v1663 = vadd.f32 %v1558, %v1662
    %v1664 = vpop.f32.mrb[0].mxu0
    %1665 = vmatprep.mubr.f32.mxu0 0.0
    %1666 = vmatmul.mubr.f32.gmra.mrb[0].mxu0 %v1471
    %v1667 = vpop.f32.mrb[0].mxu0
    %v1668 = vadd.f32 %v1563, %v1667
    %v1669 = vpop.f32.mrb[0].mxu0
    %1670 = vmatprep.mubr.f32.mxu0 0.0
    %1671 = vmatmul.mubr.f32.gmra.mrb[0].mxu0 %v1474
    %v1672 = vpop.f32.mrb[0].mxu0
    %v1673 = vadd.f32 %v1568, %v1672
    %v1674 = vpop.f32.mrb[0].mxu0
    %1675 = vmatprep.mubr.f32.mxu0 0.0
    %1676 = vmatmul.mubr.f32.gmra.mrb[0].mxu0 %v1477
    %v1677 = vpop.f32.mrb[0].mxu0
    %v1678 = vadd.f32 %v1573, %v1677
    %v1679 = vpop.f32.mrb[0].mxu0
    %1680 = vmatprep.mubr.f32.mxu0 0.0
    %1681 = vmatmul.mubr.f32.gmra.mrb[0].mxu0 %v1480
    %v1682 = vpop.f32.mrb[0].mxu0
    %v1683 = vadd.f32 %v1578, %v1682
    %v1684 = vpop.f32.mrb[0].mxu0
    %1685 = vmatprep.mubr.f32.mxu0 0.0
    %1686 = vmatmul.mubr.f32.gmra.mrb[0].mxu0 %v1483
    %v1687 = vpop.f32.mrb[0].mxu0
    %v1688 = vadd.f32 %v1583, %v1687
    %v1689 = vpop.f32.mrb[0].mxu0
    %1690 = vmatprep.mubr.f32.mxu0 0.0
    %1691 = vmatmul.mubr.f32.gmra.mrb[0].mxu0 %v1486
    %v1692 = vpop.f32.mrb[0].mxu0
    %v1693 = vadd.f32 %v1588, %v1692
    %v1694 = vpop.f32.mrb[0].mxu0
    %1695 = vmatprep.mubr.f32.mxu0 0.0
    %1696 = vmatmul.mubr.f32.gmra.mrb[0].mxu0 %v1489
    %v1697 = vpop.f32.mrb[0].mxu0
    %v1698 = vadd.f32 %v1593, %v1697
    %v1699 = vpop.f32.mrb[0].mxu0
    %1700 = vdwg.mxu0
    %v1701 = vmax.f32 %v1663, 0.0
    %v1702 = vmax.f32 %v1668, 0.0
    %v1703 = vmax.f32 %v1673, 0.0
    %v1704 = vmax.f32 %v1678, 0.0
    %v1705 = vmax.f32 %v1683, 0.0
    %v1706 = vmax.f32 %v1688, 0.0
    %v1707 = vmax.f32 %v1693, 0.0
    %v1708 = vmax.f32 %v1698, 0.0
    %v1710 = vlaneseq
    %v1711 = vshrl.u32 %v1710, 7
    %v1712 = vsub.s32 0, %v1711
    %v1713 = vrot.slane %v362, %v1712
    %v1716 = vsel %vm768, %v1701, 0
    %v1719 = vsel %vm768, %v1702, 0
    %v1722 = vsel %vm768, %v1703, 0
    %v1725 = vsel %vm768, %v1704, 0
    %v1728 = vsel %vm768, %v1705, 0
    %v1731 = vsel %vm768, %v1706, 0
    %v1734 = vsel %vm768, %v1707, 0
    %v1737 = vsel %vm768, %v1708, 0
    %1739 = vmatprep.subr.mxu0 0.0
    %1740 = vmatpush1.msra.mxu0 %v358
    %1741 = vmatprep.subr.mxu0 0.0
    %1742 = vmatpush1.msra.mxu0 %v359
    %1743 = vmatprep.subr.mxu0 0.0
    %1744 = vmatpush1.msra.mxu0 %v360
    %1745 = vmatprep.subr.mxu0 0.0
    %1746 = vmatpush1.msra.mxu0 %v361
    %1747 = vmatprep.subr.mxu0 0.0
    %1748 = vmatpush1.msra.mxu0 0.0
    %1749 = vmatprep.subr.mxu0 0.0
    %1750 = vmatpush1.msra.mxu0 0.0
    %1751 = vmatprep.subr.mxu0 0.0
    %1752 = vmatpush1.msra.mxu0 0.0
    %1753 = vmatprep.subr.mxu0 0.0
    %1754 = vmatpush1.msra.mxu0 0.0
    %1755 = vmatprep.subr.mxu0 0.0
    %1756 = vmatpush1.msra.mxu0 0.0
    %1757 = vmatprep.subr.mxu0 0.0
    %1758 = vmatpush1.msra.mxu0 0.0
    %1759 = vmatprep.subr.mxu0 0.0
    %1760 = vmatpush1.msra.mxu0 0.0
    %1761 = vmatprep.subr.mxu0 0.0
    %1762 = vmatpush1.msra.mxu0 0.0
    %1763 = vmatprep.subr.mxu0 0.0
    %1764 = vmatpush1.msra.mxu0 0.0
    %1765 = vmatprep.subr.mxu0 0.0
    %1766 = vmatpush1.msra.mxu0 0.0
    %1767 = vmatprep.subr.mxu0 0.0
    %1768 = vmatpush1.msra.mxu0 0.0
    %1769 = vmatprep.subr.mxu0 0.0
    %1770 = vmatpush1.msra.mxu0 0.0
    %1771 = vmatprep.subr.mxu0 0.0
    %1772 = vmatpush1.msra.mxu0 0.0
    %1773 = vmatprep.subr.mxu0 0.0
    %1774 = vmatpush1.msra.mxu0 0.0
    %1775 = vmatprep.subr.mxu0 0.0
    %1776 = vmatpush1.msra.mxu0 0.0
    %1777 = vmatprep.subr.mxu0 0.0
    %1778 = vmatpush1.msra.mxu0 0.0
    %1779 = vmatprep.subr.mxu0 0.0
    %1780 = vmatpush1.msra.mxu0 0.0
    %1781 = vmatprep.subr.mxu0 0.0
    %1782 = vmatpush1.msra.mxu0 0.0
    %1783 = vmatprep.subr.mxu0 0.0
    %1784 = vmatpush1.msra.mxu0 0.0
    %1785 = vmatprep.subr.mxu0 0.0
    %1786 = vmatpush1.msra.mxu0 0.0
    %1787 = vmatprep.subr.mxu0 0.0
    %1788 = vmatpush1.msra.mxu0 0.0
    %1789 = vmatprep.subr.mxu0 0.0
    %1790 = vmatpush1.msra.mxu0 0.0
    %1791 = vmatprep.subr.mxu0 0.0
    %1792 = vmatpush1.msra.mxu0 0.0
    %1793 = vmatprep.subr.mxu0 0.0
    %1794 = vmatpush1.msra.mxu0 0.0
    %1795 = vmatprep.subr.mxu0 0.0
    %1796 = vmatpush1.msra.mxu0 0.0
    %1797 = vmatprep.subr.mxu0 0.0
    %1798 = vmatpush1.msra.mxu0 0.0
    %1799 = vmatprep.subr.mxu0 0.0
    %1800 = vmatpush1.msra.mxu0 0.0
    %1801 = vmatprep.subr.mxu0 0.0
    %1802 = vmatpush1.msra.mxu0 0.0
    %1803 = vmatprep.mubr.f32.mxu0 0.0
    %1804 = vmatmul.mubr.f32.gmra.mrb[0].mxu0 %v1716
    %v1805 = vpop.f32.mrb[0].mxu0
    %v1806 = vadd.f32 %v1713, %v1805
    %v1807 = vpop.f32.mrb[0].mxu0
    %1808 = vmatprep.mubr.f32.mxu0 0.0
    %1809 = vmatmul.mubr.f32.gmra.mrb[0].mxu0 %v1719
    %v1810 = vpop.f32.mrb[0].mxu0
    %v1811 = vadd.f32 %v1713, %v1810
    %v1812 = vpop.f32.mrb[0].mxu0
    %1813 = vmatprep.mubr.f32.mxu0 0.0
    %1814 = vmatmul.mubr.f32.gmra.mrb[0].mxu0 %v1722
    %v1815 = vpop.f32.mrb[0].mxu0
    %v1816 = vadd.f32 %v1713, %v1815
    %v1817 = vpop.f32.mrb[0].mxu0
    %1818 = vmatprep.mubr.f32.mxu0 0.0
    %1819 = vmatmul.mubr.f32.gmra.mrb[0].mxu0 %v1725
    %v1820 = vpop.f32.mrb[0].mxu0
    %v1821 = vadd.f32 %v1713, %v1820
    %v1822 = vpop.f32.mrb[0].mxu0
    %1823 = vmatprep.mubr.f32.mxu0 0.0
    %1824 = vmatmul.mubr.f32.gmra.mrb[0].mxu0 %v1728
    %v1825 = vpop.f32.mrb[0].mxu0
    %v1826 = vadd.f32 %v1713, %v1825
    %v1827 = vpop.f32.mrb[0].mxu0
    %1828 = vmatprep.mubr.f32.mxu0 0.0
    %1829 = vmatmul.mubr.f32.gmra.mrb[0].mxu0 %v1731
    %v1830 = vpop.f32.mrb[0].mxu0
    %v1831 = vadd.f32 %v1713, %v1830
    %v1832 = vpop.f32.mrb[0].mxu0
    %1833 = vmatprep.mubr.f32.mxu0 0.0
    %1834 = vmatmul.mubr.f32.gmra.mrb[0].mxu0 %v1734
    %v1835 = vpop.f32.mrb[0].mxu0
    %v1836 = vadd.f32 %v1713, %v1835
    %v1837 = vpop.f32.mrb[0].mxu0
    %1838 = vmatprep.mubr.f32.mxu0 0.0
    %1839 = vmatmul.mubr.f32.gmra.mrb[0].mxu0 %v1737
    %v1840 = vpop.f32.mrb[0].mxu0
    %v1841 = vadd.f32 %v1713, %v1840
    %v1842 = vpop.f32.mrb[0].mxu0
    %1843 = vdwg.mxu0
    %v1845 = vsel %vm1466, %v295, 0
    %v1848 = vsel %vm1466, %v296, 0
    %v1851 = vsel %vm1466, %v297, 0
    %v1854 = vsel %vm1466, %v298, 0
    %1856 = vmatprep.subr.mxu0 0.0
    %1857 = vmatpush1.msra.mxu0 %v1806
    %1858 = vmatprep.subr.mxu0 0.0
    %1859 = vmatpush1.msra.mxu0 %v1811
    %1860 = vmatprep.subr.mxu0 0.0
    %1861 = vmatpush1.msra.mxu0 %v1816
    %1862 = vmatprep.subr.mxu0 0.0
    %1863 = vmatpush1.msra.mxu0 %v1821
    %1864 = vmatprep.subr.mxu0 0.0
    %1865 = vmatpush1.msra.mxu0 %v1826
    %1866 = vmatprep.subr.mxu0 0.0
    %1867 = vmatpush1.msra.mxu0 %v1831
    %1868 = vmatprep.subr.mxu0 0.0
    %1869 = vmatpush1.msra.mxu0 %v1836
    %1870 = vmatprep.subr.mxu0 0.0
    %1871 = vmatpush1.msra.mxu0 %v1841
    %1872 = vmatprep.subr.mxu0 0.0
    %1873 = vmatpush1.msra.mxu0 0.0
    %1874 = vmatprep.subr.mxu0 0.0
    %1875 = vmatpush1.msra.mxu0 0.0
    %1876 = vmatprep.subr.mxu0 0.0
    %1877 = vmatpush1.msra.mxu0 0.0
    %1878 = vmatprep.subr.mxu0 0.0
    %1879 = vmatpush1.msra.mxu0 0.0
    %1880 = vmatprep.subr.mxu0 0.0
    %1881 = vmatpush1.msra.mxu0 0.0
    %1882 = vmatprep.subr.mxu0 0.0
    %1883 = vmatpush1.msra.mxu0 0.0
    %1884 = vmatprep.subr.mxu0 0.0
    %1885 = vmatpush1.msra.mxu0 0.0
    %1886 = vmatprep.subr.mxu0 0.0
    %1887 = vmatpush1.msra.mxu0 0.0
    %1888 = vmatprep.subr.mxu0 0.0
    %1889 = vmatpush1.msra.mxu0 0.0
    %1890 = vmatprep.subr.mxu0 0.0
    %1891 = vmatpush1.msra.mxu0 0.0
    %1892 = vmatprep.subr.mxu0 0.0
    %1893 = vmatpush1.msra.mxu0 0.0
    %1894 = vmatprep.subr.mxu0 0.0
    %1895 = vmatpush1.msra.mxu0 0.0
    %1896 = vmatprep.subr.mxu0 0.0
    %1897 = vmatpush1.msra.mxu0 0.0
    %1898 = vmatprep.subr.mxu0 0.0
    %1899 = vmatpush1.msra.mxu0 0.0
    %1900 = vmatprep.subr.mxu0 0.0
    %1901 = vmatpush1.msra.mxu0 0.0
    %1902 = vmatprep.subr.mxu0 0.0
    %1903 = vmatpush1.msra.mxu0 0.0
    %1904 = vmatprep.subr.mxu0 0.0
    %1905 = vmatpush1.msra.mxu0 0.0
    %1906 = vmatprep.subr.mxu0 0.0
    %1907 = vmatpush1.msra.mxu0 0.0
    %1908 = vmatprep.subr.mxu0 0.0
    %1909 = vmatpush1.msra.mxu0 0.0
    %1910 = vmatprep.subr.mxu0 0.0
    %1911 = vmatpush1.msra.mxu0 0.0
    %1912 = vmatprep.subr.mxu0 0.0
    %1913 = vmatpush1.msra.mxu0 0.0
    %1914 = vmatprep.subr.mxu0 0.0
    %1915 = vmatpush1.msra.mxu0 0.0
    %1916 = vmatprep.subr.mxu0 0.0
    %1917 = vmatpush1.msra.mxu0 0.0
    %1918 = vmatprep.subr.mxu0 0.0
    %1919 = vmatpush1.msra.mxu0 0.0
    %1920 = vmatprep.mubr.f32.mxu0 0.0
    %1921 = vmatmul.mubr.f32.gmra.mrb[0].mxu0 %v1845
    %v1922 = vpop.f32.mrb[0].mxu0
    %v1923 = vadd.f32 0.0, %v1922
    %v1924 = vpop.f32.mrb[0].mxu0
    %1925 = vmatprep.mubr.f32.mxu0 0.0
    %1926 = vmatmul.mubr.f32.gmra.mrb[0].mxu0 %v1848
    %v1927 = vpop.f32.mrb[0].mxu0
    %v1928 = vadd.f32 0.0, %v1927
    %v1929 = vpop.f32.mrb[0].mxu0
    %1930 = vmatprep.mubr.f32.mxu0 0.0
    %1931 = vmatmul.mubr.f32.gmra.mrb[0].mxu0 %v1851
    %v1932 = vpop.f32.mrb[0].mxu0
    %v1933 = vadd.f32 0.0, %v1932
    %v1934 = vpop.f32.mrb[0].mxu0
    %1935 = vmatprep.mubr.f32.mxu0 0.0
    %1936 = vmatmul.mubr.f32.gmra.mrb[0].mxu0 %v1854
    %v1937 = vpop.f32.mrb[0].mxu0
    %v1938 = vadd.f32 0.0, %v1937
    %v1939 = vpop.f32.mrb[0].mxu0
    %1940 = vdwg.mxu0
    %v1942 = vlaneseq
    %v1943 = vshrl.u32 %v1942, 7
    %v1944 = vsub.s32 0, %v1943
    %v1945 = vrot.slane %v439, %v1944
    %v1946 = vlaneseq
    %v1947 = vshrl.u32 %v1946, 7
    %v1948 = vsub.s32 1, %v1947
    %v1949 = vrot.slane %v439, %v1948
    %v1950 = vlaneseq
    %v1951 = vshrl.u32 %v1950, 7
    %v1952 = vsub.s32 2, %v1951
    %v1953 = vrot.slane %v439, %v1952
    %v1958 = vsel %vm768, %v1923, 0
    %v1961 = vsel %vm768, %v1928, 0
    %v1964 = vsel %vm768, %v1933, 0
    %v1967 = vsel %vm768, %v1938, 0
    %1969 = vmatprep.subr.mxu0 %v428
    %1970 = vmatpush1.msra.mxu0 %v427
    %1971 = vmatprep.subr.mxu0 %v431
    %1972 = vmatpush1.msra.mxu0 %v430
    %1973 = vmatprep.subr.mxu0 %v434
    %1974 = vmatpush1.msra.mxu0 %v433
    %1975 = vmatprep.subr.mxu0 %v437
    %1976 = vmatpush1.msra.mxu0 %v436
    %1977 = vmatprep.subr.mxu0 0.0
    %1978 = vmatpush1.msra.mxu0 0.0
    %1979 = vmatprep.subr.mxu0 0.0
    %1980 = vmatpush1.msra.mxu0 0.0
    %1981 = vmatprep.subr.mxu0 0.0
    %1982 = vmatpush1.msra.mxu0 0.0
    %1983 = vmatprep.subr.mxu0 0.0
    %1984 = vmatpush1.msra.mxu0 0.0
    %1985 = vmatprep.subr.mxu0 0.0
    %1986 = vmatpush1.msra.mxu0 0.0
    %1987 = vmatprep.subr.mxu0 0.0
    %1988 = vmatpush1.msra.mxu0 0.0
    %1989 = vmatprep.subr.mxu0 0.0
    %1990 = vmatpush1.msra.mxu0 0.0
    %1991 = vmatprep.subr.mxu0 0.0
    %1992 = vmatpush1.msra.mxu0 0.0
    %1993 = vmatprep.subr.mxu0 0.0
    %1994 = vmatpush1.msra.mxu0 0.0
    %1995 = vmatprep.subr.mxu0 0.0
    %1996 = vmatpush1.msra.mxu0 0.0
    %1997 = vmatprep.subr.mxu0 0.0
    %1998 = vmatpush1.msra.mxu0 0.0
    %1999 = vmatprep.subr.mxu0 0.0
    %2000 = vmatpush1.msra.mxu0 0.0
    %2001 = vmatprep.subr.mxu0 0.0
    %2002 = vmatpush1.msra.mxu0 0.0
    %2003 = vmatprep.subr.mxu0 0.0
    %2004 = vmatpush1.msra.mxu0 0.0
    %2005 = vmatprep.subr.mxu0 0.0
    %2006 = vmatpush1.msra.mxu0 0.0
    %2007 = vmatprep.subr.mxu0 0.0
    %2008 = vmatpush1.msra.mxu0 0.0
    %2009 = vmatprep.subr.mxu0 0.0
    %2010 = vmatpush1.msra.mxu0 0.0
    %2011 = vmatprep.subr.mxu0 0.0
    %2012 = vmatpush1.msra.mxu0 0.0
    %2013 = vmatprep.subr.mxu0 0.0
    %2014 = vmatpush1.msra.mxu0 0.0
    %2015 = vmatprep.subr.mxu0 0.0
    %2016 = vmatpush1.msra.mxu0 0.0
    %2017 = vmatprep.subr.mxu0 0.0
    %2018 = vmatpush1.msra.mxu0 0.0
    %2019 = vmatprep.subr.mxu0 0.0
    %2020 = vmatpush1.msra.mxu0 0.0
    %2021 = vmatprep.subr.mxu0 0.0
    %2022 = vmatpush1.msra.mxu0 0.0
    %2023 = vmatprep.subr.mxu0 0.0
    %2024 = vmatpush1.msra.mxu0 0.0
    %2025 = vmatprep.subr.mxu0 0.0
    %2026 = vmatpush1.msra.mxu0 0.0
    %2027 = vmatprep.subr.mxu0 0.0
    %2028 = vmatpush1.msra.mxu0 0.0
    %2029 = vmatprep.subr.mxu0 0.0
    %2030 = vmatpush1.msra.mxu0 0.0
    %2031 = vmatprep.subr.mxu0 0.0
    %2032 = vmatpush1.msra.mxu0 0.0
    %2033 = vmatprep.mubr.f32.mxu0 0.0
    %2034 = vmatmul.mubr.f32.gmra.mrb[0].mxu0 %v1958
    %v2035 = vpop.f32.mrb[0].mxu0
    %v2036 = vadd.f32 %v1945, %v2035
    %v2037 = vpop.f32.mrb[0].mxu0
    %v2038 = vadd.f32 %v1949, %v2037
    %2039 = vmatprep.mubr.f32.mxu0 0.0
    %2040 = vmatmul.mubr.f32.gmra.mrb[0].mxu0 %v1961
    %v2041 = vpop.f32.mrb[0].mxu0
    %v2042 = vadd.f32 %v1945, %v2041
    %v2043 = vpop.f32.mrb[0].mxu0
    %v2044 = vadd.f32 %v1949, %v2043
    %2045 = vmatprep.mubr.f32.mxu0 0.0
    %2046 = vmatmul.mubr.f32.gmra.mrb[0].mxu0 %v1964
    %v2047 = vpop.f32.mrb[0].mxu0
    %v2048 = vadd.f32 %v1945, %v2047
    %v2049 = vpop.f32.mrb[0].mxu0
    %v2050 = vadd.f32 %v1949, %v2049
    %2051 = vmatprep.mubr.f32.mxu0 0.0
    %2052 = vmatmul.mubr.f32.gmra.mrb[0].mxu0 %v1967
    %v2053 = vpop.f32.mrb[0].mxu0
    %v2054 = vadd.f32 %v1945, %v2053
    %v2055 = vpop.f32.mrb[0].mxu0
    %v2056 = vadd.f32 %v1949, %v2055
    %2057 = vdwg.mxu0
    %2058 = vmatprep.subr.mxu0 0.0
    %2059 = vmatpush1.msra.mxu0 %v429
    %2060 = vmatprep.subr.mxu0 0.0
    %2061 = vmatpush1.msra.mxu0 %v432
    %2062 = vmatprep.subr.mxu0 0.0
    %2063 = vmatpush1.msra.mxu0 %v435
    %2064 = vmatprep.subr.mxu0 0.0
    %2065 = vmatpush1.msra.mxu0 %v438
    %2066 = vmatprep.subr.mxu0 0.0
    %2067 = vmatpush1.msra.mxu0 0.0
    %2068 = vmatprep.subr.mxu0 0.0
    %2069 = vmatpush1.msra.mxu0 0.0
    %2070 = vmatprep.subr.mxu0 0.0
    %2071 = vmatpush1.msra.mxu0 0.0
    %2072 = vmatprep.subr.mxu0 0.0
    %2073 = vmatpush1.msra.mxu0 0.0
    %2074 = vmatprep.subr.mxu0 0.0
    %2075 = vmatpush1.msra.mxu0 0.0
    %2076 = vmatprep.subr.mxu0 0.0
    %2077 = vmatpush1.msra.mxu0 0.0
    %2078 = vmatprep.subr.mxu0 0.0
    %2079 = vmatpush1.msra.mxu0 0.0
    %2080 = vmatprep.subr.mxu0 0.0
    %2081 = vmatpush1.msra.mxu0 0.0
    %2082 = vmatprep.subr.mxu0 0.0
    %2083 = vmatpush1.msra.mxu0 0.0
    %2084 = vmatprep.subr.mxu0 0.0
    %2085 = vmatpush1.msra.mxu0 0.0
    %2086 = vmatprep.subr.mxu0 0.0
    %2087 = vmatpush1.msra.mxu0 0.0
    %2088 = vmatprep.subr.mxu0 0.0
    %2089 = vmatpush1.msra.mxu0 0.0
    %2090 = vmatprep.subr.mxu0 0.0
    %2091 = vmatpush1.msra.mxu0 0.0
    %2092 = vmatprep.subr.mxu0 0.0
    %2093 = vmatpush1.msra.mxu0 0.0
    %2094 = vmatprep.subr.mxu0 0.0
    %2095 = vmatpush1.msra.mxu0 0.0
    %2096 = vmatprep.subr.mxu0 0.0
    %2097 = vmatpush1.msra.mxu0 0.0
    %2098 = vmatprep.subr.mxu0 0.0
    %2099 = vmatpush1.msra.mxu0 0.0
    %2100 = vmatprep.subr.mxu0 0.0
    %2101 = vmatpush1.msra.mxu0 0.0
    %2102 = vmatprep.subr.mxu0 0.0
    %2103 = vmatpush1.msra.mxu0 0.0
    %2104 = vmatprep.subr.mxu0 0.0
    %2105 = vmatpush1.msra.mxu0 0.0
    %2106 = vmatprep.subr.mxu0 0.0
    %2107 = vmatpush1.msra.mxu0 0.0
    %2108 = vmatprep.subr.mxu0 0.0
    %2109 = vmatpush1.msra.mxu0 0.0
    %2110 = vmatprep.subr.mxu0 0.0
    %2111 = vmatpush1.msra.mxu0 0.0
    %2112 = vmatprep.subr.mxu0 0.0
    %2113 = vmatpush1.msra.mxu0 0.0
    %2114 = vmatprep.subr.mxu0 0.0
    %2115 = vmatpush1.msra.mxu0 0.0
    %2116 = vmatprep.subr.mxu0 0.0
    %2117 = vmatpush1.msra.mxu0 0.0
    %2118 = vmatprep.subr.mxu0 0.0
    %2119 = vmatpush1.msra.mxu0 0.0
    %2120 = vmatprep.subr.mxu0 0.0
    %2121 = vmatpush1.msra.mxu0 0.0
    %2122 = vmatprep.mubr.f32.mxu0 0.0
    %2123 = vmatmul.mubr.f32.gmra.mrb[0].mxu0 %v1958
    %v2124 = vpop.f32.mrb[0].mxu0
    %v2125 = vadd.f32 %v1953, %v2124
    %v2126 = vpop.f32.mrb[0].mxu0
    %2127 = vmatprep.mubr.f32.mxu0 0.0
    %2128 = vmatmul.mubr.f32.gmra.mrb[0].mxu0 %v1961
    %v2129 = vpop.f32.mrb[0].mxu0
    %v2130 = vadd.f32 %v1953, %v2129
    %v2131 = vpop.f32.mrb[0].mxu0
    %2132 = vmatprep.mubr.f32.mxu0 0.0
    %2133 = vmatmul.mubr.f32.gmra.mrb[0].mxu0 %v1964
    %v2134 = vpop.f32.mrb[0].mxu0
    %v2135 = vadd.f32 %v1953, %v2134
    %v2136 = vpop.f32.mrb[0].mxu0
    %2137 = vmatprep.mubr.f32.mxu0 0.0
    %2138 = vmatmul.mubr.f32.gmra.mrb[0].mxu0 %v1967
    %v2139 = vpop.f32.mrb[0].mxu0
    %v2140 = vadd.f32 %v1953, %v2139
    %v2141 = vpop.f32.mrb[0].mxu0
    %2142 = vdwg.mxu0
    %v2143 = vmax.f32 %v2036, 0.0
    %v2144 = vmax.f32 %v2038, 0.0
    %v2145 = vmax.f32 %v2125, 0.0
    %v2146 = vmax.f32 %v2042, 0.0
    %v2147 = vmax.f32 %v2044, 0.0
    %v2148 = vmax.f32 %v2130, 0.0
    %v2149 = vmax.f32 %v2048, 0.0
    %v2150 = vmax.f32 %v2050, 0.0
    %v2151 = vmax.f32 %v2135, 0.0
    %v2152 = vmax.f32 %v2054, 0.0
    %v2153 = vmax.f32 %v2056, 0.0
    %v2154 = vmax.f32 %v2140, 0.0
    %v2156 = vlaneseq
    %v2157 = vshrl.u32 %v2156, 7
    %v2158 = vsub.s32 0, %v2157
    %v2159 = vrot.slane %v480, %v2158
    %v2162 = vsel %vm1466, %v2145, 0
    %v2165 = vsel %vm1466, %v2148, 0
    %v2168 = vsel %vm1466, %v2151, 0
    %v2171 = vsel %vm1466, %v2154, 0
    %2173 = vmatprep.subr.mxu0 0.0
    %2174 = vmatpush1.msra.mxu0 %v440
    %2175 = vmatprep.subr.mxu0 0.0
    %2176 = vmatpush1.msra.mxu0 %v441
    %2177 = vmatprep.subr.mxu0 0.0
    %2178 = vmatpush1.msra.mxu0 %v442
    %2179 = vmatprep.subr.mxu0 0.0
    %2180 = vmatpush1.msra.mxu0 %v443
    %2181 = vmatprep.subr.mxu0 0.0
    %2182 = vmatpush1.msra.mxu0 %v444
    %2183 = vmatprep.subr.mxu0 0.0
    %2184 = vmatpush1.msra.mxu0 %v445
    %2185 = vmatprep.subr.mxu0 0.0
    %2186 = vmatpush1.msra.mxu0 %v446
    %2187 = vmatprep.subr.mxu0 0.0
    %2188 = vmatpush1.msra.mxu0 %v447
    %2189 = vmatprep.subr.mxu0 0.0
    %2190 = vmatpush1.msra.mxu0 %v448
    %2191 = vmatprep.subr.mxu0 0.0
    %2192 = vmatpush1.msra.mxu0 %v449
    %2193 = vmatprep.subr.mxu0 0.0
    %2194 = vmatpush1.msra.mxu0 %v450
    %2195 = vmatprep.subr.mxu0 0.0
    %2196 = vmatpush1.msra.mxu0 %v451
    %2197 = vmatprep.subr.mxu0 0.0
    %2198 = vmatpush1.msra.mxu0 %v452
    %2199 = vmatprep.subr.mxu0 0.0
    %2200 = vmatpush1.msra.mxu0 %v453
    %2201 = vmatprep.subr.mxu0 0.0
    %2202 = vmatpush1.msra.mxu0 %v454
    %2203 = vmatprep.subr.mxu0 0.0
    %2204 = vmatpush1.msra.mxu0 %v455
    %2205 = vmatprep.subr.mxu0 0.0
    %2206 = vmatpush1.msra.mxu0 %v456
    %2207 = vmatprep.subr.mxu0 0.0
    %2208 = vmatpush1.msra.mxu0 %v457
    %2209 = vmatprep.subr.mxu0 0.0
    %2210 = vmatpush1.msra.mxu0 %v458
    %2211 = vmatprep.subr.mxu0 0.0
    %2212 = vmatpush1.msra.mxu0 %v459
    %2213 = vmatprep.subr.mxu0 0.0
    %2214 = vmatpush1.msra.mxu0 %v460
    %2215 = vmatprep.subr.mxu0 0.0
    %2216 = vmatpush1.msra.mxu0 %v461
    %2217 = vmatprep.subr.mxu0 0.0
    %2218 = vmatpush1.msra.mxu0 %v462
    %2219 = vmatprep.subr.mxu0 0.0
    %2220 = vmatpush1.msra.mxu0 %v463
    %2221 = vmatprep.subr.mxu0 0.0
    %2222 = vmatpush1.msra.mxu0 %v464
    %2223 = vmatprep.subr.mxu0 0.0
    %2224 = vmatpush1.msra.mxu0 %v465
    %2225 = vmatprep.subr.mxu0 0.0
    %2226 = vmatpush1.msra.mxu0 %v466
    %2227 = vmatprep.subr.mxu0 0.0
    %2228 = vmatpush1.msra.mxu0 %v467
    %2229 = vmatprep.subr.mxu0 0.0
    %2230 = vmatpush1.msra.mxu0 %v468
    %2231 = vmatprep.subr.mxu0 0.0
    %2232 = vmatpush1.msra.mxu0 %v469
    %2233 = vmatprep.subr.mxu0 0.0
    %2234 = vmatpush1.msra.mxu0 %v470
    %2235 = vmatprep.subr.mxu0 0.0
    %2236 = vmatpush1.msra.mxu0 %v471
    %2237 = vmatprep.mubr.f32.mxu0 %v2144
    %2238 = vmatmul.mubr.f32.gmra.mrb[0].mxu0 %v2143
    %v2239 = vpop.f32.mrb[0].mxu0
    %v2240 = vadd.f32 %v2159, %v2239
    %v2241 = vpop.f32.mrb[0].mxu0
    %2242 = vmatprep.mubr.f32.mxu0 %v2147
    %2243 = vmatmul.mubr.f32.gmra.mrb[0].mxu0 %v2146
    %v2244 = vpop.f32.mrb[0].mxu0
    %v2245 = vadd.f32 %v2159, %v2244
    %v2246 = vpop.f32.mrb[0].mxu0
    %2247 = vmatprep.mubr.f32.mxu0 %v2150
    %2248 = vmatmul.mubr.f32.gmra.mrb[0].mxu0 %v2149
    %v2249 = vpop.f32.mrb[0].mxu0
    %v2250 = vadd.f32 %v2159, %v2249
    %v2251 = vpop.f32.mrb[0].mxu0
    %2252 = vmatprep.mubr.f32.mxu0 %v2153
    %2253 = vmatmul.mubr.f32.gmra.mrb[0].mxu0 %v2152
    %v2254 = vpop.f32.mrb[0].mxu0
    %v2255 = vadd.f32 %v2159, %v2254
    %v2256 = vpop.f32.mrb[0].mxu0
    %2257 = vdwg.mxu0
    %2258 = vmatprep.subr.mxu0 0.0
    %2259 = vmatpush1.msra.mxu0 %v472
    %2260 = vmatprep.subr.mxu0 0.0
    %2261 = vmatpush1.msra.mxu0 %v473
    %2262 = vmatprep.subr.mxu0 0.0
    %2263 = vmatpush1.msra.mxu0 %v474
    %2264 = vmatprep.subr.mxu0 0.0
    %2265 = vmatpush1.msra.mxu0 %v475
    %2266 = vmatprep.subr.mxu0 0.0
    %2267 = vmatpush1.msra.mxu0 %v476
    %2268 = vmatprep.subr.mxu0 0.0
    %2269 = vmatpush1.msra.mxu0 %v477
    %2270 = vmatprep.subr.mxu0 0.0
    %2271 = vmatpush1.msra.mxu0 %v478
    %2272 = vmatprep.subr.mxu0 0.0
    %2273 = vmatpush1.msra.mxu0 %v479
    %2274 = vmatprep.subr.mxu0 0.0
    %2275 = vmatpush1.msra.mxu0 0.0
    %2276 = vmatprep.subr.mxu0 0.0
    %2277 = vmatpush1.msra.mxu0 0.0
    %2278 = vmatprep.subr.mxu0 0.0
    %2279 = vmatpush1.msra.mxu0 0.0
    %2280 = vmatprep.subr.mxu0 0.0
    %2281 = vmatpush1.msra.mxu0 0.0
    %2282 = vmatprep.subr.mxu0 0.0
    %2283 = vmatpush1.msra.mxu0 0.0
    %2284 = vmatprep.subr.mxu0 0.0
    %2285 = vmatpush1.msra.mxu0 0.0
    %2286 = vmatprep.subr.mxu0 0.0
    %2287 = vmatpush1.msra.mxu0 0.0
    %2288 = vmatprep.subr.mxu0 0.0
    %2289 = vmatpush1.msra.mxu0 0.0
    %2290 = vmatprep.subr.mxu0 0.0
    %2291 = vmatpush1.msra.mxu0 0.0
    %2292 = vmatprep.subr.mxu0 0.0
    %2293 = vmatpush1.msra.mxu0 0.0
    %2294 = vmatprep.subr.mxu0 0.0
    %2295 = vmatpush1.msra.mxu0 0.0
    %2296 = vmatprep.subr.mxu0 0.0
    %2297 = vmatpush1.msra.mxu0 0.0
    %2298 = vmatprep.subr.mxu0 0.0
    %2299 = vmatpush1.msra.mxu0 0.0
    %2300 = vmatprep.subr.mxu0 0.0
    %2301 = vmatpush1.msra.mxu0 0.0
    %2302 = vmatprep.subr.mxu0 0.0
    %2303 = vmatpush1.msra.mxu0 0.0
    %2304 = vmatprep.subr.mxu0 0.0
    %2305 = vmatpush1.msra.mxu0 0.0
    %2306 = vmatprep.subr.mxu0 0.0
    %2307 = vmatpush1.msra.mxu0 0.0
    %2308 = vmatprep.subr.mxu0 0.0
    %2309 = vmatpush1.msra.mxu0 0.0
    %2310 = vmatprep.subr.mxu0 0.0
    %2311 = vmatpush1.msra.mxu0 0.0
    %2312 = vmatprep.subr.mxu0 0.0
    %2313 = vmatpush1.msra.mxu0 0.0
    %2314 = vmatprep.subr.mxu0 0.0
    %2315 = vmatpush1.msra.mxu0 0.0
    %2316 = vmatprep.subr.mxu0 0.0
    %2317 = vmatpush1.msra.mxu0 0.0
    %2318 = vmatprep.subr.mxu0 0.0
    %2319 = vmatpush1.msra.mxu0 0.0
    %2320 = vmatprep.subr.mxu0 0.0
    %2321 = vmatpush1.msra.mxu0 0.0
    %2322 = vmatprep.mubr.f32.mxu0 0.0
    %2323 = vmatmul.mubr.f32.gmra.mrb[0].mxu0 %v2162
    %v2324 = vpop.f32.mrb[0].mxu0
    %v2325 = vadd.f32 %v2240, %v2324
    %v2326 = vpop.f32.mrb[0].mxu0
    %2327 = vmatprep.mubr.f32.mxu0 0.0
    %2328 = vmatmul.mubr.f32.gmra.mrb[0].mxu0 %v2165
    %v2329 = vpop.f32.mrb[0].mxu0
    %v2330 = vadd.f32 %v2245, %v2329
    %v2331 = vpop.f32.mrb[0].mxu0
    %2332 = vmatprep.mubr.f32.mxu0 0.0
    %2333 = vmatmul.mubr.f32.gmra.mrb[0].mxu0 %v2168
    %v2334 = vpop.f32.mrb[0].mxu0
    %v2335 = vadd.f32 %v2250, %v2334
    %v2336 = vpop.f32.mrb[0].mxu0
    %2337 = vmatprep.mubr.f32.mxu0 0.0
    %2338 = vmatmul.mubr.f32.gmra.mrb[0].mxu0 %v2171
    %v2339 = vpop.f32.mrb[0].mxu0
    %v2340 = vadd.f32 %v2255, %v2339
    %v2341 = vpop.f32.mrb[0].mxu0
    %2342 = vdwg.mxu0
    %v2343 = vmax.f32 %v2325, 0.0
    %v2344 = vmax.f32 %v2330, 0.0
    %v2345 = vmax.f32 %v2335, 0.0
    %v2346 = vmax.f32 %v2340, 0.0
    %v2348 = vlaneseq
    %v2349 = vshrl.u32 %v2348, 7
    %v2350 = vsub.s32 0, %v2349
    %v2351 = vrot.slane %v485, %v2350
    %v2354 = vsel %vm768, %v2343, 0
    %v2357 = vsel %vm768, %v2344, 0
    %v2360 = vsel %vm768, %v2345, 0
    %v2363 = vsel %vm768, %v2346, 0
    %2365 = vmatprep.subr.mxu0 0.0
    %2366 = vmatpush1.msra.mxu0 %v481
    %2367 = vmatprep.subr.mxu0 0.0
    %2368 = vmatpush1.msra.mxu0 %v482
    %2369 = vmatprep.subr.mxu0 0.0
    %2370 = vmatpush1.msra.mxu0 %v483
    %2371 = vmatprep.subr.mxu0 0.0
    %2372 = vmatpush1.msra.mxu0 %v484
    %2373 = vmatprep.subr.mxu0 0.0
    %2374 = vmatpush1.msra.mxu0 0.0
    %2375 = vmatprep.subr.mxu0 0.0
    %2376 = vmatpush1.msra.mxu0 0.0
    %2377 = vmatprep.subr.mxu0 0.0
    %2378 = vmatpush1.msra.mxu0 0.0
    %2379 = vmatprep.subr.mxu0 0.0
    %2380 = vmatpush1.msra.mxu0 0.0
    %2381 = vmatprep.subr.mxu0 0.0
    %2382 = vmatpush1.msra.mxu0 0.0
    %2383 = vmatprep.subr.mxu0 0.0
    %2384 = vmatpush1.msra.mxu0 0.0
    %2385 = vmatprep.subr.mxu0 0.0
    %2386 = vmatpush1.msra.mxu0 0.0
    %2387 = vmatprep.subr.mxu0 0.0
    %2388 = vmatpush1.msra.mxu0 0.0
    %2389 = vmatprep.subr.mxu0 0.0
    %2390 = vmatpush1.msra.mxu0 0.0
    %2391 = vmatprep.subr.mxu0 0.0
    %2392 = vmatpush1.msra.mxu0 0.0
    %2393 = vmatprep.subr.mxu0 0.0
    %2394 = vmatpush1.msra.mxu0 0.0
    %2395 = vmatprep.subr.mxu0 0.0
    %2396 = vmatpush1.msra.mxu0 0.0
    %2397 = vmatprep.subr.mxu0 0.0
    %2398 = vmatpush1.msra.mxu0 0.0
    %2399 = vmatprep.subr.mxu0 0.0
    %2400 = vmatpush1.msra.mxu0 0.0
    %2401 = vmatprep.subr.mxu0 0.0
    %2402 = vmatpush1.msra.mxu0 0.0
    %2403 = vmatprep.subr.mxu0 0.0
    %2404 = vmatpush1.msra.mxu0 0.0
    %2405 = vmatprep.subr.mxu0 0.0
    %2406 = vmatpush1.msra.mxu0 0.0
    %2407 = vmatprep.subr.mxu0 0.0
    %2408 = vmatpush1.msra.mxu0 0.0
    %2409 = vmatprep.subr.mxu0 0.0
    %2410 = vmatpush1.msra.mxu0 0.0
    %2411 = vmatprep.subr.mxu0 0.0
    %2412 = vmatpush1.msra.mxu0 0.0
    %2413 = vmatprep.subr.mxu0 0.0
    %2414 = vmatpush1.msra.mxu0 0.0
    %2415 = vmatprep.subr.mxu0 0.0
    %2416 = vmatpush1.msra.mxu0 0.0
    %2417 = vmatprep.subr.mxu0 0.0
    %2418 = vmatpush1.msra.mxu0 0.0
    %2419 = vmatprep.subr.mxu0 0.0
    %2420 = vmatpush1.msra.mxu0 0.0
    %2421 = vmatprep.subr.mxu0 0.0
    %2422 = vmatpush1.msra.mxu0 0.0
    %2423 = vmatprep.subr.mxu0 0.0
    %2424 = vmatpush1.msra.mxu0 0.0
    %2425 = vmatprep.subr.mxu0 0.0
    %2426 = vmatpush1.msra.mxu0 0.0
    %2427 = vmatprep.subr.mxu0 0.0
    %2428 = vmatpush1.msra.mxu0 0.0
    %2429 = vmatprep.mubr.f32.mxu0 0.0
    %2430 = vmatmul.mubr.f32.gmra.mrb[0].mxu0 %v2354
    %v2431 = vpop.f32.mrb[0].mxu0
    %v2432 = vadd.f32 %v2351, %v2431
    %v2433 = vpop.f32.mrb[0].mxu0
    %2434 = vmatprep.mubr.f32.mxu0 0.0
    %2435 = vmatmul.mubr.f32.gmra.mrb[0].mxu0 %v2357
    %v2436 = vpop.f32.mrb[0].mxu0
    %v2437 = vadd.f32 %v2351, %v2436
    %v2438 = vpop.f32.mrb[0].mxu0
    %2439 = vmatprep.mubr.f32.mxu0 0.0
    %2440 = vmatmul.mubr.f32.gmra.mrb[0].mxu0 %v2360
    %v2441 = vpop.f32.mrb[0].mxu0
    %v2442 = vadd.f32 %v2351, %v2441
    %v2443 = vpop.f32.mrb[0].mxu0
    %2444 = vmatprep.mubr.f32.mxu0 0.0
    %2445 = vmatmul.mubr.f32.gmra.mrb[0].mxu0 %v2363
    %v2446 = vpop.f32.mrb[0].mxu0
    %v2447 = vadd.f32 %v2351, %v2446
    %v2448 = vpop.f32.mrb[0].mxu0
    %2449 = vdwg.mxu0
    %2450 = vmatprep.subr.mxu0 0.0
    %2451 = vmatpush1.msra.mxu0 %v271
    %2452 = vmatprep.subr.mxu0 0.0
    %2453 = vmatpush1.msra.mxu0 %v272
    %2454 = vmatprep.subr.mxu0 0.0
    %2455 = vmatpush1.msra.mxu0 %v273
    %2456 = vmatprep.subr.mxu0 0.0
    %2457 = vmatpush1.msra.mxu0 %v274
    %2458 = vmatprep.subr.mxu0 0.0
    %2459 = vmatpush1.msra.mxu0 0.0
    %2460 = vmatprep.subr.mxu0 0.0
    %2461 = vmatpush1.msra.mxu0 0.0
    %2462 = vmatprep.subr.mxu0 0.0
    %2463 = vmatpush1.msra.mxu0 0.0
    %2464 = vmatprep.subr.mxu0 0.0
    %2465 = vmatpush1.msra.mxu0 0.0
    %2466 = vmatprep.subr.mxu0 0.0
    %2467 = vmatpush1.msra.mxu0 0.0
    %2468 = vmatprep.subr.mxu0 0.0
    %2469 = vmatpush1.msra.mxu0 0.0
    %2470 = vmatprep.subr.mxu0 0.0
    %2471 = vmatpush1.msra.mxu0 0.0
    %2472 = vmatprep.subr.mxu0 0.0
    %2473 = vmatpush1.msra.mxu0 0.0
    %2474 = vmatprep.subr.mxu0 0.0
    %2475 = vmatpush1.msra.mxu0 0.0
    %2476 = vmatprep.subr.mxu0 0.0
    %2477 = vmatpush1.msra.mxu0 0.0
    %2478 = vmatprep.subr.mxu0 0.0
    %2479 = vmatpush1.msra.mxu0 0.0
    %2480 = vmatprep.subr.mxu0 0.0
    %2481 = vmatpush1.msra.mxu0 0.0
    %2482 = vmatprep.subr.mxu0 0.0
    %2483 = vmatpush1.msra.mxu0 0.0
    %2484 = vmatprep.subr.mxu0 0.0
    %2485 = vmatpush1.msra.mxu0 0.0
    %2486 = vmatprep.subr.mxu0 0.0
    %2487 = vmatpush1.msra.mxu0 0.0
    %2488 = vmatprep.subr.mxu0 0.0
    %2489 = vmatpush1.msra.mxu0 0.0
    %2490 = vmatprep.subr.mxu0 0.0
    %2491 = vmatpush1.msra.mxu0 0.0
    %2492 = vmatprep.subr.mxu0 0.0
    %2493 = vmatpush1.msra.mxu0 0.0
    %2494 = vmatprep.subr.mxu0 0.0
    %2495 = vmatpush1.msra.mxu0 0.0
    %2496 = vmatprep.subr.mxu0 0.0
    %2497 = vmatpush1.msra.mxu0 0.0
    %2498 = vmatprep.subr.mxu0 0.0
    %2499 = vmatpush1.msra.mxu0 0.0
    %2500 = vmatprep.subr.mxu0 0.0
    %2501 = vmatpush1.msra.mxu0 0.0
    %2502 = vmatprep.subr.mxu0 0.0
    %2503 = vmatpush1.msra.mxu0 0.0
    %2504 = vmatprep.subr.mxu0 0.0
    %2505 = vmatpush1.msra.mxu0 0.0
    %2506 = vmatprep.subr.mxu0 0.0
    %2507 = vmatpush1.msra.mxu0 0.0
    %2508 = vmatprep.subr.mxu0 0.0
    %2509 = vmatpush1.msra.mxu0 0.0
    %2510 = vmatprep.subr.mxu0 0.0
    %2511 = vmatpush1.msra.mxu0 0.0
    %2512 = vmatprep.subr.mxu0 0.0
    %2513 = vmatpush1.msra.mxu0 0.0
    %2514 = vmatprep.mubr.f32.mxu0 0.0
    %2515 = vmatmul.mubr.f32.gmra.mrb[0].mxu0 %v770
    %v2516 = vpop.f32.mrb[0].mxu0
    %v2517 = vadd.f32 0.0, %v2516
    %v2518 = vpop.f32.mrb[0].mxu0
    %2519 = vmatprep.mubr.f32.mxu0 0.0
    %2520 = vmatmul.mubr.f32.gmra.mrb[0].mxu0 %v773
    %v2521 = vpop.f32.mrb[0].mxu0
    %v2522 = vadd.f32 0.0, %v2521
    %v2523 = vpop.f32.mrb[0].mxu0
    %2524 = vmatprep.mubr.f32.mxu0 0.0
    %2525 = vmatmul.mubr.f32.gmra.mrb[0].mxu0 %v776
    %v2526 = vpop.f32.mrb[0].mxu0
    %v2527 = vadd.f32 0.0, %v2526
    %v2528 = vpop.f32.mrb[0].mxu0
    %2529 = vmatprep.mubr.f32.mxu0 0.0
    %2530 = vmatmul.mubr.f32.gmra.mrb[0].mxu0 %v779
    %v2531 = vpop.f32.mrb[0].mxu0
    %v2532 = vadd.f32 0.0, %v2531
    %v2533 = vpop.f32.mrb[0].mxu0
    %2534 = vmatprep.mubr.f32.mxu0 0.0
    %2535 = vmatmul.mubr.f32.gmra.mrb[0].mxu0 %v782
    %v2536 = vpop.f32.mrb[0].mxu0
    %v2537 = vadd.f32 0.0, %v2536
    %v2538 = vpop.f32.mrb[0].mxu0
    %2539 = vmatprep.mubr.f32.mxu0 0.0
    %2540 = vmatmul.mubr.f32.gmra.mrb[0].mxu0 %v785
    %v2541 = vpop.f32.mrb[0].mxu0
    %v2542 = vadd.f32 0.0, %v2541
    %v2543 = vpop.f32.mrb[0].mxu0
    %2544 = vmatprep.mubr.f32.mxu0 0.0
    %2545 = vmatmul.mubr.f32.gmra.mrb[0].mxu0 %v788
    %v2546 = vpop.f32.mrb[0].mxu0
    %v2547 = vadd.f32 0.0, %v2546
    %v2548 = vpop.f32.mrb[0].mxu0
    %2549 = vmatprep.mubr.f32.mxu0 0.0
    %2550 = vmatmul.mubr.f32.gmra.mrb[0].mxu0 %v791
    %v2551 = vpop.f32.mrb[0].mxu0
    %v2552 = vadd.f32 0.0, %v2551
    %v2553 = vpop.f32.mrb[0].mxu0
    %2554 = vdwg.mxu0
    %2555 = vmatprep.subr.mxu0 0.0
    %2556 = vmatpush1.msra.mxu0 %v271
    %2557 = vmatprep.subr.mxu0 0.0
    %2558 = vmatpush1.msra.mxu0 %v272
    %2559 = vmatprep.subr.mxu0 0.0
    %2560 = vmatpush1.msra.mxu0 %v273
    %2561 = vmatprep.subr.mxu0 0.0
    %2562 = vmatpush1.msra.mxu0 %v274
    %2563 = vmatprep.subr.mxu0 0.0
    %2564 = vmatpush1.msra.mxu0 0.0
    %2565 = vmatprep.subr.mxu0 0.0
    %2566 = vmatpush1.msra.mxu0 0.0
    %2567 = vmatprep.subr.mxu0 0.0
    %2568 = vmatpush1.msra.mxu0 0.0
    %2569 = vmatprep.subr.mxu0 0.0
    %2570 = vmatpush1.msra.mxu0 0.0
    %2571 = vmatprep.subr.mxu0 0.0
    %2572 = vmatpush1.msra.mxu0 0.0
    %2573 = vmatprep.subr.mxu0 0.0
    %2574 = vmatpush1.msra.mxu0 0.0
    %2575 = vmatprep.subr.mxu0 0.0
    %2576 = vmatpush1.msra.mxu0 0.0
    %2577 = vmatprep.subr.mxu0 0.0
    %2578 = vmatpush1.msra.mxu0 0.0
    %2579 = vmatprep.subr.mxu0 0.0
    %2580 = vmatpush1.msra.mxu0 0.0
    %2581 = vmatprep.subr.mxu0 0.0
    %2582 = vmatpush1.msra.mxu0 0.0
    %2583 = vmatprep.subr.mxu0 0.0
    %2584 = vmatpush1.msra.mxu0 0.0
    %2585 = vmatprep.subr.mxu0 0.0
    %2586 = vmatpush1.msra.mxu0 0.0
    %2587 = vmatprep.subr.mxu0 0.0
    %2588 = vmatpush1.msra.mxu0 0.0
    %2589 = vmatprep.subr.mxu0 0.0
    %2590 = vmatpush1.msra.mxu0 0.0
    %2591 = vmatprep.subr.mxu0 0.0
    %2592 = vmatpush1.msra.mxu0 0.0
    %2593 = vmatprep.subr.mxu0 0.0
    %2594 = vmatpush1.msra.mxu0 0.0
    %2595 = vmatprep.subr.mxu0 0.0
    %2596 = vmatpush1.msra.mxu0 0.0
    %2597 = vmatprep.subr.mxu0 0.0
    %2598 = vmatpush1.msra.mxu0 0.0
    %2599 = vmatprep.subr.mxu0 0.0
    %2600 = vmatpush1.msra.mxu0 0.0
    %2601 = vmatprep.subr.mxu0 0.0
    %2602 = vmatpush1.msra.mxu0 0.0
    %2603 = vmatprep.subr.mxu0 0.0
    %2604 = vmatpush1.msra.mxu0 0.0
    %2605 = vmatprep.subr.mxu0 0.0
    %2606 = vmatpush1.msra.mxu0 0.0
    %2607 = vmatprep.subr.mxu0 0.0
    %2608 = vmatpush1.msra.mxu0 0.0
    %2609 = vmatprep.subr.mxu0 0.0
    %2610 = vmatpush1.msra.mxu0 0.0
    %2611 = vmatprep.subr.mxu0 0.0
    %2612 = vmatpush1.msra.mxu0 0.0
    %2613 = vmatprep.subr.mxu0 0.0
    %2614 = vmatpush1.msra.mxu0 0.0
    %2615 = vmatprep.subr.mxu0 0.0
    %2616 = vmatpush1.msra.mxu0 0.0
    %2617 = vmatprep.subr.mxu0 0.0
    %2618 = vmatpush1.msra.mxu0 0.0
    %2619 = vmatprep.mubr.f32.mxu0 0.0
    %2620 = vmatmul.mubr.f32.gmra.mrb[0].mxu0 %v899
    %v2621 = vpop.f32.mrb[0].mxu0
    %v2622 = vadd.f32 0.0, %v2621
    %v2623 = vpop.f32.mrb[0].mxu0
    %2624 = vmatprep.mubr.f32.mxu0 0.0
    %2625 = vmatmul.mubr.f32.gmra.mrb[0].mxu0 %v902
    %v2626 = vpop.f32.mrb[0].mxu0
    %v2627 = vadd.f32 0.0, %v2626
    %v2628 = vpop.f32.mrb[0].mxu0
    %2629 = vmatprep.mubr.f32.mxu0 0.0
    %2630 = vmatmul.mubr.f32.gmra.mrb[0].mxu0 %v905
    %v2631 = vpop.f32.mrb[0].mxu0
    %v2632 = vadd.f32 0.0, %v2631
    %v2633 = vpop.f32.mrb[0].mxu0
    %2634 = vmatprep.mubr.f32.mxu0 0.0
    %2635 = vmatmul.mubr.f32.gmra.mrb[0].mxu0 %v908
    %v2636 = vpop.f32.mrb[0].mxu0
    %v2637 = vadd.f32 0.0, %v2636
    %v2638 = vpop.f32.mrb[0].mxu0
    %2639 = vmatprep.mubr.f32.mxu0 0.0
    %2640 = vmatmul.mubr.f32.gmra.mrb[0].mxu0 %v911
    %v2641 = vpop.f32.mrb[0].mxu0
    %v2642 = vadd.f32 0.0, %v2641
    %v2643 = vpop.f32.mrb[0].mxu0
    %2644 = vmatprep.mubr.f32.mxu0 0.0
    %2645 = vmatmul.mubr.f32.gmra.mrb[0].mxu0 %v914
    %v2646 = vpop.f32.mrb[0].mxu0
    %v2647 = vadd.f32 0.0, %v2646
    %v2648 = vpop.f32.mrb[0].mxu0
    %2649 = vmatprep.mubr.f32.mxu0 0.0
    %2650 = vmatmul.mubr.f32.gmra.mrb[0].mxu0 %v917
    %v2651 = vpop.f32.mrb[0].mxu0
    %v2652 = vadd.f32 0.0, %v2651
    %v2653 = vpop.f32.mrb[0].mxu0
    %2654 = vmatprep.mubr.f32.mxu0 0.0
    %2655 = vmatmul.mubr.f32.gmra.mrb[0].mxu0 %v920
    %v2656 = vpop.f32.mrb[0].mxu0
    %v2657 = vadd.f32 0.0, %v2656
    %v2658 = vpop.f32.mrb[0].mxu0
    %2659 = vdwg.mxu0
    %v2660 = vmul.f32 %v2517, %v2622
    %v2661 = vmul.f32 %v2522, %v2627
    %v2662 = vmul.f32 %v2527, %v2632
    %v2663 = vmul.f32 %v2532, %v2637
    %v2664 = vmul.f32 %v2537, %v2642
    %v2665 = vmul.f32 %v2542, %v2647
    %v2666 = vmul.f32 %v2547, %v2652
    %v2667 = vmul.f32 %v2552, %v2657
    %v2669 = vlaneseq
    %v2670 = vshrl.u32 %v2669, 7
    %v2671 = vsub.s32 0, %v2670
    %v2672 = vrot.slane %v367, %v2671
    %v2675 = vsel %vm768, %v2660, 0
    %v2678 = vsel %vm768, %v2661, 0
    %v2681 = vsel %vm768, %v2662, 0
    %v2684 = vsel %vm768, %v2663, 0
    %v2687 = vsel %vm768, %v2664, 0
    %v2690 = vsel %vm768, %v2665, 0
    %v2693 = vsel %vm768, %v2666, 0
    %v2696 = vsel %vm768, %v2667, 0
    %2698 = vmatprep.subr.mxu0 0.0
    %2699 = vmatpush1.msra.mxu0 %v363
    %2700 = vmatprep.subr.mxu0 0.0
    %2701 = vmatpush1.msra.mxu0 %v364
    %2702 = vmatprep.subr.mxu0 0.0
    %2703 = vmatpush1.msra.mxu0 %v365
    %2704 = vmatprep.subr.mxu0 0.0
    %2705 = vmatpush1.msra.mxu0 %v366
    %2706 = vmatprep.subr.mxu0 0.0
    %2707 = vmatpush1.msra.mxu0 0.0
    %2708 = vmatprep.subr.mxu0 0.0
    %2709 = vmatpush1.msra.mxu0 0.0
    %2710 = vmatprep.subr.mxu0 0.0
    %2711 = vmatpush1.msra.mxu0 0.0
    %2712 = vmatprep.subr.mxu0 0.0
    %2713 = vmatpush1.msra.mxu0 0.0
    %2714 = vmatprep.subr.mxu0 0.0
    %2715 = vmatpush1.msra.mxu0 0.0
    %2716 = vmatprep.subr.mxu0 0.0
    %2717 = vmatpush1.msra.mxu0 0.0
    %2718 = vmatprep.subr.mxu0 0.0
    %2719 = vmatpush1.msra.mxu0 0.0
    %2720 = vmatprep.subr.mxu0 0.0
    %2721 = vmatpush1.msra.mxu0 0.0
    %2722 = vmatprep.subr.mxu0 0.0
    %2723 = vmatpush1.msra.mxu0 0.0
    %2724 = vmatprep.subr.mxu0 0.0
    %2725 = vmatpush1.msra.mxu0 0.0
    %2726 = vmatprep.subr.mxu0 0.0
    %2727 = vmatpush1.msra.mxu0 0.0
    %2728 = vmatprep.subr.mxu0 0.0
    %2729 = vmatpush1.msra.mxu0 0.0
    %2730 = vmatprep.subr.mxu0 0.0
    %2731 = vmatpush1.msra.mxu0 0.0
    %2732 = vmatprep.subr.mxu0 0.0
    %2733 = vmatpush1.msra.mxu0 0.0
    %2734 = vmatprep.subr.mxu0 0.0
    %2735 = vmatpush1.msra.mxu0 0.0
    %2736 = vmatprep.subr.mxu0 0.0
    %2737 = vmatpush1.msra.mxu0 0.0
    %2738 = vmatprep.subr.mxu0 0.0
    %2739 = vmatpush1.msra.mxu0 0.0
    %2740 = vmatprep.subr.mxu0 0.0
    %2741 = vmatpush1.msra.mxu0 0.0
    %2742 = vmatprep.subr.mxu0 0.0
    %2743 = vmatpush1.msra.mxu0 0.0
    %2744 = vmatprep.subr.mxu0 0.0
    %2745 = vmatpush1.msra.mxu0 0.0
    %2746 = vmatprep.subr.mxu0 0.0
    %2747 = vmatpush1.msra.mxu0 0.0
    %2748 = vmatprep.subr.mxu0 0.0
    %2749 = vmatpush1.msra.mxu0 0.0
    %2750 = vmatprep.subr.mxu0 0.0
    %2751 = vmatpush1.msra.mxu0 0.0
    %2752 = vmatprep.subr.mxu0 0.0
    %2753 = vmatpush1.msra.mxu0 0.0
    %2754 = vmatprep.subr.mxu0 0.0
    %2755 = vmatpush1.msra.mxu0 0.0
    %2756 = vmatprep.subr.mxu0 0.0
    %2757 = vmatpush1.msra.mxu0 0.0
    %2758 = vmatprep.subr.mxu0 0.0
    %2759 = vmatpush1.msra.mxu0 0.0
    %2760 = vmatprep.subr.mxu0 0.0
    %2761 = vmatpush1.msra.mxu0 0.0
    %2762 = vmatprep.mubr.f32.mxu0 0.0
    %2763 = vmatmul.mubr.f32.gmra.mrb[0].mxu0 %v2675
    %v2764 = vpop.f32.mrb[0].mxu0
    %v2765 = vadd.f32 %v2672, %v2764
    %v2766 = vpop.f32.mrb[0].mxu0
    %2767 = vmatprep.mubr.f32.mxu0 0.0
    %2768 = vmatmul.mubr.f32.gmra.mrb[0].mxu0 %v2678
    %v2769 = vpop.f32.mrb[0].mxu0
    %v2770 = vadd.f32 %v2672, %v2769
    %v2771 = vpop.f32.mrb[0].mxu0
    %2772 = vmatprep.mubr.f32.mxu0 0.0
    %2773 = vmatmul.mubr.f32.gmra.mrb[0].mxu0 %v2681
    %v2774 = vpop.f32.mrb[0].mxu0
    %v2775 = vadd.f32 %v2672, %v2774
    %v2776 = vpop.f32.mrb[0].mxu0
    %2777 = vmatprep.mubr.f32.mxu0 0.0
    %2778 = vmatmul.mubr.f32.gmra.mrb[0].mxu0 %v2684
    %v2779 = vpop.f32.mrb[0].mxu0
    %v2780 = vadd.f32 %v2672, %v2779
    %v2781 = vpop.f32.mrb[0].mxu0
    %2782 = vmatprep.mubr.f32.mxu0 0.0
    %2783 = vmatmul.mubr.f32.gmra.mrb[0].mxu0 %v2687
    %v2784 = vpop.f32.mrb[0].mxu0
    %v2785 = vadd.f32 %v2672, %v2784
    %v2786 = vpop.f32.mrb[0].mxu0
    %2787 = vmatprep.mubr.f32.mxu0 0.0
    %2788 = vmatmul.mubr.f32.gmra.mrb[0].mxu0 %v2690
    %v2789 = vpop.f32.mrb[0].mxu0
    %v2790 = vadd.f32 %v2672, %v2789
    %v2791 = vpop.f32.mrb[0].mxu0
    %2792 = vmatprep.mubr.f32.mxu0 0.0
    %2793 = vmatmul.mubr.f32.gmra.mrb[0].mxu0 %v2693
    %v2794 = vpop.f32.mrb[0].mxu0
    %v2795 = vadd.f32 %v2672, %v2794
    %v2796 = vpop.f32.mrb[0].mxu0
    %2797 = vmatprep.mubr.f32.mxu0 0.0
    %2798 = vmatmul.mubr.f32.gmra.mrb[0].mxu0 %v2696
    %v2799 = vpop.f32.mrb[0].mxu0
    %v2800 = vadd.f32 %v2672, %v2799
    %v2801 = vpop.f32.mrb[0].mxu0
    %2802 = vdwg.mxu0
    %v2803 = vmax.f32 %v2765, 0.0
    %v2804 = vmax.f32 %v2770, 0.0
    %v2805 = vmax.f32 %v2775, 0.0
    %v2806 = vmax.f32 %v2780, 0.0
    %v2807 = vmax.f32 %v2785, 0.0
    %v2808 = vmax.f32 %v2790, 0.0
    %v2809 = vmax.f32 %v2795, 0.0
    %v2810 = vmax.f32 %v2800, 0.0
    %v2812 = vlaneseq
    %v2813 = vshrl.u32 %v2812, 7
    %v2814 = vsub.s32 0, %v2813
    %v2815 = vrot.slane %v380, %v2814
    %v2816 = vlaneseq
    %v2817 = vshrl.u32 %v2816, 7
    %v2818 = vsub.s32 1, %v2817
    %v2819 = vrot.slane %v380, %v2818
    %v2820 = vlaneseq
    %v2821 = vshrl.u32 %v2820, 7
    %v2822 = vsub.s32 2, %v2821
    %v2823 = vrot.slane %v380, %v2822
    %v2828 = vsel %vm768, %v2803, 0
    %v2831 = vsel %vm768, %v2804, 0
    %v2834 = vsel %vm768, %v2805, 0
    %v2837 = vsel %vm768, %v2806, 0
    %v2840 = vsel %vm768, %v2807, 0
    %v2843 = vsel %vm768, %v2808, 0
    %v2846 = vsel %vm768, %v2809, 0
    %v2849 = vsel %vm768, %v2810, 0
    %2851 = vmatprep.subr.mxu0 %v369
    %2852 = vmatpush1.msra.mxu0 %v368
    %2853 = vmatprep.subr.mxu0 %v372
    %2854 = vmatpush1.msra.mxu0 %v371
    %2855 = vmatprep.subr.mxu0 %v375
    %2856 = vmatpush1.msra.mxu0 %v374
    %2857 = vmatprep.subr.mxu0 %v378
    %2858 = vmatpush1.msra.mxu0 %v377
    %2859 = vmatprep.subr.mxu0 0.0
    %2860 = vmatpush1.msra.mxu0 0.0
    %2861 = vmatprep.subr.mxu0 0.0
    %2862 = vmatpush1.msra.mxu0 0.0
    %2863 = vmatprep.subr.mxu0 0.0
    %2864 = vmatpush1.msra.mxu0 0.0
    %2865 = vmatprep.subr.mxu0 0.0
    %2866 = vmatpush1.msra.mxu0 0.0
    %2867 = vmatprep.subr.mxu0 0.0
    %2868 = vmatpush1.msra.mxu0 0.0
    %2869 = vmatprep.subr.mxu0 0.0
    %2870 = vmatpush1.msra.mxu0 0.0
    %2871 = vmatprep.subr.mxu0 0.0
    %2872 = vmatpush1.msra.mxu0 0.0
    %2873 = vmatprep.subr.mxu0 0.0
    %2874 = vmatpush1.msra.mxu0 0.0
    %2875 = vmatprep.subr.mxu0 0.0
    %2876 = vmatpush1.msra.mxu0 0.0
    %2877 = vmatprep.subr.mxu0 0.0
    %2878 = vmatpush1.msra.mxu0 0.0
    %2879 = vmatprep.subr.mxu0 0.0
    %2880 = vmatpush1.msra.mxu0 0.0
    %2881 = vmatprep.subr.mxu0 0.0
    %2882 = vmatpush1.msra.mxu0 0.0
    %2883 = vmatprep.subr.mxu0 0.0
    %2884 = vmatpush1.msra.mxu0 0.0
    %2885 = vmatprep.subr.mxu0 0.0
    %2886 = vmatpush1.msra.mxu0 0.0
    %2887 = vmatprep.subr.mxu0 0.0
    %2888 = vmatpush1.msra.mxu0 0.0
    %2889 = vmatprep.subr.mxu0 0.0
    %2890 = vmatpush1.msra.mxu0 0.0
    %2891 = vmatprep.subr.mxu0 0.0
    %2892 = vmatpush1.msra.mxu0 0.0
    %2893 = vmatprep.subr.mxu0 0.0
    %2894 = vmatpush1.msra.mxu0 0.0
    %2895 = vmatprep.subr.mxu0 0.0
    %2896 = vmatpush1.msra.mxu0 0.0
    %2897 = vmatprep.subr.mxu0 0.0
    %2898 = vmatpush1.msra.mxu0 0.0
    %2899 = vmatprep.subr.mxu0 0.0
    %2900 = vmatpush1.msra.mxu0 0.0
    %2901 = vmatprep.subr.mxu0 0.0
    %2902 = vmatpush1.msra.mxu0 0.0
    %2903 = vmatprep.subr.mxu0 0.0
    %2904 = vmatpush1.msra.mxu0 0.0
    %2905 = vmatprep.subr.mxu0 0.0
    %2906 = vmatpush1.msra.mxu0 0.0
    %2907 = vmatprep.subr.mxu0 0.0
    %2908 = vmatpush1.msra.mxu0 0.0
    %2909 = vmatprep.subr.mxu0 0.0
    %2910 = vmatpush1.msra.mxu0 0.0
    %2911 = vmatprep.subr.mxu0 0.0
    %2912 = vmatpush1.msra.mxu0 0.0
    %2913 = vmatprep.subr.mxu0 0.0
    %2914 = vmatpush1.msra.mxu0 0.0
    %2915 = vmatprep.mubr.f32.mxu0 0.0
    %2916 = vmatmul.mubr.f32.gmra.mrb[0].mxu0 %v2828
    %v2917 = vpop.f32.mrb[0].mxu0
    %v2918 = vadd.f32 %v2815, %v2917
    %v2919 = vpop.f32.mrb[0].mxu0
    %v2920 = vadd.f32 %v2819, %v2919
    %2921 = vmatprep.mubr.f32.mxu0 0.0
    %2922 = vmatmul.mubr.f32.gmra.mrb[0].mxu0 %v2831
    %v2923 = vpop.f32.mrb[0].mxu0
    %v2924 = vadd.f32 %v2815, %v2923
    %v2925 = vpop.f32.mrb[0].mxu0
    %v2926 = vadd.f32 %v2819, %v2925
    %2927 = vmatprep.mubr.f32.mxu0 0.0
    %2928 = vmatmul.mubr.f32.gmra.mrb[0].mxu0 %v2834
    %v2929 = vpop.f32.mrb[0].mxu0
    %v2930 = vadd.f32 %v2815, %v2929
    %v2931 = vpop.f32.mrb[0].mxu0
    %v2932 = vadd.f32 %v2819, %v2931
    %2933 = vmatprep.mubr.f32.mxu0 0.0
    %2934 = vmatmul.mubr.f32.gmra.mrb[0].mxu0 %v2837
    %v2935 = vpop.f32.mrb[0].mxu0
    %v2936 = vadd.f32 %v2815, %v2935
    %v2937 = vpop.f32.mrb[0].mxu0
    %v2938 = vadd.f32 %v2819, %v2937
    %2939 = vmatprep.mubr.f32.mxu0 0.0
    %2940 = vmatmul.mubr.f32.gmra.mrb[0].mxu0 %v2840
    %v2941 = vpop.f32.mrb[0].mxu0
    %v2942 = vadd.f32 %v2815, %v2941
    %v2943 = vpop.f32.mrb[0].mxu0
    %v2944 = vadd.f32 %v2819, %v2943
    %2945 = vmatprep.mubr.f32.mxu0 0.0
    %2946 = vmatmul.mubr.f32.gmra.mrb[0].mxu0 %v2843
    %v2947 = vpop.f32.mrb[0].mxu0
    %v2948 = vadd.f32 %v2815, %v2947
    %v2949 = vpop.f32.mrb[0].mxu0
    %v2950 = vadd.f32 %v2819, %v2949
    %2951 = vmatprep.mubr.f32.mxu0 0.0
    %2952 = vmatmul.mubr.f32.gmra.mrb[0].mxu0 %v2846
    %v2953 = vpop.f32.mrb[0].mxu0
    %v2954 = vadd.f32 %v2815, %v2953
    %v2955 = vpop.f32.mrb[0].mxu0
    %v2956 = vadd.f32 %v2819, %v2955
    %2957 = vmatprep.mubr.f32.mxu0 0.0
    %2958 = vmatmul.mubr.f32.gmra.mrb[0].mxu0 %v2849
    %v2959 = vpop.f32.mrb[0].mxu0
    %v2960 = vadd.f32 %v2815, %v2959
    %v2961 = vpop.f32.mrb[0].mxu0
    %v2962 = vadd.f32 %v2819, %v2961
    %2963 = vdwg.mxu0
    %2964 = vmatprep.subr.mxu0 0.0
    %2965 = vmatpush1.msra.mxu0 %v370
    %2966 = vmatprep.subr.mxu0 0.0
    %2967 = vmatpush1.msra.mxu0 %v373
    %2968 = vmatprep.subr.mxu0 0.0
    %2969 = vmatpush1.msra.mxu0 %v376
    %2970 = vmatprep.subr.mxu0 0.0
    %2971 = vmatpush1.msra.mxu0 %v379
    %2972 = vmatprep.subr.mxu0 0.0
    %2973 = vmatpush1.msra.mxu0 0.0
    %2974 = vmatprep.subr.mxu0 0.0
    %2975 = vmatpush1.msra.mxu0 0.0
    %2976 = vmatprep.subr.mxu0 0.0
    %2977 = vmatpush1.msra.mxu0 0.0
    %2978 = vmatprep.subr.mxu0 0.0
    %2979 = vmatpush1.msra.mxu0 0.0
    %2980 = vmatprep.subr.mxu0 0.0
    %2981 = vmatpush1.msra.mxu0 0.0
    %2982 = vmatprep.subr.mxu0 0.0
    %2983 = vmatpush1.msra.mxu0 0.0
    %2984 = vmatprep.subr.mxu0 0.0
    %2985 = vmatpush1.msra.mxu0 0.0
    %2986 = vmatprep.subr.mxu0 0.0
    %2987 = vmatpush1.msra.mxu0 0.0
    %2988 = vmatprep.subr.mxu0 0.0
    %2989 = vmatpush1.msra.mxu0 0.0
    %2990 = vmatprep.subr.mxu0 0.0
    %2991 = vmatpush1.msra.mxu0 0.0
    %2992 = vmatprep.subr.mxu0 0.0
    %2993 = vmatpush1.msra.mxu0 0.0
    %2994 = vmatprep.subr.mxu0 0.0
    %2995 = vmatpush1.msra.mxu0 0.0
    %2996 = vmatprep.subr.mxu0 0.0
    %2997 = vmatpush1.msra.mxu0 0.0
    %2998 = vmatprep.subr.mxu0 0.0
    %2999 = vmatpush1.msra.mxu0 0.0
    %3000 = vmatprep.subr.mxu0 0.0
    %3001 = vmatpush1.msra.mxu0 0.0
    %3002 = vmatprep.subr.mxu0 0.0
    %3003 = vmatpush1.msra.mxu0 0.0
    %3004 = vmatprep.subr.mxu0 0.0
    %3005 = vmatpush1.msra.mxu0 0.0
    %3006 = vmatprep.subr.mxu0 0.0
    %3007 = vmatpush1.msra.mxu0 0.0
    %3008 = vmatprep.subr.mxu0 0.0
    %3009 = vmatpush1.msra.mxu0 0.0
    %3010 = vmatprep.subr.mxu0 0.0
    %3011 = vmatpush1.msra.mxu0 0.0
    %3012 = vmatprep.subr.mxu0 0.0
    %3013 = vmatpush1.msra.mxu0 0.0
    %3014 = vmatprep.subr.mxu0 0.0
    %3015 = vmatpush1.msra.mxu0 0.0
    %3016 = vmatprep.subr.mxu0 0.0
    %3017 = vmatpush1.msra.mxu0 0.0
    %3018 = vmatprep.subr.mxu0 0.0
    %3019 = vmatpush1.msra.mxu0 0.0
    %3020 = vmatprep.subr.mxu0 0.0
    %3021 = vmatpush1.msra.mxu0 0.0
    %3022 = vmatprep.subr.mxu0 0.0
    %3023 = vmatpush1.msra.mxu0 0.0
    %3024 = vmatprep.subr.mxu0 0.0
    %3025 = vmatpush1.msra.mxu0 0.0
    %3026 = vmatprep.subr.mxu0 0.0
    %3027 = vmatpush1.msra.mxu0 0.0
    %3028 = vmatprep.mubr.f32.mxu0 0.0
    %3029 = vmatmul.mubr.f32.gmra.mrb[0].mxu0 %v2828
    %v3030 = vpop.f32.mrb[0].mxu0
    %v3031 = vadd.f32 %v2823, %v3030
    %v3032 = vpop.f32.mrb[0].mxu0
    %3033 = vmatprep.mubr.f32.mxu0 0.0
    %3034 = vmatmul.mubr.f32.gmra.mrb[0].mxu0 %v2831
    %v3035 = vpop.f32.mrb[0].mxu0
    %v3036 = vadd.f32 %v2823, %v3035
    %v3037 = vpop.f32.mrb[0].mxu0
    %3038 = vmatprep.mubr.f32.mxu0 0.0
    %3039 = vmatmul.mubr.f32.gmra.mrb[0].mxu0 %v2834
    %v3040 = vpop.f32.mrb[0].mxu0
    %v3041 = vadd.f32 %v2823, %v3040
    %v3042 = vpop.f32.mrb[0].mxu0
    %3043 = vmatprep.mubr.f32.mxu0 0.0
    %3044 = vmatmul.mubr.f32.gmra.mrb[0].mxu0 %v2837
    %v3045 = vpop.f32.mrb[0].mxu0
    %v3046 = vadd.f32 %v2823, %v3045
    %v3047 = vpop.f32.mrb[0].mxu0
    %3048 = vmatprep.mubr.f32.mxu0 0.0
    %3049 = vmatmul.mubr.f32.gmra.mrb[0].mxu0 %v2840
    %v3050 = vpop.f32.mrb[0].mxu0
    %v3051 = vadd.f32 %v2823, %v3050
    %v3052 = vpop.f32.mrb[0].mxu0
    %3053 = vmatprep.mubr.f32.mxu0 0.0
    %3054 = vmatmul.mubr.f32.gmra.mrb[0].mxu0 %v2843
    %v3055 = vpop.f32.mrb[0].mxu0
    %v3056 = vadd.f32 %v2823, %v3055
    %v3057 = vpop.f32.mrb[0].mxu0
    %3058 = vmatprep.mubr.f32.mxu0 0.0
    %3059 = vmatmul.mubr.f32.gmra.mrb[0].mxu0 %v2846
    %v3060 = vpop.f32.mrb[0].mxu0
    %v3061 = vadd.f32 %v2823, %v3060
    %v3062 = vpop.f32.mrb[0].mxu0
    %3063 = vmatprep.mubr.f32.mxu0 0.0
    %3064 = vmatmul.mubr.f32.gmra.mrb[0].mxu0 %v2849
    %v3065 = vpop.f32.mrb[0].mxu0
    %v3066 = vadd.f32 %v2823, %v3065
    %v3067 = vpop.f32.mrb[0].mxu0
    %3068 = vdwg.mxu0
    %v3069 = vmax.f32 %v2918, 0.0
    %v3070 = vmax.f32 %v2920, 0.0
    %v3071 = vmax.f32 %v3031, 0.0
    %v3072 = vmax.f32 %v2924, 0.0
    %v3073 = vmax.f32 %v2926, 0.0
    %v3074 = vmax.f32 %v3036, 0.0
    %v3075 = vmax.f32 %v2930, 0.0
    %v3076 = vmax.f32 %v2932, 0.0
    %v3077 = vmax.f32 %v3041, 0.0
    %v3078 = vmax.f32 %v2936, 0.0
    %v3079 = vmax.f32 %v2938, 0.0
    %v3080 = vmax.f32 %v3046, 0.0
    %v3081 = vmax.f32 %v2942, 0.0
    %v3082 = vmax.f32 %v2944, 0.0
    %v3083 = vmax.f32 %v3051, 0.0
    %v3084 = vmax.f32 %v2948, 0.0
    %v3085 = vmax.f32 %v2950, 0.0
    %v3086 = vmax.f32 %v3056, 0.0
    %v3087 = vmax.f32 %v2954, 0.0
    %v3088 = vmax.f32 %v2956, 0.0
    %v3089 = vmax.f32 %v3061, 0.0
    %v3090 = vmax.f32 %v2960, 0.0
    %v3091 = vmax.f32 %v2962, 0.0
    %v3092 = vmax.f32 %v3066, 0.0
    %v3094 = vlaneseq
    %v3095 = vshrl.u32 %v3094, 7
    %v3096 = vsub.s32 0, %v3095
    %v3097 = vrot.slane %v421, %v3096
    %v3100 = vsel %vm1466, %v3071, 0
    %v3103 = vsel %vm1466, %v3074, 0
    %v3106 = vsel %vm1466, %v3077, 0
    %v3109 = vsel %vm1466, %v3080, 0
    %v3112 = vsel %vm1466, %v3083, 0
    %v3115 = vsel %vm1466, %v3086, 0
    %v3118 = vsel %vm1466, %v3089, 0
    %v3121 = vsel %vm1466, %v3092, 0
    %3123 = vmatprep.subr.mxu0 0.0
    %3124 = vmatpush1.msra.mxu0 %v381
    %3125 = vmatprep.subr.mxu0 0.0
    %3126 = vmatpush1.msra.mxu0 %v382
    %3127 = vmatprep.subr.mxu0 0.0
    %3128 = vmatpush1.msra.mxu0 %v383
    %3129 = vmatprep.subr.mxu0 0.0
    %3130 = vmatpush1.msra.mxu0 %v384
    %3131 = vmatprep.subr.mxu0 0.0
    %3132 = vmatpush1.msra.mxu0 %v385
    %3133 = vmatprep.subr.mxu0 0.0
    %3134 = vmatpush1.msra.mxu0 %v386
    %3135 = vmatprep.subr.mxu0 0.0
    %3136 = vmatpush1.msra.mxu0 %v387
    %3137 = vmatprep.subr.mxu0 0.0
    %3138 = vmatpush1.msra.mxu0 %v388
    %3139 = vmatprep.subr.mxu0 0.0
    %3140 = vmatpush1.msra.mxu0 %v389
    %3141 = vmatprep.subr.mxu0 0.0
    %3142 = vmatpush1.msra.mxu0 %v390
    %3143 = vmatprep.subr.mxu0 0.0
    %3144 = vmatpush1.msra.mxu0 %v391
    %3145 = vmatprep.subr.mxu0 0.0
    %3146 = vmatpush1.msra.mxu0 %v392
    %3147 = vmatprep.subr.mxu0 0.0
    %3148 = vmatpush1.msra.mxu0 %v393
    %3149 = vmatprep.subr.mxu0 0.0
    %3150 = vmatpush1.msra.mxu0 %v394
    %3151 = vmatprep.subr.mxu0 0.0
    %3152 = vmatpush1.msra.mxu0 %v395
    %3153 = vmatprep.subr.mxu0 0.0
    %3154 = vmatpush1.msra.mxu0 %v396
    %3155 = vmatprep.subr.mxu0 0.0
    %3156 = vmatpush1.msra.mxu0 %v397
    %3157 = vmatprep.subr.mxu0 0.0
    %3158 = vmatpush1.msra.mxu0 %v398
    %3159 = vmatprep.subr.mxu0 0.0
    %3160 = vmatpush1.msra.mxu0 %v399
    %3161 = vmatprep.subr.mxu0 0.0
    %3162 = vmatpush1.msra.mxu0 %v400
    %3163 = vmatprep.subr.mxu0 0.0
    %3164 = vmatpush1.msra.mxu0 %v401
    %3165 = vmatprep.subr.mxu0 0.0
    %3166 = vmatpush1.msra.mxu0 %v402
    %3167 = vmatprep.subr.mxu0 0.0
    %3168 = vmatpush1.msra.mxu0 %v403
    %3169 = vmatprep.subr.mxu0 0.0
    %3170 = vmatpush1.msra.mxu0 %v404
    %3171 = vmatprep.subr.mxu0 0.0
    %3172 = vmatpush1.msra.mxu0 %v405
    %3173 = vmatprep.subr.mxu0 0.0
    %3174 = vmatpush1.msra.mxu0 %v406
    %3175 = vmatprep.subr.mxu0 0.0
    %3176 = vmatpush1.msra.mxu0 %v407
    %3177 = vmatprep.subr.mxu0 0.0
    %3178 = vmatpush1.msra.mxu0 %v408
    %3179 = vmatprep.subr.mxu0 0.0
    %3180 = vmatpush1.msra.mxu0 %v409
    %3181 = vmatprep.subr.mxu0 0.0
    %3182 = vmatpush1.msra.mxu0 %v410
    %3183 = vmatprep.subr.mxu0 0.0
    %3184 = vmatpush1.msra.mxu0 %v411
    %3185 = vmatprep.subr.mxu0 0.0
    %3186 = vmatpush1.msra.mxu0 %v412
    %3187 = vmatprep.mubr.f32.mxu0 %v3070
    %3188 = vmatmul.mubr.f32.gmra.mrb[0].mxu0 %v3069
    %v3189 = vpop.f32.mrb[0].mxu0
    %v3190 = vadd.f32 %v3097, %v3189
    %v3191 = vpop.f32.mrb[0].mxu0
    %3192 = vmatprep.mubr.f32.mxu0 %v3073
    %3193 = vmatmul.mubr.f32.gmra.mrb[0].mxu0 %v3072
    %v3194 = vpop.f32.mrb[0].mxu0
    %v3195 = vadd.f32 %v3097, %v3194
    %v3196 = vpop.f32.mrb[0].mxu0
    %3197 = vmatprep.mubr.f32.mxu0 %v3076
    %3198 = vmatmul.mubr.f32.gmra.mrb[0].mxu0 %v3075
    %v3199 = vpop.f32.mrb[0].mxu0
    %v3200 = vadd.f32 %v3097, %v3199
    %v3201 = vpop.f32.mrb[0].mxu0
    %3202 = vmatprep.mubr.f32.mxu0 %v3079
    %3203 = vmatmul.mubr.f32.gmra.mrb[0].mxu0 %v3078
    %v3204 = vpop.f32.mrb[0].mxu0
    %v3205 = vadd.f32 %v3097, %v3204
    %v3206 = vpop.f32.mrb[0].mxu0
    %3207 = vmatprep.mubr.f32.mxu0 %v3082
    %3208 = vmatmul.mubr.f32.gmra.mrb[0].mxu0 %v3081
    %v3209 = vpop.f32.mrb[0].mxu0
    %v3210 = vadd.f32 %v3097, %v3209
    %v3211 = vpop.f32.mrb[0].mxu0
    %3212 = vmatprep.mubr.f32.mxu0 %v3085
    %3213 = vmatmul.mubr.f32.gmra.mrb[0].mxu0 %v3084
    %v3214 = vpop.f32.mrb[0].mxu0
    %v3215 = vadd.f32 %v3097, %v3214
    %v3216 = vpop.f32.mrb[0].mxu0
    %3217 = vmatprep.mubr.f32.mxu0 %v3088
    %3218 = vmatmul.mubr.f32.gmra.mrb[0].mxu0 %v3087
    %v3219 = vpop.f32.mrb[0].mxu0
    %v3220 = vadd.f32 %v3097, %v3219
    %v3221 = vpop.f32.mrb[0].mxu0
    %3222 = vmatprep.mubr.f32.mxu0 %v3091
    %3223 = vmatmul.mubr.f32.gmra.mrb[0].mxu0 %v3090
    %v3224 = vpop.f32.mrb[0].mxu0
    %v3225 = vadd.f32 %v3097, %v3224
    %v3226 = vpop.f32.mrb[0].mxu0
    %3227 = vdwg.mxu0
    %3228 = vmatprep.subr.mxu0 0.0
    %3229 = vmatpush1.msra.mxu0 %v413
    %3230 = vmatprep.subr.mxu0 0.0
    %3231 = vmatpush1.msra.mxu0 %v414
    %3232 = vmatprep.subr.mxu0 0.0
    %3233 = vmatpush1.msra.mxu0 %v415
    %3234 = vmatprep.subr.mxu0 0.0
    %3235 = vmatpush1.msra.mxu0 %v416
    %3236 = vmatprep.subr.mxu0 0.0
    %3237 = vmatpush1.msra.mxu0 %v417
    %3238 = vmatprep.subr.mxu0 0.0
    %3239 = vmatpush1.msra.mxu0 %v418
    %3240 = vmatprep.subr.mxu0 0.0
    %3241 = vmatpush1.msra.mxu0 %v419
    %3242 = vmatprep.subr.mxu0 0.0
    %3243 = vmatpush1.msra.mxu0 %v420
    %3244 = vmatprep.subr.mxu0 0.0
    %3245 = vmatpush1.msra.mxu0 0.0
    %3246 = vmatprep.subr.mxu0 0.0
    %3247 = vmatpush1.msra.mxu0 0.0
    %3248 = vmatprep.subr.mxu0 0.0
    %3249 = vmatpush1.msra.mxu0 0.0
    %3250 = vmatprep.subr.mxu0 0.0
    %3251 = vmatpush1.msra.mxu0 0.0
    %3252 = vmatprep.subr.mxu0 0.0
    %3253 = vmatpush1.msra.mxu0 0.0
    %3254 = vmatprep.subr.mxu0 0.0
    %3255 = vmatpush1.msra.mxu0 0.0
    %3256 = vmatprep.subr.mxu0 0.0
    %3257 = vmatpush1.msra.mxu0 0.0
    %3258 = vmatprep.subr.mxu0 0.0
    %3259 = vmatpush1.msra.mxu0 0.0
    %3260 = vmatprep.subr.mxu0 0.0
    %3261 = vmatpush1.msra.mxu0 0.0
    %3262 = vmatprep.subr.mxu0 0.0
    %3263 = vmatpush1.msra.mxu0 0.0
    %3264 = vmatprep.subr.mxu0 0.0
    %3265 = vmatpush1.msra.mxu0 0.0
    %3266 = vmatprep.subr.mxu0 0.0
    %3267 = vmatpush1.msra.mxu0 0.0
    %3268 = vmatprep.subr.mxu0 0.0
    %3269 = vmatpush1.msra.mxu0 0.0
    %3270 = vmatprep.subr.mxu0 0.0
    %3271 = vmatpush1.msra.mxu0 0.0
    %3272 = vmatprep.subr.mxu0 0.0
    %3273 = vmatpush1.msra.mxu0 0.0
    %3274 = vmatprep.subr.mxu0 0.0
    %3275 = vmatpush1.msra.mxu0 0.0
    %3276 = vmatprep.subr.mxu0 0.0
    %3277 = vmatpush1.msra.mxu0 0.0
    %3278 = vmatprep.subr.mxu0 0.0
    %3279 = vmatpush1.msra.mxu0 0.0
    %3280 = vmatprep.subr.mxu0 0.0
    %3281 = vmatpush1.msra.mxu0 0.0
    %3282 = vmatprep.subr.mxu0 0.0
    %3283 = vmatpush1.msra.mxu0 0.0
    %3284 = vmatprep.subr.mxu0 0.0
    %3285 = vmatpush1.msra.mxu0 0.0
    %3286 = vmatprep.subr.mxu0 0.0
    %3287 = vmatpush1.msra.mxu0 0.0
    %3288 = vmatprep.subr.mxu0 0.0
    %3289 = vmatpush1.msra.mxu0 0.0
    %3290 = vmatprep.subr.mxu0 0.0
    %3291 = vmatpush1.msra.mxu0 0.0
    %3292 = vmatprep.mubr.f32.mxu0 0.0
    %3293 = vmatmul.mubr.f32.gmra.mrb[0].mxu0 %v3100
    %v3294 = vpop.f32.mrb[0].mxu0
    %v3295 = vadd.f32 %v3190, %v3294
    %v3296 = vpop.f32.mrb[0].mxu0
    %3297 = vmatprep.mubr.f32.mxu0 0.0
    %3298 = vmatmul.mubr.f32.gmra.mrb[0].mxu0 %v3103
    %v3299 = vpop.f32.mrb[0].mxu0
    %v3300 = vadd.f32 %v3195, %v3299
    %v3301 = vpop.f32.mrb[0].mxu0
    %3302 = vmatprep.mubr.f32.mxu0 0.0
    %3303 = vmatmul.mubr.f32.gmra.mrb[0].mxu0 %v3106
    %v3304 = vpop.f32.mrb[0].mxu0
    %v3305 = vadd.f32 %v3200, %v3304
    %v3306 = vpop.f32.mrb[0].mxu0
    %3307 = vmatprep.mubr.f32.mxu0 0.0
    %3308 = vmatmul.mubr.f32.gmra.mrb[0].mxu0 %v3109
    %v3309 = vpop.f32.mrb[0].mxu0
    %v3310 = vadd.f32 %v3205, %v3309
    %v3311 = vpop.f32.mrb[0].mxu0
    %3312 = vmatprep.mubr.f32.mxu0 0.0
    %3313 = vmatmul.mubr.f32.gmra.mrb[0].mxu0 %v3112
    %v3314 = vpop.f32.mrb[0].mxu0
    %v3315 = vadd.f32 %v3210, %v3314
    %v3316 = vpop.f32.mrb[0].mxu0
    %3317 = vmatprep.mubr.f32.mxu0 0.0
    %3318 = vmatmul.mubr.f32.gmra.mrb[0].mxu0 %v3115
    %v3319 = vpop.f32.mrb[0].mxu0
    %v3320 = vadd.f32 %v3215, %v3319
    %v3321 = vpop.f32.mrb[0].mxu0
    %3322 = vmatprep.mubr.f32.mxu0 0.0
    %3323 = vmatmul.mubr.f32.gmra.mrb[0].mxu0 %v3118
    %v3324 = vpop.f32.mrb[0].mxu0
    %v3325 = vadd.f32 %v3220, %v3324
    %v3326 = vpop.f32.mrb[0].mxu0
    %3327 = vmatprep.mubr.f32.mxu0 0.0
    %3328 = vmatmul.mubr.f32.gmra.mrb[0].mxu0 %v3121
    %v3329 = vpop.f32.mrb[0].mxu0
    %v3330 = vadd.f32 %v3225, %v3329
    %v3331 = vpop.f32.mrb[0].mxu0
    %3332 = vdwg.mxu0
    %v3333 = vmax.f32 %v3295, 0.0
    %v3334 = vmax.f32 %v3300, 0.0
    %v3335 = vmax.f32 %v3305, 0.0
    %v3336 = vmax.f32 %v3310, 0.0
    %v3337 = vmax.f32 %v3315, 0.0
    %v3338 = vmax.f32 %v3320, 0.0
    %v3339 = vmax.f32 %v3325, 0.0
    %v3340 = vmax.f32 %v3330, 0.0
    %v3342 = vlaneseq
    %v3343 = vshrl.u32 %v3342, 7
    %v3344 = vsub.s32 0, %v3343
    %v3345 = vrot.slane %v426, %v3344
    %v3348 = vsel %vm768, %v3333, 0
    %v3351 = vsel %vm768, %v3334, 0
    %v3354 = vsel %vm768, %v3335, 0
    %v3357 = vsel %vm768, %v3336, 0
    %v3360 = vsel %vm768, %v3337, 0
    %v3363 = vsel %vm768, %v3338, 0
    %v3366 = vsel %vm768, %v3339, 0
    %v3369 = vsel %vm768, %v3340, 0
    %3371 = vmatprep.subr.mxu0 0.0
    %3372 = vmatpush1.msra.mxu0 %v422
    %3373 = vmatprep.subr.mxu0 0.0
    %3374 = vmatpush1.msra.mxu0 %v423
    %3375 = vmatprep.subr.mxu0 0.0
    %3376 = vmatpush1.msra.mxu0 %v424
    %3377 = vmatprep.subr.mxu0 0.0
    %3378 = vmatpush1.msra.mxu0 %v425
    %3379 = vmatprep.subr.mxu0 0.0
    %3380 = vmatpush1.msra.mxu0 0.0
    %3381 = vmatprep.subr.mxu0 0.0
    %3382 = vmatpush1.msra.mxu0 0.0
    %3383 = vmatprep.subr.mxu0 0.0
    %3384 = vmatpush1.msra.mxu0 0.0
    %3385 = vmatprep.subr.mxu0 0.0
    %3386 = vmatpush1.msra.mxu0 0.0
    %3387 = vmatprep.subr.mxu0 0.0
    %3388 = vmatpush1.msra.mxu0 0.0
    %3389 = vmatprep.subr.mxu0 0.0
    %3390 = vmatpush1.msra.mxu0 0.0
    %3391 = vmatprep.subr.mxu0 0.0
    %3392 = vmatpush1.msra.mxu0 0.0
    %3393 = vmatprep.subr.mxu0 0.0
    %3394 = vmatpush1.msra.mxu0 0.0
    %3395 = vmatprep.subr.mxu0 0.0
    %3396 = vmatpush1.msra.mxu0 0.0
    %3397 = vmatprep.subr.mxu0 0.0
    %3398 = vmatpush1.msra.mxu0 0.0
    %3399 = vmatprep.subr.mxu0 0.0
    %3400 = vmatpush1.msra.mxu0 0.0
    %3401 = vmatprep.subr.mxu0 0.0
    %3402 = vmatpush1.msra.mxu0 0.0
    %3403 = vmatprep.subr.mxu0 0.0
    %3404 = vmatpush1.msra.mxu0 0.0
    %3405 = vmatprep.subr.mxu0 0.0
    %3406 = vmatpush1.msra.mxu0 0.0
    %3407 = vmatprep.subr.mxu0 0.0
    %3408 = vmatpush1.msra.mxu0 0.0
    %3409 = vmatprep.subr.mxu0 0.0
    %3410 = vmatpush1.msra.mxu0 0.0
    %3411 = vmatprep.subr.mxu0 0.0
    %3412 = vmatpush1.msra.mxu0 0.0
    %3413 = vmatprep.subr.mxu0 0.0
    %3414 = vmatpush1.msra.mxu0 0.0
    %3415 = vmatprep.subr.mxu0 0.0
    %3416 = vmatpush1.msra.mxu0 0.0
    %3417 = vmatprep.subr.mxu0 0.0
    %3418 = vmatpush1.msra.mxu0 0.0
    %3419 = vmatprep.subr.mxu0 0.0
    %3420 = vmatpush1.msra.mxu0 0.0
    %3421 = vmatprep.subr.mxu0 0.0
    %3422 = vmatpush1.msra.mxu0 0.0
    %3423 = vmatprep.subr.mxu0 0.0
    %3424 = vmatpush1.msra.mxu0 0.0
    %3425 = vmatprep.subr.mxu0 0.0
    %3426 = vmatpush1.msra.mxu0 0.0
    %3427 = vmatprep.subr.mxu0 0.0
    %3428 = vmatpush1.msra.mxu0 0.0
    %3429 = vmatprep.subr.mxu0 0.0
    %3430 = vmatpush1.msra.mxu0 0.0
    %3431 = vmatprep.subr.mxu0 0.0
    %3432 = vmatpush1.msra.mxu0 0.0
    %3433 = vmatprep.subr.mxu0 0.0
    %3434 = vmatpush1.msra.mxu0 0.0
    %3435 = vmatprep.mubr.f32.mxu0 0.0
    %3436 = vmatmul.mubr.f32.gmra.mrb[0].mxu0 %v3348
    %v3437 = vpop.f32.mrb[0].mxu0
    %v3438 = vadd.f32 %v3345, %v3437
    %v3439 = vpop.f32.mrb[0].mxu0
    %3440 = vmatprep.mubr.f32.mxu0 0.0
    %3441 = vmatmul.mubr.f32.gmra.mrb[0].mxu0 %v3351
    %v3442 = vpop.f32.mrb[0].mxu0
    %v3443 = vadd.f32 %v3345, %v3442
    %v3444 = vpop.f32.mrb[0].mxu0
    %3445 = vmatprep.mubr.f32.mxu0 0.0
    %3446 = vmatmul.mubr.f32.gmra.mrb[0].mxu0 %v3354
    %v3447 = vpop.f32.mrb[0].mxu0
    %v3448 = vadd.f32 %v3345, %v3447
    %v3449 = vpop.f32.mrb[0].mxu0
    %3450 = vmatprep.mubr.f32.mxu0 0.0
    %3451 = vmatmul.mubr.f32.gmra.mrb[0].mxu0 %v3357
    %v3452 = vpop.f32.mrb[0].mxu0
    %v3453 = vadd.f32 %v3345, %v3452
    %v3454 = vpop.f32.mrb[0].mxu0
    %3455 = vmatprep.mubr.f32.mxu0 0.0
    %3456 = vmatmul.mubr.f32.gmra.mrb[0].mxu0 %v3360
    %v3457 = vpop.f32.mrb[0].mxu0
    %v3458 = vadd.f32 %v3345, %v3457
    %v3459 = vpop.f32.mrb[0].mxu0
    %3460 = vmatprep.mubr.f32.mxu0 0.0
    %3461 = vmatmul.mubr.f32.gmra.mrb[0].mxu0 %v3363
    %v3462 = vpop.f32.mrb[0].mxu0
    %v3463 = vadd.f32 %v3345, %v3462
    %v3464 = vpop.f32.mrb[0].mxu0
    %3465 = vmatprep.mubr.f32.mxu0 0.0
    %3466 = vmatmul.mubr.f32.gmra.mrb[0].mxu0 %v3366
    %v3467 = vpop.f32.mrb[0].mxu0
    %v3468 = vadd.f32 %v3345, %v3467
    %v3469 = vpop.f32.mrb[0].mxu0
    %3470 = vmatprep.mubr.f32.mxu0 0.0
    %3471 = vmatmul.mubr.f32.gmra.mrb[0].mxu0 %v3369
    %v3472 = vpop.f32.mrb[0].mxu0
    %v3473 = vadd.f32 %v3345, %v3472
    %v3474 = vpop.f32.mrb[0].mxu0
    %3475 = vdwg.mxu0
    %3476 = vmatprep.subr.mxu0 0.0
    %3477 = vmatpush1.msra.mxu0 %v3438
    %3478 = vmatprep.subr.mxu0 0.0
    %3479 = vmatpush1.msra.mxu0 %v3443
    %3480 = vmatprep.subr.mxu0 0.0
    %3481 = vmatpush1.msra.mxu0 %v3448
    %3482 = vmatprep.subr.mxu0 0.0
    %3483 = vmatpush1.msra.mxu0 %v3453
    %3484 = vmatprep.subr.mxu0 0.0
    %3485 = vmatpush1.msra.mxu0 %v3458
    %3486 = vmatprep.subr.mxu0 0.0
    %3487 = vmatpush1.msra.mxu0 %v3463
    %3488 = vmatprep.subr.mxu0 0.0
    %3489 = vmatpush1.msra.mxu0 %v3468
    %3490 = vmatprep.subr.mxu0 0.0
    %3491 = vmatpush1.msra.mxu0 %v3473
    %3492 = vmatprep.subr.mxu0 0.0
    %3493 = vmatpush1.msra.mxu0 0.0
    %3494 = vmatprep.subr.mxu0 0.0
    %3495 = vmatpush1.msra.mxu0 0.0
    %3496 = vmatprep.subr.mxu0 0.0
    %3497 = vmatpush1.msra.mxu0 0.0
    %3498 = vmatprep.subr.mxu0 0.0
    %3499 = vmatpush1.msra.mxu0 0.0
    %3500 = vmatprep.subr.mxu0 0.0
    %3501 = vmatpush1.msra.mxu0 0.0
    %3502 = vmatprep.subr.mxu0 0.0
    %3503 = vmatpush1.msra.mxu0 0.0
    %3504 = vmatprep.subr.mxu0 0.0
    %3505 = vmatpush1.msra.mxu0 0.0
    %3506 = vmatprep.subr.mxu0 0.0
    %3507 = vmatpush1.msra.mxu0 0.0
    %3508 = vmatprep.subr.mxu0 0.0
    %3509 = vmatpush1.msra.mxu0 0.0
    %3510 = vmatprep.subr.mxu0 0.0
    %3511 = vmatpush1.msra.mxu0 0.0
    %3512 = vmatprep.subr.mxu0 0.0
    %3513 = vmatpush1.msra.mxu0 0.0
    %3514 = vmatprep.subr.mxu0 0.0
    %3515 = vmatpush1.msra.mxu0 0.0
    %3516 = vmatprep.subr.mxu0 0.0
    %3517 = vmatpush1.msra.mxu0 0.0
    %3518 = vmatprep.subr.mxu0 0.0
    %3519 = vmatpush1.msra.mxu0 0.0
    %3520 = vmatprep.subr.mxu0 0.0
    %3521 = vmatpush1.msra.mxu0 0.0
    %3522 = vmatprep.subr.mxu0 0.0
    %3523 = vmatpush1.msra.mxu0 0.0
    %3524 = vmatprep.subr.mxu0 0.0
    %3525 = vmatpush1.msra.mxu0 0.0
    %3526 = vmatprep.subr.mxu0 0.0
    %3527 = vmatpush1.msra.mxu0 0.0
    %3528 = vmatprep.subr.mxu0 0.0
    %3529 = vmatpush1.msra.mxu0 0.0
    %3530 = vmatprep.subr.mxu0 0.0
    %3531 = vmatpush1.msra.mxu0 0.0
    %3532 = vmatprep.subr.mxu0 0.0
    %3533 = vmatpush1.msra.mxu0 0.0
    %3534 = vmatprep.subr.mxu0 0.0
    %3535 = vmatpush1.msra.mxu0 0.0
    %3536 = vmatprep.subr.mxu0 0.0
    %3537 = vmatpush1.msra.mxu0 0.0
    %3538 = vmatprep.subr.mxu0 0.0
    %3539 = vmatpush1.msra.mxu0 0.0
    %3540 = vmatprep.mubr.f32.mxu0 0.0
    %3541 = vmatmul.mubr.f32.gmra.mrb[0].mxu0 %v1845
    %v3542 = vpop.f32.mrb[0].mxu0
    %v3543 = vadd.f32 0.0, %v3542
    %v3544 = vpop.f32.mrb[0].mxu0
    %3545 = vmatprep.mubr.f32.mxu0 0.0
    %3546 = vmatmul.mubr.f32.gmra.mrb[0].mxu0 %v1848
    %v3547 = vpop.f32.mrb[0].mxu0
    %v3548 = vadd.f32 0.0, %v3547
    %v3549 = vpop.f32.mrb[0].mxu0
    %3550 = vmatprep.mubr.f32.mxu0 0.0
    %3551 = vmatmul.mubr.f32.gmra.mrb[0].mxu0 %v1851
    %v3552 = vpop.f32.mrb[0].mxu0
    %v3553 = vadd.f32 0.0, %v3552
    %v3554 = vpop.f32.mrb[0].mxu0
    %3555 = vmatprep.mubr.f32.mxu0 0.0
    %3556 = vmatmul.mubr.f32.gmra.mrb[0].mxu0 %v1854
    %v3557 = vpop.f32.mrb[0].mxu0
    %v3558 = vadd.f32 0.0, %v3557
    %v3559 = vpop.f32.mrb[0].mxu0
    %3560 = vdwg.mxu0
    %v3562 = vsel %vm768, %v3543, 0
    %v3565 = vsel %vm768, %v3548, 0
    %v3568 = vsel %vm768, %v3553, 0
    %v3571 = vsel %vm768, %v3558, 0
    %3573 = vmatprep.subr.mxu0 %v428
    %3574 = vmatpush1.msra.mxu0 %v427
    %3575 = vmatprep.subr.mxu0 %v431
    %3576 = vmatpush1.msra.mxu0 %v430
    %3577 = vmatprep.subr.mxu0 %v434
    %3578 = vmatpush1.msra.mxu0 %v433
    %3579 = vmatprep.subr.mxu0 %v437
    %3580 = vmatpush1.msra.mxu0 %v436
    %3581 = vmatprep.subr.mxu0 0.0
    %3582 = vmatpush1.msra.mxu0 0.0
    %3583 = vmatprep.subr.mxu0 0.0
    %3584 = vmatpush1.msra.mxu0 0.0
    %3585 = vmatprep.subr.mxu0 0.0
    %3586 = vmatpush1.msra.mxu0 0.0
    %3587 = vmatprep.subr.mxu0 0.0
    %3588 = vmatpush1.msra.mxu0 0.0
    %3589 = vmatprep.subr.mxu0 0.0
    %3590 = vmatpush1.msra.mxu0 0.0
    %3591 = vmatprep.subr.mxu0 0.0
    %3592 = vmatpush1.msra.mxu0 0.0
    %3593 = vmatprep.subr.mxu0 0.0
    %3594 = vmatpush1.msra.mxu0 0.0
    %3595 = vmatprep.subr.mxu0 0.0
    %3596 = vmatpush1.msra.mxu0 0.0
    %3597 = vmatprep.subr.mxu0 0.0
    %3598 = vmatpush1.msra.mxu0 0.0
    %3599 = vmatprep.subr.mxu0 0.0
    %3600 = vmatpush1.msra.mxu0 0.0
    %3601 = vmatprep.subr.mxu0 0.0
    %3602 = vmatpush1.msra.mxu0 0.0
    %3603 = vmatprep.subr.mxu0 0.0
    %3604 = vmatpush1.msra.mxu0 0.0
    %3605 = vmatprep.subr.mxu0 0.0
    %3606 = vmatpush1.msra.mxu0 0.0
    %3607 = vmatprep.subr.mxu0 0.0
    %3608 = vmatpush1.msra.mxu0 0.0
    %3609 = vmatprep.subr.mxu0 0.0
    %3610 = vmatpush1.msra.mxu0 0.0
    %3611 = vmatprep.subr.mxu0 0.0
    %3612 = vmatpush1.msra.mxu0 0.0
    %3613 = vmatprep.subr.mxu0 0.0
    %3614 = vmatpush1.msra.mxu0 0.0
    %3615 = vmatprep.subr.mxu0 0.0
    %3616 = vmatpush1.msra.mxu0 0.0
    %3617 = vmatprep.subr.mxu0 0.0
    %3618 = vmatpush1.msra.mxu0 0.0
    %3619 = vmatprep.subr.mxu0 0.0
    %3620 = vmatpush1.msra.mxu0 0.0
    %3621 = vmatprep.subr.mxu0 0.0
    %3622 = vmatpush1.msra.mxu0 0.0
    %3623 = vmatprep.subr.mxu0 0.0
    %3624 = vmatpush1.msra.mxu0 0.0
    %3625 = vmatprep.subr.mxu0 0.0
    %3626 = vmatpush1.msra.mxu0 0.0
    %3627 = vmatprep.subr.mxu0 0.0
    %3628 = vmatpush1.msra.mxu0 0.0
    %3629 = vmatprep.subr.mxu0 0.0
    %3630 = vmatpush1.msra.mxu0 0.0
    %3631 = vmatprep.subr.mxu0 0.0
    %3632 = vmatpush1.msra.mxu0 0.0
    %3633 = vmatprep.subr.mxu0 0.0
    %3634 = vmatpush1.msra.mxu0 0.0
    %3635 = vmatprep.subr.mxu0 0.0
    %3636 = vmatpush1.msra.mxu0 0.0
    %3637 = vmatprep.mubr.f32.mxu0 0.0
    %3638 = vmatmul.mubr.f32.gmra.mrb[0].mxu0 %v3562
    %v3639 = vpop.f32.mrb[0].mxu0
    %v3640 = vadd.f32 %v1945, %v3639
    %v3641 = vpop.f32.mrb[0].mxu0
    %v3642 = vadd.f32 %v1949, %v3641
    %3643 = vmatprep.mubr.f32.mxu0 0.0
    %3644 = vmatmul.mubr.f32.gmra.mrb[0].mxu0 %v3565
    %v3645 = vpop.f32.mrb[0].mxu0
    %v3646 = vadd.f32 %v1945, %v3645
    %v3647 = vpop.f32.mrb[0].mxu0
    %v3648 = vadd.f32 %v1949, %v3647
    %3649 = vmatprep.mubr.f32.mxu0 0.0
    %3650 = vmatmul.mubr.f32.gmra.mrb[0].mxu0 %v3568
    %v3651 = vpop.f32.mrb[0].mxu0
    %v3652 = vadd.f32 %v1945, %v3651
    %v3653 = vpop.f32.mrb[0].mxu0
    %v3654 = vadd.f32 %v1949, %v3653
    %3655 = vmatprep.mubr.f32.mxu0 0.0
    %3656 = vmatmul.mubr.f32.gmra.mrb[0].mxu0 %v3571
    %v3657 = vpop.f32.mrb[0].mxu0
    %v3658 = vadd.f32 %v1945, %v3657
    %v3659 = vpop.f32.mrb[0].mxu0
    %v3660 = vadd.f32 %v1949, %v3659
    %3661 = vdwg.mxu0
    %3662 = vmatprep.subr.mxu0 0.0
    %3663 = vmatpush1.msra.mxu0 %v429
    %3664 = vmatprep.subr.mxu0 0.0
    %3665 = vmatpush1.msra.mxu0 %v432
    %3666 = vmatprep.subr.mxu0 0.0
    %3667 = vmatpush1.msra.mxu0 %v435
    %3668 = vmatprep.subr.mxu0 0.0
    %3669 = vmatpush1.msra.mxu0 %v438
    %3670 = vmatprep.subr.mxu0 0.0
    %3671 = vmatpush1.msra.mxu0 0.0
    %3672 = vmatprep.subr.mxu0 0.0
    %3673 = vmatpush1.msra.mxu0 0.0
    %3674 = vmatprep.subr.mxu0 0.0
    %3675 = vmatpush1.msra.mxu0 0.0
    %3676 = vmatprep.subr.mxu0 0.0
    %3677 = vmatpush1.msra.mxu0 0.0
    %3678 = vmatprep.subr.mxu0 0.0
    %3679 = vmatpush1.msra.mxu0 0.0
    %3680 = vmatprep.subr.mxu0 0.0
    %3681 = vmatpush1.msra.mxu0 0.0
    %3682 = vmatprep.subr.mxu0 0.0
    %3683 = vmatpush1.msra.mxu0 0.0
    %3684 = vmatprep.subr.mxu0 0.0
    %3685 = vmatpush1.msra.mxu0 0.0
    %3686 = vmatprep.subr.mxu0 0.0
    %3687 = vmatpush1.msra.mxu0 0.0
    %3688 = vmatprep.subr.mxu0 0.0
    %3689 = vmatpush1.msra.mxu0 0.0
    %3690 = vmatprep.subr.mxu0 0.0
    %3691 = vmatpush1.msra.mxu0 0.0
    %3692 = vmatprep.subr.mxu0 0.0
    %3693 = vmatpush1.msra.mxu0 0.0
    %3694 = vmatprep.subr.mxu0 0.0
    %3695 = vmatpush1.msra.mxu0 0.0
    %3696 = vmatprep.subr.mxu0 0.0
    %3697 = vmatpush1.msra.mxu0 0.0
    %3698 = vmatprep.subr.mxu0 0.0
    %3699 = vmatpush1.msra.mxu0 0.0
    %3700 = vmatprep.subr.mxu0 0.0
    %3701 = vmatpush1.msra.mxu0 0.0
    %3702 = vmatprep.subr.mxu0 0.0
    %3703 = vmatpush1.msra.mxu0 0.0
    %3704 = vmatprep.subr.mxu0 0.0
    %3705 = vmatpush1.msra.mxu0 0.0
    %3706 = vmatprep.subr.mxu0 0.0
    %3707 = vmatpush1.msra.mxu0 0.0
    %3708 = vmatprep.subr.mxu0 0.0
    %3709 = vmatpush1.msra.mxu0 0.0
    %3710 = vmatprep.subr.mxu0 0.0
    %3711 = vmatpush1.msra.mxu0 0.0
    %3712 = vmatprep.subr.mxu0 0.0
    %3713 = vmatpush1.msra.mxu0 0.0
    %3714 = vmatprep.subr.mxu0 0.0
    %3715 = vmatpush1.msra.mxu0 0.0
    %3716 = vmatprep.subr.mxu0 0.0
    %3717 = vmatpush1.msra.mxu0 0.0
    %3718 = vmatprep.subr.mxu0 0.0
    %3719 = vmatpush1.msra.mxu0 0.0
    %3720 = vmatprep.subr.mxu0 0.0
    %3721 = vmatpush1.msra.mxu0 0.0
    %3722 = vmatprep.subr.mxu0 0.0
    %3723 = vmatpush1.msra.mxu0 0.0
    %3724 = vmatprep.subr.mxu0 0.0
    %3725 = vmatpush1.msra.mxu0 0.0
    %3726 = vmatprep.mubr.f32.mxu0 0.0
    %3727 = vmatmul.mubr.f32.gmra.mrb[0].mxu0 %v3562
    %v3728 = vpop.f32.mrb[0].mxu0
    %v3729 = vadd.f32 %v1953, %v3728
    %v3730 = vpop.f32.mrb[0].mxu0
    %3731 = vmatprep.mubr.f32.mxu0 0.0
    %3732 = vmatmul.mubr.f32.gmra.mrb[0].mxu0 %v3565
    %v3733 = vpop.f32.mrb[0].mxu0
    %v3734 = vadd.f32 %v1953, %v3733
    %v3735 = vpop.f32.mrb[0].mxu0
    %3736 = vmatprep.mubr.f32.mxu0 0.0
    %3737 = vmatmul.mubr.f32.gmra.mrb[0].mxu0 %v3568
    %v3738 = vpop.f32.mrb[0].mxu0
    %v3739 = vadd.f32 %v1953, %v3738
    %v3740 = vpop.f32.mrb[0].mxu0
    %3741 = vmatprep.mubr.f32.mxu0 0.0
    %3742 = vmatmul.mubr.f32.gmra.mrb[0].mxu0 %v3571
    %v3743 = vpop.f32.mrb[0].mxu0
    %v3744 = vadd.f32 %v1953, %v3743
    %v3745 = vpop.f32.mrb[0].mxu0
    %3746 = vdwg.mxu0
    %v3747 = vmax.f32 %v3640, 0.0
    %v3748 = vmax.f32 %v3642, 0.0
    %v3749 = vmax.f32 %v3729, 0.0
    %v3750 = vmax.f32 %v3646, 0.0
    %v3751 = vmax.f32 %v3648, 0.0
    %v3752 = vmax.f32 %v3734, 0.0
    %v3753 = vmax.f32 %v3652, 0.0
    %v3754 = vmax.f32 %v3654, 0.0
    %v3755 = vmax.f32 %v3739, 0.0
    %v3756 = vmax.f32 %v3658, 0.0
    %v3757 = vmax.f32 %v3660, 0.0
    %v3758 = vmax.f32 %v3744, 0.0
    %v3760 = vsel %vm1466, %v3749, 0
    %v3763 = vsel %vm1466, %v3752, 0
    %v3766 = vsel %vm1466, %v3755, 0
    %v3769 = vsel %vm1466, %v3758, 0
    %3771 = vmatprep.subr.mxu0 0.0
    %3772 = vmatpush1.msra.mxu0 %v440
    %3773 = vmatprep.subr.mxu0 0.0
    %3774 = vmatpush1.msra.mxu0 %v441
    %3775 = vmatprep.subr.mxu0 0.0
    %3776 = vmatpush1.msra.mxu0 %v442
    %3777 = vmatprep.subr.mxu0 0.0
    %3778 = vmatpush1.msra.mxu0 %v443
    %3779 = vmatprep.subr.mxu0 0.0
    %3780 = vmatpush1.msra.mxu0 %v444
    %3781 = vmatprep.subr.mxu0 0.0
    %3782 = vmatpush1.msra.mxu0 %v445
    %3783 = vmatprep.subr.mxu0 0.0
    %3784 = vmatpush1.msra.mxu0 %v446
    %3785 = vmatprep.subr.mxu0 0.0
    %3786 = vmatpush1.msra.mxu0 %v447
    %3787 = vmatprep.subr.mxu0 0.0
    %3788 = vmatpush1.msra.mxu0 %v448
    %3789 = vmatprep.subr.mxu0 0.0
    %3790 = vmatpush1.msra.mxu0 %v449
    %3791 = vmatprep.subr.mxu0 0.0
    %3792 = vmatpush1.msra.mxu0 %v450
    %3793 = vmatprep.subr.mxu0 0.0
    %3794 = vmatpush1.msra.mxu0 %v451
    %3795 = vmatprep.subr.mxu0 0.0
    %3796 = vmatpush1.msra.mxu0 %v452
    %3797 = vmatprep.subr.mxu0 0.0
    %3798 = vmatpush1.msra.mxu0 %v453
    %3799 = vmatprep.subr.mxu0 0.0
    %3800 = vmatpush1.msra.mxu0 %v454
    %3801 = vmatprep.subr.mxu0 0.0
    %3802 = vmatpush1.msra.mxu0 %v455
    %3803 = vmatprep.subr.mxu0 0.0
    %3804 = vmatpush1.msra.mxu0 %v456
    %3805 = vmatprep.subr.mxu0 0.0
    %3806 = vmatpush1.msra.mxu0 %v457
    %3807 = vmatprep.subr.mxu0 0.0
    %3808 = vmatpush1.msra.mxu0 %v458
    %3809 = vmatprep.subr.mxu0 0.0
    %3810 = vmatpush1.msra.mxu0 %v459
    %3811 = vmatprep.subr.mxu0 0.0
    %3812 = vmatpush1.msra.mxu0 %v460
    %3813 = vmatprep.subr.mxu0 0.0
    %3814 = vmatpush1.msra.mxu0 %v461
    %3815 = vmatprep.subr.mxu0 0.0
    %3816 = vmatpush1.msra.mxu0 %v462
    %3817 = vmatprep.subr.mxu0 0.0
    %3818 = vmatpush1.msra.mxu0 %v463
    %3819 = vmatprep.subr.mxu0 0.0
    %3820 = vmatpush1.msra.mxu0 %v464
    %3821 = vmatprep.subr.mxu0 0.0
    %3822 = vmatpush1.msra.mxu0 %v465
    %3823 = vmatprep.subr.mxu0 0.0
    %3824 = vmatpush1.msra.mxu0 %v466
    %3825 = vmatprep.subr.mxu0 0.0
    %3826 = vmatpush1.msra.mxu0 %v467
    %3827 = vmatprep.subr.mxu0 0.0
    %3828 = vmatpush1.msra.mxu0 %v468
    %3829 = vmatprep.subr.mxu0 0.0
    %3830 = vmatpush1.msra.mxu0 %v469
    %3831 = vmatprep.subr.mxu0 0.0
    %3832 = vmatpush1.msra.mxu0 %v470
    %3833 = vmatprep.subr.mxu0 0.0
    %3834 = vmatpush1.msra.mxu0 %v471
    %3835 = vmatprep.mubr.f32.mxu0 %v3748
    %3836 = vmatmul.mubr.f32.gmra.mrb[0].mxu0 %v3747
    %v3837 = vpop.f32.mrb[0].mxu0
    %v3838 = vadd.f32 %v2159, %v3837
    %v3839 = vpop.f32.mrb[0].mxu0
    %3840 = vmatprep.mubr.f32.mxu0 %v3751
    %3841 = vmatmul.mubr.f32.gmra.mrb[0].mxu0 %v3750
    %v3842 = vpop.f32.mrb[0].mxu0
    %v3843 = vadd.f32 %v2159, %v3842
    %v3844 = vpop.f32.mrb[0].mxu0
    %3845 = vmatprep.mubr.f32.mxu0 %v3754
    %3846 = vmatmul.mubr.f32.gmra.mrb[0].mxu0 %v3753
    %v3847 = vpop.f32.mrb[0].mxu0
    %v3848 = vadd.f32 %v2159, %v3847
    %v3849 = vpop.f32.mrb[0].mxu0
    %3850 = vmatprep.mubr.f32.mxu0 %v3757
    %3851 = vmatmul.mubr.f32.gmra.mrb[0].mxu0 %v3756
    %v3852 = vpop.f32.mrb[0].mxu0
    %v3853 = vadd.f32 %v2159, %v3852
    %v3854 = vpop.f32.mrb[0].mxu0
    %3855 = vdwg.mxu0
    %3856 = vmatprep.subr.mxu0 0.0
    %3857 = vmatpush1.msra.mxu0 %v472
    %3858 = vmatprep.subr.mxu0 0.0
    %3859 = vmatpush1.msra.mxu0 %v473
    %3860 = vmatprep.subr.mxu0 0.0
    %3861 = vmatpush1.msra.mxu0 %v474
    %3862 = vmatprep.subr.mxu0 0.0
    %3863 = vmatpush1.msra.mxu0 %v475
    %3864 = vmatprep.subr.mxu0 0.0
    %3865 = vmatpush1.msra.mxu0 %v476
    %3866 = vmatprep.subr.mxu0 0.0
    %3867 = vmatpush1.msra.mxu0 %v477
    %3868 = vmatprep.subr.mxu0 0.0
    %3869 = vmatpush1.msra.mxu0 %v478
    %3870 = vmatprep.subr.mxu0 0.0
    %3871 = vmatpush1.msra.mxu0 %v479
    %3872 = vmatprep.subr.mxu0 0.0
    %3873 = vmatpush1.msra.mxu0 0.0
    %3874 = vmatprep.subr.mxu0 0.0
    %3875 = vmatpush1.msra.mxu0 0.0
    %3876 = vmatprep.subr.mxu0 0.0
    %3877 = vmatpush1.msra.mxu0 0.0
    %3878 = vmatprep.subr.mxu0 0.0
    %3879 = vmatpush1.msra.mxu0 0.0
    %3880 = vmatprep.subr.mxu0 0.0
    %3881 = vmatpush1.msra.mxu0 0.0
    %3882 = vmatprep.subr.mxu0 0.0
    %3883 = vmatpush1.msra.mxu0 0.0
    %3884 = vmatprep.subr.mxu0 0.0
    %3885 = vmatpush1.msra.mxu0 0.0
    %3886 = vmatprep.subr.mxu0 0.0
    %3887 = vmatpush1.msra.mxu0 0.0
    %3888 = vmatprep.subr.mxu0 0.0
    %3889 = vmatpush1.msra.mxu0 0.0
    %3890 = vmatprep.subr.mxu0 0.0
    %3891 = vmatpush1.msra.mxu0 0.0
    %3892 = vmatprep.subr.mxu0 0.0
    %3893 = vmatpush1.msra.mxu0 0.0
    %3894 = vmatprep.subr.mxu0 0.0
    %3895 = vmatpush1.msra.mxu0 0.0
    %3896 = vmatprep.subr.mxu0 0.0
    %3897 = vmatpush1.msra.mxu0 0.0
    %3898 = vmatprep.subr.mxu0 0.0
    %3899 = vmatpush1.msra.mxu0 0.0
    %3900 = vmatprep.subr.mxu0 0.0
    %3901 = vmatpush1.msra.mxu0 0.0
    %3902 = vmatprep.subr.mxu0 0.0
    %3903 = vmatpush1.msra.mxu0 0.0
    %3904 = vmatprep.subr.mxu0 0.0
    %3905 = vmatpush1.msra.mxu0 0.0
    %3906 = vmatprep.subr.mxu0 0.0
    %3907 = vmatpush1.msra.mxu0 0.0
    %3908 = vmatprep.subr.mxu0 0.0
    %3909 = vmatpush1.msra.mxu0 0.0
    %3910 = vmatprep.subr.mxu0 0.0
    %3911 = vmatpush1.msra.mxu0 0.0
    %3912 = vmatprep.subr.mxu0 0.0
    %3913 = vmatpush1.msra.mxu0 0.0
    %3914 = vmatprep.subr.mxu0 0.0
    %3915 = vmatpush1.msra.mxu0 0.0
    %3916 = vmatprep.subr.mxu0 0.0
    %3917 = vmatpush1.msra.mxu0 0.0
    %3918 = vmatprep.subr.mxu0 0.0
    %3919 = vmatpush1.msra.mxu0 0.0
    %3920 = vmatprep.mubr.f32.mxu0 0.0
    %3921 = vmatmul.mubr.f32.gmra.mrb[0].mxu0 %v3760
    %v3922 = vpop.f32.mrb[0].mxu0
    %v3923 = vadd.f32 %v3838, %v3922
    %v3924 = vpop.f32.mrb[0].mxu0
    %3925 = vmatprep.mubr.f32.mxu0 0.0
    %3926 = vmatmul.mubr.f32.gmra.mrb[0].mxu0 %v3763
    %v3927 = vpop.f32.mrb[0].mxu0
    %v3928 = vadd.f32 %v3843, %v3927
    %v3929 = vpop.f32.mrb[0].mxu0
    %3930 = vmatprep.mubr.f32.mxu0 0.0
    %3931 = vmatmul.mubr.f32.gmra.mrb[0].mxu0 %v3766
    %v3932 = vpop.f32.mrb[0].mxu0
    %v3933 = vadd.f32 %v3848, %v3932
    %v3934 = vpop.f32.mrb[0].mxu0
    %3935 = vmatprep.mubr.f32.mxu0 0.0
    %3936 = vmatmul.mubr.f32.gmra.mrb[0].mxu0 %v3769
    %v3937 = vpop.f32.mrb[0].mxu0
    %v3938 = vadd.f32 %v3853, %v3937
    %v3939 = vpop.f32.mrb[0].mxu0
    %3940 = vdwg.mxu0
    %v3941 = vmax.f32 %v3923, 0.0
    %v3942 = vmax.f32 %v3928, 0.0
    %v3943 = vmax.f32 %v3933, 0.0
    %v3944 = vmax.f32 %v3938, 0.0
    %v3946 = vsel %vm768, %v3941, 0
    %v3949 = vsel %vm768, %v3942, 0
    %v3952 = vsel %vm768, %v3943, 0
    %v3955 = vsel %vm768, %v3944, 0
    %3957 = vmatprep.subr.mxu0 0.0
    %3958 = vmatpush1.msra.mxu0 %v481
    %3959 = vmatprep.subr.mxu0 0.0
    %3960 = vmatpush1.msra.mxu0 %v482
    %3961 = vmatprep.subr.mxu0 0.0
    %3962 = vmatpush1.msra.mxu0 %v483
    %3963 = vmatprep.subr.mxu0 0.0
    %3964 = vmatpush1.msra.mxu0 %v484
    %3965 = vmatprep.subr.mxu0 0.0
    %3966 = vmatpush1.msra.mxu0 0.0
    %3967 = vmatprep.subr.mxu0 0.0
    %3968 = vmatpush1.msra.mxu0 0.0
    %3969 = vmatprep.subr.mxu0 0.0
    %3970 = vmatpush1.msra.mxu0 0.0
    %3971 = vmatprep.subr.mxu0 0.0
    %3972 = vmatpush1.msra.mxu0 0.0
    %3973 = vmatprep.subr.mxu0 0.0
    %3974 = vmatpush1.msra.mxu0 0.0
    %3975 = vmatprep.subr.mxu0 0.0
    %3976 = vmatpush1.msra.mxu0 0.0
    %3977 = vmatprep.subr.mxu0 0.0
    %3978 = vmatpush1.msra.mxu0 0.0
    %3979 = vmatprep.subr.mxu0 0.0
    %3980 = vmatpush1.msra.mxu0 0.0
    %3981 = vmatprep.subr.mxu0 0.0
    %3982 = vmatpush1.msra.mxu0 0.0
    %3983 = vmatprep.subr.mxu0 0.0
    %3984 = vmatpush1.msra.mxu0 0.0
    %3985 = vmatprep.subr.mxu0 0.0
    %3986 = vmatpush1.msra.mxu0 0.0
    %3987 = vmatprep.subr.mxu0 0.0
    %3988 = vmatpush1.msra.mxu0 0.0
    %3989 = vmatprep.subr.mxu0 0.0
    %3990 = vmatpush1.msra.mxu0 0.0
    %3991 = vmatprep.subr.mxu0 0.0
    %3992 = vmatpush1.msra.mxu0 0.0
    %3993 = vmatprep.subr.mxu0 0.0
    %3994 = vmatpush1.msra.mxu0 0.0
    %3995 = vmatprep.subr.mxu0 0.0
    %3996 = vmatpush1.msra.mxu0 0.0
    %3997 = vmatprep.subr.mxu0 0.0
    %3998 = vmatpush1.msra.mxu0 0.0
    %3999 = vmatprep.subr.mxu0 0.0
    %4000 = vmatpush1.msra.mxu0 0.0
    %4001 = vmatprep.subr.mxu0 0.0
    %4002 = vmatpush1.msra.mxu0 0.0
    %4003 = vmatprep.subr.mxu0 0.0
    %4004 = vmatpush1.msra.mxu0 0.0
    %4005 = vmatprep.subr.mxu0 0.0
    %4006 = vmatpush1.msra.mxu0 0.0
    %4007 = vmatprep.subr.mxu0 0.0
    %4008 = vmatpush1.msra.mxu0 0.0
    %4009 = vmatprep.subr.mxu0 0.0
    %4010 = vmatpush1.msra.mxu0 0.0
    %4011 = vmatprep.subr.mxu0 0.0
    %4012 = vmatpush1.msra.mxu0 0.0
    %4013 = vmatprep.subr.mxu0 0.0
    %4014 = vmatpush1.msra.mxu0 0.0
    %4015 = vmatprep.subr.mxu0 0.0
    %4016 = vmatpush1.msra.mxu0 0.0
    %4017 = vmatprep.subr.mxu0 0.0
    %4018 = vmatpush1.msra.mxu0 0.0
    %4019 = vmatprep.subr.mxu0 0.0
    %4020 = vmatpush1.msra.mxu0 0.0
    %4021 = vmatprep.mubr.f32.mxu0 0.0
    %4022 = vmatmul.mubr.f32.gmra.mrb[0].mxu0 %v3946
    %v4023 = vpop.f32.mrb[0].mxu0
    %v4024 = vadd.f32 %v2351, %v4023
    %v4025 = vpop.f32.mrb[0].mxu0
    %4026 = vmatprep.mubr.f32.mxu0 0.0
    %4027 = vmatmul.mubr.f32.gmra.mrb[0].mxu0 %v3949
    %v4028 = vpop.f32.mrb[0].mxu0
    %v4029 = vadd.f32 %v2351, %v4028
    %v4030 = vpop.f32.mrb[0].mxu0
    %4031 = vmatprep.mubr.f32.mxu0 0.0
    %4032 = vmatmul.mubr.f32.gmra.mrb[0].mxu0 %v3952
    %v4033 = vpop.f32.mrb[0].mxu0
    %v4034 = vadd.f32 %v2351, %v4033
    %v4035 = vpop.f32.mrb[0].mxu0
    %4036 = vmatprep.mubr.f32.mxu0 0.0
    %4037 = vmatmul.mubr.f32.gmra.mrb[0].mxu0 %v3955
    %v4038 = vpop.f32.mrb[0].mxu0
    %v4039 = vadd.f32 %v2351, %v4038
    %v4040 = vpop.f32.mrb[0].mxu0
    %4041 = vdwg.mxu0
    %v4043 = vlaneseq
    %v4044 = vshrl.u32 %v4043, 7
    %v4045 = vsub.s32 0, %v4044
    %v4046 = vrot.slane %v490, %v4045
    %4048 = vmatprep.subr.mxu0 0.0
    %4049 = vmatpush1.msra.mxu0 %v486
    %4050 = vmatprep.subr.mxu0 0.0
    %4051 = vmatpush1.msra.mxu0 %v487
    %4052 = vmatprep.subr.mxu0 0.0
    %4053 = vmatpush1.msra.mxu0 %v488
    %4054 = vmatprep.subr.mxu0 0.0
    %4055 = vmatpush1.msra.mxu0 %v489
    %4056 = vmatprep.subr.mxu0 0.0
    %4057 = vmatpush1.msra.mxu0 0.0
    %4058 = vmatprep.subr.mxu0 0.0
    %4059 = vmatpush1.msra.mxu0 0.0
    %4060 = vmatprep.subr.mxu0 0.0
    %4061 = vmatpush1.msra.mxu0 0.0
    %4062 = vmatprep.subr.mxu0 0.0
    %4063 = vmatpush1.msra.mxu0 0.0
    %4064 = vmatprep.subr.mxu0 0.0
    %4065 = vmatpush1.msra.mxu0 0.0
    %4066 = vmatprep.subr.mxu0 0.0
    %4067 = vmatpush1.msra.mxu0 0.0
    %4068 = vmatprep.subr.mxu0 0.0
    %4069 = vmatpush1.msra.mxu0 0.0
    %4070 = vmatprep.subr.mxu0 0.0
    %4071 = vmatpush1.msra.mxu0 0.0
    %4072 = vmatprep.subr.mxu0 0.0
    %4073 = vmatpush1.msra.mxu0 0.0
    %4074 = vmatprep.subr.mxu0 0.0
    %4075 = vmatpush1.msra.mxu0 0.0
    %4076 = vmatprep.subr.mxu0 0.0
    %4077 = vmatpush1.msra.mxu0 0.0
    %4078 = vmatprep.subr.mxu0 0.0
    %4079 = vmatpush1.msra.mxu0 0.0
    %4080 = vmatprep.subr.mxu0 0.0
    %4081 = vmatpush1.msra.mxu0 0.0
    %4082 = vmatprep.subr.mxu0 0.0
    %4083 = vmatpush1.msra.mxu0 0.0
    %4084 = vmatprep.subr.mxu0 0.0
    %4085 = vmatpush1.msra.mxu0 0.0
    %4086 = vmatprep.subr.mxu0 0.0
    %4087 = vmatpush1.msra.mxu0 0.0
    %4088 = vmatprep.subr.mxu0 0.0
    %4089 = vmatpush1.msra.mxu0 0.0
    %4090 = vmatprep.subr.mxu0 0.0
    %4091 = vmatpush1.msra.mxu0 0.0
    %4092 = vmatprep.subr.mxu0 0.0
    %4093 = vmatpush1.msra.mxu0 0.0
    %4094 = vmatprep.subr.mxu0 0.0
    %4095 = vmatpush1.msra.mxu0 0.0
    %4096 = vmatprep.subr.mxu0 0.0
    %4097 = vmatpush1.msra.mxu0 0.0
    %4098 = vmatprep.subr.mxu0 0.0
    %4099 = vmatpush1.msra.mxu0 0.0
    %4100 = vmatprep.subr.mxu0 0.0
    %4101 = vmatpush1.msra.mxu0 0.0
    %4102 = vmatprep.subr.mxu0 0.0
    %4103 = vmatpush1.msra.mxu0 0.0
    %4104 = vmatprep.subr.mxu0 0.0
    %4105 = vmatpush1.msra.mxu0 0.0
    %4106 = vmatprep.subr.mxu0 0.0
    %4107 = vmatpush1.msra.mxu0 0.0
    %4108 = vmatprep.subr.mxu0 0.0
    %4109 = vmatpush1.msra.mxu0 0.0
    %4110 = vmatprep.subr.mxu0 0.0
    %4111 = vmatpush1.msra.mxu0 0.0
    %4112 = vmatprep.mubr.f32.mxu0 0.0
    %4113 = vmatmul.mubr.f32.gmra.mrb[0].mxu0 %v1042
    %v4114 = vpop.f32.mrb[0].mxu0
    %v4115 = vadd.f32 %v4046, %v4114
    %v4116 = vpop.f32.mrb[0].mxu0
    %4117 = vmatprep.mubr.f32.mxu0 0.0
    %4118 = vmatmul.mubr.f32.gmra.mrb[0].mxu0 %v1045
    %v4119 = vpop.f32.mrb[0].mxu0
    %v4120 = vadd.f32 %v4046, %v4119
    %v4121 = vpop.f32.mrb[0].mxu0
    %4122 = vmatprep.mubr.f32.mxu0 0.0
    %4123 = vmatmul.mubr.f32.gmra.mrb[0].mxu0 %v1048
    %v4124 = vpop.f32.mrb[0].mxu0
    %v4125 = vadd.f32 %v4046, %v4124
    %v4126 = vpop.f32.mrb[0].mxu0
    %4127 = vmatprep.mubr.f32.mxu0 0.0
    %4128 = vmatmul.mubr.f32.gmra.mrb[0].mxu0 %v1051
    %v4129 = vpop.f32.mrb[0].mxu0
    %v4130 = vadd.f32 %v4046, %v4129
    %v4131 = vpop.f32.mrb[0].mxu0
    %4132 = vmatprep.mubr.f32.mxu0 0.0
    %4133 = vmatmul.mubr.f32.gmra.mrb[0].mxu0 %v1054
    %v4134 = vpop.f32.mrb[0].mxu0
    %v4135 = vadd.f32 %v4046, %v4134
    %v4136 = vpop.f32.mrb[0].mxu0
    %4137 = vmatprep.mubr.f32.mxu0 0.0
    %4138 = vmatmul.mubr.f32.gmra.mrb[0].mxu0 %v1057
    %v4139 = vpop.f32.mrb[0].mxu0
    %v4140 = vadd.f32 %v4046, %v4139
    %v4141 = vpop.f32.mrb[0].mxu0
    %4142 = vmatprep.mubr.f32.mxu0 0.0
    %4143 = vmatmul.mubr.f32.gmra.mrb[0].mxu0 %v1060
    %v4144 = vpop.f32.mrb[0].mxu0
    %v4145 = vadd.f32 %v4046, %v4144
    %v4146 = vpop.f32.mrb[0].mxu0
    %4147 = vmatprep.mubr.f32.mxu0 0.0
    %4148 = vmatmul.mubr.f32.gmra.mrb[0].mxu0 %v1063
    %v4149 = vpop.f32.mrb[0].mxu0
    %v4150 = vadd.f32 %v4046, %v4149
    %v4151 = vpop.f32.mrb[0].mxu0
    %4152 = vdwg.mxu0
    %v4153 = vmax.f32 %v4115, 0.0
    %v4154 = vmax.f32 %v4120, 0.0
    %v4155 = vmax.f32 %v4125, 0.0
    %v4156 = vmax.f32 %v4130, 0.0
    %v4157 = vmax.f32 %v4135, 0.0
    %v4158 = vmax.f32 %v4140, 0.0
    %v4159 = vmax.f32 %v4145, 0.0
    %v4160 = vmax.f32 %v4150, 0.0
    %v4162 = vlaneseq
    %v4163 = vshrl.u32 %v4162, 7
    %v4164 = vsub.s32 0, %v4163
    %v4165 = vrot.slane %v503, %v4164
    %v4166 = vlaneseq
    %v4167 = vshrl.u32 %v4166, 7
    %v4168 = vsub.s32 1, %v4167
    %v4169 = vrot.slane %v503, %v4168
    %v4170 = vlaneseq
    %v4171 = vshrl.u32 %v4170, 7
    %v4172 = vsub.s32 2, %v4171
    %v4173 = vrot.slane %v503, %v4172
    %v4178 = vsel %vm768, %v4153, 0
    %v4181 = vsel %vm768, %v4154, 0
    %v4184 = vsel %vm768, %v4155, 0
    %v4187 = vsel %vm768, %v4156, 0
    %v4190 = vsel %vm768, %v4157, 0
    %v4193 = vsel %vm768, %v4158, 0
    %v4196 = vsel %vm768, %v4159, 0
    %v4199 = vsel %vm768, %v4160, 0
    %4201 = vmatprep.subr.mxu0 %v492
    %4202 = vmatpush1.msra.mxu0 %v491
    %4203 = vmatprep.subr.mxu0 %v495
    %4204 = vmatpush1.msra.mxu0 %v494
    %4205 = vmatprep.subr.mxu0 %v498
    %4206 = vmatpush1.msra.mxu0 %v497
    %4207 = vmatprep.subr.mxu0 %v501
    %4208 = vmatpush1.msra.mxu0 %v500
    %4209 = vmatprep.subr.mxu0 0.0
    %4210 = vmatpush1.msra.mxu0 0.0
    %4211 = vmatprep.subr.mxu0 0.0
    %4212 = vmatpush1.msra.mxu0 0.0
    %4213 = vmatprep.subr.mxu0 0.0
    %4214 = vmatpush1.msra.mxu0 0.0
    %4215 = vmatprep.subr.mxu0 0.0
    %4216 = vmatpush1.msra.mxu0 0.0
    %4217 = vmatprep.subr.mxu0 0.0
    %4218 = vmatpush1.msra.mxu0 0.0
    %4219 = vmatprep.subr.mxu0 0.0
    %4220 = vmatpush1.msra.mxu0 0.0
    %4221 = vmatprep.subr.mxu0 0.0
    %4222 = vmatpush1.msra.mxu0 0.0
    %4223 = vmatprep.subr.mxu0 0.0
    %4224 = vmatpush1.msra.mxu0 0.0
    %4225 = vmatprep.subr.mxu0 0.0
    %4226 = vmatpush1.msra.mxu0 0.0
    %4227 = vmatprep.subr.mxu0 0.0
    %4228 = vmatpush1.msra.mxu0 0.0
    %4229 = vmatprep.subr.mxu0 0.0
    %4230 = vmatpush1.msra.mxu0 0.0
    %4231 = vmatprep.subr.mxu0 0.0
    %4232 = vmatpush1.msra.mxu0 0.0
    %4233 = vmatprep.subr.mxu0 0.0
    %4234 = vmatpush1.msra.mxu0 0.0
    %4235 = vmatprep.subr.mxu0 0.0
    %4236 = vmatpush1.msra.mxu0 0.0
    %4237 = vmatprep.subr.mxu0 0.0
    %4238 = vmatpush1.msra.mxu0 0.0
    %4239 = vmatprep.subr.mxu0 0.0
    %4240 = vmatpush1.msra.mxu0 0.0
    %4241 = vmatprep.subr.mxu0 0.0
    %4242 = vmatpush1.msra.mxu0 0.0
    %4243 = vmatprep.subr.mxu0 0.0
    %4244 = vmatpush1.msra.mxu0 0.0
    %4245 = vmatprep.subr.mxu0 0.0
    %4246 = vmatpush1.msra.mxu0 0.0
    %4247 = vmatprep.subr.mxu0 0.0
    %4248 = vmatpush1.msra.mxu0 0.0
    %4249 = vmatprep.subr.mxu0 0.0
    %4250 = vmatpush1.msra.mxu0 0.0
    %4251 = vmatprep.subr.mxu0 0.0
    %4252 = vmatpush1.msra.mxu0 0.0
    %4253 = vmatprep.subr.mxu0 0.0
    %4254 = vmatpush1.msra.mxu0 0.0
    %4255 = vmatprep.subr.mxu0 0.0
    %4256 = vmatpush1.msra.mxu0 0.0
    %4257 = vmatprep.subr.mxu0 0.0
    %4258 = vmatpush1.msra.mxu0 0.0
    %4259 = vmatprep.subr.mxu0 0.0
    %4260 = vmatpush1.msra.mxu0 0.0
    %4261 = vmatprep.subr.mxu0 0.0
    %4262 = vmatpush1.msra.mxu0 0.0
    %4263 = vmatprep.subr.mxu0 0.0
    %4264 = vmatpush1.msra.mxu0 0.0
    %4265 = vmatprep.mubr.f32.mxu0 0.0
    %4266 = vmatmul.mubr.f32.gmra.mrb[0].mxu0 %v4178
    %v4267 = vpop.f32.mrb[0].mxu0
    %v4268 = vadd.f32 %v4165, %v4267
    %v4269 = vpop.f32.mrb[0].mxu0
    %v4270 = vadd.f32 %v4169, %v4269
    %4271 = vmatprep.mubr.f32.mxu0 0.0
    %4272 = vmatmul.mubr.f32.gmra.mrb[0].mxu0 %v4181
    %v4273 = vpop.f32.mrb[0].mxu0
    %v4274 = vadd.f32 %v4165, %v4273
    %v4275 = vpop.f32.mrb[0].mxu0
    %v4276 = vadd.f32 %v4169, %v4275
    %4277 = vmatprep.mubr.f32.mxu0 0.0
    %4278 = vmatmul.mubr.f32.gmra.mrb[0].mxu0 %v4184
    %v4279 = vpop.f32.mrb[0].mxu0
    %v4280 = vadd.f32 %v4165, %v4279
    %v4281 = vpop.f32.mrb[0].mxu0
    %v4282 = vadd.f32 %v4169, %v4281
    %4283 = vmatprep.mubr.f32.mxu0 0.0
    %4284 = vmatmul.mubr.f32.gmra.mrb[0].mxu0 %v4187
    %v4285 = vpop.f32.mrb[0].mxu0
    %v4286 = vadd.f32 %v4165, %v4285
    %v4287 = vpop.f32.mrb[0].mxu0
    %v4288 = vadd.f32 %v4169, %v4287
    %4289 = vmatprep.mubr.f32.mxu0 0.0
    %4290 = vmatmul.mubr.f32.gmra.mrb[0].mxu0 %v4190
    %v4291 = vpop.f32.mrb[0].mxu0
    %v4292 = vadd.f32 %v4165, %v4291
    %v4293 = vpop.f32.mrb[0].mxu0
    %v4294 = vadd.f32 %v4169, %v4293
    %4295 = vmatprep.mubr.f32.mxu0 0.0
    %4296 = vmatmul.mubr.f32.gmra.mrb[0].mxu0 %v4193
    %v4297 = vpop.f32.mrb[0].mxu0
    %v4298 = vadd.f32 %v4165, %v4297
    %v4299 = vpop.f32.mrb[0].mxu0
    %v4300 = vadd.f32 %v4169, %v4299
    %4301 = vmatprep.mubr.f32.mxu0 0.0
    %4302 = vmatmul.mubr.f32.gmra.mrb[0].mxu0 %v4196
    %v4303 = vpop.f32.mrb[0].mxu0
    %v4304 = vadd.f32 %v4165, %v4303
    %v4305 = vpop.f32.mrb[0].mxu0
    %v4306 = vadd.f32 %v4169, %v4305
    %4307 = vmatprep.mubr.f32.mxu0 0.0
    %4308 = vmatmul.mubr.f32.gmra.mrb[0].mxu0 %v4199
    %v4309 = vpop.f32.mrb[0].mxu0
    %v4310 = vadd.f32 %v4165, %v4309
    %v4311 = vpop.f32.mrb[0].mxu0
    %v4312 = vadd.f32 %v4169, %v4311
    %4313 = vdwg.mxu0
    %4314 = vmatprep.subr.mxu0 0.0
    %4315 = vmatpush1.msra.mxu0 %v493
    %4316 = vmatprep.subr.mxu0 0.0
    %4317 = vmatpush1.msra.mxu0 %v496
    %4318 = vmatprep.subr.mxu0 0.0
    %4319 = vmatpush1.msra.mxu0 %v499
    %4320 = vmatprep.subr.mxu0 0.0
    %4321 = vmatpush1.msra.mxu0 %v502
    %4322 = vmatprep.subr.mxu0 0.0
    %4323 = vmatpush1.msra.mxu0 0.0
    %4324 = vmatprep.subr.mxu0 0.0
    %4325 = vmatpush1.msra.mxu0 0.0
    %4326 = vmatprep.subr.mxu0 0.0
    %4327 = vmatpush1.msra.mxu0 0.0
    %4328 = vmatprep.subr.mxu0 0.0
    %4329 = vmatpush1.msra.mxu0 0.0
    %4330 = vmatprep.subr.mxu0 0.0
    %4331 = vmatpush1.msra.mxu0 0.0
    %4332 = vmatprep.subr.mxu0 0.0
    %4333 = vmatpush1.msra.mxu0 0.0
    %4334 = vmatprep.subr.mxu0 0.0
    %4335 = vmatpush1.msra.mxu0 0.0
    %4336 = vmatprep.subr.mxu0 0.0
    %4337 = vmatpush1.msra.mxu0 0.0
    %4338 = vmatprep.subr.mxu0 0.0
    %4339 = vmatpush1.msra.mxu0 0.0
    %4340 = vmatprep.subr.mxu0 0.0
    %4341 = vmatpush1.msra.mxu0 0.0
    %4342 = vmatprep.subr.mxu0 0.0
    %4343 = vmatpush1.msra.mxu0 0.0
    %4344 = vmatprep.subr.mxu0 0.0
    %4345 = vmatpush1.msra.mxu0 0.0
    %4346 = vmatprep.subr.mxu0 0.0
    %4347 = vmatpush1.msra.mxu0 0.0
    %4348 = vmatprep.subr.mxu0 0.0
    %4349 = vmatpush1.msra.mxu0 0.0
    %4350 = vmatprep.subr.mxu0 0.0
    %4351 = vmatpush1.msra.mxu0 0.0
    %4352 = vmatprep.subr.mxu0 0.0
    %4353 = vmatpush1.msra.mxu0 0.0
    %4354 = vmatprep.subr.mxu0 0.0
    %4355 = vmatpush1.msra.mxu0 0.0
    %4356 = vmatprep.subr.mxu0 0.0
    %4357 = vmatpush1.msra.mxu0 0.0
    %4358 = vmatprep.subr.mxu0 0.0
    %4359 = vmatpush1.msra.mxu0 0.0
    %4360 = vmatprep.subr.mxu0 0.0
    %4361 = vmatpush1.msra.mxu0 0.0
    %4362 = vmatprep.subr.mxu0 0.0
    %4363 = vmatpush1.msra.mxu0 0.0
    %4364 = vmatprep.subr.mxu0 0.0
    %4365 = vmatpush1.msra.mxu0 0.0
    %4366 = vmatprep.subr.mxu0 0.0
    %4367 = vmatpush1.msra.mxu0 0.0
    %4368 = vmatprep.subr.mxu0 0.0
    %4369 = vmatpush1.msra.mxu0 0.0
    %4370 = vmatprep.subr.mxu0 0.0
    %4371 = vmatpush1.msra.mxu0 0.0
    %4372 = vmatprep.subr.mxu0 0.0
    %4373 = vmatpush1.msra.mxu0 0.0
    %4374 = vmatprep.subr.mxu0 0.0
    %4375 = vmatpush1.msra.mxu0 0.0
    %4376 = vmatprep.subr.mxu0 0.0
    %4377 = vmatpush1.msra.mxu0 0.0
    %4378 = vmatprep.mubr.f32.mxu0 0.0
    %4379 = vmatmul.mubr.f32.gmra.mrb[0].mxu0 %v4178
    %v4380 = vpop.f32.mrb[0].mxu0
    %v4381 = vadd.f32 %v4173, %v4380
    %v4382 = vpop.f32.mrb[0].mxu0
    %4383 = vmatprep.mubr.f32.mxu0 0.0
    %4384 = vmatmul.mubr.f32.gmra.mrb[0].mxu0 %v4181
    %v4385 = vpop.f32.mrb[0].mxu0
    %v4386 = vadd.f32 %v4173, %v4385
    %v4387 = vpop.f32.mrb[0].mxu0
    %4388 = vmatprep.mubr.f32.mxu0 0.0
    %4389 = vmatmul.mubr.f32.gmra.mrb[0].mxu0 %v4184
    %v4390 = vpop.f32.mrb[0].mxu0
    %v4391 = vadd.f32 %v4173, %v4390
    %v4392 = vpop.f32.mrb[0].mxu0
    %4393 = vmatprep.mubr.f32.mxu0 0.0
    %4394 = vmatmul.mubr.f32.gmra.mrb[0].mxu0 %v4187
    %v4395 = vpop.f32.mrb[0].mxu0
    %v4396 = vadd.f32 %v4173, %v4395
    %v4397 = vpop.f32.mrb[0].mxu0
    %4398 = vmatprep.mubr.f32.mxu0 0.0
    %4399 = vmatmul.mubr.f32.gmra.mrb[0].mxu0 %v4190
    %v4400 = vpop.f32.mrb[0].mxu0
    %v4401 = vadd.f32 %v4173, %v4400
    %v4402 = vpop.f32.mrb[0].mxu0
    %4403 = vmatprep.mubr.f32.mxu0 0.0
    %4404 = vmatmul.mubr.f32.gmra.mrb[0].mxu0 %v4193
    %v4405 = vpop.f32.mrb[0].mxu0
    %v4406 = vadd.f32 %v4173, %v4405
    %v4407 = vpop.f32.mrb[0].mxu0
    %4408 = vmatprep.mubr.f32.mxu0 0.0
    %4409 = vmatmul.mubr.f32.gmra.mrb[0].mxu0 %v4196
    %v4410 = vpop.f32.mrb[0].mxu0
    %v4411 = vadd.f32 %v4173, %v4410
    %v4412 = vpop.f32.mrb[0].mxu0
    %4413 = vmatprep.mubr.f32.mxu0 0.0
    %4414 = vmatmul.mubr.f32.gmra.mrb[0].mxu0 %v4199
    %v4415 = vpop.f32.mrb[0].mxu0
    %v4416 = vadd.f32 %v4173, %v4415
    %v4417 = vpop.f32.mrb[0].mxu0
    %4418 = vdwg.mxu0
    %v4419 = vmax.f32 %v4268, 0.0
    %v4420 = vmax.f32 %v4270, 0.0
    %v4421 = vmax.f32 %v4381, 0.0
    %v4422 = vmax.f32 %v4274, 0.0
    %v4423 = vmax.f32 %v4276, 0.0
    %v4424 = vmax.f32 %v4386, 0.0
    %v4425 = vmax.f32 %v4280, 0.0
    %v4426 = vmax.f32 %v4282, 0.0
    %v4427 = vmax.f32 %v4391, 0.0
    %v4428 = vmax.f32 %v4286, 0.0
    %v4429 = vmax.f32 %v4288, 0.0
    %v4430 = vmax.f32 %v4396, 0.0
    %v4431 = vmax.f32 %v4292, 0.0
    %v4432 = vmax.f32 %v4294, 0.0
    %v4433 = vmax.f32 %v4401, 0.0
    %v4434 = vmax.f32 %v4298, 0.0
    %v4435 = vmax.f32 %v4300, 0.0
    %v4436 = vmax.f32 %v4406, 0.0
    %v4437 = vmax.f32 %v4304, 0.0
    %v4438 = vmax.f32 %v4306, 0.0
    %v4439 = vmax.f32 %v4411, 0.0
    %v4440 = vmax.f32 %v4310, 0.0
    %v4441 = vmax.f32 %v4312, 0.0
    %v4442 = vmax.f32 %v4416, 0.0
    %v4444 = vlaneseq
    %v4445 = vshrl.u32 %v4444, 7
    %v4446 = vsub.s32 0, %v4445
    %v4447 = vrot.slane %v544, %v4446
    %v4450 = vsel %vm1466, %v4421, 0
    %v4453 = vsel %vm1466, %v4424, 0
    %v4456 = vsel %vm1466, %v4427, 0
    %v4459 = vsel %vm1466, %v4430, 0
    %v4462 = vsel %vm1466, %v4433, 0
    %v4465 = vsel %vm1466, %v4436, 0
    %v4468 = vsel %vm1466, %v4439, 0
    %v4471 = vsel %vm1466, %v4442, 0
    %4473 = vmatprep.subr.mxu0 0.0
    %4474 = vmatpush1.msra.mxu0 %v504
    %4475 = vmatprep.subr.mxu0 0.0
    %4476 = vmatpush1.msra.mxu0 %v505
    %4477 = vmatprep.subr.mxu0 0.0
    %4478 = vmatpush1.msra.mxu0 %v506
    %4479 = vmatprep.subr.mxu0 0.0
    %4480 = vmatpush1.msra.mxu0 %v507
    %4481 = vmatprep.subr.mxu0 0.0
    %4482 = vmatpush1.msra.mxu0 %v508
    %4483 = vmatprep.subr.mxu0 0.0
    %4484 = vmatpush1.msra.mxu0 %v509
    %4485 = vmatprep.subr.mxu0 0.0
    %4486 = vmatpush1.msra.mxu0 %v510
    %4487 = vmatprep.subr.mxu0 0.0
    %4488 = vmatpush1.msra.mxu0 %v511
    %4489 = vmatprep.subr.mxu0 0.0
    %4490 = vmatpush1.msra.mxu0 %v512
    %4491 = vmatprep.subr.mxu0 0.0
    %4492 = vmatpush1.msra.mxu0 %v513
    %4493 = vmatprep.subr.mxu0 0.0
    %4494 = vmatpush1.msra.mxu0 %v514
    %4495 = vmatprep.subr.mxu0 0.0
    %4496 = vmatpush1.msra.mxu0 %v515
    %4497 = vmatprep.subr.mxu0 0.0
    %4498 = vmatpush1.msra.mxu0 %v516
    %4499 = vmatprep.subr.mxu0 0.0
    %4500 = vmatpush1.msra.mxu0 %v517
    %4501 = vmatprep.subr.mxu0 0.0
    %4502 = vmatpush1.msra.mxu0 %v518
    %4503 = vmatprep.subr.mxu0 0.0
    %4504 = vmatpush1.msra.mxu0 %v519
    %4505 = vmatprep.subr.mxu0 0.0
    %4506 = vmatpush1.msra.mxu0 %v520
    %4507 = vmatprep.subr.mxu0 0.0
    %4508 = vmatpush1.msra.mxu0 %v521
    %4509 = vmatprep.subr.mxu0 0.0
    %4510 = vmatpush1.msra.mxu0 %v522
    %4511 = vmatprep.subr.mxu0 0.0
    %4512 = vmatpush1.msra.mxu0 %v523
    %4513 = vmatprep.subr.mxu0 0.0
    %4514 = vmatpush1.msra.mxu0 %v524
    %4515 = vmatprep.subr.mxu0 0.0
    %4516 = vmatpush1.msra.mxu0 %v525
    %4517 = vmatprep.subr.mxu0 0.0
    %4518 = vmatpush1.msra.mxu0 %v526
    %4519 = vmatprep.subr.mxu0 0.0
    %4520 = vmatpush1.msra.mxu0 %v527
    %4521 = vmatprep.subr.mxu0 0.0
    %4522 = vmatpush1.msra.mxu0 %v528
    %4523 = vmatprep.subr.mxu0 0.0
    %4524 = vmatpush1.msra.mxu0 %v529
    %4525 = vmatprep.subr.mxu0 0.0
    %4526 = vmatpush1.msra.mxu0 %v530
    %4527 = vmatprep.subr.mxu0 0.0
    %4528 = vmatpush1.msra.mxu0 %v531
    %4529 = vmatprep.subr.mxu0 0.0
    %4530 = vmatpush1.msra.mxu0 %v532
    %4531 = vmatprep.subr.mxu0 0.0
    %4532 = vmatpush1.msra.mxu0 %v533
    %4533 = vmatprep.subr.mxu0 0.0
    %4534 = vmatpush1.msra.mxu0 %v534
    %4535 = vmatprep.subr.mxu0 0.0
    %4536 = vmatpush1.msra.mxu0 %v535
    %4537 = vmatprep.mubr.f32.mxu0 %v4420
    %4538 = vmatmul.mubr.f32.gmra.mrb[0].mxu0 %v4419
    %v4539 = vpop.f32.mrb[0].mxu0
    %v4540 = vadd.f32 %v4447, %v4539
    %v4541 = vpop.f32.mrb[0].mxu0
    %4542 = vmatprep.mubr.f32.mxu0 %v4423
    %4543 = vmatmul.mubr.f32.gmra.mrb[0].mxu0 %v4422
    %v4544 = vpop.f32.mrb[0].mxu0
    %v4545 = vadd.f32 %v4447, %v4544
    %v4546 = vpop.f32.mrb[0].mxu0
    %4547 = vmatprep.mubr.f32.mxu0 %v4426
    %4548 = vmatmul.mubr.f32.gmra.mrb[0].mxu0 %v4425
    %v4549 = vpop.f32.mrb[0].mxu0
    %v4550 = vadd.f32 %v4447, %v4549
    %v4551 = vpop.f32.mrb[0].mxu0
    %4552 = vmatprep.mubr.f32.mxu0 %v4429
    %4553 = vmatmul.mubr.f32.gmra.mrb[0].mxu0 %v4428
    %v4554 = vpop.f32.mrb[0].mxu0
    %v4555 = vadd.f32 %v4447, %v4554
    %v4556 = vpop.f32.mrb[0].mxu0
    %4557 = vmatprep.mubr.f32.mxu0 %v4432
    %4558 = vmatmul.mubr.f32.gmra.mrb[0].mxu0 %v4431
    %v4559 = vpop.f32.mrb[0].mxu0
    %v4560 = vadd.f32 %v4447, %v4559
    %v4561 = vpop.f32.mrb[0].mxu0
    %4562 = vmatprep.mubr.f32.mxu0 %v4435
    %4563 = vmatmul.mubr.f32.gmra.mrb[0].mxu0 %v4434
    %v4564 = vpop.f32.mrb[0].mxu0
    %v4565 = vadd.f32 %v4447, %v4564
    %v4566 = vpop.f32.mrb[0].mxu0
    %4567 = vmatprep.mubr.f32.mxu0 %v4438
    %4568 = vmatmul.mubr.f32.gmra.mrb[0].mxu0 %v4437
    %v4569 = vpop.f32.mrb[0].mxu0
    %v4570 = vadd.f32 %v4447, %v4569
    %v4571 = vpop.f32.mrb[0].mxu0
    %4572 = vmatprep.mubr.f32.mxu0 %v4441
    %4573 = vmatmul.mubr.f32.gmra.mrb[0].mxu0 %v4440
    %v4574 = vpop.f32.mrb[0].mxu0
    %v4575 = vadd.f32 %v4447, %v4574
    %v4576 = vpop.f32.mrb[0].mxu0
    %4577 = vdwg.mxu0
    %4578 = vmatprep.subr.mxu0 0.0
    %4579 = vmatpush1.msra.mxu0 %v536
    %4580 = vmatprep.subr.mxu0 0.0
    %4581 = vmatpush1.msra.mxu0 %v537
    %4582 = vmatprep.subr.mxu0 0.0
    %4583 = vmatpush1.msra.mxu0 %v538
    %4584 = vmatprep.subr.mxu0 0.0
    %4585 = vmatpush1.msra.mxu0 %v539
    %4586 = vmatprep.subr.mxu0 0.0
    %4587 = vmatpush1.msra.mxu0 %v540
    %4588 = vmatprep.subr.mxu0 0.0
    %4589 = vmatpush1.msra.mxu0 %v541
    %4590 = vmatprep.subr.mxu0 0.0
    %4591 = vmatpush1.msra.mxu0 %v542
    %4592 = vmatprep.subr.mxu0 0.0
    %4593 = vmatpush1.msra.mxu0 %v543
    %4594 = vmatprep.subr.mxu0 0.0
    %4595 = vmatpush1.msra.mxu0 0.0
    %4596 = vmatprep.subr.mxu0 0.0
    %4597 = vmatpush1.msra.mxu0 0.0
    %4598 = vmatprep.subr.mxu0 0.0
    %4599 = vmatpush1.msra.mxu0 0.0
    %4600 = vmatprep.subr.mxu0 0.0
    %4601 = vmatpush1.msra.mxu0 0.0
    %4602 = vmatprep.subr.mxu0 0.0
    %4603 = vmatpush1.msra.mxu0 0.0
    %4604 = vmatprep.subr.mxu0 0.0
    %4605 = vmatpush1.msra.mxu0 0.0
    %4606 = vmatprep.subr.mxu0 0.0
    %4607 = vmatpush1.msra.mxu0 0.0
    %4608 = vmatprep.subr.mxu0 0.0
    %4609 = vmatpush1.msra.mxu0 0.0
    %4610 = vmatprep.subr.mxu0 0.0
    %4611 = vmatpush1.msra.mxu0 0.0
    %4612 = vmatprep.subr.mxu0 0.0
    %4613 = vmatpush1.msra.mxu0 0.0
    %4614 = vmatprep.subr.mxu0 0.0
    %4615 = vmatpush1.msra.mxu0 0.0
    %4616 = vmatprep.subr.mxu0 0.0
    %4617 = vmatpush1.msra.mxu0 0.0
    %4618 = vmatprep.subr.mxu0 0.0
    %4619 = vmatpush1.msra.mxu0 0.0
    %4620 = vmatprep.subr.mxu0 0.0
    %4621 = vmatpush1.msra.mxu0 0.0
    %4622 = vmatprep.subr.mxu0 0.0
    %4623 = vmatpush1.msra.mxu0 0.0
    %4624 = vmatprep.subr.mxu0 0.0
    %4625 = vmatpush1.msra.mxu0 0.0
    %4626 = vmatprep.subr.mxu0 0.0
    %4627 = vmatpush1.msra.mxu0 0.0
    %4628 = vmatprep.subr.mxu0 0.0
    %4629 = vmatpush1.msra.mxu0 0.0
    %4630 = vmatprep.subr.mxu0 0.0
    %4631 = vmatpush1.msra.mxu0 0.0
    %4632 = vmatprep.subr.mxu0 0.0
    %4633 = vmatpush1.msra.mxu0 0.0
    %4634 = vmatprep.subr.mxu0 0.0
    %4635 = vmatpush1.msra.mxu0 0.0
    %4636 = vmatprep.subr.mxu0 0.0
    %4637 = vmatpush1.msra.mxu0 0.0
    %4638 = vmatprep.subr.mxu0 0.0
    %4639 = vmatpush1.msra.mxu0 0.0
    %4640 = vmatprep.subr.mxu0 0.0
    %4641 = vmatpush1.msra.mxu0 0.0
    %4642 = vmatprep.mubr.f32.mxu0 0.0
    %4643 = vmatmul.mubr.f32.gmra.mrb[0].mxu0 %v4450
    %v4644 = vpop.f32.mrb[0].mxu0
    %v4645 = vadd.f32 %v4540, %v4644
    %v4646 = vpop.f32.mrb[0].mxu0
    %4647 = vmatprep.mubr.f32.mxu0 0.0
    %4648 = vmatmul.mubr.f32.gmra.mrb[0].mxu0 %v4453
    %v4649 = vpop.f32.mrb[0].mxu0
    %v4650 = vadd.f32 %v4545, %v4649
    %v4651 = vpop.f32.mrb[0].mxu0
    %4652 = vmatprep.mubr.f32.mxu0 0.0
    %4653 = vmatmul.mubr.f32.gmra.mrb[0].mxu0 %v4456
    %v4654 = vpop.f32.mrb[0].mxu0
    %v4655 = vadd.f32 %v4550, %v4654
    %v4656 = vpop.f32.mrb[0].mxu0
    %4657 = vmatprep.mubr.f32.mxu0 0.0
    %4658 = vmatmul.mubr.f32.gmra.mrb[0].mxu0 %v4459
    %v4659 = vpop.f32.mrb[0].mxu0
    %v4660 = vadd.f32 %v4555, %v4659
    %v4661 = vpop.f32.mrb[0].mxu0
    %4662 = vmatprep.mubr.f32.mxu0 0.0
    %4663 = vmatmul.mubr.f32.gmra.mrb[0].mxu0 %v4462
    %v4664 = vpop.f32.mrb[0].mxu0
    %v4665 = vadd.f32 %v4560, %v4664
    %v4666 = vpop.f32.mrb[0].mxu0
    %4667 = vmatprep.mubr.f32.mxu0 0.0
    %4668 = vmatmul.mubr.f32.gmra.mrb[0].mxu0 %v4465
    %v4669 = vpop.f32.mrb[0].mxu0
    %v4670 = vadd.f32 %v4565, %v4669
    %v4671 = vpop.f32.mrb[0].mxu0
    %4672 = vmatprep.mubr.f32.mxu0 0.0
    %4673 = vmatmul.mubr.f32.gmra.mrb[0].mxu0 %v4468
    %v4674 = vpop.f32.mrb[0].mxu0
    %v4675 = vadd.f32 %v4570, %v4674
    %v4676 = vpop.f32.mrb[0].mxu0
    %4677 = vmatprep.mubr.f32.mxu0 0.0
    %4678 = vmatmul.mubr.f32.gmra.mrb[0].mxu0 %v4471
    %v4679 = vpop.f32.mrb[0].mxu0
    %v4680 = vadd.f32 %v4575, %v4679
    %v4681 = vpop.f32.mrb[0].mxu0
    %4682 = vdwg.mxu0
    %v4683 = vmax.f32 %v4645, 0.0
    %v4684 = vmax.f32 %v4650, 0.0
    %v4685 = vmax.f32 %v4655, 0.0
    %v4686 = vmax.f32 %v4660, 0.0
    %v4687 = vmax.f32 %v4665, 0.0
    %v4688 = vmax.f32 %v4670, 0.0
    %v4689 = vmax.f32 %v4675, 0.0
    %v4690 = vmax.f32 %v4680, 0.0
    %v4692 = vlaneseq
    %v4693 = vshrl.u32 %v4692, 7
    %v4694 = vsub.s32 0, %v4693
    %v4695 = vrot.slane %v549, %v4694
    %v4698 = vsel %vm768, %v4683, 0
    %v4701 = vsel %vm768, %v4684, 0
    %v4704 = vsel %vm768, %v4685, 0
    %v4707 = vsel %vm768, %v4686, 0
    %v4710 = vsel %vm768, %v4687, 0
    %v4713 = vsel %vm768, %v4688, 0
    %v4716 = vsel %vm768, %v4689, 0
    %v4719 = vsel %vm768, %v4690, 0
    %4721 = vmatprep.subr.mxu0 0.0
    %4722 = vmatpush1.msra.mxu0 %v545
    %4723 = vmatprep.subr.mxu0 0.0
    %4724 = vmatpush1.msra.mxu0 %v546
    %4725 = vmatprep.subr.mxu0 0.0
    %4726 = vmatpush1.msra.mxu0 %v547
    %4727 = vmatprep.subr.mxu0 0.0
    %4728 = vmatpush1.msra.mxu0 %v548
    %4729 = vmatprep.subr.mxu0 0.0
    %4730 = vmatpush1.msra.mxu0 0.0
    %4731 = vmatprep.subr.mxu0 0.0
    %4732 = vmatpush1.msra.mxu0 0.0
    %4733 = vmatprep.subr.mxu0 0.0
    %4734 = vmatpush1.msra.mxu0 0.0
    %4735 = vmatprep.subr.mxu0 0.0
    %4736 = vmatpush1.msra.mxu0 0.0
    %4737 = vmatprep.subr.mxu0 0.0
    %4738 = vmatpush1.msra.mxu0 0.0
    %4739 = vmatprep.subr.mxu0 0.0
    %4740 = vmatpush1.msra.mxu0 0.0
    %4741 = vmatprep.subr.mxu0 0.0
    %4742 = vmatpush1.msra.mxu0 0.0
    %4743 = vmatprep.subr.mxu0 0.0
    %4744 = vmatpush1.msra.mxu0 0.0
    %4745 = vmatprep.subr.mxu0 0.0
    %4746 = vmatpush1.msra.mxu0 0.0
    %4747 = vmatprep.subr.mxu0 0.0
    %4748 = vmatpush1.msra.mxu0 0.0
    %4749 = vmatprep.subr.mxu0 0.0
    %4750 = vmatpush1.msra.mxu0 0.0
    %4751 = vmatprep.subr.mxu0 0.0
    %4752 = vmatpush1.msra.mxu0 0.0
    %4753 = vmatprep.subr.mxu0 0.0
    %4754 = vmatpush1.msra.mxu0 0.0
    %4755 = vmatprep.subr.mxu0 0.0
    %4756 = vmatpush1.msra.mxu0 0.0
    %4757 = vmatprep.subr.mxu0 0.0
    %4758 = vmatpush1.msra.mxu0 0.0
    %4759 = vmatprep.subr.mxu0 0.0
    %4760 = vmatpush1.msra.mxu0 0.0
    %4761 = vmatprep.subr.mxu0 0.0
    %4762 = vmatpush1.msra.mxu0 0.0
    %4763 = vmatprep.subr.mxu0 0.0
    %4764 = vmatpush1.msra.mxu0 0.0
    %4765 = vmatprep.subr.mxu0 0.0
    %4766 = vmatpush1.msra.mxu0 0.0
    %4767 = vmatprep.subr.mxu0 0.0
    %4768 = vmatpush1.msra.mxu0 0.0
    %4769 = vmatprep.subr.mxu0 0.0
    %4770 = vmatpush1.msra.mxu0 0.0
    %4771 = vmatprep.subr.mxu0 0.0
    %4772 = vmatpush1.msra.mxu0 0.0
    %4773 = vmatprep.subr.mxu0 0.0
    %4774 = vmatpush1.msra.mxu0 0.0
    %4775 = vmatprep.subr.mxu0 0.0
    %4776 = vmatpush1.msra.mxu0 0.0
    %4777 = vmatprep.subr.mxu0 0.0
    %4778 = vmatpush1.msra.mxu0 0.0
    %4779 = vmatprep.subr.mxu0 0.0
    %4780 = vmatpush1.msra.mxu0 0.0
    %4781 = vmatprep.subr.mxu0 0.0
    %4782 = vmatpush1.msra.mxu0 0.0
    %4783 = vmatprep.subr.mxu0 0.0
    %4784 = vmatpush1.msra.mxu0 0.0
    %4785 = vmatprep.mubr.f32.mxu0 0.0
    %4786 = vmatmul.mubr.f32.gmra.mrb[0].mxu0 %v4698
    %v4787 = vpop.f32.mrb[0].mxu0
    %v4788 = vadd.f32 %v4695, %v4787
    %v4789 = vpop.f32.mrb[0].mxu0
    %4790 = vmatprep.mubr.f32.mxu0 0.0
    %4791 = vmatmul.mubr.f32.gmra.mrb[0].mxu0 %v4701
    %v4792 = vpop.f32.mrb[0].mxu0
    %v4793 = vadd.f32 %v4695, %v4792
    %v4794 = vpop.f32.mrb[0].mxu0
    %4795 = vmatprep.mubr.f32.mxu0 0.0
    %4796 = vmatmul.mubr.f32.gmra.mrb[0].mxu0 %v4704
    %v4797 = vpop.f32.mrb[0].mxu0
    %v4798 = vadd.f32 %v4695, %v4797
    %v4799 = vpop.f32.mrb[0].mxu0
    %4800 = vmatprep.mubr.f32.mxu0 0.0
    %4801 = vmatmul.mubr.f32.gmra.mrb[0].mxu0 %v4707
    %v4802 = vpop.f32.mrb[0].mxu0
    %v4803 = vadd.f32 %v4695, %v4802
    %v4804 = vpop.f32.mrb[0].mxu0
    %4805 = vmatprep.mubr.f32.mxu0 0.0
    %4806 = vmatmul.mubr.f32.gmra.mrb[0].mxu0 %v4710
    %v4807 = vpop.f32.mrb[0].mxu0
    %v4808 = vadd.f32 %v4695, %v4807
    %v4809 = vpop.f32.mrb[0].mxu0
    %4810 = vmatprep.mubr.f32.mxu0 0.0
    %4811 = vmatmul.mubr.f32.gmra.mrb[0].mxu0 %v4713
    %v4812 = vpop.f32.mrb[0].mxu0
    %v4813 = vadd.f32 %v4695, %v4812
    %v4814 = vpop.f32.mrb[0].mxu0
    %4815 = vmatprep.mubr.f32.mxu0 0.0
    %4816 = vmatmul.mubr.f32.gmra.mrb[0].mxu0 %v4716
    %v4817 = vpop.f32.mrb[0].mxu0
    %v4818 = vadd.f32 %v4695, %v4817
    %v4819 = vpop.f32.mrb[0].mxu0
    %4820 = vmatprep.mubr.f32.mxu0 0.0
    %4821 = vmatmul.mubr.f32.gmra.mrb[0].mxu0 %v4719
    %v4822 = vpop.f32.mrb[0].mxu0
    %v4823 = vadd.f32 %v4695, %v4822
    %v4824 = vpop.f32.mrb[0].mxu0
    %4825 = vdwg.mxu0
    %v4827 = vsel %vm1466, %v291, 0
    %v4830 = vsel %vm1466, %v292, 0
    %v4833 = vsel %vm1466, %v293, 0
    %v4836 = vsel %vm1466, %v294, 0
    %4838 = vmatprep.subr.mxu0 0.0
    %4839 = vmatpush1.msra.mxu0 %v4788
    %4840 = vmatprep.subr.mxu0 0.0
    %4841 = vmatpush1.msra.mxu0 %v4793
    %4842 = vmatprep.subr.mxu0 0.0
    %4843 = vmatpush1.msra.mxu0 %v4798
    %4844 = vmatprep.subr.mxu0 0.0
    %4845 = vmatpush1.msra.mxu0 %v4803
    %4846 = vmatprep.subr.mxu0 0.0
    %4847 = vmatpush1.msra.mxu0 %v4808
    %4848 = vmatprep.subr.mxu0 0.0
    %4849 = vmatpush1.msra.mxu0 %v4813
    %4850 = vmatprep.subr.mxu0 0.0
    %4851 = vmatpush1.msra.mxu0 %v4818
    %4852 = vmatprep.subr.mxu0 0.0
    %4853 = vmatpush1.msra.mxu0 %v4823
    %4854 = vmatprep.subr.mxu0 0.0
    %4855 = vmatpush1.msra.mxu0 0.0
    %4856 = vmatprep.subr.mxu0 0.0
    %4857 = vmatpush1.msra.mxu0 0.0
    %4858 = vmatprep.subr.mxu0 0.0
    %4859 = vmatpush1.msra.mxu0 0.0
    %4860 = vmatprep.subr.mxu0 0.0
    %4861 = vmatpush1.msra.mxu0 0.0
    %4862 = vmatprep.subr.mxu0 0.0
    %4863 = vmatpush1.msra.mxu0 0.0
    %4864 = vmatprep.subr.mxu0 0.0
    %4865 = vmatpush1.msra.mxu0 0.0
    %4866 = vmatprep.subr.mxu0 0.0
    %4867 = vmatpush1.msra.mxu0 0.0
    %4868 = vmatprep.subr.mxu0 0.0
    %4869 = vmatpush1.msra.mxu0 0.0
    %4870 = vmatprep.subr.mxu0 0.0
    %4871 = vmatpush1.msra.mxu0 0.0
    %4872 = vmatprep.subr.mxu0 0.0
    %4873 = vmatpush1.msra.mxu0 0.0
    %4874 = vmatprep.subr.mxu0 0.0
    %4875 = vmatpush1.msra.mxu0 0.0
    %4876 = vmatprep.subr.mxu0 0.0
    %4877 = vmatpush1.msra.mxu0 0.0
    %4878 = vmatprep.subr.mxu0 0.0
    %4879 = vmatpush1.msra.mxu0 0.0
    %4880 = vmatprep.subr.mxu0 0.0
    %4881 = vmatpush1.msra.mxu0 0.0
    %4882 = vmatprep.subr.mxu0 0.0
    %4883 = vmatpush1.msra.mxu0 0.0
    %4884 = vmatprep.subr.mxu0 0.0
    %4885 = vmatpush1.msra.mxu0 0.0
    %4886 = vmatprep.subr.mxu0 0.0
    %4887 = vmatpush1.msra.mxu0 0.0
    %4888 = vmatprep.subr.mxu0 0.0
    %4889 = vmatpush1.msra.mxu0 0.0
    %4890 = vmatprep.subr.mxu0 0.0
    %4891 = vmatpush1.msra.mxu0 0.0
    %4892 = vmatprep.subr.mxu0 0.0
    %4893 = vmatpush1.msra.mxu0 0.0
    %4894 = vmatprep.subr.mxu0 0.0
    %4895 = vmatpush1.msra.mxu0 0.0
    %4896 = vmatprep.subr.mxu0 0.0
    %4897 = vmatpush1.msra.mxu0 0.0
    %4898 = vmatprep.subr.mxu0 0.0
    %4899 = vmatpush1.msra.mxu0 0.0
    %4900 = vmatprep.subr.mxu0 0.0
    %4901 = vmatpush1.msra.mxu0 0.0
    %4902 = vmatprep.mubr.f32.mxu0 0.0
    %4903 = vmatmul.mubr.f32.gmra.mrb[0].mxu0 %v4827
    %v4904 = vpop.f32.mrb[0].mxu0
    %v4905 = vadd.f32 0.0, %v4904
    %v4906 = vpop.f32.mrb[0].mxu0
    %4907 = vmatprep.mubr.f32.mxu0 0.0
    %4908 = vmatmul.mubr.f32.gmra.mrb[0].mxu0 %v4830
    %v4909 = vpop.f32.mrb[0].mxu0
    %v4910 = vadd.f32 0.0, %v4909
    %v4911 = vpop.f32.mrb[0].mxu0
    %4912 = vmatprep.mubr.f32.mxu0 0.0
    %4913 = vmatmul.mubr.f32.gmra.mrb[0].mxu0 %v4833
    %v4914 = vpop.f32.mrb[0].mxu0
    %v4915 = vadd.f32 0.0, %v4914
    %v4916 = vpop.f32.mrb[0].mxu0
    %4917 = vmatprep.mubr.f32.mxu0 0.0
    %4918 = vmatmul.mubr.f32.gmra.mrb[0].mxu0 %v4836
    %v4919 = vpop.f32.mrb[0].mxu0
    %v4920 = vadd.f32 0.0, %v4919
    %v4921 = vpop.f32.mrb[0].mxu0
    %4922 = vdwg.mxu0
    %v4924 = vlaneseq
    %v4925 = vshrl.u32 %v4924, 7
    %v4926 = vsub.s32 0, %v4925
    %v4927 = vrot.slane %v626, %v4926
    %v4928 = vlaneseq
    %v4929 = vshrl.u32 %v4928, 7
    %v4930 = vsub.s32 1, %v4929
    %v4931 = vrot.slane %v626, %v4930
    %v4932 = vlaneseq
    %v4933 = vshrl.u32 %v4932, 7
    %v4934 = vsub.s32 2, %v4933
    %v4935 = vrot.slane %v626, %v4934
    %v4940 = vsel %vm768, %v4905, 0
    %v4943 = vsel %vm768, %v4910, 0
    %v4946 = vsel %vm768, %v4915, 0
    %v4949 = vsel %vm768, %v4920, 0
    %4951 = vmatprep.subr.mxu0 %v615
    %4952 = vmatpush1.msra.mxu0 %v614
    %4953 = vmatprep.subr.mxu0 %v618
    %4954 = vmatpush1.msra.mxu0 %v617
    %4955 = vmatprep.subr.mxu0 %v621
    %4956 = vmatpush1.msra.mxu0 %v620
    %4957 = vmatprep.subr.mxu0 %v624
    %4958 = vmatpush1.msra.mxu0 %v623
    %4959 = vmatprep.subr.mxu0 0.0
    %4960 = vmatpush1.msra.mxu0 0.0
    %4961 = vmatprep.subr.mxu0 0.0
    %4962 = vmatpush1.msra.mxu0 0.0
    %4963 = vmatprep.subr.mxu0 0.0
    %4964 = vmatpush1.msra.mxu0 0.0
    %4965 = vmatprep.subr.mxu0 0.0
    %4966 = vmatpush1.msra.mxu0 0.0
    %4967 = vmatprep.subr.mxu0 0.0
    %4968 = vmatpush1.msra.mxu0 0.0
    %4969 = vmatprep.subr.mxu0 0.0
    %4970 = vmatpush1.msra.mxu0 0.0
    %4971 = vmatprep.subr.mxu0 0.0
    %4972 = vmatpush1.msra.mxu0 0.0
    %4973 = vmatprep.subr.mxu0 0.0
    %4974 = vmatpush1.msra.mxu0 0.0
    %4975 = vmatprep.subr.mxu0 0.0
    %4976 = vmatpush1.msra.mxu0 0.0
    %4977 = vmatprep.subr.mxu0 0.0
    %4978 = vmatpush1.msra.mxu0 0.0
    %4979 = vmatprep.subr.mxu0 0.0
    %4980 = vmatpush1.msra.mxu0 0.0
    %4981 = vmatprep.subr.mxu0 0.0
    %4982 = vmatpush1.msra.mxu0 0.0
    %4983 = vmatprep.subr.mxu0 0.0
    %4984 = vmatpush1.msra.mxu0 0.0
    %4985 = vmatprep.subr.mxu0 0.0
    %4986 = vmatpush1.msra.mxu0 0.0
    %4987 = vmatprep.subr.mxu0 0.0
    %4988 = vmatpush1.msra.mxu0 0.0
    %4989 = vmatprep.subr.mxu0 0.0
    %4990 = vmatpush1.msra.mxu0 0.0
    %4991 = vmatprep.subr.mxu0 0.0
    %4992 = vmatpush1.msra.mxu0 0.0
    %4993 = vmatprep.subr.mxu0 0.0
    %4994 = vmatpush1.msra.mxu0 0.0
    %4995 = vmatprep.subr.mxu0 0.0
    %4996 = vmatpush1.msra.mxu0 0.0
    %4997 = vmatprep.subr.mxu0 0.0
    %4998 = vmatpush1.msra.mxu0 0.0
    %4999 = vmatprep.subr.mxu0 0.0
    %5000 = vmatpush1.msra.mxu0 0.0
    %5001 = vmatprep.subr.mxu0 0.0
    %5002 = vmatpush1.msra.mxu0 0.0
    %5003 = vmatprep.subr.mxu0 0.0
    %5004 = vmatpush1.msra.mxu0 0.0
    %5005 = vmatprep.subr.mxu0 0.0
    %5006 = vmatpush1.msra.mxu0 0.0
    %5007 = vmatprep.subr.mxu0 0.0
    %5008 = vmatpush1.msra.mxu0 0.0
    %5009 = vmatprep.subr.mxu0 0.0
    %5010 = vmatpush1.msra.mxu0 0.0
    %5011 = vmatprep.subr.mxu0 0.0
    %5012 = vmatpush1.msra.mxu0 0.0
    %5013 = vmatprep.subr.mxu0 0.0
    %5014 = vmatpush1.msra.mxu0 0.0
    %5015 = vmatprep.mubr.f32.mxu0 0.0
    %5016 = vmatmul.mubr.f32.gmra.mrb[0].mxu0 %v4940
    %v5017 = vpop.f32.mrb[0].mxu0
    %v5018 = vadd.f32 %v4927, %v5017
    %v5019 = vpop.f32.mrb[0].mxu0
    %v5020 = vadd.f32 %v4931, %v5019
    %5021 = vmatprep.mubr.f32.mxu0 0.0
    %5022 = vmatmul.mubr.f32.gmra.mrb[0].mxu0 %v4943
    %v5023 = vpop.f32.mrb[0].mxu0
    %v5024 = vadd.f32 %v4927, %v5023
    %v5025 = vpop.f32.mrb[0].mxu0
    %v5026 = vadd.f32 %v4931, %v5025
    %5027 = vmatprep.mubr.f32.mxu0 0.0
    %5028 = vmatmul.mubr.f32.gmra.mrb[0].mxu0 %v4946
    %v5029 = vpop.f32.mrb[0].mxu0
    %v5030 = vadd.f32 %v4927, %v5029
    %v5031 = vpop.f32.mrb[0].mxu0
    %v5032 = vadd.f32 %v4931, %v5031
    %5033 = vmatprep.mubr.f32.mxu0 0.0
    %5034 = vmatmul.mubr.f32.gmra.mrb[0].mxu0 %v4949
    %v5035 = vpop.f32.mrb[0].mxu0
    %v5036 = vadd.f32 %v4927, %v5035
    %v5037 = vpop.f32.mrb[0].mxu0
    %v5038 = vadd.f32 %v4931, %v5037
    %5039 = vdwg.mxu0
    %5040 = vmatprep.subr.mxu0 0.0
    %5041 = vmatpush1.msra.mxu0 %v616
    %5042 = vmatprep.subr.mxu0 0.0
    %5043 = vmatpush1.msra.mxu0 %v619
    %5044 = vmatprep.subr.mxu0 0.0
    %5045 = vmatpush1.msra.mxu0 %v622
    %5046 = vmatprep.subr.mxu0 0.0
    %5047 = vmatpush1.msra.mxu0 %v625
    %5048 = vmatprep.subr.mxu0 0.0
    %5049 = vmatpush1.msra.mxu0 0.0
    %5050 = vmatprep.subr.mxu0 0.0
    %5051 = vmatpush1.msra.mxu0 0.0
    %5052 = vmatprep.subr.mxu0 0.0
    %5053 = vmatpush1.msra.mxu0 0.0
    %5054 = vmatprep.subr.mxu0 0.0
    %5055 = vmatpush1.msra.mxu0 0.0
    %5056 = vmatprep.subr.mxu0 0.0
    %5057 = vmatpush1.msra.mxu0 0.0
    %5058 = vmatprep.subr.mxu0 0.0
    %5059 = vmatpush1.msra.mxu0 0.0
    %5060 = vmatprep.subr.mxu0 0.0
    %5061 = vmatpush1.msra.mxu0 0.0
    %5062 = vmatprep.subr.mxu0 0.0
    %5063 = vmatpush1.msra.mxu0 0.0
    %5064 = vmatprep.subr.mxu0 0.0
    %5065 = vmatpush1.msra.mxu0 0.0
    %5066 = vmatprep.subr.mxu0 0.0
    %5067 = vmatpush1.msra.mxu0 0.0
    %5068 = vmatprep.subr.mxu0 0.0
    %5069 = vmatpush1.msra.mxu0 0.0
    %5070 = vmatprep.subr.mxu0 0.0
    %5071 = vmatpush1.msra.mxu0 0.0
    %5072 = vmatprep.subr.mxu0 0.0
    %5073 = vmatpush1.msra.mxu0 0.0
    %5074 = vmatprep.subr.mxu0 0.0
    %5075 = vmatpush1.msra.mxu0 0.0
    %5076 = vmatprep.subr.mxu0 0.0
    %5077 = vmatpush1.msra.mxu0 0.0
    %5078 = vmatprep.subr.mxu0 0.0
    %5079 = vmatpush1.msra.mxu0 0.0
    %5080 = vmatprep.subr.mxu0 0.0
    %5081 = vmatpush1.msra.mxu0 0.0
    %5082 = vmatprep.subr.mxu0 0.0
    %5083 = vmatpush1.msra.mxu0 0.0
    %5084 = vmatprep.subr.mxu0 0.0
    %5085 = vmatpush1.msra.mxu0 0.0
    %5086 = vmatprep.subr.mxu0 0.0
    %5087 = vmatpush1.msra.mxu0 0.0
    %5088 = vmatprep.subr.mxu0 0.0
    %5089 = vmatpush1.msra.mxu0 0.0
    %5090 = vmatprep.subr.mxu0 0.0
    %5091 = vmatpush1.msra.mxu0 0.0
    %5092 = vmatprep.subr.mxu0 0.0
    %5093 = vmatpush1.msra.mxu0 0.0
    %5094 = vmatprep.subr.mxu0 0.0
    %5095 = vmatpush1.msra.mxu0 0.0
    %5096 = vmatprep.subr.mxu0 0.0
    %5097 = vmatpush1.msra.mxu0 0.0
    %5098 = vmatprep.subr.mxu0 0.0
    %5099 = vmatpush1.msra.mxu0 0.0
    %5100 = vmatprep.subr.mxu0 0.0
    %5101 = vmatpush1.msra.mxu0 0.0
    %5102 = vmatprep.subr.mxu0 0.0
    %5103 = vmatpush1.msra.mxu0 0.0
    %5104 = vmatprep.mubr.f32.mxu0 0.0
    %5105 = vmatmul.mubr.f32.gmra.mrb[0].mxu0 %v4940
    %v5106 = vpop.f32.mrb[0].mxu0
    %v5107 = vadd.f32 %v4935, %v5106
    %v5108 = vpop.f32.mrb[0].mxu0
    %5109 = vmatprep.mubr.f32.mxu0 0.0
    %5110 = vmatmul.mubr.f32.gmra.mrb[0].mxu0 %v4943
    %v5111 = vpop.f32.mrb[0].mxu0
    %v5112 = vadd.f32 %v4935, %v5111
    %v5113 = vpop.f32.mrb[0].mxu0
    %5114 = vmatprep.mubr.f32.mxu0 0.0
    %5115 = vmatmul.mubr.f32.gmra.mrb[0].mxu0 %v4946
    %v5116 = vpop.f32.mrb[0].mxu0
    %v5117 = vadd.f32 %v4935, %v5116
    %v5118 = vpop.f32.mrb[0].mxu0
    %5119 = vmatprep.mubr.f32.mxu0 0.0
    %5120 = vmatmul.mubr.f32.gmra.mrb[0].mxu0 %v4949
    %v5121 = vpop.f32.mrb[0].mxu0
    %v5122 = vadd.f32 %v4935, %v5121
    %v5123 = vpop.f32.mrb[0].mxu0
    %5124 = vdwg.mxu0
    %v5125 = vmax.f32 %v5018, 0.0
    %v5126 = vmax.f32 %v5020, 0.0
    %v5127 = vmax.f32 %v5107, 0.0
    %v5128 = vmax.f32 %v5024, 0.0
    %v5129 = vmax.f32 %v5026, 0.0
    %v5130 = vmax.f32 %v5112, 0.0
    %v5131 = vmax.f32 %v5030, 0.0
    %v5132 = vmax.f32 %v5032, 0.0
    %v5133 = vmax.f32 %v5117, 0.0
    %v5134 = vmax.f32 %v5036, 0.0
    %v5135 = vmax.f32 %v5038, 0.0
    %v5136 = vmax.f32 %v5122, 0.0
    %v5138 = vlaneseq
    %v5139 = vshrl.u32 %v5138, 7
    %v5140 = vsub.s32 0, %v5139
    %v5141 = vrot.slane %v667, %v5140
    %v5144 = vsel %vm1466, %v5127, 0
    %v5147 = vsel %vm1466, %v5130, 0
    %v5150 = vsel %vm1466, %v5133, 0
    %v5153 = vsel %vm1466, %v5136, 0
    %5155 = vmatprep.subr.mxu0 0.0
    %5156 = vmatpush1.msra.mxu0 %v627
    %5157 = vmatprep.subr.mxu0 0.0
    %5158 = vmatpush1.msra.mxu0 %v628
    %5159 = vmatprep.subr.mxu0 0.0
    %5160 = vmatpush1.msra.mxu0 %v629
    %5161 = vmatprep.subr.mxu0 0.0
    %5162 = vmatpush1.msra.mxu0 %v630
    %5163 = vmatprep.subr.mxu0 0.0
    %5164 = vmatpush1.msra.mxu0 %v631
    %5165 = vmatprep.subr.mxu0 0.0
    %5166 = vmatpush1.msra.mxu0 %v632
    %5167 = vmatprep.subr.mxu0 0.0
    %5168 = vmatpush1.msra.mxu0 %v633
    %5169 = vmatprep.subr.mxu0 0.0
    %5170 = vmatpush1.msra.mxu0 %v634
    %5171 = vmatprep.subr.mxu0 0.0
    %5172 = vmatpush1.msra.mxu0 %v635
    %5173 = vmatprep.subr.mxu0 0.0
    %5174 = vmatpush1.msra.mxu0 %v636
    %5175 = vmatprep.subr.mxu0 0.0
    %5176 = vmatpush1.msra.mxu0 %v637
    %5177 = vmatprep.subr.mxu0 0.0
    %5178 = vmatpush1.msra.mxu0 %v638
    %5179 = vmatprep.subr.mxu0 0.0
    %5180 = vmatpush1.msra.mxu0 %v639
    %5181 = vmatprep.subr.mxu0 0.0
    %5182 = vmatpush1.msra.mxu0 %v640
    %5183 = vmatprep.subr.mxu0 0.0
    %5184 = vmatpush1.msra.mxu0 %v641
    %5185 = vmatprep.subr.mxu0 0.0
    %5186 = vmatpush1.msra.mxu0 %v642
    %5187 = vmatprep.subr.mxu0 0.0
    %5188 = vmatpush1.msra.mxu0 %v643
    %5189 = vmatprep.subr.mxu0 0.0
    %5190 = vmatpush1.msra.mxu0 %v644
    %5191 = vmatprep.subr.mxu0 0.0
    %5192 = vmatpush1.msra.mxu0 %v645
    %5193 = vmatprep.subr.mxu0 0.0
    %5194 = vmatpush1.msra.mxu0 %v646
    %5195 = vmatprep.subr.mxu0 0.0
    %5196 = vmatpush1.msra.mxu0 %v647
    %5197 = vmatprep.subr.mxu0 0.0
    %5198 = vmatpush1.msra.mxu0 %v648
    %5199 = vmatprep.subr.mxu0 0.0
    %5200 = vmatpush1.msra.mxu0 %v649
    %5201 = vmatprep.subr.mxu0 0.0
    %5202 = vmatpush1.msra.mxu0 %v650
    %5203 = vmatprep.subr.mxu0 0.0
    %5204 = vmatpush1.msra.mxu0 %v651
    %5205 = vmatprep.subr.mxu0 0.0
    %5206 = vmatpush1.msra.mxu0 %v652
    %5207 = vmatprep.subr.mxu0 0.0
    %5208 = vmatpush1.msra.mxu0 %v653
    %5209 = vmatprep.subr.mxu0 0.0
    %5210 = vmatpush1.msra.mxu0 %v654
    %5211 = vmatprep.subr.mxu0 0.0
    %5212 = vmatpush1.msra.mxu0 %v655
    %5213 = vmatprep.subr.mxu0 0.0
    %5214 = vmatpush1.msra.mxu0 %v656
    %5215 = vmatprep.subr.mxu0 0.0
    %5216 = vmatpush1.msra.mxu0 %v657
    %5217 = vmatprep.subr.mxu0 0.0
    %5218 = vmatpush1.msra.mxu0 %v658
    %5219 = vmatprep.mubr.f32.mxu0 %v5126
    %5220 = vmatmul.mubr.f32.gmra.mrb[0].mxu0 %v5125
    %v5221 = vpop.f32.mrb[0].mxu0
    %v5222 = vadd.f32 %v5141, %v5221
    %v5223 = vpop.f32.mrb[0].mxu0
    %5224 = vmatprep.mubr.f32.mxu0 %v5129
    %5225 = vmatmul.mubr.f32.gmra.mrb[0].mxu0 %v5128
    %v5226 = vpop.f32.mrb[0].mxu0
    %v5227 = vadd.f32 %v5141, %v5226
    %v5228 = vpop.f32.mrb[0].mxu0
    %5229 = vmatprep.mubr.f32.mxu0 %v5132
    %5230 = vmatmul.mubr.f32.gmra.mrb[0].mxu0 %v5131
    %v5231 = vpop.f32.mrb[0].mxu0
    %v5232 = vadd.f32 %v5141, %v5231
    %v5233 = vpop.f32.mrb[0].mxu0
    %5234 = vmatprep.mubr.f32.mxu0 %v5135
    %5235 = vmatmul.mubr.f32.gmra.mrb[0].mxu0 %v5134
    %v5236 = vpop.f32.mrb[0].mxu0
    %v5237 = vadd.f32 %v5141, %v5236
    %v5238 = vpop.f32.mrb[0].mxu0
    %5239 = vdwg.mxu0
    %5240 = vmatprep.subr.mxu0 0.0
    %5241 = vmatpush1.msra.mxu0 %v659
    %5242 = vmatprep.subr.mxu0 0.0
    %5243 = vmatpush1.msra.mxu0 %v660
    %5244 = vmatprep.subr.mxu0 0.0
    %5245 = vmatpush1.msra.mxu0 %v661
    %5246 = vmatprep.subr.mxu0 0.0
    %5247 = vmatpush1.msra.mxu0 %v662
    %5248 = vmatprep.subr.mxu0 0.0
    %5249 = vmatpush1.msra.mxu0 %v663
    %5250 = vmatprep.subr.mxu0 0.0
    %5251 = vmatpush1.msra.mxu0 %v664
    %5252 = vmatprep.subr.mxu0 0.0
    %5253 = vmatpush1.msra.mxu0 %v665
    %5254 = vmatprep.subr.mxu0 0.0
    %5255 = vmatpush1.msra.mxu0 %v666
    %5256 = vmatprep.subr.mxu0 0.0
    %5257 = vmatpush1.msra.mxu0 0.0
    %5258 = vmatprep.subr.mxu0 0.0
    %5259 = vmatpush1.msra.mxu0 0.0
    %5260 = vmatprep.subr.mxu0 0.0
    %5261 = vmatpush1.msra.mxu0 0.0
    %5262 = vmatprep.subr.mxu0 0.0
    %5263 = vmatpush1.msra.mxu0 0.0
    %5264 = vmatprep.subr.mxu0 0.0
    %5265 = vmatpush1.msra.mxu0 0.0
    %5266 = vmatprep.subr.mxu0 0.0
    %5267 = vmatpush1.msra.mxu0 0.0
    %5268 = vmatprep.subr.mxu0 0.0
    %5269 = vmatpush1.msra.mxu0 0.0
    %5270 = vmatprep.subr.mxu0 0.0
    %5271 = vmatpush1.msra.mxu0 0.0
    %5272 = vmatprep.subr.mxu0 0.0
    %5273 = vmatpush1.msra.mxu0 0.0
    %5274 = vmatprep.subr.mxu0 0.0
    %5275 = vmatpush1.msra.mxu0 0.0
    %5276 = vmatprep.subr.mxu0 0.0
    %5277 = vmatpush1.msra.mxu0 0.0
    %5278 = vmatprep.subr.mxu0 0.0
    %5279 = vmatpush1.msra.mxu0 0.0
    %5280 = vmatprep.subr.mxu0 0.0
    %5281 = vmatpush1.msra.mxu0 0.0
    %5282 = vmatprep.subr.mxu0 0.0
    %5283 = vmatpush1.msra.mxu0 0.0
    %5284 = vmatprep.subr.mxu0 0.0
    %5285 = vmatpush1.msra.mxu0 0.0
    %5286 = vmatprep.subr.mxu0 0.0
    %5287 = vmatpush1.msra.mxu0 0.0
    %5288 = vmatprep.subr.mxu0 0.0
    %5289 = vmatpush1.msra.mxu0 0.0
    %5290 = vmatprep.subr.mxu0 0.0
    %5291 = vmatpush1.msra.mxu0 0.0
    %5292 = vmatprep.subr.mxu0 0.0
    %5293 = vmatpush1.msra.mxu0 0.0
    %5294 = vmatprep.subr.mxu0 0.0
    %5295 = vmatpush1.msra.mxu0 0.0
    %5296 = vmatprep.subr.mxu0 0.0
    %5297 = vmatpush1.msra.mxu0 0.0
    %5298 = vmatprep.subr.mxu0 0.0
    %5299 = vmatpush1.msra.mxu0 0.0
    %5300 = vmatprep.subr.mxu0 0.0
    %5301 = vmatpush1.msra.mxu0 0.0
    %5302 = vmatprep.subr.mxu0 0.0
    %5303 = vmatpush1.msra.mxu0 0.0
    %5304 = vmatprep.mubr.f32.mxu0 0.0
    %5305 = vmatmul.mubr.f32.gmra.mrb[0].mxu0 %v5144
    %v5306 = vpop.f32.mrb[0].mxu0
    %v5307 = vadd.f32 %v5222, %v5306
    %v5308 = vpop.f32.mrb[0].mxu0
    %5309 = vmatprep.mubr.f32.mxu0 0.0
    %5310 = vmatmul.mubr.f32.gmra.mrb[0].mxu0 %v5147
    %v5311 = vpop.f32.mrb[0].mxu0
    %v5312 = vadd.f32 %v5227, %v5311
    %v5313 = vpop.f32.mrb[0].mxu0
    %5314 = vmatprep.mubr.f32.mxu0 0.0
    %5315 = vmatmul.mubr.f32.gmra.mrb[0].mxu0 %v5150
    %v5316 = vpop.f32.mrb[0].mxu0
    %v5317 = vadd.f32 %v5232, %v5316
    %v5318 = vpop.f32.mrb[0].mxu0
    %5319 = vmatprep.mubr.f32.mxu0 0.0
    %5320 = vmatmul.mubr.f32.gmra.mrb[0].mxu0 %v5153
    %v5321 = vpop.f32.mrb[0].mxu0
    %v5322 = vadd.f32 %v5237, %v5321
    %v5323 = vpop.f32.mrb[0].mxu0
    %5324 = vdwg.mxu0
    %v5325 = vmax.f32 %v5307, 0.0
    %v5326 = vmax.f32 %v5312, 0.0
    %v5327 = vmax.f32 %v5317, 0.0
    %v5328 = vmax.f32 %v5322, 0.0
    %v5330 = vlaneseq
    %v5331 = vshrl.u32 %v5330, 7
    %v5332 = vsub.s32 0, %v5331
    %v5333 = vrot.slane %v672, %v5332
    %v5336 = vsel %vm768, %v5325, 0
    %v5339 = vsel %vm768, %v5326, 0
    %v5342 = vsel %vm768, %v5327, 0
    %v5345 = vsel %vm768, %v5328, 0
    %5347 = vmatprep.subr.mxu0 0.0
    %5348 = vmatpush1.msra.mxu0 %v668
    %5349 = vmatprep.subr.mxu0 0.0
    %5350 = vmatpush1.msra.mxu0 %v669
    %5351 = vmatprep.subr.mxu0 0.0
    %5352 = vmatpush1.msra.mxu0 %v670
    %5353 = vmatprep.subr.mxu0 0.0
    %5354 = vmatpush1.msra.mxu0 %v671
    %5355 = vmatprep.subr.mxu0 0.0
    %5356 = vmatpush1.msra.mxu0 0.0
    %5357 = vmatprep.subr.mxu0 0.0
    %5358 = vmatpush1.msra.mxu0 0.0
    %5359 = vmatprep.subr.mxu0 0.0
    %5360 = vmatpush1.msra.mxu0 0.0
    %5361 = vmatprep.subr.mxu0 0.0
    %5362 = vmatpush1.msra.mxu0 0.0
    %5363 = vmatprep.subr.mxu0 0.0
    %5364 = vmatpush1.msra.mxu0 0.0
    %5365 = vmatprep.subr.mxu0 0.0
    %5366 = vmatpush1.msra.mxu0 0.0
    %5367 = vmatprep.subr.mxu0 0.0
    %5368 = vmatpush1.msra.mxu0 0.0
    %5369 = vmatprep.subr.mxu0 0.0
    %5370 = vmatpush1.msra.mxu0 0.0
    %5371 = vmatprep.subr.mxu0 0.0
    %5372 = vmatpush1.msra.mxu0 0.0
    %5373 = vmatprep.subr.mxu0 0.0
    %5374 = vmatpush1.msra.mxu0 0.0
    %5375 = vmatprep.subr.mxu0 0.0
    %5376 = vmatpush1.msra.mxu0 0.0
    %5377 = vmatprep.subr.mxu0 0.0
    %5378 = vmatpush1.msra.mxu0 0.0
    %5379 = vmatprep.subr.mxu0 0.0
    %5380 = vmatpush1.msra.mxu0 0.0
    %5381 = vmatprep.subr.mxu0 0.0
    %5382 = vmatpush1.msra.mxu0 0.0
    %5383 = vmatprep.subr.mxu0 0.0
    %5384 = vmatpush1.msra.mxu0 0.0
    %5385 = vmatprep.subr.mxu0 0.0
    %5386 = vmatpush1.msra.mxu0 0.0
    %5387 = vmatprep.subr.mxu0 0.0
    %5388 = vmatpush1.msra.mxu0 0.0
    %5389 = vmatprep.subr.mxu0 0.0
    %5390 = vmatpush1.msra.mxu0 0.0
    %5391 = vmatprep.subr.mxu0 0.0
    %5392 = vmatpush1.msra.mxu0 0.0
    %5393 = vmatprep.subr.mxu0 0.0
    %5394 = vmatpush1.msra.mxu0 0.0
    %5395 = vmatprep.subr.mxu0 0.0
    %5396 = vmatpush1.msra.mxu0 0.0
    %5397 = vmatprep.subr.mxu0 0.0
    %5398 = vmatpush1.msra.mxu0 0.0
    %5399 = vmatprep.subr.mxu0 0.0
    %5400 = vmatpush1.msra.mxu0 0.0
    %5401 = vmatprep.subr.mxu0 0.0
    %5402 = vmatpush1.msra.mxu0 0.0
    %5403 = vmatprep.subr.mxu0 0.0
    %5404 = vmatpush1.msra.mxu0 0.0
    %5405 = vmatprep.subr.mxu0 0.0
    %5406 = vmatpush1.msra.mxu0 0.0
    %5407 = vmatprep.subr.mxu0 0.0
    %5408 = vmatpush1.msra.mxu0 0.0
    %5409 = vmatprep.subr.mxu0 0.0
    %5410 = vmatpush1.msra.mxu0 0.0
    %5411 = vmatprep.mubr.f32.mxu0 0.0
    %5412 = vmatmul.mubr.f32.gmra.mrb[0].mxu0 %v5336
    %v5413 = vpop.f32.mrb[0].mxu0
    %v5414 = vadd.f32 %v5333, %v5413
    %v5415 = vpop.f32.mrb[0].mxu0
    %5416 = vmatprep.mubr.f32.mxu0 0.0
    %5417 = vmatmul.mubr.f32.gmra.mrb[0].mxu0 %v5339
    %v5418 = vpop.f32.mrb[0].mxu0
    %v5419 = vadd.f32 %v5333, %v5418
    %v5420 = vpop.f32.mrb[0].mxu0
    %5421 = vmatprep.mubr.f32.mxu0 0.0
    %5422 = vmatmul.mubr.f32.gmra.mrb[0].mxu0 %v5342
    %v5423 = vpop.f32.mrb[0].mxu0
    %v5424 = vadd.f32 %v5333, %v5423
    %v5425 = vpop.f32.mrb[0].mxu0
    %5426 = vmatprep.mubr.f32.mxu0 0.0
    %5427 = vmatmul.mubr.f32.gmra.mrb[0].mxu0 %v5345
    %v5428 = vpop.f32.mrb[0].mxu0
    %v5429 = vadd.f32 %v5333, %v5428
    %v5430 = vpop.f32.mrb[0].mxu0
    %5431 = vdwg.mxu0
    %v5433 = vlaneseq
    %v5434 = vshrl.u32 %v5433, 7
    %v5435 = vsub.s32 0, %v5434
    %v5436 = vrot.slane %v554, %v5435
    %5438 = vmatprep.subr.mxu0 0.0
    %5439 = vmatpush1.msra.mxu0 %v550
    %5440 = vmatprep.subr.mxu0 0.0
    %5441 = vmatpush1.msra.mxu0 %v551
    %5442 = vmatprep.subr.mxu0 0.0
    %5443 = vmatpush1.msra.mxu0 %v552
    %5444 = vmatprep.subr.mxu0 0.0
    %5445 = vmatpush1.msra.mxu0 %v553
    %5446 = vmatprep.subr.mxu0 0.0
    %5447 = vmatpush1.msra.mxu0 0.0
    %5448 = vmatprep.subr.mxu0 0.0
    %5449 = vmatpush1.msra.mxu0 0.0
    %5450 = vmatprep.subr.mxu0 0.0
    %5451 = vmatpush1.msra.mxu0 0.0
    %5452 = vmatprep.subr.mxu0 0.0
    %5453 = vmatpush1.msra.mxu0 0.0
    %5454 = vmatprep.subr.mxu0 0.0
    %5455 = vmatpush1.msra.mxu0 0.0
    %5456 = vmatprep.subr.mxu0 0.0
    %5457 = vmatpush1.msra.mxu0 0.0
    %5458 = vmatprep.subr.mxu0 0.0
    %5459 = vmatpush1.msra.mxu0 0.0
    %5460 = vmatprep.subr.mxu0 0.0
    %5461 = vmatpush1.msra.mxu0 0.0
    %5462 = vmatprep.subr.mxu0 0.0
    %5463 = vmatpush1.msra.mxu0 0.0
    %5464 = vmatprep.subr.mxu0 0.0
    %5465 = vmatpush1.msra.mxu0 0.0
    %5466 = vmatprep.subr.mxu0 0.0
    %5467 = vmatpush1.msra.mxu0 0.0
    %5468 = vmatprep.subr.mxu0 0.0
    %5469 = vmatpush1.msra.mxu0 0.0
    %5470 = vmatprep.subr.mxu0 0.0
    %5471 = vmatpush1.msra.mxu0 0.0
    %5472 = vmatprep.subr.mxu0 0.0
    %5473 = vmatpush1.msra.mxu0 0.0
    %5474 = vmatprep.subr.mxu0 0.0
    %5475 = vmatpush1.msra.mxu0 0.0
    %5476 = vmatprep.subr.mxu0 0.0
    %5477 = vmatpush1.msra.mxu0 0.0
    %5478 = vmatprep.subr.mxu0 0.0
    %5479 = vmatpush1.msra.mxu0 0.0
    %5480 = vmatprep.subr.mxu0 0.0
    %5481 = vmatpush1.msra.mxu0 0.0
    %5482 = vmatprep.subr.mxu0 0.0
    %5483 = vmatpush1.msra.mxu0 0.0
    %5484 = vmatprep.subr.mxu0 0.0
    %5485 = vmatpush1.msra.mxu0 0.0
    %5486 = vmatprep.subr.mxu0 0.0
    %5487 = vmatpush1.msra.mxu0 0.0
    %5488 = vmatprep.subr.mxu0 0.0
    %5489 = vmatpush1.msra.mxu0 0.0
    %5490 = vmatprep.subr.mxu0 0.0
    %5491 = vmatpush1.msra.mxu0 0.0
    %5492 = vmatprep.subr.mxu0 0.0
    %5493 = vmatpush1.msra.mxu0 0.0
    %5494 = vmatprep.subr.mxu0 0.0
    %5495 = vmatpush1.msra.mxu0 0.0
    %5496 = vmatprep.subr.mxu0 0.0
    %5497 = vmatpush1.msra.mxu0 0.0
    %5498 = vmatprep.subr.mxu0 0.0
    %5499 = vmatpush1.msra.mxu0 0.0
    %5500 = vmatprep.subr.mxu0 0.0
    %5501 = vmatpush1.msra.mxu0 0.0
    %5502 = vmatprep.mubr.f32.mxu0 0.0
    %5503 = vmatmul.mubr.f32.gmra.mrb[0].mxu0 %v2675
    %v5504 = vpop.f32.mrb[0].mxu0
    %v5505 = vadd.f32 %v5436, %v5504
    %v5506 = vpop.f32.mrb[0].mxu0
    %5507 = vmatprep.mubr.f32.mxu0 0.0
    %5508 = vmatmul.mubr.f32.gmra.mrb[0].mxu0 %v2678
    %v5509 = vpop.f32.mrb[0].mxu0
    %v5510 = vadd.f32 %v5436, %v5509
    %v5511 = vpop.f32.mrb[0].mxu0
    %5512 = vmatprep.mubr.f32.mxu0 0.0
    %5513 = vmatmul.mubr.f32.gmra.mrb[0].mxu0 %v2681
    %v5514 = vpop.f32.mrb[0].mxu0
    %v5515 = vadd.f32 %v5436, %v5514
    %v5516 = vpop.f32.mrb[0].mxu0
    %5517 = vmatprep.mubr.f32.mxu0 0.0
    %5518 = vmatmul.mubr.f32.gmra.mrb[0].mxu0 %v2684
    %v5519 = vpop.f32.mrb[0].mxu0
    %v5520 = vadd.f32 %v5436, %v5519
    %v5521 = vpop.f32.mrb[0].mxu0
    %5522 = vmatprep.mubr.f32.mxu0 0.0
    %5523 = vmatmul.mubr.f32.gmra.mrb[0].mxu0 %v2687
    %v5524 = vpop.f32.mrb[0].mxu0
    %v5525 = vadd.f32 %v5436, %v5524
    %v5526 = vpop.f32.mrb[0].mxu0
    %5527 = vmatprep.mubr.f32.mxu0 0.0
    %5528 = vmatmul.mubr.f32.gmra.mrb[0].mxu0 %v2690
    %v5529 = vpop.f32.mrb[0].mxu0
    %v5530 = vadd.f32 %v5436, %v5529
    %v5531 = vpop.f32.mrb[0].mxu0
    %5532 = vmatprep.mubr.f32.mxu0 0.0
    %5533 = vmatmul.mubr.f32.gmra.mrb[0].mxu0 %v2693
    %v5534 = vpop.f32.mrb[0].mxu0
    %v5535 = vadd.f32 %v5436, %v5534
    %v5536 = vpop.f32.mrb[0].mxu0
    %5537 = vmatprep.mubr.f32.mxu0 0.0
    %5538 = vmatmul.mubr.f32.gmra.mrb[0].mxu0 %v2696
    %v5539 = vpop.f32.mrb[0].mxu0
    %v5540 = vadd.f32 %v5436, %v5539
    %v5541 = vpop.f32.mrb[0].mxu0
    %5542 = vdwg.mxu0
    %v5543 = vmax.f32 %v5505, 0.0
    %v5544 = vmax.f32 %v5510, 0.0
    %v5545 = vmax.f32 %v5515, 0.0
    %v5546 = vmax.f32 %v5520, 0.0
    %v5547 = vmax.f32 %v5525, 0.0
    %v5548 = vmax.f32 %v5530, 0.0
    %v5549 = vmax.f32 %v5535, 0.0
    %v5550 = vmax.f32 %v5540, 0.0
    %v5552 = vlaneseq
    %v5553 = vshrl.u32 %v5552, 7
    %v5554 = vsub.s32 0, %v5553
    %v5555 = vrot.slane %v567, %v5554
    %v5556 = vlaneseq
    %v5557 = vshrl.u32 %v5556, 7
    %v5558 = vsub.s32 1, %v5557
    %v5559 = vrot.slane %v567, %v5558
    %v5560 = vlaneseq
    %v5561 = vshrl.u32 %v5560, 7
    %v5562 = vsub.s32 2, %v5561
    %v5563 = vrot.slane %v567, %v5562
    %v5568 = vsel %vm768, %v5543, 0
    %v5571 = vsel %vm768, %v5544, 0
    %v5574 = vsel %vm768, %v5545, 0
    %v5577 = vsel %vm768, %v5546, 0
    %v5580 = vsel %vm768, %v5547, 0
    %v5583 = vsel %vm768, %v5548, 0
    %v5586 = vsel %vm768, %v5549, 0
    %v5589 = vsel %vm768, %v5550, 0
    %5591 = vmatprep.subr.mxu0 %v556
    %5592 = vmatpush1.msra.mxu0 %v555
    %5593 = vmatprep.subr.mxu0 %v559
    %5594 = vmatpush1.msra.mxu0 %v558
    %5595 = vmatprep.subr.mxu0 %v562
    %5596 = vmatpush1.msra.mxu0 %v561
    %5597 = vmatprep.subr.mxu0 %v565
    %5598 = vmatpush1.msra.mxu0 %v564
    %5599 = vmatprep.subr.mxu0 0.0
    %5600 = vmatpush1.msra.mxu0 0.0
    %5601 = vmatprep.subr.mxu0 0.0
    %5602 = vmatpush1.msra.mxu0 0.0
    %5603 = vmatprep.subr.mxu0 0.0
    %5604 = vmatpush1.msra.mxu0 0.0
    %5605 = vmatprep.subr.mxu0 0.0
    %5606 = vmatpush1.msra.mxu0 0.0
    %5607 = vmatprep.subr.mxu0 0.0
    %5608 = vmatpush1.msra.mxu0 0.0
    %5609 = vmatprep.subr.mxu0 0.0
    %5610 = vmatpush1.msra.mxu0 0.0
    %5611 = vmatprep.subr.mxu0 0.0
    %5612 = vmatpush1.msra.mxu0 0.0
    %5613 = vmatprep.subr.mxu0 0.0
    %5614 = vmatpush1.msra.mxu0 0.0
    %5615 = vmatprep.subr.mxu0 0.0
    %5616 = vmatpush1.msra.mxu0 0.0
    %5617 = vmatprep.subr.mxu0 0.0
    %5618 = vmatpush1.msra.mxu0 0.0
    %5619 = vmatprep.subr.mxu0 0.0
    %5620 = vmatpush1.msra.mxu0 0.0
    %5621 = vmatprep.subr.mxu0 0.0
    %5622 = vmatpush1.msra.mxu0 0.0
    %5623 = vmatprep.subr.mxu0 0.0
    %5624 = vmatpush1.msra.mxu0 0.0
    %5625 = vmatprep.subr.mxu0 0.0
    %5626 = vmatpush1.msra.mxu0 0.0
    %5627 = vmatprep.subr.mxu0 0.0
    %5628 = vmatpush1.msra.mxu0 0.0
    %5629 = vmatprep.subr.mxu0 0.0
    %5630 = vmatpush1.msra.mxu0 0.0
    %5631 = vmatprep.subr.mxu0 0.0
    %5632 = vmatpush1.msra.mxu0 0.0
    %5633 = vmatprep.subr.mxu0 0.0
    %5634 = vmatpush1.msra.mxu0 0.0
    %5635 = vmatprep.subr.mxu0 0.0
    %5636 = vmatpush1.msra.mxu0 0.0
    %5637 = vmatprep.subr.mxu0 0.0
    %5638 = vmatpush1.msra.mxu0 0.0
    %5639 = vmatprep.subr.mxu0 0.0
    %5640 = vmatpush1.msra.mxu0 0.0
    %5641 = vmatprep.subr.mxu0 0.0
    %5642 = vmatpush1.msra.mxu0 0.0
    %5643 = vmatprep.subr.mxu0 0.0
    %5644 = vmatpush1.msra.mxu0 0.0
    %5645 = vmatprep.subr.mxu0 0.0
    %5646 = vmatpush1.msra.mxu0 0.0
    %5647 = vmatprep.subr.mxu0 0.0
    %5648 = vmatpush1.msra.mxu0 0.0
    %5649 = vmatprep.subr.mxu0 0.0
    %5650 = vmatpush1.msra.mxu0 0.0
    %5651 = vmatprep.subr.mxu0 0.0
    %5652 = vmatpush1.msra.mxu0 0.0
    %5653 = vmatprep.subr.mxu0 0.0
    %5654 = vmatpush1.msra.mxu0 0.0
    %5655 = vmatprep.mubr.f32.mxu0 0.0
    %5656 = vmatmul.mubr.f32.gmra.mrb[0].mxu0 %v5568
    %v5657 = vpop.f32.mrb[0].mxu0
    %v5658 = vadd.f32 %v5555, %v5657
    %v5659 = vpop.f32.mrb[0].mxu0
    %v5660 = vadd.f32 %v5559, %v5659
    %5661 = vmatprep.mubr.f32.mxu0 0.0
    %5662 = vmatmul.mubr.f32.gmra.mrb[0].mxu0 %v5571
    %v5663 = vpop.f32.mrb[0].mxu0
    %v5664 = vadd.f32 %v5555, %v5663
    %v5665 = vpop.f32.mrb[0].mxu0
    %v5666 = vadd.f32 %v5559, %v5665
    %5667 = vmatprep.mubr.f32.mxu0 0.0
    %5668 = vmatmul.mubr.f32.gmra.mrb[0].mxu0 %v5574
    %v5669 = vpop.f32.mrb[0].mxu0
    %v5670 = vadd.f32 %v5555, %v5669
    %v5671 = vpop.f32.mrb[0].mxu0
    %v5672 = vadd.f32 %v5559, %v5671
    %5673 = vmatprep.mubr.f32.mxu0 0.0
    %5674 = vmatmul.mubr.f32.gmra.mrb[0].mxu0 %v5577
    %v5675 = vpop.f32.mrb[0].mxu0
    %v5676 = vadd.f32 %v5555, %v5675
    %v5677 = vpop.f32.mrb[0].mxu0
    %v5678 = vadd.f32 %v5559, %v5677
    %5679 = vmatprep.mubr.f32.mxu0 0.0
    %5680 = vmatmul.mubr.f32.gmra.mrb[0].mxu0 %v5580
    %v5681 = vpop.f32.mrb[0].mxu0
    %v5682 = vadd.f32 %v5555, %v5681
    %v5683 = vpop.f32.mrb[0].mxu0
    %v5684 = vadd.f32 %v5559, %v5683
    %5685 = vmatprep.mubr.f32.mxu0 0.0
    %5686 = vmatmul.mubr.f32.gmra.mrb[0].mxu0 %v5583
    %v5687 = vpop.f32.mrb[0].mxu0
    %v5688 = vadd.f32 %v5555, %v5687
    %v5689 = vpop.f32.mrb[0].mxu0
    %v5690 = vadd.f32 %v5559, %v5689
    %5691 = vmatprep.mubr.f32.mxu0 0.0
    %5692 = vmatmul.mubr.f32.gmra.mrb[0].mxu0 %v5586
    %v5693 = vpop.f32.mrb[0].mxu0
    %v5694 = vadd.f32 %v5555, %v5693
    %v5695 = vpop.f32.mrb[0].mxu0
    %v5696 = vadd.f32 %v5559, %v5695
    %5697 = vmatprep.mubr.f32.mxu0 0.0
    %5698 = vmatmul.mubr.f32.gmra.mrb[0].mxu0 %v5589
    %v5699 = vpop.f32.mrb[0].mxu0
    %v5700 = vadd.f32 %v5555, %v5699
    %v5701 = vpop.f32.mrb[0].mxu0
    %v5702 = vadd.f32 %v5559, %v5701
    %5703 = vdwg.mxu0
    %5704 = vmatprep.subr.mxu0 0.0
    %5705 = vmatpush1.msra.mxu0 %v557
    %5706 = vmatprep.subr.mxu0 0.0
    %5707 = vmatpush1.msra.mxu0 %v560
    %5708 = vmatprep.subr.mxu0 0.0
    %5709 = vmatpush1.msra.mxu0 %v563
    %5710 = vmatprep.subr.mxu0 0.0
    %5711 = vmatpush1.msra.mxu0 %v566
    %5712 = vmatprep.subr.mxu0 0.0
    %5713 = vmatpush1.msra.mxu0 0.0
    %5714 = vmatprep.subr.mxu0 0.0
    %5715 = vmatpush1.msra.mxu0 0.0
    %5716 = vmatprep.subr.mxu0 0.0
    %5717 = vmatpush1.msra.mxu0 0.0
    %5718 = vmatprep.subr.mxu0 0.0
    %5719 = vmatpush1.msra.mxu0 0.0
    %5720 = vmatprep.subr.mxu0 0.0
    %5721 = vmatpush1.msra.mxu0 0.0
    %5722 = vmatprep.subr.mxu0 0.0
    %5723 = vmatpush1.msra.mxu0 0.0
    %5724 = vmatprep.subr.mxu0 0.0
    %5725 = vmatpush1.msra.mxu0 0.0
    %5726 = vmatprep.subr.mxu0 0.0
    %5727 = vmatpush1.msra.mxu0 0.0
    %5728 = vmatprep.subr.mxu0 0.0
    %5729 = vmatpush1.msra.mxu0 0.0
    %5730 = vmatprep.subr.mxu0 0.0
    %5731 = vmatpush1.msra.mxu0 0.0
    %5732 = vmatprep.subr.mxu0 0.0
    %5733 = vmatpush1.msra.mxu0 0.0
    %5734 = vmatprep.subr.mxu0 0.0
    %5735 = vmatpush1.msra.mxu0 0.0
    %5736 = vmatprep.subr.mxu0 0.0
    %5737 = vmatpush1.msra.mxu0 0.0
    %5738 = vmatprep.subr.mxu0 0.0
    %5739 = vmatpush1.msra.mxu0 0.0
    %5740 = vmatprep.subr.mxu0 0.0
    %5741 = vmatpush1.msra.mxu0 0.0
    %5742 = vmatprep.subr.mxu0 0.0
    %5743 = vmatpush1.msra.mxu0 0.0
    %5744 = vmatprep.subr.mxu0 0.0
    %5745 = vmatpush1.msra.mxu0 0.0
    %5746 = vmatprep.subr.mxu0 0.0
    %5747 = vmatpush1.msra.mxu0 0.0
    %5748 = vmatprep.subr.mxu0 0.0
    %5749 = vmatpush1.msra.mxu0 0.0
    %5750 = vmatprep.subr.mxu0 0.0
    %5751 = vmatpush1.msra.mxu0 0.0
    %5752 = vmatprep.subr.mxu0 0.0
    %5753 = vmatpush1.msra.mxu0 0.0
    %5754 = vmatprep.subr.mxu0 0.0
    %5755 = vmatpush1.msra.mxu0 0.0
    %5756 = vmatprep.subr.mxu0 0.0
    %5757 = vmatpush1.msra.mxu0 0.0
    %5758 = vmatprep.subr.mxu0 0.0
    %5759 = vmatpush1.msra.mxu0 0.0
    %5760 = vmatprep.subr.mxu0 0.0
    %5761 = vmatpush1.msra.mxu0 0.0
    %5762 = vmatprep.subr.mxu0 0.0
    %5763 = vmatpush1.msra.mxu0 0.0
    %5764 = vmatprep.subr.mxu0 0.0
    %5765 = vmatpush1.msra.mxu0 0.0
    %5766 = vmatprep.subr.mxu0 0.0
    %5767 = vmatpush1.msra.mxu0 0.0
    %5768 = vmatprep.mubr.f32.mxu0 0.0
    %5769 = vmatmul.mubr.f32.gmra.mrb[0].mxu0 %v5568
    %v5770 = vpop.f32.mrb[0].mxu0
    %v5771 = vadd.f32 %v5563, %v5770
    %v5772 = vpop.f32.mrb[0].mxu0
    %5773 = vmatprep.mubr.f32.mxu0 0.0
    %5774 = vmatmul.mubr.f32.gmra.mrb[0].mxu0 %v5571
    %v5775 = vpop.f32.mrb[0].mxu0
    %v5776 = vadd.f32 %v5563, %v5775
    %v5777 = vpop.f32.mrb[0].mxu0
    %5778 = vmatprep.mubr.f32.mxu0 0.0
    %5779 = vmatmul.mubr.f32.gmra.mrb[0].mxu0 %v5574
    %v5780 = vpop.f32.mrb[0].mxu0
    %v5781 = vadd.f32 %v5563, %v5780
    %v5782 = vpop.f32.mrb[0].mxu0
    %5783 = vmatprep.mubr.f32.mxu0 0.0
    %5784 = vmatmul.mubr.f32.gmra.mrb[0].mxu0 %v5577
    %v5785 = vpop.f32.mrb[0].mxu0
    %v5786 = vadd.f32 %v5563, %v5785
    %v5787 = vpop.f32.mrb[0].mxu0
    %5788 = vmatprep.mubr.f32.mxu0 0.0
    %5789 = vmatmul.mubr.f32.gmra.mrb[0].mxu0 %v5580
    %v5790 = vpop.f32.mrb[0].mxu0
    %v5791 = vadd.f32 %v5563, %v5790
    %v5792 = vpop.f32.mrb[0].mxu0
    %5793 = vmatprep.mubr.f32.mxu0 0.0
    %5794 = vmatmul.mubr.f32.gmra.mrb[0].mxu0 %v5583
    %v5795 = vpop.f32.mrb[0].mxu0
    %v5796 = vadd.f32 %v5563, %v5795
    %v5797 = vpop.f32.mrb[0].mxu0
    %5798 = vmatprep.mubr.f32.mxu0 0.0
    %5799 = vmatmul.mubr.f32.gmra.mrb[0].mxu0 %v5586
    %v5800 = vpop.f32.mrb[0].mxu0
    %v5801 = vadd.f32 %v5563, %v5800
    %v5802 = vpop.f32.mrb[0].mxu0
    %5803 = vmatprep.mubr.f32.mxu0 0.0
    %5804 = vmatmul.mubr.f32.gmra.mrb[0].mxu0 %v5589
    %v5805 = vpop.f32.mrb[0].mxu0
    %v5806 = vadd.f32 %v5563, %v5805
    %v5807 = vpop.f32.mrb[0].mxu0
    %5808 = vdwg.mxu0
    %v5809 = vmax.f32 %v5658, 0.0
    %v5810 = vmax.f32 %v5660, 0.0
    %v5811 = vmax.f32 %v5771, 0.0
    %v5812 = vmax.f32 %v5664, 0.0
    %v5813 = vmax.f32 %v5666, 0.0
    %v5814 = vmax.f32 %v5776, 0.0
    %v5815 = vmax.f32 %v5670, 0.0
    %v5816 = vmax.f32 %v5672, 0.0
    %v5817 = vmax.f32 %v5781, 0.0
    %v5818 = vmax.f32 %v5676, 0.0
    %v5819 = vmax.f32 %v5678, 0.0
    %v5820 = vmax.f32 %v5786, 0.0
    %v5821 = vmax.f32 %v5682, 0.0
    %v5822 = vmax.f32 %v5684, 0.0
    %v5823 = vmax.f32 %v5791, 0.0
    %v5824 = vmax.f32 %v5688, 0.0
    %v5825 = vmax.f32 %v5690, 0.0
    %v5826 = vmax.f32 %v5796, 0.0
    %v5827 = vmax.f32 %v5694, 0.0
    %v5828 = vmax.f32 %v5696, 0.0
    %v5829 = vmax.f32 %v5801, 0.0
    %v5830 = vmax.f32 %v5700, 0.0
    %v5831 = vmax.f32 %v5702, 0.0
    %v5832 = vmax.f32 %v5806, 0.0
    %v5834 = vlaneseq
    %v5835 = vshrl.u32 %v5834, 7
    %v5836 = vsub.s32 0, %v5835
    %v5837 = vrot.slane %v608, %v5836
    %v5840 = vsel %vm1466, %v5811, 0
    %v5843 = vsel %vm1466, %v5814, 0
    %v5846 = vsel %vm1466, %v5817, 0
    %v5849 = vsel %vm1466, %v5820, 0
    %v5852 = vsel %vm1466, %v5823, 0
    %v5855 = vsel %vm1466, %v5826, 0
    %v5858 = vsel %vm1466, %v5829, 0
    %v5861 = vsel %vm1466, %v5832, 0
    %5863 = vmatprep.subr.mxu0 0.0
    %5864 = vmatpush1.msra.mxu0 %v568
    %5865 = vmatprep.subr.mxu0 0.0
    %5866 = vmatpush1.msra.mxu0 %v569
    %5867 = vmatprep.subr.mxu0 0.0
    %5868 = vmatpush1.msra.mxu0 %v570
    %5869 = vmatprep.subr.mxu0 0.0
    %5870 = vmatpush1.msra.mxu0 %v571
    %5871 = vmatprep.subr.mxu0 0.0
    %5872 = vmatpush1.msra.mxu0 %v572
    %5873 = vmatprep.subr.mxu0 0.0
    %5874 = vmatpush1.msra.mxu0 %v573
    %5875 = vmatprep.subr.mxu0 0.0
    %5876 = vmatpush1.msra.mxu0 %v574
    %5877 = vmatprep.subr.mxu0 0.0
    %5878 = vmatpush1.msra.mxu0 %v575
    %5879 = vmatprep.subr.mxu0 0.0
    %5880 = vmatpush1.msra.mxu0 %v576
    %5881 = vmatprep.subr.mxu0 0.0
    %5882 = vmatpush1.msra.mxu0 %v577
    %5883 = vmatprep.subr.mxu0 0.0
    %5884 = vmatpush1.msra.mxu0 %v578
    %5885 = vmatprep.subr.mxu0 0.0
    %5886 = vmatpush1.msra.mxu0 %v579
    %5887 = vmatprep.subr.mxu0 0.0
    %5888 = vmatpush1.msra.mxu0 %v580
    %5889 = vmatprep.subr.mxu0 0.0
    %5890 = vmatpush1.msra.mxu0 %v581
    %5891 = vmatprep.subr.mxu0 0.0
    %5892 = vmatpush1.msra.mxu0 %v582
    %5893 = vmatprep.subr.mxu0 0.0
    %5894 = vmatpush1.msra.mxu0 %v583
    %5895 = vmatprep.subr.mxu0 0.0
    %5896 = vmatpush1.msra.mxu0 %v584
    %5897 = vmatprep.subr.mxu0 0.0
    %5898 = vmatpush1.msra.mxu0 %v585
    %5899 = vmatprep.subr.mxu0 0.0
    %5900 = vmatpush1.msra.mxu0 %v586
    %5901 = vmatprep.subr.mxu0 0.0
    %5902 = vmatpush1.msra.mxu0 %v587
    %5903 = vmatprep.subr.mxu0 0.0
    %5904 = vmatpush1.msra.mxu0 %v588
    %5905 = vmatprep.subr.mxu0 0.0
    %5906 = vmatpush1.msra.mxu0 %v589
    %5907 = vmatprep.subr.mxu0 0.0
    %5908 = vmatpush1.msra.mxu0 %v590
    %5909 = vmatprep.subr.mxu0 0.0
    %5910 = vmatpush1.msra.mxu0 %v591
    %5911 = vmatprep.subr.mxu0 0.0
    %5912 = vmatpush1.msra.mxu0 %v592
    %5913 = vmatprep.subr.mxu0 0.0
    %5914 = vmatpush1.msra.mxu0 %v593
    %5915 = vmatprep.subr.mxu0 0.0
    %5916 = vmatpush1.msra.mxu0 %v594
    %5917 = vmatprep.subr.mxu0 0.0
    %5918 = vmatpush1.msra.mxu0 %v595
    %5919 = vmatprep.subr.mxu0 0.0
    %5920 = vmatpush1.msra.mxu0 %v596
    %5921 = vmatprep.subr.mxu0 0.0
    %5922 = vmatpush1.msra.mxu0 %v597
    %5923 = vmatprep.subr.mxu0 0.0
    %5924 = vmatpush1.msra.mxu0 %v598
    %5925 = vmatprep.subr.mxu0 0.0
    %5926 = vmatpush1.msra.mxu0 %v599
    %5927 = vmatprep.mubr.f32.mxu0 %v5810
    %5928 = vmatmul.mubr.f32.gmra.mrb[0].mxu0 %v5809
    %v5929 = vpop.f32.mrb[0].mxu0
    %v5930 = vadd.f32 %v5837, %v5929
    %v5931 = vpop.f32.mrb[0].mxu0
    %5932 = vmatprep.mubr.f32.mxu0 %v5813
    %5933 = vmatmul.mubr.f32.gmra.mrb[0].mxu0 %v5812
    %v5934 = vpop.f32.mrb[0].mxu0
    %v5935 = vadd.f32 %v5837, %v5934
    %v5936 = vpop.f32.mrb[0].mxu0
    %5937 = vmatprep.mubr.f32.mxu0 %v5816
    %5938 = vmatmul.mubr.f32.gmra.mrb[0].mxu0 %v5815
    %v5939 = vpop.f32.mrb[0].mxu0
    %v5940 = vadd.f32 %v5837, %v5939
    %v5941 = vpop.f32.mrb[0].mxu0
    %5942 = vmatprep.mubr.f32.mxu0 %v5819
    %5943 = vmatmul.mubr.f32.gmra.mrb[0].mxu0 %v5818
    %v5944 = vpop.f32.mrb[0].mxu0
    %v5945 = vadd.f32 %v5837, %v5944
    %v5946 = vpop.f32.mrb[0].mxu0
    %5947 = vmatprep.mubr.f32.mxu0 %v5822
    %5948 = vmatmul.mubr.f32.gmra.mrb[0].mxu0 %v5821
    %v5949 = vpop.f32.mrb[0].mxu0
    %v5950 = vadd.f32 %v5837, %v5949
    %v5951 = vpop.f32.mrb[0].mxu0
    %5952 = vmatprep.mubr.f32.mxu0 %v5825
    %5953 = vmatmul.mubr.f32.gmra.mrb[0].mxu0 %v5824
    %v5954 = vpop.f32.mrb[0].mxu0
    %v5955 = vadd.f32 %v5837, %v5954
    %v5956 = vpop.f32.mrb[0].mxu0
    %5957 = vmatprep.mubr.f32.mxu0 %v5828
    %5958 = vmatmul.mubr.f32.gmra.mrb[0].mxu0 %v5827
    %v5959 = vpop.f32.mrb[0].mxu0
    %v5960 = vadd.f32 %v5837, %v5959
    %v5961 = vpop.f32.mrb[0].mxu0
    %5962 = vmatprep.mubr.f32.mxu0 %v5831
    %5963 = vmatmul.mubr.f32.gmra.mrb[0].mxu0 %v5830
    %v5964 = vpop.f32.mrb[0].mxu0
    %v5965 = vadd.f32 %v5837, %v5964
    %v5966 = vpop.f32.mrb[0].mxu0
    %5967 = vdwg.mxu0
    %5968 = vmatprep.subr.mxu0 0.0
    %5969 = vmatpush1.msra.mxu0 %v600
    %5970 = vmatprep.subr.mxu0 0.0
    %5971 = vmatpush1.msra.mxu0 %v601
    %5972 = vmatprep.subr.mxu0 0.0
    %5973 = vmatpush1.msra.mxu0 %v602
    %5974 = vmatprep.subr.mxu0 0.0
    %5975 = vmatpush1.msra.mxu0 %v603
    %5976 = vmatprep.subr.mxu0 0.0
    %5977 = vmatpush1.msra.mxu0 %v604
    %5978 = vmatprep.subr.mxu0 0.0
    %5979 = vmatpush1.msra.mxu0 %v605
    %5980 = vmatprep.subr.mxu0 0.0
    %5981 = vmatpush1.msra.mxu0 %v606
    %5982 = vmatprep.subr.mxu0 0.0
    %5983 = vmatpush1.msra.mxu0 %v607
    %5984 = vmatprep.subr.mxu0 0.0
    %5985 = vmatpush1.msra.mxu0 0.0
    %5986 = vmatprep.subr.mxu0 0.0
    %5987 = vmatpush1.msra.mxu0 0.0
    %5988 = vmatprep.subr.mxu0 0.0
    %5989 = vmatpush1.msra.mxu0 0.0
    %5990 = vmatprep.subr.mxu0 0.0
    %5991 = vmatpush1.msra.mxu0 0.0
    %5992 = vmatprep.subr.mxu0 0.0
    %5993 = vmatpush1.msra.mxu0 0.0
    %5994 = vmatprep.subr.mxu0 0.0
    %5995 = vmatpush1.msra.mxu0 0.0
    %5996 = vmatprep.subr.mxu0 0.0
    %5997 = vmatpush1.msra.mxu0 0.0
    %5998 = vmatprep.subr.mxu0 0.0
    %5999 = vmatpush1.msra.mxu0 0.0
    %6000 = vmatprep.subr.mxu0 0.0
    %6001 = vmatpush1.msra.mxu0 0.0
    %6002 = vmatprep.subr.mxu0 0.0
    %6003 = vmatpush1.msra.mxu0 0.0
    %6004 = vmatprep.subr.mxu0 0.0
    %6005 = vmatpush1.msra.mxu0 0.0
    %6006 = vmatprep.subr.mxu0 0.0
    %6007 = vmatpush1.msra.mxu0 0.0
    %6008 = vmatprep.subr.mxu0 0.0
    %6009 = vmatpush1.msra.mxu0 0.0
    %6010 = vmatprep.subr.mxu0 0.0
    %6011 = vmatpush1.msra.mxu0 0.0
    %6012 = vmatprep.subr.mxu0 0.0
    %6013 = vmatpush1.msra.mxu0 0.0
    %6014 = vmatprep.subr.mxu0 0.0
    %6015 = vmatpush1.msra.mxu0 0.0
    %6016 = vmatprep.subr.mxu0 0.0
    %6017 = vmatpush1.msra.mxu0 0.0
    %6018 = vmatprep.subr.mxu0 0.0
    %6019 = vmatpush1.msra.mxu0 0.0
    %6020 = vmatprep.subr.mxu0 0.0
    %6021 = vmatpush1.msra.mxu0 0.0
    %6022 = vmatprep.subr.mxu0 0.0
    %6023 = vmatpush1.msra.mxu0 0.0
    %6024 = vmatprep.subr.mxu0 0.0
    %6025 = vmatpush1.msra.mxu0 0.0
    %6026 = vmatprep.subr.mxu0 0.0
    %6027 = vmatpush1.msra.mxu0 0.0
    %6028 = vmatprep.subr.mxu0 0.0
    %6029 = vmatpush1.msra.mxu0 0.0
    %6030 = vmatprep.subr.mxu0 0.0
    %6031 = vmatpush1.msra.mxu0 0.0
    %6032 = vmatprep.mubr.f32.mxu0 0.0
    %6033 = vmatmul.mubr.f32.gmra.mrb[0].mxu0 %v5840
    %v6034 = vpop.f32.mrb[0].mxu0
    %v6035 = vadd.f32 %v5930, %v6034
    %v6036 = vpop.f32.mrb[0].mxu0
    %6037 = vmatprep.mubr.f32.mxu0 0.0
    %6038 = vmatmul.mubr.f32.gmra.mrb[0].mxu0 %v5843
    %v6039 = vpop.f32.mrb[0].mxu0
    %v6040 = vadd.f32 %v5935, %v6039
    %v6041 = vpop.f32.mrb[0].mxu0
    %6042 = vmatprep.mubr.f32.mxu0 0.0
    %6043 = vmatmul.mubr.f32.gmra.mrb[0].mxu0 %v5846
    %v6044 = vpop.f32.mrb[0].mxu0
    %v6045 = vadd.f32 %v5940, %v6044
    %v6046 = vpop.f32.mrb[0].mxu0
    %6047 = vmatprep.mubr.f32.mxu0 0.0
    %6048 = vmatmul.mubr.f32.gmra.mrb[0].mxu0 %v5849
    %v6049 = vpop.f32.mrb[0].mxu0
    %v6050 = vadd.f32 %v5945, %v6049
    %v6051 = vpop.f32.mrb[0].mxu0
    %6052 = vmatprep.mubr.f32.mxu0 0.0
    %6053 = vmatmul.mubr.f32.gmra.mrb[0].mxu0 %v5852
    %v6054 = vpop.f32.mrb[0].mxu0
    %v6055 = vadd.f32 %v5950, %v6054
    %v6056 = vpop.f32.mrb[0].mxu0
    %6057 = vmatprep.mubr.f32.mxu0 0.0
    %6058 = vmatmul.mubr.f32.gmra.mrb[0].mxu0 %v5855
    %v6059 = vpop.f32.mrb[0].mxu0
    %v6060 = vadd.f32 %v5955, %v6059
    %v6061 = vpop.f32.mrb[0].mxu0
    %6062 = vmatprep.mubr.f32.mxu0 0.0
    %6063 = vmatmul.mubr.f32.gmra.mrb[0].mxu0 %v5858
    %v6064 = vpop.f32.mrb[0].mxu0
    %v6065 = vadd.f32 %v5960, %v6064
    %v6066 = vpop.f32.mrb[0].mxu0
    %6067 = vmatprep.mubr.f32.mxu0 0.0
    %6068 = vmatmul.mubr.f32.gmra.mrb[0].mxu0 %v5861
    %v6069 = vpop.f32.mrb[0].mxu0
    %v6070 = vadd.f32 %v5965, %v6069
    %v6071 = vpop.f32.mrb[0].mxu0
    %6072 = vdwg.mxu0
    %v6073 = vmax.f32 %v6035, 0.0
    %v6074 = vmax.f32 %v6040, 0.0
    %v6075 = vmax.f32 %v6045, 0.0
    %v6076 = vmax.f32 %v6050, 0.0
    %v6077 = vmax.f32 %v6055, 0.0
    %v6078 = vmax.f32 %v6060, 0.0
    %v6079 = vmax.f32 %v6065, 0.0
    %v6080 = vmax.f32 %v6070, 0.0
    %v6082 = vlaneseq
    %v6083 = vshrl.u32 %v6082, 7
    %v6084 = vsub.s32 0, %v6083
    %v6085 = vrot.slane %v613, %v6084
    %v6088 = vsel %vm768, %v6073, 0
    %v6091 = vsel %vm768, %v6074, 0
    %v6094 = vsel %vm768, %v6075, 0
    %v6097 = vsel %vm768, %v6076, 0
    %v6100 = vsel %vm768, %v6077, 0
    %v6103 = vsel %vm768, %v6078, 0
    %v6106 = vsel %vm768, %v6079, 0
    %v6109 = vsel %vm768, %v6080, 0
    %6111 = vmatprep.subr.mxu0 0.0
    %6112 = vmatpush1.msra.mxu0 %v609
    %6113 = vmatprep.subr.mxu0 0.0
    %6114 = vmatpush1.msra.mxu0 %v610
    %6115 = vmatprep.subr.mxu0 0.0
    %6116 = vmatpush1.msra.mxu0 %v611
    %6117 = vmatprep.subr.mxu0 0.0
    %6118 = vmatpush1.msra.mxu0 %v612
    %6119 = vmatprep.subr.mxu0 0.0
    %6120 = vmatpush1.msra.mxu0 0.0
    %6121 = vmatprep.subr.mxu0 0.0
    %6122 = vmatpush1.msra.mxu0 0.0
    %6123 = vmatprep.subr.mxu0 0.0
    %6124 = vmatpush1.msra.mxu0 0.0
    %6125 = vmatprep.subr.mxu0 0.0
    %6126 = vmatpush1.msra.mxu0 0.0
    %6127 = vmatprep.subr.mxu0 0.0
    %6128 = vmatpush1.msra.mxu0 0.0
    %6129 = vmatprep.subr.mxu0 0.0
    %6130 = vmatpush1.msra.mxu0 0.0
    %6131 = vmatprep.subr.mxu0 0.0
    %6132 = vmatpush1.msra.mxu0 0.0
    %6133 = vmatprep.subr.mxu0 0.0
    %6134 = vmatpush1.msra.mxu0 0.0
    %6135 = vmatprep.subr.mxu0 0.0
    %6136 = vmatpush1.msra.mxu0 0.0
    %6137 = vmatprep.subr.mxu0 0.0
    %6138 = vmatpush1.msra.mxu0 0.0
    %6139 = vmatprep.subr.mxu0 0.0
    %6140 = vmatpush1.msra.mxu0 0.0
    %6141 = vmatprep.subr.mxu0 0.0
    %6142 = vmatpush1.msra.mxu0 0.0
    %6143 = vmatprep.subr.mxu0 0.0
    %6144 = vmatpush1.msra.mxu0 0.0
    %6145 = vmatprep.subr.mxu0 0.0
    %6146 = vmatpush1.msra.mxu0 0.0
    %6147 = vmatprep.subr.mxu0 0.0
    %6148 = vmatpush1.msra.mxu0 0.0
    %6149 = vmatprep.subr.mxu0 0.0
    %6150 = vmatpush1.msra.mxu0 0.0
    %6151 = vmatprep.subr.mxu0 0.0
    %6152 = vmatpush1.msra.mxu0 0.0
    %6153 = vmatprep.subr.mxu0 0.0
    %6154 = vmatpush1.msra.mxu0 0.0
    %6155 = vmatprep.subr.mxu0 0.0
    %6156 = vmatpush1.msra.mxu0 0.0
    %6157 = vmatprep.subr.mxu0 0.0
    %6158 = vmatpush1.msra.mxu0 0.0
    %6159 = vmatprep.subr.mxu0 0.0
    %6160 = vmatpush1.msra.mxu0 0.0
    %6161 = vmatprep.subr.mxu0 0.0
    %6162 = vmatpush1.msra.mxu0 0.0
    %6163 = vmatprep.subr.mxu0 0.0
    %6164 = vmatpush1.msra.mxu0 0.0
    %6165 = vmatprep.subr.mxu0 0.0
    %6166 = vmatpush1.msra.mxu0 0.0
    %6167 = vmatprep.subr.mxu0 0.0
    %6168 = vmatpush1.msra.mxu0 0.0
    %6169 = vmatprep.subr.mxu0 0.0
    %6170 = vmatpush1.msra.mxu0 0.0
    %6171 = vmatprep.subr.mxu0 0.0
    %6172 = vmatpush1.msra.mxu0 0.0
    %6173 = vmatprep.subr.mxu0 0.0
    %6174 = vmatpush1.msra.mxu0 0.0
    %6175 = vmatprep.mubr.f32.mxu0 0.0
    %6176 = vmatmul.mubr.f32.gmra.mrb[0].mxu0 %v6088
    %v6177 = vpop.f32.mrb[0].mxu0
    %v6178 = vadd.f32 %v6085, %v6177
    %v6179 = vpop.f32.mrb[0].mxu0
    %6180 = vmatprep.mubr.f32.mxu0 0.0
    %6181 = vmatmul.mubr.f32.gmra.mrb[0].mxu0 %v6091
    %v6182 = vpop.f32.mrb[0].mxu0
    %v6183 = vadd.f32 %v6085, %v6182
    %v6184 = vpop.f32.mrb[0].mxu0
    %6185 = vmatprep.mubr.f32.mxu0 0.0
    %6186 = vmatmul.mubr.f32.gmra.mrb[0].mxu0 %v6094
    %v6187 = vpop.f32.mrb[0].mxu0
    %v6188 = vadd.f32 %v6085, %v6187
    %v6189 = vpop.f32.mrb[0].mxu0
    %6190 = vmatprep.mubr.f32.mxu0 0.0
    %6191 = vmatmul.mubr.f32.gmra.mrb[0].mxu0 %v6097
    %v6192 = vpop.f32.mrb[0].mxu0
    %v6193 = vadd.f32 %v6085, %v6192
    %v6194 = vpop.f32.mrb[0].mxu0
    %6195 = vmatprep.mubr.f32.mxu0 0.0
    %6196 = vmatmul.mubr.f32.gmra.mrb[0].mxu0 %v6100
    %v6197 = vpop.f32.mrb[0].mxu0
    %v6198 = vadd.f32 %v6085, %v6197
    %v6199 = vpop.f32.mrb[0].mxu0
    %6200 = vmatprep.mubr.f32.mxu0 0.0
    %6201 = vmatmul.mubr.f32.gmra.mrb[0].mxu0 %v6103
    %v6202 = vpop.f32.mrb[0].mxu0
    %v6203 = vadd.f32 %v6085, %v6202
    %v6204 = vpop.f32.mrb[0].mxu0
    %6205 = vmatprep.mubr.f32.mxu0 0.0
    %6206 = vmatmul.mubr.f32.gmra.mrb[0].mxu0 %v6106
    %v6207 = vpop.f32.mrb[0].mxu0
    %v6208 = vadd.f32 %v6085, %v6207
    %v6209 = vpop.f32.mrb[0].mxu0
    %6210 = vmatprep.mubr.f32.mxu0 0.0
    %6211 = vmatmul.mubr.f32.gmra.mrb[0].mxu0 %v6109
    %v6212 = vpop.f32.mrb[0].mxu0
    %v6213 = vadd.f32 %v6085, %v6212
    %v6214 = vpop.f32.mrb[0].mxu0
    %6215 = vdwg.mxu0
    %6216 = vmatprep.subr.mxu0 0.0
    %6217 = vmatpush1.msra.mxu0 %v6178
    %6218 = vmatprep.subr.mxu0 0.0
    %6219 = vmatpush1.msra.mxu0 %v6183
    %6220 = vmatprep.subr.mxu0 0.0
    %6221 = vmatpush1.msra.mxu0 %v6188
    %6222 = vmatprep.subr.mxu0 0.0
    %6223 = vmatpush1.msra.mxu0 %v6193
    %6224 = vmatprep.subr.mxu0 0.0
    %6225 = vmatpush1.msra.mxu0 %v6198
    %6226 = vmatprep.subr.mxu0 0.0
    %6227 = vmatpush1.msra.mxu0 %v6203
    %6228 = vmatprep.subr.mxu0 0.0
    %6229 = vmatpush1.msra.mxu0 %v6208
    %6230 = vmatprep.subr.mxu0 0.0
    %6231 = vmatpush1.msra.mxu0 %v6213
    %6232 = vmatprep.subr.mxu0 0.0
    %6233 = vmatpush1.msra.mxu0 0.0
    %6234 = vmatprep.subr.mxu0 0.0
    %6235 = vmatpush1.msra.mxu0 0.0
    %6236 = vmatprep.subr.mxu0 0.0
    %6237 = vmatpush1.msra.mxu0 0.0
    %6238 = vmatprep.subr.mxu0 0.0
    %6239 = vmatpush1.msra.mxu0 0.0
    %6240 = vmatprep.subr.mxu0 0.0
    %6241 = vmatpush1.msra.mxu0 0.0
    %6242 = vmatprep.subr.mxu0 0.0
    %6243 = vmatpush1.msra.mxu0 0.0
    %6244 = vmatprep.subr.mxu0 0.0
    %6245 = vmatpush1.msra.mxu0 0.0
    %6246 = vmatprep.subr.mxu0 0.0
    %6247 = vmatpush1.msra.mxu0 0.0
    %6248 = vmatprep.subr.mxu0 0.0
    %6249 = vmatpush1.msra.mxu0 0.0
    %6250 = vmatprep.subr.mxu0 0.0
    %6251 = vmatpush1.msra.mxu0 0.0
    %6252 = vmatprep.subr.mxu0 0.0
    %6253 = vmatpush1.msra.mxu0 0.0
    %6254 = vmatprep.subr.mxu0 0.0
    %6255 = vmatpush1.msra.mxu0 0.0
    %6256 = vmatprep.subr.mxu0 0.0
    %6257 = vmatpush1.msra.mxu0 0.0
    %6258 = vmatprep.subr.mxu0 0.0
    %6259 = vmatpush1.msra.mxu0 0.0
    %6260 = vmatprep.subr.mxu0 0.0
    %6261 = vmatpush1.msra.mxu0 0.0
    %6262 = vmatprep.subr.mxu0 0.0
    %6263 = vmatpush1.msra.mxu0 0.0
    %6264 = vmatprep.subr.mxu0 0.0
    %6265 = vmatpush1.msra.mxu0 0.0
    %6266 = vmatprep.subr.mxu0 0.0
    %6267 = vmatpush1.msra.mxu0 0.0
    %6268 = vmatprep.subr.mxu0 0.0
    %6269 = vmatpush1.msra.mxu0 0.0
    %6270 = vmatprep.subr.mxu0 0.0
    %6271 = vmatpush1.msra.mxu0 0.0
    %6272 = vmatprep.subr.mxu0 0.0
    %6273 = vmatpush1.msra.mxu0 0.0
    %6274 = vmatprep.subr.mxu0 0.0
    %6275 = vmatpush1.msra.mxu0 0.0
    %6276 = vmatprep.subr.mxu0 0.0
    %6277 = vmatpush1.msra.mxu0 0.0
    %6278 = vmatprep.subr.mxu0 0.0
    %6279 = vmatpush1.msra.mxu0 0.0
    %6280 = vmatprep.mubr.f32.mxu0 0.0
    %6281 = vmatmul.mubr.f32.gmra.mrb[0].mxu0 %v4827
    %v6282 = vpop.f32.mrb[0].mxu0
    %v6283 = vadd.f32 0.0, %v6282
    %v6284 = vpop.f32.mrb[0].mxu0
    %6285 = vmatprep.mubr.f32.mxu0 0.0
    %6286 = vmatmul.mubr.f32.gmra.mrb[0].mxu0 %v4830
    %v6287 = vpop.f32.mrb[0].mxu0
    %v6288 = vadd.f32 0.0, %v6287
    %v6289 = vpop.f32.mrb[0].mxu0
    %6290 = vmatprep.mubr.f32.mxu0 0.0
    %6291 = vmatmul.mubr.f32.gmra.mrb[0].mxu0 %v4833
    %v6292 = vpop.f32.mrb[0].mxu0
    %v6293 = vadd.f32 0.0, %v6292
    %v6294 = vpop.f32.mrb[0].mxu0
    %6295 = vmatprep.mubr.f32.mxu0 0.0
    %6296 = vmatmul.mubr.f32.gmra.mrb[0].mxu0 %v4836
    %v6297 = vpop.f32.mrb[0].mxu0
    %v6298 = vadd.f32 0.0, %v6297
    %v6299 = vpop.f32.mrb[0].mxu0
    %6300 = vdwg.mxu0
    %v6302 = vsel %vm768, %v6283, 0
    %v6305 = vsel %vm768, %v6288, 0
    %v6308 = vsel %vm768, %v6293, 0
    %v6311 = vsel %vm768, %v6298, 0
    %6313 = vmatprep.subr.mxu0 %v615
    %6314 = vmatpush1.msra.mxu0 %v614
    %6315 = vmatprep.subr.mxu0 %v618
    %6316 = vmatpush1.msra.mxu0 %v617
    %6317 = vmatprep.subr.mxu0 %v621
    %6318 = vmatpush1.msra.mxu0 %v620
    %6319 = vmatprep.subr.mxu0 %v624
    %6320 = vmatpush1.msra.mxu0 %v623
    %6321 = vmatprep.subr.mxu0 0.0
    %6322 = vmatpush1.msra.mxu0 0.0
    %6323 = vmatprep.subr.mxu0 0.0
    %6324 = vmatpush1.msra.mxu0 0.0
    %6325 = vmatprep.subr.mxu0 0.0
    %6326 = vmatpush1.msra.mxu0 0.0
    %6327 = vmatprep.subr.mxu0 0.0
    %6328 = vmatpush1.msra.mxu0 0.0
    %6329 = vmatprep.subr.mxu0 0.0
    %6330 = vmatpush1.msra.mxu0 0.0
    %6331 = vmatprep.subr.mxu0 0.0
    %6332 = vmatpush1.msra.mxu0 0.0
    %6333 = vmatprep.subr.mxu0 0.0
    %6334 = vmatpush1.msra.mxu0 0.0
    %6335 = vmatprep.subr.mxu0 0.0
    %6336 = vmatpush1.msra.mxu0 0.0
    %6337 = vmatprep.subr.mxu0 0.0
    %6338 = vmatpush1.msra.mxu0 0.0
    %6339 = vmatprep.subr.mxu0 0.0
    %6340 = vmatpush1.msra.mxu0 0.0
    %6341 = vmatprep.subr.mxu0 0.0
    %6342 = vmatpush1.msra.mxu0 0.0
    %6343 = vmatprep.subr.mxu0 0.0
    %6344 = vmatpush1.msra.mxu0 0.0
    %6345 = vmatprep.subr.mxu0 0.0
    %6346 = vmatpush1.msra.mxu0 0.0
    %6347 = vmatprep.subr.mxu0 0.0
    %6348 = vmatpush1.msra.mxu0 0.0
    %6349 = vmatprep.subr.mxu0 0.0
    %6350 = vmatpush1.msra.mxu0 0.0
    %6351 = vmatprep.subr.mxu0 0.0
    %6352 = vmatpush1.msra.mxu0 0.0
    %6353 = vmatprep.subr.mxu0 0.0
    %6354 = vmatpush1.msra.mxu0 0.0
    %6355 = vmatprep.subr.mxu0 0.0
    %6356 = vmatpush1.msra.mxu0 0.0
    %6357 = vmatprep.subr.mxu0 0.0
    %6358 = vmatpush1.msra.mxu0 0.0
    %6359 = vmatprep.subr.mxu0 0.0
    %6360 = vmatpush1.msra.mxu0 0.0
    %6361 = vmatprep.subr.mxu0 0.0
    %6362 = vmatpush1.msra.mxu0 0.0
    %6363 = vmatprep.subr.mxu0 0.0
    %6364 = vmatpush1.msra.mxu0 0.0
    %6365 = vmatprep.subr.mxu0 0.0
    %6366 = vmatpush1.msra.mxu0 0.0
    %6367 = vmatprep.subr.mxu0 0.0
    %6368 = vmatpush1.msra.mxu0 0.0
    %6369 = vmatprep.subr.mxu0 0.0
    %6370 = vmatpush1.msra.mxu0 0.0
    %6371 = vmatprep.subr.mxu0 0.0
    %6372 = vmatpush1.msra.mxu0 0.0
    %6373 = vmatprep.subr.mxu0 0.0
    %6374 = vmatpush1.msra.mxu0 0.0
    %6375 = vmatprep.subr.mxu0 0.0
    %6376 = vmatpush1.msra.mxu0 0.0
    %6377 = vmatprep.mubr.f32.mxu0 0.0
    %6378 = vmatmul.mubr.f32.gmra.mrb[0].mxu0 %v6302
    %v6379 = vpop.f32.mrb[0].mxu0
    %v6380 = vadd.f32 %v4927, %v6379
    %v6381 = vpop.f32.mrb[0].mxu0
    %v6382 = vadd.f32 %v4931, %v6381
    %6383 = vmatprep.mubr.f32.mxu0 0.0
    %6384 = vmatmul.mubr.f32.gmra.mrb[0].mxu0 %v6305
    %v6385 = vpop.f32.mrb[0].mxu0
    %v6386 = vadd.f32 %v4927, %v6385
    %v6387 = vpop.f32.mrb[0].mxu0
    %v6388 = vadd.f32 %v4931, %v6387
    %6389 = vmatprep.mubr.f32.mxu0 0.0
    %6390 = vmatmul.mubr.f32.gmra.mrb[0].mxu0 %v6308
    %v6391 = vpop.f32.mrb[0].mxu0
    %v6392 = vadd.f32 %v4927, %v6391
    %v6393 = vpop.f32.mrb[0].mxu0
    %v6394 = vadd.f32 %v4931, %v6393
    %6395 = vmatprep.mubr.f32.mxu0 0.0
    %6396 = vmatmul.mubr.f32.gmra.mrb[0].mxu0 %v6311
    %v6397 = vpop.f32.mrb[0].mxu0
    %v6398 = vadd.f32 %v4927, %v6397
    %v6399 = vpop.f32.mrb[0].mxu0
    %v6400 = vadd.f32 %v4931, %v6399
    %6401 = vdwg.mxu0
    %6402 = vmatprep.subr.mxu0 0.0
    %6403 = vmatpush1.msra.mxu0 %v616
    %6404 = vmatprep.subr.mxu0 0.0
    %6405 = vmatpush1.msra.mxu0 %v619
    %6406 = vmatprep.subr.mxu0 0.0
    %6407 = vmatpush1.msra.mxu0 %v622
    %6408 = vmatprep.subr.mxu0 0.0
    %6409 = vmatpush1.msra.mxu0 %v625
    %6410 = vmatprep.subr.mxu0 0.0
    %6411 = vmatpush1.msra.mxu0 0.0
    %6412 = vmatprep.subr.mxu0 0.0
    %6413 = vmatpush1.msra.mxu0 0.0
    %6414 = vmatprep.subr.mxu0 0.0
    %6415 = vmatpush1.msra.mxu0 0.0
    %6416 = vmatprep.subr.mxu0 0.0
    %6417 = vmatpush1.msra.mxu0 0.0
    %6418 = vmatprep.subr.mxu0 0.0
    %6419 = vmatpush1.msra.mxu0 0.0
    %6420 = vmatprep.subr.mxu0 0.0
    %6421 = vmatpush1.msra.mxu0 0.0
    %6422 = vmatprep.subr.mxu0 0.0
    %6423 = vmatpush1.msra.mxu0 0.0
    %6424 = vmatprep.subr.mxu0 0.0
    %6425 = vmatpush1.msra.mxu0 0.0
    %6426 = vmatprep.subr.mxu0 0.0
    %6427 = vmatpush1.msra.mxu0 0.0
    %6428 = vmatprep.subr.mxu0 0.0
    %6429 = vmatpush1.msra.mxu0 0.0
    %6430 = vmatprep.subr.mxu0 0.0
    %6431 = vmatpush1.msra.mxu0 0.0
    %6432 = vmatprep.subr.mxu0 0.0
    %6433 = vmatpush1.msra.mxu0 0.0
    %6434 = vmatprep.subr.mxu0 0.0
    %6435 = vmatpush1.msra.mxu0 0.0
    %6436 = vmatprep.subr.mxu0 0.0
    %6437 = vmatpush1.msra.mxu0 0.0
    %6438 = vmatprep.subr.mxu0 0.0
    %6439 = vmatpush1.msra.mxu0 0.0
    %6440 = vmatprep.subr.mxu0 0.0
    %6441 = vmatpush1.msra.mxu0 0.0
    %6442 = vmatprep.subr.mxu0 0.0
    %6443 = vmatpush1.msra.mxu0 0.0
    %6444 = vmatprep.subr.mxu0 0.0
    %6445 = vmatpush1.msra.mxu0 0.0
    %6446 = vmatprep.subr.mxu0 0.0
    %6447 = vmatpush1.msra.mxu0 0.0
    %6448 = vmatprep.subr.mxu0 0.0
    %6449 = vmatpush1.msra.mxu0 0.0
    %6450 = vmatprep.subr.mxu0 0.0
    %6451 = vmatpush1.msra.mxu0 0.0
    %6452 = vmatprep.subr.mxu0 0.0
    %6453 = vmatpush1.msra.mxu0 0.0
    %6454 = vmatprep.subr.mxu0 0.0
    %6455 = vmatpush1.msra.mxu0 0.0
    %6456 = vmatprep.subr.mxu0 0.0
    %6457 = vmatpush1.msra.mxu0 0.0
    %6458 = vmatprep.subr.mxu0 0.0
    %6459 = vmatpush1.msra.mxu0 0.0
    %6460 = vmatprep.subr.mxu0 0.0
    %6461 = vmatpush1.msra.mxu0 0.0
    %6462 = vmatprep.subr.mxu0 0.0
    %6463 = vmatpush1.msra.mxu0 0.0
    %6464 = vmatprep.subr.mxu0 0.0
    %6465 = vmatpush1.msra.mxu0 0.0
    %6466 = vmatprep.mubr.f32.mxu0 0.0
    %6467 = vmatmul.mubr.f32.gmra.mrb[0].mxu0 %v6302
    %v6468 = vpop.f32.mrb[0].mxu0
    %v6469 = vadd.f32 %v4935, %v6468
    %v6470 = vpop.f32.mrb[0].mxu0
    %6471 = vmatprep.mubr.f32.mxu0 0.0
    %6472 = vmatmul.mubr.f32.gmra.mrb[0].mxu0 %v6305
    %v6473 = vpop.f32.mrb[0].mxu0
    %v6474 = vadd.f32 %v4935, %v6473
    %v6475 = vpop.f32.mrb[0].mxu0
    %6476 = vmatprep.mubr.f32.mxu0 0.0
    %6477 = vmatmul.mubr.f32.gmra.mrb[0].mxu0 %v6308
    %v6478 = vpop.f32.mrb[0].mxu0
    %v6479 = vadd.f32 %v4935, %v6478
    %v6480 = vpop.f32.mrb[0].mxu0
    %6481 = vmatprep.mubr.f32.mxu0 0.0
    %6482 = vmatmul.mubr.f32.gmra.mrb[0].mxu0 %v6311
    %v6483 = vpop.f32.mrb[0].mxu0
    %v6484 = vadd.f32 %v4935, %v6483
    %v6485 = vpop.f32.mrb[0].mxu0
    %6486 = vdwg.mxu0
    %v6487 = vmax.f32 %v6380, 0.0
    %v6488 = vmax.f32 %v6382, 0.0
    %v6489 = vmax.f32 %v6469, 0.0
    %v6490 = vmax.f32 %v6386, 0.0
    %v6491 = vmax.f32 %v6388, 0.0
    %v6492 = vmax.f32 %v6474, 0.0
    %v6493 = vmax.f32 %v6392, 0.0
    %v6494 = vmax.f32 %v6394, 0.0
    %v6495 = vmax.f32 %v6479, 0.0
    %v6496 = vmax.f32 %v6398, 0.0
    %v6497 = vmax.f32 %v6400, 0.0
    %v6498 = vmax.f32 %v6484, 0.0
    %v6500 = vsel %vm1466, %v6489, 0
    %v6503 = vsel %vm1466, %v6492, 0
    %v6506 = vsel %vm1466, %v6495, 0
    %v6509 = vsel %vm1466, %v6498, 0
    %6511 = vmatprep.subr.mxu0 0.0
    %6512 = vmatpush1.msra.mxu0 %v627
    %6513 = vmatprep.subr.mxu0 0.0
    %6514 = vmatpush1.msra.mxu0 %v628
    %6515 = vmatprep.subr.mxu0 0.0
    %6516 = vmatpush1.msra.mxu0 %v629
    %6517 = vmatprep.subr.mxu0 0.0
    %6518 = vmatpush1.msra.mxu0 %v630
    %6519 = vmatprep.subr.mxu0 0.0
    %6520 = vmatpush1.msra.mxu0 %v631
    %6521 = vmatprep.subr.mxu0 0.0
    %6522 = vmatpush1.msra.mxu0 %v632
    %6523 = vmatprep.subr.mxu0 0.0
    %6524 = vmatpush1.msra.mxu0 %v633
    %6525 = vmatprep.subr.mxu0 0.0
    %6526 = vmatpush1.msra.mxu0 %v634
    %6527 = vmatprep.subr.mxu0 0.0
    %6528 = vmatpush1.msra.mxu0 %v635
    %6529 = vmatprep.subr.mxu0 0.0
    %6530 = vmatpush1.msra.mxu0 %v636
    %6531 = vmatprep.subr.mxu0 0.0
    %6532 = vmatpush1.msra.mxu0 %v637
    %6533 = vmatprep.subr.mxu0 0.0
    %6534 = vmatpush1.msra.mxu0 %v638
    %6535 = vmatprep.subr.mxu0 0.0
    %6536 = vmatpush1.msra.mxu0 %v639
    %6537 = vmatprep.subr.mxu0 0.0
    %6538 = vmatpush1.msra.mxu0 %v640
    %6539 = vmatprep.subr.mxu0 0.0
    %6540 = vmatpush1.msra.mxu0 %v641
    %6541 = vmatprep.subr.mxu0 0.0
    %6542 = vmatpush1.msra.mxu0 %v642
    %6543 = vmatprep.subr.mxu0 0.0
    %6544 = vmatpush1.msra.mxu0 %v643
    %6545 = vmatprep.subr.mxu0 0.0
    %6546 = vmatpush1.msra.mxu0 %v644
    %6547 = vmatprep.subr.mxu0 0.0
    %6548 = vmatpush1.msra.mxu0 %v645
    %6549 = vmatprep.subr.mxu0 0.0
    %6550 = vmatpush1.msra.mxu0 %v646
    %6551 = vmatprep.subr.mxu0 0.0
    %6552 = vmatpush1.msra.mxu0 %v647
    %6553 = vmatprep.subr.mxu0 0.0
    %6554 = vmatpush1.msra.mxu0 %v648
    %6555 = vmatprep.subr.mxu0 0.0
    %6556 = vmatpush1.msra.mxu0 %v649
    %6557 = vmatprep.subr.mxu0 0.0
    %6558 = vmatpush1.msra.mxu0 %v650
    %6559 = vmatprep.subr.mxu0 0.0
    %6560 = vmatpush1.msra.mxu0 %v651
    %6561 = vmatprep.subr.mxu0 0.0
    %6562 = vmatpush1.msra.mxu0 %v652
    %6563 = vmatprep.subr.mxu0 0.0
    %6564 = vmatpush1.msra.mxu0 %v653
    %6565 = vmatprep.subr.mxu0 0.0
    %6566 = vmatpush1.msra.mxu0 %v654
    %6567 = vmatprep.subr.mxu0 0.0
    %6568 = vmatpush1.msra.mxu0 %v655
    %6569 = vmatprep.subr.mxu0 0.0
    %6570 = vmatpush1.msra.mxu0 %v656
    %6571 = vmatprep.subr.mxu0 0.0
    %6572 = vmatpush1.msra.mxu0 %v657
    %6573 = vmatprep.subr.mxu0 0.0
    %6574 = vmatpush1.msra.mxu0 %v658
    %6575 = vmatprep.mubr.f32.mxu0 %v6488
    %6576 = vmatmul.mubr.f32.gmra.mrb[0].mxu0 %v6487
    %v6577 = vpop.f32.mrb[0].mxu0
    %v6578 = vadd.f32 %v5141, %v6577
    %v6579 = vpop.f32.mrb[0].mxu0
    %6580 = vmatprep.mubr.f32.mxu0 %v6491
    %6581 = vmatmul.mubr.f32.gmra.mrb[0].mxu0 %v6490
    %v6582 = vpop.f32.mrb[0].mxu0
    %v6583 = vadd.f32 %v5141, %v6582
    %v6584 = vpop.f32.mrb[0].mxu0
    %6585 = vmatprep.mubr.f32.mxu0 %v6494
    %6586 = vmatmul.mubr.f32.gmra.mrb[0].mxu0 %v6493
    %v6587 = vpop.f32.mrb[0].mxu0
    %v6588 = vadd.f32 %v5141, %v6587
    %v6589 = vpop.f32.mrb[0].mxu0
    %6590 = vmatprep.mubr.f32.mxu0 %v6497
    %6591 = vmatmul.mubr.f32.gmra.mrb[0].mxu0 %v6496
    %v6592 = vpop.f32.mrb[0].mxu0
    %v6593 = vadd.f32 %v5141, %v6592
    %v6594 = vpop.f32.mrb[0].mxu0
    %6595 = vdwg.mxu0
    %6596 = vmatprep.subr.mxu0 0.0
    %6597 = vmatpush1.msra.mxu0 %v659
    %6598 = vmatprep.subr.mxu0 0.0
    %6599 = vmatpush1.msra.mxu0 %v660
    %6600 = vmatprep.subr.mxu0 0.0
    %6601 = vmatpush1.msra.mxu0 %v661
    %6602 = vmatprep.subr.mxu0 0.0
    %6603 = vmatpush1.msra.mxu0 %v662
    %6604 = vmatprep.subr.mxu0 0.0
    %6605 = vmatpush1.msra.mxu0 %v663
    %6606 = vmatprep.subr.mxu0 0.0
    %6607 = vmatpush1.msra.mxu0 %v664
    %6608 = vmatprep.subr.mxu0 0.0
    %6609 = vmatpush1.msra.mxu0 %v665
    %6610 = vmatprep.subr.mxu0 0.0
    %6611 = vmatpush1.msra.mxu0 %v666
    %6612 = vmatprep.subr.mxu0 0.0
    %6613 = vmatpush1.msra.mxu0 0.0
    %6614 = vmatprep.subr.mxu0 0.0
    %6615 = vmatpush1.msra.mxu0 0.0
    %6616 = vmatprep.subr.mxu0 0.0
    %6617 = vmatpush1.msra.mxu0 0.0
    %6618 = vmatprep.subr.mxu0 0.0
    %6619 = vmatpush1.msra.mxu0 0.0
    %6620 = vmatprep.subr.mxu0 0.0
    %6621 = vmatpush1.msra.mxu0 0.0
    %6622 = vmatprep.subr.mxu0 0.0
    %6623 = vmatpush1.msra.mxu0 0.0
    %6624 = vmatprep.subr.mxu0 0.0
    %6625 = vmatpush1.msra.mxu0 0.0
    %6626 = vmatprep.subr.mxu0 0.0
    %6627 = vmatpush1.msra.mxu0 0.0
    %6628 = vmatprep.subr.mxu0 0.0
    %6629 = vmatpush1.msra.mxu0 0.0
    %6630 = vmatprep.subr.mxu0 0.0
    %6631 = vmatpush1.msra.mxu0 0.0
    %6632 = vmatprep.subr.mxu0 0.0
    %6633 = vmatpush1.msra.mxu0 0.0
    %6634 = vmatprep.subr.mxu0 0.0
    %6635 = vmatpush1.msra.mxu0 0.0
    %6636 = vmatprep.subr.mxu0 0.0
    %6637 = vmatpush1.msra.mxu0 0.0
    %6638 = vmatprep.subr.mxu0 0.0
    %6639 = vmatpush1.msra.mxu0 0.0
    %6640 = vmatprep.subr.mxu0 0.0
    %6641 = vmatpush1.msra.mxu0 0.0
    %6642 = vmatprep.subr.mxu0 0.0
    %6643 = vmatpush1.msra.mxu0 0.0
    %6644 = vmatprep.subr.mxu0 0.0
    %6645 = vmatpush1.msra.mxu0 0.0
    %6646 = vmatprep.subr.mxu0 0.0
    %6647 = vmatpush1.msra.mxu0 0.0
    %6648 = vmatprep.subr.mxu0 0.0
    %6649 = vmatpush1.msra.mxu0 0.0
    %6650 = vmatprep.subr.mxu0 0.0
    %6651 = vmatpush1.msra.mxu0 0.0
    %6652 = vmatprep.subr.mxu0 0.0
    %6653 = vmatpush1.msra.mxu0 0.0
    %6654 = vmatprep.subr.mxu0 0.0
    %6655 = vmatpush1.msra.mxu0 0.0
    %6656 = vmatprep.subr.mxu0 0.0
    %6657 = vmatpush1.msra.mxu0 0.0
    %6658 = vmatprep.subr.mxu0 0.0
    %6659 = vmatpush1.msra.mxu0 0.0
    %6660 = vmatprep.mubr.f32.mxu0 0.0
    %6661 = vmatmul.mubr.f32.gmra.mrb[0].mxu0 %v6500
    %v6662 = vpop.f32.mrb[0].mxu0
    %v6663 = vadd.f32 %v6578, %v6662
    %v6664 = vpop.f32.mrb[0].mxu0
    %6665 = vmatprep.mubr.f32.mxu0 0.0
    %6666 = vmatmul.mubr.f32.gmra.mrb[0].mxu0 %v6503
    %v6667 = vpop.f32.mrb[0].mxu0
    %v6668 = vadd.f32 %v6583, %v6667
    %v6669 = vpop.f32.mrb[0].mxu0
    %6670 = vmatprep.mubr.f32.mxu0 0.0
    %6671 = vmatmul.mubr.f32.gmra.mrb[0].mxu0 %v6506
    %v6672 = vpop.f32.mrb[0].mxu0
    %v6673 = vadd.f32 %v6588, %v6672
    %v6674 = vpop.f32.mrb[0].mxu0
    %6675 = vmatprep.mubr.f32.mxu0 0.0
    %6676 = vmatmul.mubr.f32.gmra.mrb[0].mxu0 %v6509
    %v6677 = vpop.f32.mrb[0].mxu0
    %v6678 = vadd.f32 %v6593, %v6677
    %v6679 = vpop.f32.mrb[0].mxu0
    %6680 = vdwg.mxu0
    %v6681 = vmax.f32 %v6663, 0.0
    %v6682 = vmax.f32 %v6668, 0.0
    %v6683 = vmax.f32 %v6673, 0.0
    %v6684 = vmax.f32 %v6678, 0.0
    %v6686 = vsel %vm768, %v6681, 0
    %v6689 = vsel %vm768, %v6682, 0
    %v6692 = vsel %vm768, %v6683, 0
    %v6695 = vsel %vm768, %v6684, 0
    %6697 = vmatprep.subr.mxu0 0.0
    %6698 = vmatpush1.msra.mxu0 %v668
    %6699 = vmatprep.subr.mxu0 0.0
    %6700 = vmatpush1.msra.mxu0 %v669
    %6701 = vmatprep.subr.mxu0 0.0
    %6702 = vmatpush1.msra.mxu0 %v670
    %6703 = vmatprep.subr.mxu0 0.0
    %6704 = vmatpush1.msra.mxu0 %v671
    %6705 = vmatprep.subr.mxu0 0.0
    %6706 = vmatpush1.msra.mxu0 0.0
    %6707 = vmatprep.subr.mxu0 0.0
    %6708 = vmatpush1.msra.mxu0 0.0
    %6709 = vmatprep.subr.mxu0 0.0
    %6710 = vmatpush1.msra.mxu0 0.0
    %6711 = vmatprep.subr.mxu0 0.0
    %6712 = vmatpush1.msra.mxu0 0.0
    %6713 = vmatprep.subr.mxu0 0.0
    %6714 = vmatpush1.msra.mxu0 0.0
    %6715 = vmatprep.subr.mxu0 0.0
    %6716 = vmatpush1.msra.mxu0 0.0
    %6717 = vmatprep.subr.mxu0 0.0
    %6718 = vmatpush1.msra.mxu0 0.0
    %6719 = vmatprep.subr.mxu0 0.0
    %6720 = vmatpush1.msra.mxu0 0.0
    %6721 = vmatprep.subr.mxu0 0.0
    %6722 = vmatpush1.msra.mxu0 0.0
    %6723 = vmatprep.subr.mxu0 0.0
    %6724 = vmatpush1.msra.mxu0 0.0
    %6725 = vmatprep.subr.mxu0 0.0
    %6726 = vmatpush1.msra.mxu0 0.0
    %6727 = vmatprep.subr.mxu0 0.0
    %6728 = vmatpush1.msra.mxu0 0.0
    %6729 = vmatprep.subr.mxu0 0.0
    %6730 = vmatpush1.msra.mxu0 0.0
    %6731 = vmatprep.subr.mxu0 0.0
    %6732 = vmatpush1.msra.mxu0 0.0
    %6733 = vmatprep.subr.mxu0 0.0
    %6734 = vmatpush1.msra.mxu0 0.0
    %6735 = vmatprep.subr.mxu0 0.0
    %6736 = vmatpush1.msra.mxu0 0.0
    %6737 = vmatprep.subr.mxu0 0.0
    %6738 = vmatpush1.msra.mxu0 0.0
    %6739 = vmatprep.subr.mxu0 0.0
    %6740 = vmatpush1.msra.mxu0 0.0
    %6741 = vmatprep.subr.mxu0 0.0
    %6742 = vmatpush1.msra.mxu0 0.0
    %6743 = vmatprep.subr.mxu0 0.0
    %6744 = vmatpush1.msra.mxu0 0.0
    %6745 = vmatprep.subr.mxu0 0.0
    %6746 = vmatpush1.msra.mxu0 0.0
    %6747 = vmatprep.subr.mxu0 0.0
    %6748 = vmatpush1.msra.mxu0 0.0
    %6749 = vmatprep.subr.mxu0 0.0
    %6750 = vmatpush1.msra.mxu0 0.0
    %6751 = vmatprep.subr.mxu0 0.0
    %6752 = vmatpush1.msra.mxu0 0.0
    %6753 = vmatprep.subr.mxu0 0.0
    %6754 = vmatpush1.msra.mxu0 0.0
    %6755 = vmatprep.subr.mxu0 0.0
    %6756 = vmatpush1.msra.mxu0 0.0
    %6757 = vmatprep.subr.mxu0 0.0
    %6758 = vmatpush1.msra.mxu0 0.0
    %6759 = vmatprep.subr.mxu0 0.0
    %6760 = vmatpush1.msra.mxu0 0.0
    %6761 = vmatprep.mubr.f32.mxu0 0.0
    %6762 = vmatmul.mubr.f32.gmra.mrb[0].mxu0 %v6686
    %v6763 = vpop.f32.mrb[0].mxu0
    %v6764 = vadd.f32 %v5333, %v6763
    %v6765 = vpop.f32.mrb[0].mxu0
    %6766 = vmatprep.mubr.f32.mxu0 0.0
    %6767 = vmatmul.mubr.f32.gmra.mrb[0].mxu0 %v6689
    %v6768 = vpop.f32.mrb[0].mxu0
    %v6769 = vadd.f32 %v5333, %v6768
    %v6770 = vpop.f32.mrb[0].mxu0
    %6771 = vmatprep.mubr.f32.mxu0 0.0
    %6772 = vmatmul.mubr.f32.gmra.mrb[0].mxu0 %v6692
    %v6773 = vpop.f32.mrb[0].mxu0
    %v6774 = vadd.f32 %v5333, %v6773
    %v6775 = vpop.f32.mrb[0].mxu0
    %6776 = vmatprep.mubr.f32.mxu0 0.0
    %6777 = vmatmul.mubr.f32.gmra.mrb[0].mxu0 %v6695
    %v6778 = vpop.f32.mrb[0].mxu0
    %v6779 = vadd.f32 %v5333, %v6778
    %v6780 = vpop.f32.mrb[0].mxu0
    %6781 = vdwg.mxu0
    %6786 = vrot.lane.b32.xlu0 %v4024, 32
    %v6787 = vpop.permute.xlu0 %6786
    %6788 = vrot.lane.b32.xlu0 %v4029, 32
    %v6789 = vpop.permute.xlu0 %6788
    %6790 = vrot.lane.b32.xlu0 %v4034, 32
    %v6791 = vpop.permute.xlu0 %6790
    %6792 = vrot.lane.b32.xlu0 %v4039, 32
    %v6793 = vpop.permute.xlu0 %6792
    %6802 = vrot.lane.b32.xlu0 %v5414, 64
    %v6803 = vpop.permute.xlu0 %6802
    %6804 = vrot.lane.b32.xlu0 %v5419, 64
    %v6805 = vpop.permute.xlu0 %6804
    %6806 = vrot.lane.b32.xlu0 %v5424, 64
    %v6807 = vpop.permute.xlu0 %6806
    %6808 = vrot.lane.b32.xlu0 %v5429, 64
    %v6809 = vpop.permute.xlu0 %6808
    %6818 = vrot.lane.b32.xlu0 %v6764, 96
    %v6819 = vpop.permute.xlu0 %6818
    %6820 = vrot.lane.b32.xlu0 %v6769, 96
    %v6821 = vpop.permute.xlu0 %6820
    %6822 = vrot.lane.b32.xlu0 %v6774, 96
    %v6823 = vpop.permute.xlu0 %6822
    %6824 = vrot.lane.b32.xlu0 %v6779, 96
    %v6825 = vpop.permute.xlu0 %6824
    %v6830 = vsel %vm768, %v2432, %v6787
    %v6831 = vsel %vm768, %v2437, %v6789
    %v6832 = vsel %vm768, %v2442, %v6791
    %v6833 = vsel %vm768, %v2447, %v6793
    %v6834 = vsel %vm1466, %v6830, %v6803
    %v6835 = vsel %vm1466, %v6831, %v6805
    %v6836 = vsel %vm1466, %v6832, %v6807
    %v6837 = vsel %vm1466, %v6833, %v6809
    %vm6838 = vcmask 785408
    %v6839 = vsel %vm6838, %v6834, %v6819
    %v6840 = vsel %vm6838, %v6835, %v6821
    %v6841 = vsel %vm6838, %v6836, %v6823
    %v6842 = vsel %vm6838, %v6837, %v6825
    %v6844 = vlaneseq
    %v6845 = vshrl.u32 %v6844, 7
    %v6846 = vsub.s32 0, %v6845
    %v6847 = vrot.slane %v721, %v6846
    %v6848 = vlaneseq
    %v6849 = vshrl.u32 %v6848, 7
    %v6850 = vsub.s32 1, %v6849
    %v6851 = vrot.slane %v721, %v6850
    %v6852 = vlaneseq
    %v6853 = vshrl.u32 %v6852, 7
    %v6854 = vsub.s32 2, %v6853
    %v6855 = vrot.slane %v721, %v6854
    %6859 = vmatprep.subr.mxu0 %v674
    %6860 = vmatpush1.msra.mxu0 %v673
    %6861 = vmatprep.subr.mxu0 %v677
    %6862 = vmatpush1.msra.mxu0 %v676
    %6863 = vmatprep.subr.mxu0 %v680
    %6864 = vmatpush1.msra.mxu0 %v679
    %6865 = vmatprep.subr.mxu0 %v683
    %6866 = vmatpush1.msra.mxu0 %v682
    %6867 = vmatprep.subr.mxu0 %v686
    %6868 = vmatpush1.msra.mxu0 %v685
    %6869 = vmatprep.subr.mxu0 %v689
    %6870 = vmatpush1.msra.mxu0 %v688
    %6871 = vmatprep.subr.mxu0 %v692
    %6872 = vmatpush1.msra.mxu0 %v691
    %6873 = vmatprep.subr.mxu0 %v695
    %6874 = vmatpush1.msra.mxu0 %v694
    %6875 = vmatprep.subr.mxu0 %v698
    %6876 = vmatpush1.msra.mxu0 %v697
    %6877 = vmatprep.subr.mxu0 %v701
    %6878 = vmatpush1.msra.mxu0 %v700
    %6879 = vmatprep.subr.mxu0 %v704
    %6880 = vmatpush1.msra.mxu0 %v703
    %6881 = vmatprep.subr.mxu0 %v707
    %6882 = vmatpush1.msra.mxu0 %v706
    %6883 = vmatprep.subr.mxu0 %v710
    %6884 = vmatpush1.msra.mxu0 %v709
    %6885 = vmatprep.subr.mxu0 %v713
    %6886 = vmatpush1.msra.mxu0 %v712
    %6887 = vmatprep.subr.mxu0 %v716
    %6888 = vmatpush1.msra.mxu0 %v715
    %6889 = vmatprep.subr.mxu0 %v719
    %6890 = vmatpush1.msra.mxu0 %v718
    %6891 = vmatprep.subr.mxu0 0.0
    %6892 = vmatpush1.msra.mxu0 0.0
    %6893 = vmatprep.subr.mxu0 0.0
    %6894 = vmatpush1.msra.mxu0 0.0
    %6895 = vmatprep.subr.mxu0 0.0
    %6896 = vmatpush1.msra.mxu0 0.0
    %6897 = vmatprep.subr.mxu0 0.0
    %6898 = vmatpush1.msra.mxu0 0.0
    %6899 = vmatprep.subr.mxu0 0.0
    %6900 = vmatpush1.msra.mxu0 0.0
    %6901 = vmatprep.subr.mxu0 0.0
    %6902 = vmatpush1.msra.mxu0 0.0
    %6903 = vmatprep.subr.mxu0 0.0
    %6904 = vmatpush1.msra.mxu0 0.0
    %6905 = vmatprep.subr.mxu0 0.0
    %6906 = vmatpush1.msra.mxu0 0.0
    %6907 = vmatprep.subr.mxu0 0.0
    %6908 = vmatpush1.msra.mxu0 0.0
    %6909 = vmatprep.subr.mxu0 0.0
    %6910 = vmatpush1.msra.mxu0 0.0
    %6911 = vmatprep.subr.mxu0 0.0
    %6912 = vmatpush1.msra.mxu0 0.0
    %6913 = vmatprep.subr.mxu0 0.0
    %6914 = vmatpush1.msra.mxu0 0.0
    %6915 = vmatprep.subr.mxu0 0.0
    %6916 = vmatpush1.msra.mxu0 0.0
    %6917 = vmatprep.subr.mxu0 0.0
    %6918 = vmatpush1.msra.mxu0 0.0
    %6919 = vmatprep.subr.mxu0 0.0
    %6920 = vmatpush1.msra.mxu0 0.0
    %6921 = vmatprep.subr.mxu0 0.0
    %6922 = vmatpush1.msra.mxu0 0.0
    %6923 = vmatprep.mubr.f32.mxu0 0.0
    %6924 = vmatmul.mubr.f32.gmra.mrb[0].mxu0 %v6839
    %v6925 = vpop.f32.mrb[0].mxu0
    %v6926 = vadd.f32 %v6847, %v6925
    %v6927 = vpop.f32.mrb[0].mxu0
    %v6928 = vadd.f32 %v6851, %v6927
    %6929 = vmatprep.mubr.f32.mxu0 0.0
    %6930 = vmatmul.mubr.f32.gmra.mrb[0].mxu0 %v6840
    %v6931 = vpop.f32.mrb[0].mxu0
    %v6932 = vadd.f32 %v6847, %v6931
    %v6933 = vpop.f32.mrb[0].mxu0
    %v6934 = vadd.f32 %v6851, %v6933
    %6935 = vmatprep.mubr.f32.mxu0 0.0
    %6936 = vmatmul.mubr.f32.gmra.mrb[0].mxu0 %v6841
    %v6937 = vpop.f32.mrb[0].mxu0
    %v6938 = vadd.f32 %v6847, %v6937
    %v6939 = vpop.f32.mrb[0].mxu0
    %v6940 = vadd.f32 %v6851, %v6939
    %6941 = vmatprep.mubr.f32.mxu0 0.0
    %6942 = vmatmul.mubr.f32.gmra.mrb[0].mxu0 %v6842
    %v6943 = vpop.f32.mrb[0].mxu0
    %v6944 = vadd.f32 %v6847, %v6943
    %v6945 = vpop.f32.mrb[0].mxu0
    %v6946 = vadd.f32 %v6851, %v6945
    %6947 = vdwg.mxu0
    %6948 = vmatprep.subr.mxu0 0.0
    %6949 = vmatpush1.msra.mxu0 %v675
    %6950 = vmatprep.subr.mxu0 0.0
    %6951 = vmatpush1.msra.mxu0 %v678
    %6952 = vmatprep.subr.mxu0 0.0
    %6953 = vmatpush1.msra.mxu0 %v681
    %6954 = vmatprep.subr.mxu0 0.0
    %6955 = vmatpush1.msra.mxu0 %v684
    %6956 = vmatprep.subr.mxu0 0.0
    %6957 = vmatpush1.msra.mxu0 %v687
    %6958 = vmatprep.subr.mxu0 0.0
    %6959 = vmatpush1.msra.mxu0 %v690
    %6960 = vmatprep.subr.mxu0 0.0
    %6961 = vmatpush1.msra.mxu0 %v693
    %6962 = vmatprep.subr.mxu0 0.0
    %6963 = vmatpush1.msra.mxu0 %v696
    %6964 = vmatprep.subr.mxu0 0.0
    %6965 = vmatpush1.msra.mxu0 %v699
    %6966 = vmatprep.subr.mxu0 0.0
    %6967 = vmatpush1.msra.mxu0 %v702
    %6968 = vmatprep.subr.mxu0 0.0
    %6969 = vmatpush1.msra.mxu0 %v705
    %6970 = vmatprep.subr.mxu0 0.0
    %6971 = vmatpush1.msra.mxu0 %v708
    %6972 = vmatprep.subr.mxu0 0.0
    %6973 = vmatpush1.msra.mxu0 %v711
    %6974 = vmatprep.subr.mxu0 0.0
    %6975 = vmatpush1.msra.mxu0 %v714
    %6976 = vmatprep.subr.mxu0 0.0
    %6977 = vmatpush1.msra.mxu0 %v717
    %6978 = vmatprep.subr.mxu0 0.0
    %6979 = vmatpush1.msra.mxu0 %v720
    %6980 = vmatprep.subr.mxu0 0.0
    %6981 = vmatpush1.msra.mxu0 0.0
    %6982 = vmatprep.subr.mxu0 0.0
    %6983 = vmatpush1.msra.mxu0 0.0
    %6984 = vmatprep.subr.mxu0 0.0
    %6985 = vmatpush1.msra.mxu0 0.0
    %6986 = vmatprep.subr.mxu0 0.0
    %6987 = vmatpush1.msra.mxu0 0.0
    %6988 = vmatprep.subr.mxu0 0.0
    %6989 = vmatpush1.msra.mxu0 0.0
    %6990 = vmatprep.subr.mxu0 0.0
    %6991 = vmatpush1.msra.mxu0 0.0
    %6992 = vmatprep.subr.mxu0 0.0
    %6993 = vmatpush1.msra.mxu0 0.0
    %6994 = vmatprep.subr.mxu0 0.0
    %6995 = vmatpush1.msra.mxu0 0.0
    %6996 = vmatprep.subr.mxu0 0.0
    %6997 = vmatpush1.msra.mxu0 0.0
    %6998 = vmatprep.subr.mxu0 0.0
    %6999 = vmatpush1.msra.mxu0 0.0
    %7000 = vmatprep.subr.mxu0 0.0
    %7001 = vmatpush1.msra.mxu0 0.0
    %7002 = vmatprep.subr.mxu0 0.0
    %7003 = vmatpush1.msra.mxu0 0.0
    %7004 = vmatprep.subr.mxu0 0.0
    %7005 = vmatpush1.msra.mxu0 0.0
    %7006 = vmatprep.subr.mxu0 0.0
    %7007 = vmatpush1.msra.mxu0 0.0
    %7008 = vmatprep.subr.mxu0 0.0
    %7009 = vmatpush1.msra.mxu0 0.0
    %7010 = vmatprep.subr.mxu0 0.0
    %7011 = vmatpush1.msra.mxu0 0.0
    %7012 = vmatprep.mubr.f32.mxu0 0.0
    %7013 = vmatmul.mubr.f32.gmra.mrb[0].mxu0 %v6839
    %v7014 = vpop.f32.mrb[0].mxu0
    %v7015 = vadd.f32 %v6855, %v7014
    %v7016 = vpop.f32.mrb[0].mxu0
    %7017 = vmatprep.mubr.f32.mxu0 0.0
    %7018 = vmatmul.mubr.f32.gmra.mrb[0].mxu0 %v6840
    %v7019 = vpop.f32.mrb[0].mxu0
    %v7020 = vadd.f32 %v6855, %v7019
    %v7021 = vpop.f32.mrb[0].mxu0
    %7022 = vmatprep.mubr.f32.mxu0 0.0
    %7023 = vmatmul.mubr.f32.gmra.mrb[0].mxu0 %v6841
    %v7024 = vpop.f32.mrb[0].mxu0
    %v7025 = vadd.f32 %v6855, %v7024
    %v7026 = vpop.f32.mrb[0].mxu0
    %7027 = vmatprep.mubr.f32.mxu0 0.0
    %7028 = vmatmul.mubr.f32.gmra.mrb[0].mxu0 %v6842
    %v7029 = vpop.f32.mrb[0].mxu0
    %v7030 = vadd.f32 %v6855, %v7029
    %v7031 = vpop.f32.mrb[0].mxu0
    %7032 = vdwg.mxu0
    %v7033 = vmax.f32 %v6926, 0.0
    %v7034 = vmax.f32 %v6928, 0.0
    %v7035 = vmax.f32 %v7015, 0.0
    %v7036 = vmax.f32 %v6932, 0.0
    %v7037 = vmax.f32 %v6934, 0.0
    %v7038 = vmax.f32 %v7020, 0.0
    %v7039 = vmax.f32 %v6938, 0.0
    %v7040 = vmax.f32 %v6940, 0.0
    %v7041 = vmax.f32 %v7025, 0.0
    %v7042 = vmax.f32 %v6944, 0.0
    %v7043 = vmax.f32 %v6946, 0.0
    %v7044 = vmax.f32 %v7030, 0.0
    %v7046 = vlaneseq
    %v7047 = vshrl.u32 %v7046, 7
    %v7048 = vsub.s32 0, %v7047
    %v7049 = vrot.slane %v762, %v7048
    %v7052 = vsel %vm1466, %v7035, 0
    %v7055 = vsel %vm1466, %v7038, 0
    %v7058 = vsel %vm1466, %v7041, 0
    %v7061 = vsel %vm1466, %v7044, 0
    %7063 = vmatprep.subr.mxu0 0.0
    %7064 = vmatpush1.msra.mxu0 %v722
    %7065 = vmatprep.subr.mxu0 0.0
    %7066 = vmatpush1.msra.mxu0 %v723
    %7067 = vmatprep.subr.mxu0 0.0
    %7068 = vmatpush1.msra.mxu0 %v724
    %7069 = vmatprep.subr.mxu0 0.0
    %7070 = vmatpush1.msra.mxu0 %v725
    %7071 = vmatprep.subr.mxu0 0.0
    %7072 = vmatpush1.msra.mxu0 %v726
    %7073 = vmatprep.subr.mxu0 0.0
    %7074 = vmatpush1.msra.mxu0 %v727
    %7075 = vmatprep.subr.mxu0 0.0
    %7076 = vmatpush1.msra.mxu0 %v728
    %7077 = vmatprep.subr.mxu0 0.0
    %7078 = vmatpush1.msra.mxu0 %v729
    %7079 = vmatprep.subr.mxu0 0.0
    %7080 = vmatpush1.msra.mxu0 %v730
    %7081 = vmatprep.subr.mxu0 0.0
    %7082 = vmatpush1.msra.mxu0 %v731
    %7083 = vmatprep.subr.mxu0 0.0
    %7084 = vmatpush1.msra.mxu0 %v732
    %7085 = vmatprep.subr.mxu0 0.0
    %7086 = vmatpush1.msra.mxu0 %v733
    %7087 = vmatprep.subr.mxu0 0.0
    %7088 = vmatpush1.msra.mxu0 %v734
    %7089 = vmatprep.subr.mxu0 0.0
    %7090 = vmatpush1.msra.mxu0 %v735
    %7091 = vmatprep.subr.mxu0 0.0
    %7092 = vmatpush1.msra.mxu0 %v736
    %7093 = vmatprep.subr.mxu0 0.0
    %7094 = vmatpush1.msra.mxu0 %v737
    %7095 = vmatprep.subr.mxu0 0.0
    %7096 = vmatpush1.msra.mxu0 %v738
    %7097 = vmatprep.subr.mxu0 0.0
    %7098 = vmatpush1.msra.mxu0 %v739
    %7099 = vmatprep.subr.mxu0 0.0
    %7100 = vmatpush1.msra.mxu0 %v740
    %7101 = vmatprep.subr.mxu0 0.0
    %7102 = vmatpush1.msra.mxu0 %v741
    %7103 = vmatprep.subr.mxu0 0.0
    %7104 = vmatpush1.msra.mxu0 %v742
    %7105 = vmatprep.subr.mxu0 0.0
    %7106 = vmatpush1.msra.mxu0 %v743
    %7107 = vmatprep.subr.mxu0 0.0
    %7108 = vmatpush1.msra.mxu0 %v744
    %7109 = vmatprep.subr.mxu0 0.0
    %7110 = vmatpush1.msra.mxu0 %v745
    %7111 = vmatprep.subr.mxu0 0.0
    %7112 = vmatpush1.msra.mxu0 %v746
    %7113 = vmatprep.subr.mxu0 0.0
    %7114 = vmatpush1.msra.mxu0 %v747
    %7115 = vmatprep.subr.mxu0 0.0
    %7116 = vmatpush1.msra.mxu0 %v748
    %7117 = vmatprep.subr.mxu0 0.0
    %7118 = vmatpush1.msra.mxu0 %v749
    %7119 = vmatprep.subr.mxu0 0.0
    %7120 = vmatpush1.msra.mxu0 %v750
    %7121 = vmatprep.subr.mxu0 0.0
    %7122 = vmatpush1.msra.mxu0 %v751
    %7123 = vmatprep.subr.mxu0 0.0
    %7124 = vmatpush1.msra.mxu0 %v752
    %7125 = vmatprep.subr.mxu0 0.0
    %7126 = vmatpush1.msra.mxu0 %v753
    %7127 = vmatprep.mubr.f32.mxu0 %v7034
    %7128 = vmatmul.mubr.f32.gmra.mrb[0].mxu0 %v7033
    %v7129 = vpop.f32.mrb[0].mxu0
    %v7130 = vadd.f32 %v7049, %v7129
    %v7131 = vpop.f32.mrb[0].mxu0
    %7132 = vmatprep.mubr.f32.mxu0 %v7037
    %7133 = vmatmul.mubr.f32.gmra.mrb[0].mxu0 %v7036
    %v7134 = vpop.f32.mrb[0].mxu0
    %v7135 = vadd.f32 %v7049, %v7134
    %v7136 = vpop.f32.mrb[0].mxu0
    %7137 = vmatprep.mubr.f32.mxu0 %v7040
    %7138 = vmatmul.mubr.f32.gmra.mrb[0].mxu0 %v7039
    %v7139 = vpop.f32.mrb[0].mxu0
    %v7140 = vadd.f32 %v7049, %v7139
    %v7141 = vpop.f32.mrb[0].mxu0
    %7142 = vmatprep.mubr.f32.mxu0 %v7043
    %7143 = vmatmul.mubr.f32.gmra.mrb[0].mxu0 %v7042
    %v7144 = vpop.f32.mrb[0].mxu0
    %v7145 = vadd.f32 %v7049, %v7144
    %v7146 = vpop.f32.mrb[0].mxu0
    %7147 = vdwg.mxu0
    %7148 = vmatprep.subr.mxu0 0.0
    %7149 = vmatpush1.msra.mxu0 %v754
    %7150 = vmatprep.subr.mxu0 0.0
    %7151 = vmatpush1.msra.mxu0 %v755
    %7152 = vmatprep.subr.mxu0 0.0
    %7153 = vmatpush1.msra.mxu0 %v756
    %7154 = vmatprep.subr.mxu0 0.0
    %7155 = vmatpush1.msra.mxu0 %v757
    %7156 = vmatprep.subr.mxu0 0.0
    %7157 = vmatpush1.msra.mxu0 %v758
    %7158 = vmatprep.subr.mxu0 0.0
    %7159 = vmatpush1.msra.mxu0 %v759
    %7160 = vmatprep.subr.mxu0 0.0
    %7161 = vmatpush1.msra.mxu0 %v760
    %7162 = vmatprep.subr.mxu0 0.0
    %7163 = vmatpush1.msra.mxu0 %v761
    %7164 = vmatprep.subr.mxu0 0.0
    %7165 = vmatpush1.msra.mxu0 0.0
    %7166 = vmatprep.subr.mxu0 0.0
    %7167 = vmatpush1.msra.mxu0 0.0
    %7168 = vmatprep.subr.mxu0 0.0
    %7169 = vmatpush1.msra.mxu0 0.0
    %7170 = vmatprep.subr.mxu0 0.0
    %7171 = vmatpush1.msra.mxu0 0.0
    %7172 = vmatprep.subr.mxu0 0.0
    %7173 = vmatpush1.msra.mxu0 0.0
    %7174 = vmatprep.subr.mxu0 0.0
    %7175 = vmatpush1.msra.mxu0 0.0
    %7176 = vmatprep.subr.mxu0 0.0
    %7177 = vmatpush1.msra.mxu0 0.0
    %7178 = vmatprep.subr.mxu0 0.0
    %7179 = vmatpush1.msra.mxu0 0.0
    %7180 = vmatprep.subr.mxu0 0.0
    %7181 = vmatpush1.msra.mxu0 0.0
    %7182 = vmatprep.subr.mxu0 0.0
    %7183 = vmatpush1.msra.mxu0 0.0
    %7184 = vmatprep.subr.mxu0 0.0
    %7185 = vmatpush1.msra.mxu0 0.0
    %7186 = vmatprep.subr.mxu0 0.0
    %7187 = vmatpush1.msra.mxu0 0.0
    %7188 = vmatprep.subr.mxu0 0.0
    %7189 = vmatpush1.msra.mxu0 0.0
    %7190 = vmatprep.subr.mxu0 0.0
    %7191 = vmatpush1.msra.mxu0 0.0
    %7192 = vmatprep.subr.mxu0 0.0
    %7193 = vmatpush1.msra.mxu0 0.0
    %7194 = vmatprep.subr.mxu0 0.0
    %7195 = vmatpush1.msra.mxu0 0.0
    %7196 = vmatprep.subr.mxu0 0.0
    %7197 = vmatpush1.msra.mxu0 0.0
    %7198 = vmatprep.subr.mxu0 0.0
    %7199 = vmatpush1.msra.mxu0 0.0
    %7200 = vmatprep.subr.mxu0 0.0
    %7201 = vmatpush1.msra.mxu0 0.0
    %7202 = vmatprep.subr.mxu0 0.0
    %7203 = vmatpush1.msra.mxu0 0.0
    %7204 = vmatprep.subr.mxu0 0.0
    %7205 = vmatpush1.msra.mxu0 0.0
    %7206 = vmatprep.subr.mxu0 0.0
    %7207 = vmatpush1.msra.mxu0 0.0
    %7208 = vmatprep.subr.mxu0 0.0
    %7209 = vmatpush1.msra.mxu0 0.0
    %7210 = vmatprep.subr.mxu0 0.0
    %7211 = vmatpush1.msra.mxu0 0.0
    %7212 = vmatprep.mubr.f32.mxu0 0.0
    %7213 = vmatmul.mubr.f32.gmra.mrb[0].mxu0 %v7052
    %v7214 = vpop.f32.mrb[0].mxu0
    %v7215 = vadd.f32 %v7130, %v7214
    %v7216 = vpop.f32.mrb[0].mxu0
    %7217 = vmatprep.mubr.f32.mxu0 0.0
    %7218 = vmatmul.mubr.f32.gmra.mrb[0].mxu0 %v7055
    %v7219 = vpop.f32.mrb[0].mxu0
    %v7220 = vadd.f32 %v7135, %v7219
    %v7221 = vpop.f32.mrb[0].mxu0
    %7222 = vmatprep.mubr.f32.mxu0 0.0
    %7223 = vmatmul.mubr.f32.gmra.mrb[0].mxu0 %v7058
    %v7224 = vpop.f32.mrb[0].mxu0
    %v7225 = vadd.f32 %v7140, %v7224
    %v7226 = vpop.f32.mrb[0].mxu0
    %7227 = vmatprep.mubr.f32.mxu0 0.0
    %7228 = vmatmul.mubr.f32.gmra.mrb[0].mxu0 %v7061
    %v7229 = vpop.f32.mrb[0].mxu0
    %v7230 = vadd.f32 %v7145, %v7229
    %v7231 = vpop.f32.mrb[0].mxu0
    %7232 = vdwg.mxu0
    %v7233 = vmax.f32 %v7215, 0.0
    %v7234 = vmax.f32 %v7220, 0.0
    %v7235 = vmax.f32 %v7225, 0.0
    %v7236 = vmax.f32 %v7230, 0.0
    %v7238 = vlaneseq
    %v7239 = vshrl.u32 %v7238, 7
    %v7240 = vsub.s32 0, %v7239
    %v7241 = vrot.slane %v767, %v7240
    %v7244 = vsel %vm768, %v7233, 0
    %v7247 = vsel %vm768, %v7234, 0
    %v7250 = vsel %vm768, %v7235, 0
    %v7253 = vsel %vm768, %v7236, 0
    %7255 = vmatprep.subr.mxu0 0.0
    %7256 = vmatpush1.msra.mxu0 %v763
    %7257 = vmatprep.subr.mxu0 0.0
    %7258 = vmatpush1.msra.mxu0 %v764
    %7259 = vmatprep.subr.mxu0 0.0
    %7260 = vmatpush1.msra.mxu0 %v765
    %7261 = vmatprep.subr.mxu0 0.0
    %7262 = vmatpush1.msra.mxu0 %v766
    %7263 = vmatprep.subr.mxu0 0.0
    %7264 = vmatpush1.msra.mxu0 0.0
    %7265 = vmatprep.subr.mxu0 0.0
    %7266 = vmatpush1.msra.mxu0 0.0
    %7267 = vmatprep.subr.mxu0 0.0
    %7268 = vmatpush1.msra.mxu0 0.0
    %7269 = vmatprep.subr.mxu0 0.0
    %7270 = vmatpush1.msra.mxu0 0.0
    %7271 = vmatprep.subr.mxu0 0.0
    %7272 = vmatpush1.msra.mxu0 0.0
    %7273 = vmatprep.subr.mxu0 0.0
    %7274 = vmatpush1.msra.mxu0 0.0
    %7275 = vmatprep.subr.mxu0 0.0
    %7276 = vmatpush1.msra.mxu0 0.0
    %7277 = vmatprep.subr.mxu0 0.0
    %7278 = vmatpush1.msra.mxu0 0.0
    %7279 = vmatprep.subr.mxu0 0.0
    %7280 = vmatpush1.msra.mxu0 0.0
    %7281 = vmatprep.subr.mxu0 0.0
    %7282 = vmatpush1.msra.mxu0 0.0
    %7283 = vmatprep.subr.mxu0 0.0
    %7284 = vmatpush1.msra.mxu0 0.0
    %7285 = vmatprep.subr.mxu0 0.0
    %7286 = vmatpush1.msra.mxu0 0.0
    %7287 = vmatprep.subr.mxu0 0.0
    %7288 = vmatpush1.msra.mxu0 0.0
    %7289 = vmatprep.subr.mxu0 0.0
    %7290 = vmatpush1.msra.mxu0 0.0
    %7291 = vmatprep.subr.mxu0 0.0
    %7292 = vmatpush1.msra.mxu0 0.0
    %7293 = vmatprep.subr.mxu0 0.0
    %7294 = vmatpush1.msra.mxu0 0.0
    %7295 = vmatprep.subr.mxu0 0.0
    %7296 = vmatpush1.msra.mxu0 0.0
    %7297 = vmatprep.subr.mxu0 0.0
    %7298 = vmatpush1.msra.mxu0 0.0
    %7299 = vmatprep.subr.mxu0 0.0
    %7300 = vmatpush1.msra.mxu0 0.0
    %7301 = vmatprep.subr.mxu0 0.0
    %7302 = vmatpush1.msra.mxu0 0.0
    %7303 = vmatprep.subr.mxu0 0.0
    %7304 = vmatpush1.msra.mxu0 0.0
    %7305 = vmatprep.subr.mxu0 0.0
    %7306 = vmatpush1.msra.mxu0 0.0
    %7307 = vmatprep.subr.mxu0 0.0
    %7308 = vmatpush1.msra.mxu0 0.0
    %7309 = vmatprep.subr.mxu0 0.0
    %7310 = vmatpush1.msra.mxu0 0.0
    %7311 = vmatprep.subr.mxu0 0.0
    %7312 = vmatpush1.msra.mxu0 0.0
    %7313 = vmatprep.subr.mxu0 0.0
    %7314 = vmatpush1.msra.mxu0 0.0
    %7315 = vmatprep.subr.mxu0 0.0
    %7316 = vmatpush1.msra.mxu0 0.0
    %7317 = vmatprep.subr.mxu0 0.0
    %7318 = vmatpush1.msra.mxu0 0.0
    %7319 = vmatprep.mubr.f32.mxu0 0.0
    %7320 = vmatmul.mubr.f32.gmra.mrb[0].mxu0 %v7244
    %v7321 = vpop.f32.mrb[0].mxu0
    %v7322 = vadd.f32 %v7241, %v7321
    %v7323 = vpop.f32.mrb[0].mxu0
    %7324 = vmatprep.mubr.f32.mxu0 0.0
    %7325 = vmatmul.mubr.f32.gmra.mrb[0].mxu0 %v7247
    %v7326 = vpop.f32.mrb[0].mxu0
    %v7327 = vadd.f32 %v7241, %v7326
    %v7328 = vpop.f32.mrb[0].mxu0
    %7329 = vmatprep.mubr.f32.mxu0 0.0
    %7330 = vmatmul.mubr.f32.gmra.mrb[0].mxu0 %v7250
    %v7331 = vpop.f32.mrb[0].mxu0
    %v7332 = vadd.f32 %v7241, %v7331
    %v7333 = vpop.f32.mrb[0].mxu0
    %7334 = vmatprep.mubr.f32.mxu0 0.0
    %7335 = vmatmul.mubr.f32.gmra.mrb[0].mxu0 %v7253
    %v7336 = vpop.f32.mrb[0].mxu0
    %v7337 = vadd.f32 %v7241, %v7336
    %v7338 = vpop.f32.mrb[0].mxu0
    %7339 = vdwg.mxu0
    %vm7340 = vcmask 7168
    %7341 = vst.msk [vmem:[%s113] sm:$0xff] %vm7340, %v7322
    %7342 = vst.msk [vmem:[%s113 + $0x8] sm:$0xff] %vm7340, %v7327
    %7343 = vst.msk [vmem:[%s113 + $0x10] sm:$0xff] %vm7340, %v7332
    %7344 = vst.msk [vmem:[%s113 + $0x18] sm:$0xff] %vm7340, %v7337
    // Predicated region
    $region238: #{outer_simplicial_forward.1} parent=1 // pred_check
      _
    $region239: #{outer_simplicial_forward.1} parent=1 // pred_check_branch
      %7346 = sbr.rel (0) target = $region241
    $region240: #{outer_simplicial_forward.1} parent=1 // pred_region
      _
    $region241: #{outer_simplicial_forward.1} parent=1 // pred_fallthru
      _
    // Predicated region
    $region242: #{outer_simplicial_forward.1} parent=1 // pred_check
      _
    $region243: #{outer_simplicial_forward.1} parent=1 // pred_check_branch
      %7348 = sbr.rel (0) target = $region245
    $region244: #{outer_simplicial_forward.1} parent=1 // pred_region
      _
    $region245: #{outer_simplicial_forward.1} parent=1 // pred_fallthru
      _
    %7349 = vsyncpa [#allocation4], 1
    %7350 = vsyncpa [#allocation6], 1

</llo_original>
